<compile_context>
chip_gen: v5e
topology: v5e:2x2
jax: 0.10.0
libtpu: 0.0.40
codegen_flags: <defaults>
</compile_context>

<pallas_src>
import functools

import jax
import jax.numpy as jnp
from jax.experimental import pallas as pl
from jax.experimental.pallas import tpu as pltpu

MXU_DTYPE = jnp.bfloat16          # MXU operand dtype (accumulation stays f32)
VMEM_LIMIT = 32 * 1024 * 1024     # explicit scoped-VMEM limit, safe on v5e/v6e/v7x


def _round_up(x, m):
    return ((x + m - 1) // m) * m


# ----------------------------------------------------------------------------
# Kernel 1: tiled matmul (+ bias + ReLUs) — used for 1x1 convolutions
# ----------------------------------------------------------------------------
def _mm_kernel(x_ref, w_ref, b_ref, o_ref, *, relu_in, relu_out):
    x = x_ref[...]                                        # (TN, Cin) f32
    if relu_in:
        x = jnp.maximum(x, 0.0)
    acc = jnp.dot(x.astype(MXU_DTYPE), w_ref[...].astype(MXU_DTYPE),
                  preferred_element_type=jnp.float32)     # (TN, Cout) f32
    acc = acc + b_ref[...]
    if relu_out:
        acc = jnp.maximum(acc, 0.0)
    o_ref[...] = acc.astype(o_ref.dtype)


def conv1x1(x, w, b=None, *, relu_in=False, relu_out=False):
    """x: (B,H,W,Cin) NHWC.  w: PyTorch layout (Cout, Cin, 1, 1)."""
    B, H, W, Cin = x.shape
    Cout = w.shape[0]
    wm = jnp.transpose(w.reshape(Cout, Cin), (1, 0)).astype(jnp.float32)  # (Cin,Cout)
    bias = (jnp.zeros((1, Cout), jnp.float32) if b is None
            else b.reshape(1, Cout).astype(jnp.float32))

    N = B * H * W
    tn = min(1024, _round_up(N, 128))       # lane/sublane aligned row tile
    n_pad = _round_up(N, tn)
    x2 = x.reshape(N, Cin)
    if n_pad != N:
        x2 = jnp.pad(x2, ((0, n_pad - N), (0, 0)))

    kernel = functools.partial(_mm_kernel, relu_in=relu_in, relu_out=relu_out)
    flops = 2 * n_pad * Cin * Cout
    bytes_accessed = 4 * (n_pad * Cin + Cin * Cout + Cout + n_pad * Cout)
    y = pl.pallas_call(
        kernel,
        out_shape=jax.ShapeDtypeStruct((n_pad, Cout), jnp.float32),
        grid=(n_pad // tn,),
        in_specs=[
            pl.BlockSpec((tn, Cin), lambda i: (i, 0)),
            pl.BlockSpec((Cin, Cout), lambda i: (0, 0)),    # resident weights
            pl.BlockSpec((1, Cout), lambda i: (0, 0)),
        ],
        out_specs=pl.BlockSpec((tn, Cout), lambda i: (i, 0)),
        compiler_params=pltpu.CompilerParams(
            dimension_semantics=("parallel",),
            vmem_limit_bytes=VMEM_LIMIT),
        cost_estimate=pl.CostEstimate(flops=flops, transcendentals=0,
                                      bytes_accessed=bytes_accessed),
    )(x2, wm, bias)
    return y[:N].reshape(B, H, W, Cout)


# ----------------------------------------------------------------------------
# Kernel 2: 3x3 SAME conv, one output row per grid step (no im2col in HBM)
# ----------------------------------------------------------------------------
def _conv3x3_row_kernel(x0_ref, x1_ref, x2_ref, w_ref, b_ref, o_ref, *, relu_out):
    b, _, wp2, cin = x0_ref.shape            # (B, 1, W+2, Cin)
    wimg = wp2 - 2
    cout = o_ref.shape[-1]
    slabs = (x0_ref[...].reshape(b, wp2, cin),
             x1_ref[...].reshape(b, wp2, cin),
             x2_ref[...].reshape(b, wp2, cin))
    acc = jnp.zeros((b * wimg, cout), jnp.float32)
    for dy in range(3):                      # static unroll over kernel rows
        slab = slabs[dy]
        for dx in range(3):                  # static unroll over kernel cols
            xt = slab[:, dx:dx + wimg, :].reshape(b * wimg, cin)
            wt = w_ref[dy * 3 + dx]          # (Cin, Cout)
            acc = acc + jnp.dot(xt.astype(MXU_DTYPE), wt.astype(MXU_DTYPE),
                                preferred_element_type=jnp.float32)
    acc = acc + b_ref[...]
    if relu_out:
        acc = jnp.maximum(acc, 0.0)
    o_ref[...] = acc.reshape(o_ref.shape).astype(o_ref.dtype)


def conv3x3(x, w, b=None, *, relu_out=False):
    """x: (B,H,W,Cin) NHWC.  w: PyTorch layout (Cout, Cin, 3, 3).  SAME padding."""
    B, H, W, Cin = x.shape
    Cout = w.shape[0]
    w_taps = jnp.transpose(w, (2, 3, 1, 0)).reshape(9, Cin, Cout).astype(jnp.float32)
    bias = (jnp.zeros((1, Cout), jnp.float32) if b is None
            else b.reshape(1, Cout).astype(jnp.float32))
    xp = jnp.pad(x, ((0, 0), (1, 1), (1, 1), (0, 0)))        # (B, H+2, W+2, Cin)

    def tap_spec(dy):
        # Same padded array, three H-offset windows -> no im2col materialization.
        return pl.BlockSpec((B, 1, W + 2, Cin),
                            lambda y, dy=dy: (0, y + dy, 0, 0))

    kernel = functools.partial(_conv3x3_row_kernel, relu_out=relu_out)
    flops = 2 * B * H * W * 9 * Cin * Cout
    bytes_accessed = 4 * (3 * B * (H + 2) * (W + 2) * Cin
                          + 9 * Cin * Cout + Cout + B * H * W * Cout)
    return pl.pallas_call(
        kernel,
        out_shape=jax.ShapeDtypeStruct((B, H, W, Cout), jnp.float32),
        grid=(H,),
        in_specs=[
            tap_spec(0), tap_spec(1), tap_spec(2),
            pl.BlockSpec((9, Cin, Cout), lambda y: (0, 0, 0)),   # resident weights
            pl.BlockSpec((1, Cout), lambda y: (0, 0)),
        ],
        out_specs=pl.BlockSpec((B, 1, W, Cout), lambda y: (0, y, 0, 0)),
        compiler_params=pltpu.CompilerParams(
            dimension_semantics=("parallel",),
            vmem_limit_bytes=VMEM_LIMIT),
        cost_estimate=pl.CostEstimate(flops=flops, transcendentals=0,
                                      bytes_accessed=bytes_accessed),
    )(xp, xp, xp, w_taps, bias)


# ----------------------------------------------------------------------------
# Model: Dense block + IReDNet_IndRNN forward
# ----------------------------------------------------------------------------
def dense_block(x, dense_params):
    # Dense_Block(n_layers=6, in_channels=32, growthrate=32, bn_size=4)
    feats = [x]
    for (w1, w2) in dense_params:
        cat = jnp.concatenate(feats, axis=-1)                      # 32 + 32*i ch
        # Dense_Layer: relu(cat) -> conv1x1(no bias) -> relu -> conv3x3(no bias)
        h1 = conv1x1(cat, w1, None, relu_in=True, relu_out=True)   # -> 128 ch
        out = conv3x3(h1, w2, None)                                # -> 32 ch
        feats.append(out)
    return jnp.concatenate(feats, axis=-1)                         # 224 ch


def irednet_indrnn_forward(input_nchw, params, *, iteration=6):
    inp = jnp.transpose(input_nchw, (0, 2, 3, 1)).astype(jnp.float32)   # NHWC
    B, H, W, _ = inp.shape
    x = inp
    h = jnp.zeros((B, H, W, 32), jnp.float32)
    x_list = []
    for i in range(iteration):
        combined = jnp.concatenate([inp, x], axis=-1)                   # 6 ch
        combined = conv3x3(combined, params["conv0_w"], params["conv0_b"],
                           relu_out=True)                               # 32 ch
        combined = jnp.concatenate([combined, h], axis=-1)              # 64 ch
        rw, rb = params["rec"][i]                        # per-iteration weights
        h = conv3x3(combined, rw, rb, relu_out=True)                    # 32 ch
        x = h
        x = dense_block(x, params["dense"])                             # 224 ch
        x = conv3x3(x, params["conv_w"], params["conv_b"])              # 3 ch
        x_list.append(jnp.transpose(x, (0, 3, 1, 2)))                   # NCHW
    return jnp.transpose(x, (0, 3, 1, 2)), x_list                       # NCHW


# ----------------------------------------------------------------------------
# Deterministic parameter init (PyTorch weight layout: (Cout, Cin, kH, kW))
# ----------------------------------------------------------------------------
def init_params(key, *, iteration=6, n_dense_layers=6, growthrate=32, bn_size=4):
    def conv_w(k, cout, cin, ksz):
        fan_in = cin * ksz * ksz
        return jax.random.normal(k, (cout, cin, ksz, ksz), jnp.float32) / jnp.sqrt(
            jnp.float32(fan_in))

    def conv_b(k, cout):
        return 0.01 * jax.random.normal(k, (cout,), jnp.float32)

    keys = iter(jax.random.split(key, 128))
    p = {}
    p["conv0_w"] = conv_w(next(keys), 32, 6, 3)
    p["conv0_b"] = conv_b(next(keys), 32)
    p["rec"] = [(conv_w(next(keys), 32, 64, 3), conv_b(next(keys), 32))
                for _ in range(iteration)]
    p["dense"] = []
    for i in range(n_dense_layers):
        cin = 32 + i * growthrate
        w1 = conv_w(next(keys), bn_size * growthrate, cin, 1)          # 1x1, no bias
        w2 = conv_w(next(keys), growthrate, bn_size * growthrate, 3)   # 3x3, no bias
        p["dense"].append((w1, w2))
    p["conv_w"] = conv_w(next(keys), 3, 32 + n_dense_layers * growthrate, 3)
    p["conv_b"] = conv_b(next(keys), 3)
    return p


if __name__ == "__main__":
    key = jax.random.PRNGKey(0)
    pkey, xkey = jax.random.split(key)

    # recurrent_iter kept small (2) for a quick demo; per-step semantics identical.
    ITER = 2
    params = init_params(pkey, iteration=ITER)

    # NCHW input, as the PyTorch module expects: (B=2, C=3, H=16, W=16)
    x = jax.random.normal(xkey, (2, 3, 16, 16), jnp.float32)

    fwd = jax.jit(functools.partial(irednet_indrnn_forward, iteration=ITER))
    out, out_list = fwd(x, params)
    jax.block_until_ready(out)
    jax.block_until_ready(out_list)

    assert out.shape == (2, 3, 16, 16)
    assert len(out_list) == ITER and out_list[0].shape == (2, 3, 16, 16)
    print("KERNEL_OK")
</pallas_src>

<mosaic_0001>
module attributes {stable_mosaic.version = 11 : i64} {
  func.func @_conv3x3_row_kernel(%arg0: i32, %arg1: memref<2x1x18x6xf32, #tpu.memory_space<vmem>>, %arg2: memref<2x1x18x6xf32, #tpu.memory_space<vmem>>, %arg3: memref<2x1x18x6xf32, #tpu.memory_space<vmem>>, %arg4: memref<9x6x32xf32, #tpu.memory_space<vmem>>, %arg5: memref<1x32xf32, #tpu.memory_space<vmem>>, %arg6: memref<2x1x16x32xf32, #tpu.memory_space<vmem>>) attributes {dimension_semantics = [#tpu.dimension_semantics<parallel>], iteration_bounds = array<i64: 16>, scalar_prefetch = 0 : i64, scratch_operands = 0 : i64, tpu.core_type = #tpu.core_type<tc>, window_params = [{transform_indices = @transform_0, window_bounds = array<i64: 2, 1, 18, 6>}, {transform_indices = @transform_1, window_bounds = array<i64: 2, 1, 18, 6>}, {transform_indices = @transform_2, window_bounds = array<i64: 2, 1, 18, 6>}, {pipeline_mode = #tpu.pipeline_mode<synchronous>, transform_indices = @transform_3, window_bounds = array<i64: 9, 6, 32>}, {pipeline_mode = #tpu.pipeline_mode<synchronous>, transform_indices = @transform_4, window_bounds = array<i64: 1, 32>}, {transform_indices = @transform_5, window_bounds = array<i64: 2, 1, 16, 32>}]} {
    %c0 = arith.constant 0 : index
    %c0_0 = arith.constant 0 : index
    %c0_1 = arith.constant 0 : index
    %c0_2 = arith.constant 0 : index
    %0 = vector.load %arg1[%c0, %c0_0, %c0_1, %c0_2] : memref<2x1x18x6xf32, #tpu.memory_space<vmem>>, vector<2x1x18x6xf32>
    %1 = vector.shape_cast %0 : vector<2x1x18x6xf32> to vector<2x18x6xf32>
    %c0_3 = arith.constant 0 : index
    %c0_4 = arith.constant 0 : index
    %c0_5 = arith.constant 0 : index
    %c0_6 = arith.constant 0 : index
    %2 = vector.load %arg2[%c0_3, %c0_4, %c0_5, %c0_6] : memref<2x1x18x6xf32, #tpu.memory_space<vmem>>, vector<2x1x18x6xf32>
    %3 = vector.shape_cast %2 : vector<2x1x18x6xf32> to vector<2x18x6xf32>
    %c0_7 = arith.constant 0 : index
    %c0_8 = arith.constant 0 : index
    %c0_9 = arith.constant 0 : index
    %c0_10 = arith.constant 0 : index
    %4 = vector.load %arg3[%c0_7, %c0_8, %c0_9, %c0_10] : memref<2x1x18x6xf32, #tpu.memory_space<vmem>>, vector<2x1x18x6xf32>
    %5 = vector.shape_cast %4 : vector<2x1x18x6xf32> to vector<2x18x6xf32>
    %cst = arith.constant 0.000000e+00 : f32
    %6 = vector.broadcast %cst : f32 to vector<32x32xf32>
    %7 = vector.extract_strided_slice %1 {offsets = [0, 0, 0], sizes = [2, 16, 6], strides = [1, 1, 1]} : vector<2x18x6xf32> to vector<2x16x6xf32>
    %8 = vector.shape_cast %7 : vector<2x16x6xf32> to vector<32x6xf32>
    %c0_11 = arith.constant 0 : index
    %c0_12 = arith.constant 0 : index
    %c0_13 = arith.constant 0 : index
    %9 = vector.load %arg4[%c0_11, %c0_12, %c0_13] : memref<9x6x32xf32, #tpu.memory_space<vmem>>, vector<1x6x32xf32>
    %10 = vector.shape_cast %9 : vector<1x6x32xf32> to vector<6x32xf32>
    %11 = arith.truncf %8 : vector<32x6xf32> to vector<32x6xbf16>
    %12 = arith.truncf %10 : vector<6x32xf32> to vector<6x32xbf16>
    %cst_14 = arith.constant dense<0.000000e+00> : vector<32x32xf32>
    %13 = tpu.matmul %11, %12, %cst_14 {dimension_numbers = #tpu.dot_dimension_numbers<[1], [0], [0], [1], [0, 0, 1, 1], [], []>} : vector<32x6xbf16>, vector<6x32xbf16>, vector<32x32xf32> -> vector<32x32xf32>
    %14 = arith.addf %6, %13 : vector<32x32xf32>
    %15 = vector.extract_strided_slice %1 {offsets = [0, 1, 0], sizes = [2, 16, 6], strides = [1, 1, 1]} : vector<2x18x6xf32> to vector<2x16x6xf32>
    %16 = vector.shape_cast %15 : vector<2x16x6xf32> to vector<32x6xf32>
    %c1 = arith.constant 1 : index
    %c0_15 = arith.constant 0 : index
    %c0_16 = arith.constant 0 : index
    %17 = vector.load %arg4[%c1, %c0_15, %c0_16] : memref<9x6x32xf32, #tpu.memory_space<vmem>>, vector<1x6x32xf32>
    %18 = vector.shape_cast %17 : vector<1x6x32xf32> to vector<6x32xf32>
    %19 = arith.truncf %16 : vector<32x6xf32> to vector<32x6xbf16>
    %20 = arith.truncf %18 : vector<6x32xf32> to vector<6x32xbf16>
    %cst_17 = arith.constant dense<0.000000e+00> : vector<32x32xf32>
    %21 = tpu.matmul %19, %20, %cst_17 {dimension_numbers = #tpu.dot_dimension_numbers<[1], [0], [0], [1], [0, 0, 1, 1], [], []>} : vector<32x6xbf16>, vector<6x32xbf16>, vector<32x32xf32> -> vector<32x32xf32>
    %22 = arith.addf %14, %21 : vector<32x32xf32>
    %23 = vector.extract_strided_slice %1 {offsets = [0, 2, 0], sizes = [2, 16, 6], strides = [1, 1, 1]} : vector<2x18x6xf32> to vector<2x16x6xf32>
    %24 = vector.shape_cast %23 : vector<2x16x6xf32> to vector<32x6xf32>
    %c2 = arith.constant 2 : index
    %c0_18 = arith.constant 0 : index
    %c0_19 = arith.constant 0 : index
    %25 = vector.load %arg4[%c2, %c0_18, %c0_19] : memref<9x6x32xf32, #tpu.memory_space<vmem>>, vector<1x6x32xf32>
    %26 = vector.shape_cast %25 : vector<1x6x32xf32> to vector<6x32xf32>
    %27 = arith.truncf %24 : vector<32x6xf32> to vector<32x6xbf16>
    %28 = arith.truncf %26 : vector<6x32xf32> to vector<6x32xbf16>
    %cst_20 = arith.constant dense<0.000000e+00> : vector<32x32xf32>
    %29 = tpu.matmul %27, %28, %cst_20 {dimension_numbers = #tpu.dot_dimension_numbers<[1], [0], [0], [1], [0, 0, 1, 1], [], []>} : vector<32x6xbf16>, vector<6x32xbf16>, vector<32x32xf32> -> vector<32x32xf32>
    %30 = arith.addf %22, %29 : vector<32x32xf32>
    %31 = vector.extract_strided_slice %3 {offsets = [0, 0, 0], sizes = [2, 16, 6], strides = [1, 1, 1]} : vector<2x18x6xf32> to vector<2x16x6xf32>
    %32 = vector.shape_cast %31 : vector<2x16x6xf32> to vector<32x6xf32>
    %c3 = arith.constant 3 : index
    %c0_21 = arith.constant 0 : index
    %c0_22 = arith.constant 0 : index
    %33 = vector.load %arg4[%c3, %c0_21, %c0_22] : memref<9x6x32xf32, #tpu.memory_space<vmem>>, vector<1x6x32xf32>
    %34 = vector.shape_cast %33 : vector<1x6x32xf32> to vector<6x32xf32>
    %35 = arith.truncf %32 : vector<32x6xf32> to vector<32x6xbf16>
    %36 = arith.truncf %34 : vector<6x32xf32> to vector<6x32xbf16>
    %cst_23 = arith.constant dense<0.000000e+00> : vector<32x32xf32>
    %37 = tpu.matmul %35, %36, %cst_23 {dimension_numbers = #tpu.dot_dimension_numbers<[1], [0], [0], [1], [0, 0, 1, 1], [], []>} : vector<32x6xbf16>, vector<6x32xbf16>, vector<32x32xf32> -> vector<32x32xf32>
    %38 = arith.addf %30, %37 : vector<32x32xf32>
    %39 = vector.extract_strided_slice %3 {offsets = [0, 1, 0], sizes = [2, 16, 6], strides = [1, 1, 1]} : vector<2x18x6xf32> to vector<2x16x6xf32>
    %40 = vector.shape_cast %39 : vector<2x16x6xf32> to vector<32x6xf32>
    %c4 = arith.constant 4 : index
    %c0_24 = arith.constant 0 : index
    %c0_25 = arith.constant 0 : index
    %41 = vector.load %arg4[%c4, %c0_24, %c0_25] : memref<9x6x32xf32, #tpu.memory_space<vmem>>, vector<1x6x32xf32>
    %42 = vector.shape_cast %41 : vector<1x6x32xf32> to vector<6x32xf32>
    %43 = arith.truncf %40 : vector<32x6xf32> to vector<32x6xbf16>
    %44 = arith.truncf %42 : vector<6x32xf32> to vector<6x32xbf16>
    %cst_26 = arith.constant dense<0.000000e+00> : vector<32x32xf32>
    %45 = tpu.matmul %43, %44, %cst_26 {dimension_numbers = #tpu.dot_dimension_numbers<[1], [0], [0], [1], [0, 0, 1, 1], [], []>} : vector<32x6xbf16>, vector<6x32xbf16>, vector<32x32xf32> -> vector<32x32xf32>
    %46 = arith.addf %38, %45 : vector<32x32xf32>
    %47 = vector.extract_strided_slice %3 {offsets = [0, 2, 0], sizes = [2, 16, 6], strides = [1, 1, 1]} : vector<2x18x6xf32> to vector<2x16x6xf32>
    %48 = vector.shape_cast %47 : vector<2x16x6xf32> to vector<32x6xf32>
    %c5 = arith.constant 5 : index
    %c0_27 = arith.constant 0 : index
    %c0_28 = arith.constant 0 : index
    %49 = vector.load %arg4[%c5, %c0_27, %c0_28] : memref<9x6x32xf32, #tpu.memory_space<vmem>>, vector<1x6x32xf32>
    %50 = vector.shape_cast %49 : vector<1x6x32xf32> to vector<6x32xf32>
    %51 = arith.truncf %48 : vector<32x6xf32> to vector<32x6xbf16>
    %52 = arith.truncf %50 : vector<6x32xf32> to vector<6x32xbf16>
    %cst_29 = arith.constant dense<0.000000e+00> : vector<32x32xf32>
    %53 = tpu.matmul %51, %52, %cst_29 {dimension_numbers = #tpu.dot_dimension_numbers<[1], [0], [0], [1], [0, 0, 1, 1], [], []>} : vector<32x6xbf16>, vector<6x32xbf16>, vector<32x32xf32> -> vector<32x32xf32>
    %54 = arith.addf %46, %53 : vector<32x32xf32>
    %55 = vector.extract_strided_slice %5 {offsets = [0, 0, 0], sizes = [2, 16, 6], strides = [1, 1, 1]} : vector<2x18x6xf32> to vector<2x16x6xf32>
    %56 = vector.shape_cast %55 : vector<2x16x6xf32> to vector<32x6xf32>
    %c6 = arith.constant 6 : index
    %c0_30 = arith.constant 0 : index
    %c0_31 = arith.constant 0 : index
    %57 = vector.load %arg4[%c6, %c0_30, %c0_31] : memref<9x6x32xf32, #tpu.memory_space<vmem>>, vector<1x6x32xf32>
    %58 = vector.shape_cast %57 : vector<1x6x32xf32> to vector<6x32xf32>
    %59 = arith.truncf %56 : vector<32x6xf32> to vector<32x6xbf16>
    %60 = arith.truncf %58 : vector<6x32xf32> to vector<6x32xbf16>
    %cst_32 = arith.constant dense<0.000000e+00> : vector<32x32xf32>
    %61 = tpu.matmul %59, %60, %cst_32 {dimension_numbers = #tpu.dot_dimension_numbers<[1], [0], [0], [1], [0, 0, 1, 1], [], []>} : vector<32x6xbf16>, vector<6x32xbf16>, vector<32x32xf32> -> vector<32x32xf32>
    %62 = arith.addf %54, %61 : vector<32x32xf32>
    %63 = vector.extract_strided_slice %5 {offsets = [0, 1, 0], sizes = [2, 16, 6], strides = [1, 1, 1]} : vector<2x18x6xf32> to vector<2x16x6xf32>
    %64 = vector.shape_cast %63 : vector<2x16x6xf32> to vector<32x6xf32>
    %c7 = arith.constant 7 : index
    %c0_33 = arith.constant 0 : index
    %c0_34 = arith.constant 0 : index
    %65 = vector.load %arg4[%c7, %c0_33, %c0_34] : memref<9x6x32xf32, #tpu.memory_space<vmem>>, vector<1x6x32xf32>
    %66 = vector.shape_cast %65 : vector<1x6x32xf32> to vector<6x32xf32>
    %67 = arith.truncf %64 : vector<32x6xf32> to vector<32x6xbf16>
    %68 = arith.truncf %66 : vector<6x32xf32> to vector<6x32xbf16>
    %cst_35 = arith.constant dense<0.000000e+00> : vector<32x32xf32>
    %69 = tpu.matmul %67, %68, %cst_35 {dimension_numbers = #tpu.dot_dimension_numbers<[1], [0], [0], [1], [0, 0, 1, 1], [], []>} : vector<32x6xbf16>, vector<6x32xbf16>, vector<32x32xf32> -> vector<32x32xf32>
    %70 = arith.addf %62, %69 : vector<32x32xf32>
    %71 = vector.extract_strided_slice %5 {offsets = [0, 2, 0], sizes = [2, 16, 6], strides = [1, 1, 1]} : vector<2x18x6xf32> to vector<2x16x6xf32>
    %72 = vector.shape_cast %71 : vector<2x16x6xf32> to vector<32x6xf32>
    %c8 = arith.constant 8 : index
    %c0_36 = arith.constant 0 : index
    %c0_37 = arith.constant 0 : index
    %73 = vector.load %arg4[%c8, %c0_36, %c0_37] : memref<9x6x32xf32, #tpu.memory_space<vmem>>, vector<1x6x32xf32>
    %74 = vector.shape_cast %73 : vector<1x6x32xf32> to vector<6x32xf32>
    %75 = arith.truncf %72 : vector<32x6xf32> to vector<32x6xbf16>
    %76 = arith.truncf %74 : vector<6x32xf32> to vector<6x32xbf16>
    %cst_38 = arith.constant dense<0.000000e+00> : vector<32x32xf32>
    %77 = tpu.matmul %75, %76, %cst_38 {dimension_numbers = #tpu.dot_dimension_numbers<[1], [0], [0], [1], [0, 0, 1, 1], [], []>} : vector<32x6xbf16>, vector<6x32xbf16>, vector<32x32xf32> -> vector<32x32xf32>
    %78 = arith.addf %70, %77 : vector<32x32xf32>
    %c0_39 = arith.constant 0 : index
    %c0_40 = arith.constant 0 : index
    %79 = vector.load %arg5[%c0_39, %c0_40] : memref<1x32xf32, #tpu.memory_space<vmem>>, vector<1x32xf32>
    %80 = vector.broadcast %79 : vector<1x32xf32> to vector<32x32xf32>
    %81 = arith.addf %78, %80 : vector<32x32xf32>
    %cst_41 = arith.constant 0.000000e+00 : f32
    %82 = vector.broadcast %cst_41 : f32 to vector<32x32xf32>
    %83 = arith.maximumf %81, %82 : vector<32x32xf32>
    %84 = vector.shape_cast %83 : vector<32x32xf32> to vector<2x1x16x32xf32>
    %c0_42 = arith.constant 0 : index
    %c0_43 = arith.constant 0 : index
    %c0_44 = arith.constant 0 : index
    %c0_45 = arith.constant 0 : index
    %85 = vector.load %arg6[%c0_42, %c0_43, %c0_44, %c0_45] : memref<2x1x16x32xf32, #tpu.memory_space<vmem>>, vector<2x1x16x32xf32>
    tpu.vector_store %arg6[%c0_42, %c0_43, %c0_44, %c0_45], %84 {strides = array<i32>} : memref<2x1x16x32xf32, #tpu.memory_space<vmem>>, vector<2x1x16x32xf32>,
    return
  }
  func.func @transform_0(%arg0: i32) -> (i32, i32, i32, i32) {
    %c0_i32 = arith.constant 0 : i32
    %0 = arith.addi %arg0, %c0_i32 : i32
    %c0_i32_0 = arith.constant 0 : i32
    %c0_i32_1 = arith.constant 0 : i32
    %c0_i32_2 = arith.constant 0 : i32
    %c0_i32_3 = arith.constant 0 : i32
    return %c0_i32_0, %0, %c0_i32_1, %c0_i32_2 : i32, i32, i32, i32
  }
  func.func @transform_1(%arg0: i32) -> (i32, i32, i32, i32) {
    %c1_i32 = arith.constant 1 : i32
    %0 = arith.addi %arg0, %c1_i32 : i32
    %c0_i32 = arith.constant 0 : i32
    %c0_i32_0 = arith.constant 0 : i32
    %c0_i32_1 = arith.constant 0 : i32
    %c0_i32_2 = arith.constant 0 : i32
    return %c0_i32, %0, %c0_i32_0, %c0_i32_1 : i32, i32, i32, i32
  }
  func.func @transform_2(%arg0: i32) -> (i32, i32, i32, i32) {
    %c2_i32 = arith.constant 2 : i32
    %0 = arith.addi %arg0, %c2_i32 : i32
    %c0_i32 = arith.constant 0 : i32
    %c0_i32_0 = arith.constant 0 : i32
    %c0_i32_1 = arith.constant 0 : i32
    %c0_i32_2 = arith.constant 0 : i32
    return %c0_i32, %0, %c0_i32_0, %c0_i32_1 : i32, i32, i32, i32
  }
  func.func @transform_3(%arg0: i32) -> (i32, i32, i32) {
    %c0_i32 = arith.constant 0 : i32
    %c0_i32_0 = arith.constant 0 : i32
    %c0_i32_1 = arith.constant 0 : i32
    %c0_i32_2 = arith.constant 0 : i32
    return %c0_i32, %c0_i32_0, %c0_i32_1 : i32, i32, i32
  }
  func.func @transform_4(%arg0: i32) -> (i32, i32) {
    %c0_i32 = arith.constant 0 : i32
    %c0_i32_0 = arith.constant 0 : i32
    %c0_i32_1 = arith.constant 0 : i32
    return %c0_i32, %c0_i32_0 : i32, i32
  }
  func.func @transform_5(%arg0: i32) -> (i32, i32, i32, i32) {
    %c0_i32 = arith.constant 0 : i32
    %c0_i32_0 = arith.constant 0 : i32
    %c0_i32_1 = arith.constant 0 : i32
    %c0_i32_2 = arith.constant 0 : i32
    return %c0_i32, %arg0, %c0_i32_0, %c0_i32_1 : i32, i32, i32, i32
  }
}

module attributes {stable_mosaic.version = 11 : i64} {
  func.func @_conv3x3_row_kernel(%arg0: i32, %arg1: memref<2x1x18x64xf32, #tpu.memory_space<vmem>>, %arg2: memref<2x1x18x64xf32, #tpu.memory_space<vmem>>, %arg3: memref<2x1x18x64xf32, #tpu.memory_space<vmem>>, %arg4: memref<9x64x32xf32, #tpu.memory_space<vmem>>, %arg5: memref<1x32xf32, #tpu.memory_space<vmem>>, %arg6: memref<2x1x16x32xf32, #tpu.memory_space<vmem>>) attributes {dimension_semantics = [#tpu.dimension_semantics<parallel>], iteration_bounds = array<i64: 16>, scalar_prefetch = 0 : i64, scratch_operands = 0 : i64, tpu.core_type = #tpu.core_type<tc>, window_params = [{transform_indices = @transform_0, window_bounds = array<i64: 2, 1, 18, 64>}, {transform_indices = @transform_1, window_bounds = array<i64: 2, 1, 18, 64>}, {transform_indices = @transform_2, window_bounds = array<i64: 2, 1, 18, 64>}, {pipeline_mode = #tpu.pipeline_mode<synchronous>, transform_indices = @transform_3, window_bounds = array<i64: 9, 64, 32>}, {pipeline_mode = #tpu.pipeline_mode<synchronous>, transform_indices = @transform_4, window_bounds = array<i64: 1, 32>}, {transform_indices = @transform_5, window_bounds = array<i64: 2, 1, 16, 32>}]} {
    %c0 = arith.constant 0 : index
    %c0_0 = arith.constant 0 : index
    %c0_1 = arith.constant 0 : index
    %c0_2 = arith.constant 0 : index
    %0 = vector.load %arg1[%c0, %c0_0, %c0_1, %c0_2] : memref<2x1x18x64xf32, #tpu.memory_space<vmem>>, vector<2x1x18x64xf32>
    %1 = vector.shape_cast %0 : vector<2x1x18x64xf32> to vector<2x18x64xf32>
    %c0_3 = arith.constant 0 : index
    %c0_4 = arith.constant 0 : index
    %c0_5 = arith.constant 0 : index
    %c0_6 = arith.constant 0 : index
    %2 = vector.load %arg2[%c0_3, %c0_4, %c0_5, %c0_6] : memref<2x1x18x64xf32, #tpu.memory_space<vmem>>, vector<2x1x18x64xf32>
    %3 = vector.shape_cast %2 : vector<2x1x18x64xf32> to vector<2x18x64xf32>
    %c0_7 = arith.constant 0 : index
    %c0_8 = arith.constant 0 : index
    %c0_9 = arith.constant 0 : index
    %c0_10 = arith.constant 0 : index
    %4 = vector.load %arg3[%c0_7, %c0_8, %c0_9, %c0_10] : memref<2x1x18x64xf32, #tpu.memory_space<vmem>>, vector<2x1x18x64xf32>
    %5 = vector.shape_cast %4 : vector<2x1x18x64xf32> to vector<2x18x64xf32>
    %cst = arith.constant 0.000000e+00 : f32
    %6 = vector.broadcast %cst : f32 to vector<32x32xf32>
    %7 = vector.extract_strided_slice %1 {offsets = [0, 0, 0], sizes = [2, 16, 64], strides = [1, 1, 1]} : vector<2x18x64xf32> to vector<2x16x64xf32>
    %8 = vector.shape_cast %7 : vector<2x16x64xf32> to vector<32x64xf32>
    %c0_11 = arith.constant 0 : index
    %c0_12 = arith.constant 0 : index
    %c0_13 = arith.constant 0 : index
    %9 = vector.load %arg4[%c0_11, %c0_12, %c0_13] : memref<9x64x32xf32, #tpu.memory_space<vmem>>, vector<1x64x32xf32>
    %10 = vector.shape_cast %9 : vector<1x64x32xf32> to vector<64x32xf32>
    %11 = arith.truncf %8 : vector<32x64xf32> to vector<32x64xbf16>
    %12 = arith.truncf %10 : vector<64x32xf32> to vector<64x32xbf16>
    %cst_14 = arith.constant dense<0.000000e+00> : vector<32x32xf32>
    %13 = tpu.matmul %11, %12, %cst_14 {dimension_numbers = #tpu.dot_dimension_numbers<[1], [0], [0], [1], [0, 0, 1, 1], [], []>} : vector<32x64xbf16>, vector<64x32xbf16>, vector<32x32xf32> -> vector<32x32xf32>
    %14 = arith.addf %6, %13 : vector<32x32xf32>
    %15 = vector.extract_strided_slice %1 {offsets = [0, 1, 0], sizes = [2, 16, 64], strides = [1, 1, 1]} : vector<2x18x64xf32> to vector<2x16x64xf32>
    %16 = vector.shape_cast %15 : vector<2x16x64xf32> to vector<32x64xf32>
    %c1 = arith.constant 1 : index
    %c0_15 = arith.constant 0 : index
    %c0_16 = arith.constant 0 : index
    %17 = vector.load %arg4[%c1, %c0_15, %c0_16] : memref<9x64x32xf32, #tpu.memory_space<vmem>>, vector<1x64x32xf32>
    %18 = vector.shape_cast %17 : vector<1x64x32xf32> to vector<64x32xf32>
    %19 = arith.truncf %16 : vector<32x64xf32> to vector<32x64xbf16>
    %20 = arith.truncf %18 : vector<64x32xf32> to vector<64x32xbf16>
    %cst_17 = arith.constant dense<0.000000e+00> : vector<32x32xf32>
    %21 = tpu.matmul %19, %20, %cst_17 {dimension_numbers = #tpu.dot_dimension_numbers<[1], [0], [0], [1], [0, 0, 1, 1], [], []>} : vector<32x64xbf16>, vector<64x32xbf16>, vector<32x32xf32> -> vector<32x32xf32>
    %22 = arith.addf %14, %21 : vector<32x32xf32>
    %23 = vector.extract_strided_slice %1 {offsets = [0, 2, 0], sizes = [2, 16, 64], strides = [1, 1, 1]} : vector<2x18x64xf32> to vector<2x16x64xf32>
    %24 = vector.shape_cast %23 : vector<2x16x64xf32> to vector<32x64xf32>
    %c2 = arith.constant 2 : index
    %c0_18 = arith.constant 0 : index
    %c0_19 = arith.constant 0 : index
    %25 = vector.load %arg4[%c2, %c0_18, %c0_19] : memref<9x64x32xf32, #tpu.memory_space<vmem>>, vector<1x64x32xf32>
    %26 = vector.shape_cast %25 : vector<1x64x32xf32> to vector<64x32xf32>
    %27 = arith.truncf %24 : vector<32x64xf32> to vector<32x64xbf16>
    %28 = arith.truncf %26 : vector<64x32xf32> to vector<64x32xbf16>
    %cst_20 = arith.constant dense<0.000000e+00> : vector<32x32xf32>
    %29 = tpu.matmul %27, %28, %cst_20 {dimension_numbers = #tpu.dot_dimension_numbers<[1], [0], [0], [1], [0, 0, 1, 1], [], []>} : vector<32x64xbf16>, vector<64x32xbf16>, vector<32x32xf32> -> vector<32x32xf32>
    %30 = arith.addf %22, %29 : vector<32x32xf32>
    %31 = vector.extract_strided_slice %3 {offsets = [0, 0, 0], sizes = [2, 16, 64], strides = [1, 1, 1]} : vector<2x18x64xf32> to vector<2x16x64xf32>
    %32 = vector.shape_cast %31 : vector<2x16x64xf32> to vector<32x64xf32>
    %c3 = arith.constant 3 : index
    %c0_21 = arith.constant 0 : index
    %c0_22 = arith.constant 0 : index
    %33 = vector.load %arg4[%c3, %c0_21, %c0_22] : memref<9x64x32xf32, #tpu.memory_space<vmem>>, vector<1x64x32xf32>
    %34 = vector.shape_cast %33 : vector<1x64x32xf32> to vector<64x32xf32>
    %35 = arith.truncf %32 : vector<32x64xf32> to vector<32x64xbf16>
    %36 = arith.truncf %34 : vector<64x32xf32> to vector<64x32xbf16>
    %cst_23 = arith.constant dense<0.000000e+00> : vector<32x32xf32>
    %37 = tpu.matmul %35, %36, %cst_23 {dimension_numbers = #tpu.dot_dimension_numbers<[1], [0], [0], [1], [0, 0, 1, 1], [], []>} : vector<32x64xbf16>, vector<64x32xbf16>, vector<32x32xf32> -> vector<32x32xf32>
    %38 = arith.addf %30, %37 : vector<32x32xf32>
    %39 = vector.extract_strided_slice %3 {offsets = [0, 1, 0], sizes = [2, 16, 64], strides = [1, 1, 1]} : vector<2x18x64xf32> to vector<2x16x64xf32>
    %40 = vector.shape_cast %39 : vector<2x16x64xf32> to vector<32x64xf32>
    %c4 = arith.constant 4 : index
    %c0_24 = arith.constant 0 : index
    %c0_25 = arith.constant 0 : index
    %41 = vector.load %arg4[%c4, %c0_24, %c0_25] : memref<9x64x32xf32, #tpu.memory_space<vmem>>, vector<1x64x32xf32>
    %42 = vector.shape_cast %41 : vector<1x64x32xf32> to vector<64x32xf32>
    %43 = arith.truncf %40 : vector<32x64xf32> to vector<32x64xbf16>
    %44 = arith.truncf %42 : vector<64x32xf32> to vector<64x32xbf16>
    %cst_26 = arith.constant dense<0.000000e+00> : vector<32x32xf32>
    %45 = tpu.matmul %43, %44, %cst_26 {dimension_numbers = #tpu.dot_dimension_numbers<[1], [0], [0], [1], [0, 0, 1, 1], [], []>} : vector<32x64xbf16>, vector<64x32xbf16>, vector<32x32xf32> -> vector<32x32xf32>
    %46 = arith.addf %38, %45 : vector<32x32xf32>
    %47 = vector.extract_strided_slice %3 {offsets = [0, 2, 0], sizes = [2, 16, 64], strides = [1, 1, 1]} : vector<2x18x64xf32> to vector<2x16x64xf32>
    %48 = vector.shape_cast %47 : vector<2x16x64xf32> to vector<32x64xf32>
    %c5 = arith.constant 5 : index
    %c0_27 = arith.constant 0 : index
    %c0_28 = arith.constant 0 : index
    %49 = vector.load %arg4[%c5, %c0_27, %c0_28] : memref<9x64x32xf32, #tpu.memory_space<vmem>>, vector<1x64x32xf32>
    %50 = vector.shape_cast %49 : vector<1x64x32xf32> to vector<64x32xf32>
    %51 = arith.truncf %48 : vector<32x64xf32> to vector<32x64xbf16>
    %52 = arith.truncf %50 : vector<64x32xf32> to vector<64x32xbf16>
    %cst_29 = arith.constant dense<0.000000e+00> : vector<32x32xf32>
    %53 = tpu.matmul %51, %52, %cst_29 {dimension_numbers = #tpu.dot_dimension_numbers<[1], [0], [0], [1], [0, 0, 1, 1], [], []>} : vector<32x64xbf16>, vector<64x32xbf16>, vector<32x32xf32> -> vector<32x32xf32>
    %54 = arith.addf %46, %53 : vector<32x32xf32>
    %55 = vector.extract_strided_slice %5 {offsets = [0, 0, 0], sizes = [2, 16, 64], strides = [1, 1, 1]} : vector<2x18x64xf32> to vector<2x16x64xf32>
    %56 = vector.shape_cast %55 : vector<2x16x64xf32> to vector<32x64xf32>
    %c6 = arith.constant 6 : index
    %c0_30 = arith.constant 0 : index
    %c0_31 = arith.constant 0 : index
    %57 = vector.load %arg4[%c6, %c0_30, %c0_31] : memref<9x64x32xf32, #tpu.memory_space<vmem>>, vector<1x64x32xf32>
    %58 = vector.shape_cast %57 : vector<1x64x32xf32> to vector<64x32xf32>
    %59 = arith.truncf %56 : vector<32x64xf32> to vector<32x64xbf16>
    %60 = arith.truncf %58 : vector<64x32xf32> to vector<64x32xbf16>
    %cst_32 = arith.constant dense<0.000000e+00> : vector<32x32xf32>
    %61 = tpu.matmul %59, %60, %cst_32 {dimension_numbers = #tpu.dot_dimension_numbers<[1], [0], [0], [1], [0, 0, 1, 1], [], []>} : vector<32x64xbf16>, vector<64x32xbf16>, vector<32x32xf32> -> vector<32x32xf32>
    %62 = arith.addf %54, %61 : vector<32x32xf32>
    %63 = vector.extract_strided_slice %5 {offsets = [0, 1, 0], sizes = [2, 16, 64], strides = [1, 1, 1]} : vector<2x18x64xf32> to vector<2x16x64xf32>
    %64 = vector.shape_cast %63 : vector<2x16x64xf32> to vector<32x64xf32>
    %c7 = arith.constant 7 : index
    %c0_33 = arith.constant 0 : index
    %c0_34 = arith.constant 0 : index
    %65 = vector.load %arg4[%c7, %c0_33, %c0_34] : memref<9x64x32xf32, #tpu.memory_space<vmem>>, vector<1x64x32xf32>
    %66 = vector.shape_cast %65 : vector<1x64x32xf32> to vector<64x32xf32>
    %67 = arith.truncf %64 : vector<32x64xf32> to vector<32x64xbf16>
    %68 = arith.truncf %66 : vector<64x32xf32> to vector<64x32xbf16>
    %cst_35 = arith.constant dense<0.000000e+00> : vector<32x32xf32>
    %69 = tpu.matmul %67, %68, %cst_35 {dimension_numbers = #tpu.dot_dimension_numbers<[1], [0], [0], [1], [0, 0, 1, 1], [], []>} : vector<32x64xbf16>, vector<64x32xbf16>, vector<32x32xf32> -> vector<32x32xf32>
    %70 = arith.addf %62, %69 : vector<32x32xf32>
    %71 = vector.extract_strided_slice %5 {offsets = [0, 2, 0], sizes = [2, 16, 64], strides = [1, 1, 1]} : vector<2x18x64xf32> to vector<2x16x64xf32>
    %72 = vector.shape_cast %71 : vector<2x16x64xf32> to vector<32x64xf32>
    %c8 = arith.constant 8 : index
    %c0_36 = arith.constant 0 : index
    %c0_37 = arith.constant 0 : index
    %73 = vector.load %arg4[%c8, %c0_36, %c0_37] : memref<9x64x32xf32, #tpu.memory_space<vmem>>, vector<1x64x32xf32>
    %74 = vector.shape_cast %73 : vector<1x64x32xf32> to vector<64x32xf32>
    %75 = arith.truncf %72 : vector<32x64xf32> to vector<32x64xbf16>
    %76 = arith.truncf %74 : vector<64x32xf32> to vector<64x32xbf16>
    %cst_38 = arith.constant dense<0.000000e+00> : vector<32x32xf32>
    %77 = tpu.matmul %75, %76, %cst_38 {dimension_numbers = #tpu.dot_dimension_numbers<[1], [0], [0], [1], [0, 0, 1, 1], [], []>} : vector<32x64xbf16>, vector<64x32xbf16>, vector<32x32xf32> -> vector<32x32xf32>
    %78 = arith.addf %70, %77 : vector<32x32xf32>
    %c0_39 = arith.constant 0 : index
    %c0_40 = arith.constant 0 : index
    %79 = vector.load %arg5[%c0_39, %c0_40] : memref<1x32xf32, #tpu.memory_space<vmem>>, vector<1x32xf32>
    %80 = vector.broadcast %79 : vector<1x32xf32> to vector<32x32xf32>
    %81 = arith.addf %78, %80 : vector<32x32xf32>
    %cst_41 = arith.constant 0.000000e+00 : f32
    %82 = vector.broadcast %cst_41 : f32 to vector<32x32xf32>
    %83 = arith.maximumf %81, %82 : vector<32x32xf32>
    %84 = vector.shape_cast %83 : vector<32x32xf32> to vector<2x1x16x32xf32>
    %c0_42 = arith.constant 0 : index
    %c0_43 = arith.constant 0 : index
    %c0_44 = arith.constant 0 : index
    %c0_45 = arith.constant 0 : index
    %85 = vector.load %arg6[%c0_42, %c0_43, %c0_44, %c0_45] : memref<2x1x16x32xf32, #tpu.memory_space<vmem>>, vector<2x1x16x32xf32>
    tpu.vector_store %arg6[%c0_42, %c0_43, %c0_44, %c0_45], %84 {strides = array<i32>} : memref<2x1x16x32xf32, #tpu.memory_space<vmem>>, vector<2x1x16x32xf32>,
    return
  }
  func.func @transform_0(%arg0: i32) -> (i32, i32, i32, i32) {
    %c0_i32 = arith.constant 0 : i32
    %0 = arith.addi %arg0, %c0_i32 : i32
    %c0_i32_0 = arith.constant 0 : i32
    %c0_i32_1 = arith.constant 0 : i32
    %c0_i32_2 = arith.constant 0 : i32
    %c0_i32_3 = arith.constant 0 : i32
    return %c0_i32_0, %0, %c0_i32_1, %c0_i32_2 : i32, i32, i32, i32
  }
  func.func @transform_1(%arg0: i32) -> (i32, i32, i32, i32) {
    %c1_i32 = arith.constant 1 : i32
    %0 = arith.addi %arg0, %c1_i32 : i32
    %c0_i32 = arith.constant 0 : i32
    %c0_i32_0 = arith.constant 0 : i32
    %c0_i32_1 = arith.constant 0 : i32
    %c0_i32_2 = arith.constant 0 : i32
    return %c0_i32, %0, %c0_i32_0, %c0_i32_1 : i32, i32, i32, i32
  }
  func.func @transform_2(%arg0: i32) -> (i32, i32, i32, i32) {
    %c2_i32 = arith.constant 2 : i32
    %0 = arith.addi %arg0, %c2_i32 : i32
    %c0_i32 = arith.constant 0 : i32
    %c0_i32_0 = arith.constant 0 : i32
    %c0_i32_1 = arith.constant 0 : i32
    %c0_i32_2 = arith.constant 0 : i32
    return %c0_i32, %0, %c0_i32_0, %c0_i32_1 : i32, i32, i32, i32
  }
  func.func @transform_3(%arg0: i32) -> (i32, i32, i32) {
    %c0_i32 = arith.constant 0 : i32
    %c0_i32_0 = arith.constant 0 : i32
    %c0_i32_1 = arith.constant 0 : i32
    %c0_i32_2 = arith.constant 0 : i32
    return %c0_i32, %c0_i32_0, %c0_i32_1 : i32, i32, i32
  }
  func.func @transform_4(%arg0: i32) -> (i32, i32) {
    %c0_i32 = arith.constant 0 : i32
    %c0_i32_0 = arith.constant 0 : i32
    %c0_i32_1 = arith.constant 0 : i32
    return %c0_i32, %c0_i32_0 : i32, i32
  }
  func.func @transform_5(%arg0: i32) -> (i32, i32, i32, i32) {
    %c0_i32 = arith.constant 0 : i32
    %c0_i32_0 = arith.constant 0 : i32
    %c0_i32_1 = arith.constant 0 : i32
    %c0_i32_2 = arith.constant 0 : i32
    return %c0_i32, %arg0, %c0_i32_0, %c0_i32_1 : i32, i32, i32, i32
  }
}

module attributes {stable_mosaic.version = 11 : i64} {
  func.func @_mm_kernel(%arg0: i32, %arg1: memref<512x32xf32, #tpu.memory_space<vmem>>, %arg2: memref<32x128xf32, #tpu.memory_space<vmem>>, %arg3: memref<1x128xf32, #tpu.memory_space<vmem>>, %arg4: memref<512x128xf32, #tpu.memory_space<vmem>>) attributes {dimension_semantics = [#tpu.dimension_semantics<parallel>], iteration_bounds = array<i64: 1>, scalar_prefetch = 0 : i64, scratch_operands = 0 : i64, tpu.core_type = #tpu.core_type<tc>, window_params = [{transform_indices = @transform_0, window_bounds = array<i64: 512, 32>}, {pipeline_mode = #tpu.pipeline_mode<synchronous>, transform_indices = @transform_1, window_bounds = array<i64: 32, 128>}, {pipeline_mode = #tpu.pipeline_mode<synchronous>, transform_indices = @transform_2, window_bounds = array<i64: 1, 128>}, {transform_indices = @transform_3, window_bounds = array<i64: 512, 128>}]} {
    %c0 = arith.constant 0 : index
    %c0_0 = arith.constant 0 : index
    %0 = vector.load %arg1[%c0, %c0_0] : memref<512x32xf32, #tpu.memory_space<vmem>>, vector<512x32xf32>
    %cst = arith.constant 0.000000e+00 : f32
    %1 = vector.broadcast %cst : f32 to vector<512x32xf32>
    %2 = arith.maximumf %0, %1 : vector<512x32xf32>
    %3 = arith.truncf %2 : vector<512x32xf32> to vector<512x32xbf16>
    %c0_1 = arith.constant 0 : index
    %c0_2 = arith.constant 0 : index
    %4 = vector.load %arg2[%c0_1, %c0_2] : memref<32x128xf32, #tpu.memory_space<vmem>>, vector<32x128xf32>
    %5 = arith.truncf %4 : vector<32x128xf32> to vector<32x128xbf16>
    %cst_3 = arith.constant dense<0.000000e+00> : vector<512x128xf32>
    %6 = tpu.matmul %3, %5, %cst_3 {dimension_numbers = #tpu.dot_dimension_numbers<[1], [0], [0], [1], [0, 0, 1, 1], [], []>} : vector<512x32xbf16>, vector<32x128xbf16>, vector<512x128xf32> -> vector<512x128xf32>
    %c0_4 = arith.constant 0 : index
    %c0_5 = arith.constant 0 : index
    %7 = vector.load %arg3[%c0_4, %c0_5] : memref<1x128xf32, #tpu.memory_space<vmem>>, vector<1x128xf32>
    %8 = vector.broadcast %7 : vector<1x128xf32> to vector<512x128xf32>
    %9 = arith.addf %6, %8 : vector<512x128xf32>
    %cst_6 = arith.constant 0.000000e+00 : f32
    %10 = vector.broadcast %cst_6 : f32 to vector<512x128xf32>
    %11 = arith.maximumf %9, %10 : vector<512x128xf32>
    %c0_7 = arith.constant 0 : index
    %c0_8 = arith.constant 0 : index
    %12 = vector.load %arg4[%c0_7, %c0_8] : memref<512x128xf32, #tpu.memory_space<vmem>>, vector<512x128xf32>
    tpu.vector_store %arg4[%c0_7, %c0_8], %11 {strides = array<i32>} : memref<512x128xf32, #tpu.memory_space<vmem>>, vector<512x128xf32>,
    return
  }
  func.func @transform_0(%arg0: i32) -> (i32, i32) {
    %c0_i32 = arith.constant 0 : i32
    %c0_i32_0 = arith.constant 0 : i32
    return %arg0, %c0_i32 : i32, i32
  }
  func.func @transform_1(%arg0: i32) -> (i32, i32) {
    %c0_i32 = arith.constant 0 : i32
    %c0_i32_0 = arith.constant 0 : i32
    %c0_i32_1 = arith.constant 0 : i32
    return %c0_i32, %c0_i32_0 : i32, i32
  }
  func.func @transform_2(%arg0: i32) -> (i32, i32) {
    %c0_i32 = arith.constant 0 : i32
    %c0_i32_0 = arith.constant 0 : i32
    %c0_i32_1 = arith.constant 0 : i32
    return %c0_i32, %c0_i32_0 : i32, i32
  }
  func.func @transform_3(%arg0: i32) -> (i32, i32) {
    %c0_i32 = arith.constant 0 : i32
    %c0_i32_0 = arith.constant 0 : i32
    return %arg0, %c0_i32 : i32, i32
  }
}

module attributes {stable_mosaic.version = 11 : i64} {
  func.func @_conv3x3_row_kernel(%arg0: i32, %arg1: memref<2x1x18x128xf32, #tpu.memory_space<vmem>>, %arg2: memref<2x1x18x128xf32, #tpu.memory_space<vmem>>, %arg3: memref<2x1x18x128xf32, #tpu.memory_space<vmem>>, %arg4: memref<9x128x32xf32, #tpu.memory_space<vmem>>, %arg5: memref<1x32xf32, #tpu.memory_space<vmem>>, %arg6: memref<2x1x16x32xf32, #tpu.memory_space<vmem>>) attributes {dimension_semantics = [#tpu.dimension_semantics<parallel>], iteration_bounds = array<i64: 16>, scalar_prefetch = 0 : i64, scratch_operands = 0 : i64, tpu.core_type = #tpu.core_type<tc>, window_params = [{transform_indices = @transform_0, window_bounds = array<i64: 2, 1, 18, 128>}, {transform_indices = @transform_1, window_bounds = array<i64: 2, 1, 18, 128>}, {transform_indices = @transform_2, window_bounds = array<i64: 2, 1, 18, 128>}, {pipeline_mode = #tpu.pipeline_mode<synchronous>, transform_indices = @transform_3, window_bounds = array<i64: 9, 128, 32>}, {pipeline_mode = #tpu.pipeline_mode<synchronous>, transform_indices = @transform_4, window_bounds = array<i64: 1, 32>}, {transform_indices = @transform_5, window_bounds = array<i64: 2, 1, 16, 32>}]} {
    %c0 = arith.constant 0 : index
    %c0_0 = arith.constant 0 : index
    %c0_1 = arith.constant 0 : index
    %c0_2 = arith.constant 0 : index
    %0 = vector.load %arg1[%c0, %c0_0, %c0_1, %c0_2] : memref<2x1x18x128xf32, #tpu.memory_space<vmem>>, vector<2x1x18x128xf32>
    %1 = vector.shape_cast %0 : vector<2x1x18x128xf32> to vector<2x18x128xf32>
    %c0_3 = arith.constant 0 : index
    %c0_4 = arith.constant 0 : index
    %c0_5 = arith.constant 0 : index
    %c0_6 = arith.constant 0 : index
    %2 = vector.load %arg2[%c0_3, %c0_4, %c0_5, %c0_6] : memref<2x1x18x128xf32, #tpu.memory_space<vmem>>, vector<2x1x18x128xf32>
    %3 = vector.shape_cast %2 : vector<2x1x18x128xf32> to vector<2x18x128xf32>
    %c0_7 = arith.constant 0 : index
    %c0_8 = arith.constant 0 : index
    %c0_9 = arith.constant 0 : index
    %c0_10 = arith.constant 0 : index
    %4 = vector.load %arg3[%c0_7, %c0_8, %c0_9, %c0_10] : memref<2x1x18x128xf32, #tpu.memory_space<vmem>>, vector<2x1x18x128xf32>
    %5 = vector.shape_cast %4 : vector<2x1x18x128xf32> to vector<2x18x128xf32>
    %cst = arith.constant 0.000000e+00 : f32
    %6 = vector.broadcast %cst : f32 to vector<32x32xf32>
    %7 = vector.extract_strided_slice %1 {offsets = [0, 0, 0], sizes = [2, 16, 128], strides = [1, 1, 1]} : vector<2x18x128xf32> to vector<2x16x128xf32>
    %8 = vector.shape_cast %7 : vector<2x16x128xf32> to vector<32x128xf32>
    %c0_11 = arith.constant 0 : index
    %c0_12 = arith.constant 0 : index
    %c0_13 = arith.constant 0 : index
    %9 = vector.load %arg4[%c0_11, %c0_12, %c0_13] : memref<9x128x32xf32, #tpu.memory_space<vmem>>, vector<1x128x32xf32>
    %10 = vector.shape_cast %9 : vector<1x128x32xf32> to vector<128x32xf32>
    %11 = arith.truncf %8 : vector<32x128xf32> to vector<32x128xbf16>
    %12 = arith.truncf %10 : vector<128x32xf32> to vector<128x32xbf16>
    %cst_14 = arith.constant dense<0.000000e+00> : vector<32x32xf32>
    %13 = tpu.matmul %11, %12, %cst_14 {dimension_numbers = #tpu.dot_dimension_numbers<[1], [0], [0], [1], [0, 0, 1, 1], [], []>} : vector<32x128xbf16>, vector<128x32xbf16>, vector<32x32xf32> -> vector<32x32xf32>
    %14 = arith.addf %6, %13 : vector<32x32xf32>
    %15 = vector.extract_strided_slice %1 {offsets = [0, 1, 0], sizes = [2, 16, 128], strides = [1, 1, 1]} : vector<2x18x128xf32> to vector<2x16x128xf32>
    %16 = vector.shape_cast %15 : vector<2x16x128xf32> to vector<32x128xf32>
    %c1 = arith.constant 1 : index
    %c0_15 = arith.constant 0 : index
    %c0_16 = arith.constant 0 : index
    %17 = vector.load %arg4[%c1, %c0_15, %c0_16] : memref<9x128x32xf32, #tpu.memory_space<vmem>>, vector<1x128x32xf32>
    %18 = vector.shape_cast %17 : vector<1x128x32xf32> to vector<128x32xf32>
    %19 = arith.truncf %16 : vector<32x128xf32> to vector<32x128xbf16>
    %20 = arith.truncf %18 : vector<128x32xf32> to vector<128x32xbf16>
    %cst_17 = arith.constant dense<0.000000e+00> : vector<32x32xf32>
    %21 = tpu.matmul %19, %20, %cst_17 {dimension_numbers = #tpu.dot_dimension_numbers<[1], [0], [0], [1], [0, 0, 1, 1], [], []>} : vector<32x128xbf16>, vector<128x32xbf16>, vector<32x32xf32> -> vector<32x32xf32>
    %22 = arith.addf %14, %21 : vector<32x32xf32>
    %23 = vector.extract_strided_slice %1 {offsets = [0, 2, 0], sizes = [2, 16, 128], strides = [1, 1, 1]} : vector<2x18x128xf32> to vector<2x16x128xf32>
    %24 = vector.shape_cast %23 : vector<2x16x128xf32> to vector<32x128xf32>
    %c2 = arith.constant 2 : index
    %c0_18 = arith.constant 0 : index
    %c0_19 = arith.constant 0 : index
    %25 = vector.load %arg4[%c2, %c0_18, %c0_19] : memref<9x128x32xf32, #tpu.memory_space<vmem>>, vector<1x128x32xf32>
    %26 = vector.shape_cast %25 : vector<1x128x32xf32> to vector<128x32xf32>
    %27 = arith.truncf %24 : vector<32x128xf32> to vector<32x128xbf16>
    %28 = arith.truncf %26 : vector<128x32xf32> to vector<128x32xbf16>
    %cst_20 = arith.constant dense<0.000000e+00> : vector<32x32xf32>
    %29 = tpu.matmul %27, %28, %cst_20 {dimension_numbers = #tpu.dot_dimension_numbers<[1], [0], [0], [1], [0, 0, 1, 1], [], []>} : vector<32x128xbf16>, vector<128x32xbf16>, vector<32x32xf32> -> vector<32x32xf32>
    %30 = arith.addf %22, %29 : vector<32x32xf32>
    %31 = vector.extract_strided_slice %3 {offsets = [0, 0, 0], sizes = [2, 16, 128], strides = [1, 1, 1]} : vector<2x18x128xf32> to vector<2x16x128xf32>
    %32 = vector.shape_cast %31 : vector<2x16x128xf32> to vector<32x128xf32>
    %c3 = arith.constant 3 : index
    %c0_21 = arith.constant 0 : index
    %c0_22 = arith.constant 0 : index
    %33 = vector.load %arg4[%c3, %c0_21, %c0_22] : memref<9x128x32xf32, #tpu.memory_space<vmem>>, vector<1x128x32xf32>
    %34 = vector.shape_cast %33 : vector<1x128x32xf32> to vector<128x32xf32>
    %35 = arith.truncf %32 : vector<32x128xf32> to vector<32x128xbf16>
    %36 = arith.truncf %34 : vector<128x32xf32> to vector<128x32xbf16>
    %cst_23 = arith.constant dense<0.000000e+00> : vector<32x32xf32>
    %37 = tpu.matmul %35, %36, %cst_23 {dimension_numbers = #tpu.dot_dimension_numbers<[1], [0], [0], [1], [0, 0, 1, 1], [], []>} : vector<32x128xbf16>, vector<128x32xbf16>, vector<32x32xf32> -> vector<32x32xf32>
    %38 = arith.addf %30, %37 : vector<32x32xf32>
    %39 = vector.extract_strided_slice %3 {offsets = [0, 1, 0], sizes = [2, 16, 128], strides = [1, 1, 1]} : vector<2x18x128xf32> to vector<2x16x128xf32>
    %40 = vector.shape_cast %39 : vector<2x16x128xf32> to vector<32x128xf32>
    %c4 = arith.constant 4 : index
    %c0_24 = arith.constant 0 : index
    %c0_25 = arith.constant 0 : index
    %41 = vector.load %arg4[%c4, %c0_24, %c0_25] : memref<9x128x32xf32, #tpu.memory_space<vmem>>, vector<1x128x32xf32>
    %42 = vector.shape_cast %41 : vector<1x128x32xf32> to vector<128x32xf32>
    %43 = arith.truncf %40 : vector<32x128xf32> to vector<32x128xbf16>
    %44 = arith.truncf %42 : vector<128x32xf32> to vector<128x32xbf16>
    %cst_26 = arith.constant dense<0.000000e+00> : vector<32x32xf32>
    %45 = tpu.matmul %43, %44, %cst_26 {dimension_numbers = #tpu.dot_dimension_numbers<[1], [0], [0], [1], [0, 0, 1, 1], [], []>} : vector<32x128xbf16>, vector<128x32xbf16>, vector<32x32xf32> -> vector<32x32xf32>
    %46 = arith.addf %38, %45 : vector<32x32xf32>
    %47 = vector.extract_strided_slice %3 {offsets = [0, 2, 0], sizes = [2, 16, 128], strides = [1, 1, 1]} : vector<2x18x128xf32> to vector<2x16x128xf32>
    %48 = vector.shape_cast %47 : vector<2x16x128xf32> to vector<32x128xf32>
    %c5 = arith.constant 5 : index
    %c0_27 = arith.constant 0 : index
    %c0_28 = arith.constant 0 : index
    %49 = vector.load %arg4[%c5, %c0_27, %c0_28] : memref<9x128x32xf32, #tpu.memory_space<vmem>>, vector<1x128x32xf32>
    %50 = vector.shape_cast %49 : vector<1x128x32xf32> to vector<128x32xf32>
    %51 = arith.truncf %48 : vector<32x128xf32> to vector<32x128xbf16>
    %52 = arith.truncf %50 : vector<128x32xf32> to vector<128x32xbf16>
    %cst_29 = arith.constant dense<0.000000e+00> : vector<32x32xf32>
    %53 = tpu.matmul %51, %52, %cst_29 {dimension_numbers = #tpu.dot_dimension_numbers<[1], [0], [0], [1], [0, 0, 1, 1], [], []>} : vector<32x128xbf16>, vector<128x32xbf16>, vector<32x32xf32> -> vector<32x32xf32>
    %54 = arith.addf %46, %53 : vector<32x32xf32>
    %55 = vector.extract_strided_slice %5 {offsets = [0, 0, 0], sizes = [2, 16, 128], strides = [1, 1, 1]} : vector<2x18x128xf32> to vector<2x16x128xf32>
    %56 = vector.shape_cast %55 : vector<2x16x128xf32> to vector<32x128xf32>
    %c6 = arith.constant 6 : index
    %c0_30 = arith.constant 0 : index
    %c0_31 = arith.constant 0 : index
    %57 = vector.load %arg4[%c6, %c0_30, %c0_31] : memref<9x128x32xf32, #tpu.memory_space<vmem>>, vector<1x128x32xf32>
    %58 = vector.shape_cast %57 : vector<1x128x32xf32> to vector<128x32xf32>
    %59 = arith.truncf %56 : vector<32x128xf32> to vector<32x128xbf16>
    %60 = arith.truncf %58 : vector<128x32xf32> to vector<128x32xbf16>
    %cst_32 = arith.constant dense<0.000000e+00> : vector<32x32xf32>
    %61 = tpu.matmul %59, %60, %cst_32 {dimension_numbers = #tpu.dot_dimension_numbers<[1], [0], [0], [1], [0, 0, 1, 1], [], []>} : vector<32x128xbf16>, vector<128x32xbf16>, vector<32x32xf32> -> vector<32x32xf32>
    %62 = arith.addf %54, %61 : vector<32x32xf32>
    %63 = vector.extract_strided_slice %5 {offsets = [0, 1, 0], sizes = [2, 16, 128], strides = [1, 1, 1]} : vector<2x18x128xf32> to vector<2x16x128xf32>
    %64 = vector.shape_cast %63 : vector<2x16x128xf32> to vector<32x128xf32>
    %c7 = arith.constant 7 : index
    %c0_33 = arith.constant 0 : index
    %c0_34 = arith.constant 0 : index
    %65 = vector.load %arg4[%c7, %c0_33, %c0_34] : memref<9x128x32xf32, #tpu.memory_space<vmem>>, vector<1x128x32xf32>
    %66 = vector.shape_cast %65 : vector<1x128x32xf32> to vector<128x32xf32>
    %67 = arith.truncf %64 : vector<32x128xf32> to vector<32x128xbf16>
    %68 = arith.truncf %66 : vector<128x32xf32> to vector<128x32xbf16>
    %cst_35 = arith.constant dense<0.000000e+00> : vector<32x32xf32>
    %69 = tpu.matmul %67, %68, %cst_35 {dimension_numbers = #tpu.dot_dimension_numbers<[1], [0], [0], [1], [0, 0, 1, 1], [], []>} : vector<32x128xbf16>, vector<128x32xbf16>, vector<32x32xf32> -> vector<32x32xf32>
    %70 = arith.addf %62, %69 : vector<32x32xf32>
    %71 = vector.extract_strided_slice %5 {offsets = [0, 2, 0], sizes = [2, 16, 128], strides = [1, 1, 1]} : vector<2x18x128xf32> to vector<2x16x128xf32>
    %72 = vector.shape_cast %71 : vector<2x16x128xf32> to vector<32x128xf32>
    %c8 = arith.constant 8 : index
    %c0_36 = arith.constant 0 : index
    %c0_37 = arith.constant 0 : index
    %73 = vector.load %arg4[%c8, %c0_36, %c0_37] : memref<9x128x32xf32, #tpu.memory_space<vmem>>, vector<1x128x32xf32>
    %74 = vector.shape_cast %73 : vector<1x128x32xf32> to vector<128x32xf32>
    %75 = arith.truncf %72 : vector<32x128xf32> to vector<32x128xbf16>
    %76 = arith.truncf %74 : vector<128x32xf32> to vector<128x32xbf16>
    %cst_38 = arith.constant dense<0.000000e+00> : vector<32x32xf32>
    %77 = tpu.matmul %75, %76, %cst_38 {dimension_numbers = #tpu.dot_dimension_numbers<[1], [0], [0], [1], [0, 0, 1, 1], [], []>} : vector<32x128xbf16>, vector<128x32xbf16>, vector<32x32xf32> -> vector<32x32xf32>
    %78 = arith.addf %70, %77 : vector<32x32xf32>
    %c0_39 = arith.constant 0 : index
    %c0_40 = arith.constant 0 : index
    %79 = vector.load %arg5[%c0_39, %c0_40] : memref<1x32xf32, #tpu.memory_space<vmem>>, vector<1x32xf32>
    %80 = vector.broadcast %79 : vector<1x32xf32> to vector<32x32xf32>
    %81 = arith.addf %78, %80 : vector<32x32xf32>
    %82 = vector.shape_cast %81 : vector<32x32xf32> to vector<2x1x16x32xf32>
    %c0_41 = arith.constant 0 : index
    %c0_42 = arith.constant 0 : index
    %c0_43 = arith.constant 0 : index
    %c0_44 = arith.constant 0 : index
    %83 = vector.load %arg6[%c0_41, %c0_42, %c0_43, %c0_44] : memref<2x1x16x32xf32, #tpu.memory_space<vmem>>, vector<2x1x16x32xf32>
    tpu.vector_store %arg6[%c0_41, %c0_42, %c0_43, %c0_44], %82 {strides = array<i32>} : memref<2x1x16x32xf32, #tpu.memory_space<vmem>>, vector<2x1x16x32xf32>,
    return
  }
  func.func @transform_0(%arg0: i32) -> (i32, i32, i32, i32) {
    %c0_i32 = arith.constant 0 : i32
    %0 = arith.addi %arg0, %c0_i32 : i32
    %c0_i32_0 = arith.constant 0 : i32
    %c0_i32_1 = arith.constant 0 : i32
    %c0_i32_2 = arith.constant 0 : i32
    %c0_i32_3 = arith.constant 0 : i32
    return %c0_i32_0, %0, %c0_i32_1, %c0_i32_2 : i32, i32, i32, i32
  }
  func.func @transform_1(%arg0: i32) -> (i32, i32, i32, i32) {
    %c1_i32 = arith.constant 1 : i32
    %0 = arith.addi %arg0, %c1_i32 : i32
    %c0_i32 = arith.constant 0 : i32
    %c0_i32_0 = arith.constant 0 : i32
    %c0_i32_1 = arith.constant 0 : i32
    %c0_i32_2 = arith.constant 0 : i32
    return %c0_i32, %0, %c0_i32_0, %c0_i32_1 : i32, i32, i32, i32
  }
  func.func @transform_2(%arg0: i32) -> (i32, i32, i32, i32) {
    %c2_i32 = arith.constant 2 : i32
    %0 = arith.addi %arg0, %c2_i32 : i32
    %c0_i32 = arith.constant 0 : i32
    %c0_i32_0 = arith.constant 0 : i32
    %c0_i32_1 = arith.constant 0 : i32
    %c0_i32_2 = arith.constant 0 : i32
    return %c0_i32, %0, %c0_i32_0, %c0_i32_1 : i32, i32, i32, i32
  }
  func.func @transform_3(%arg0: i32) -> (i32, i32, i32) {
    %c0_i32 = arith.constant 0 : i32
    %c0_i32_0 = arith.constant 0 : i32
    %c0_i32_1 = arith.constant 0 : i32
    %c0_i32_2 = arith.constant 0 : i32
    return %c0_i32, %c0_i32_0, %c0_i32_1 : i32, i32, i32
  }
  func.func @transform_4(%arg0: i32) -> (i32, i32) {
    %c0_i32 = arith.constant 0 : i32
    %c0_i32_0 = arith.constant 0 : i32
    %c0_i32_1 = arith.constant 0 : i32
    return %c0_i32, %c0_i32_0 : i32, i32
  }
  func.func @transform_5(%arg0: i32) -> (i32, i32, i32, i32) {
    %c0_i32 = arith.constant 0 : i32
    %c0_i32_0 = arith.constant 0 : i32
    %c0_i32_1 = arith.constant 0 : i32
    %c0_i32_2 = arith.constant 0 : i32
    return %c0_i32, %arg0, %c0_i32_0, %c0_i32_1 : i32, i32, i32, i32
  }
}

module attributes {stable_mosaic.version = 11 : i64} {
  func.func @_mm_kernel(%arg0: i32, %arg1: memref<512x64xf32, #tpu.memory_space<vmem>>, %arg2: memref<64x128xf32, #tpu.memory_space<vmem>>, %arg3: memref<1x128xf32, #tpu.memory_space<vmem>>, %arg4: memref<512x128xf32, #tpu.memory_space<vmem>>) attributes {dimension_semantics = [#tpu.dimension_semantics<parallel>], iteration_bounds = array<i64: 1>, scalar_prefetch = 0 : i64, scratch_operands = 0 : i64, tpu.core_type = #tpu.core_type<tc>, window_params = [{transform_indices = @transform_0, window_bounds = array<i64: 512, 64>}, {pipeline_mode = #tpu.pipeline_mode<synchronous>, transform_indices = @transform_1, window_bounds = array<i64: 64, 128>}, {pipeline_mode = #tpu.pipeline_mode<synchronous>, transform_indices = @transform_2, window_bounds = array<i64: 1, 128>}, {transform_indices = @transform_3, window_bounds = array<i64: 512, 128>}]} {
    %c0 = arith.constant 0 : index
    %c0_0 = arith.constant 0 : index
    %0 = vector.load %arg1[%c0, %c0_0] : memref<512x64xf32, #tpu.memory_space<vmem>>, vector<512x64xf32>
    %cst = arith.constant 0.000000e+00 : f32
    %1 = vector.broadcast %cst : f32 to vector<512x64xf32>
    %2 = arith.maximumf %0, %1 : vector<512x64xf32>
    %3 = arith.truncf %2 : vector<512x64xf32> to vector<512x64xbf16>
    %c0_1 = arith.constant 0 : index
    %c0_2 = arith.constant 0 : index
    %4 = vector.load %arg2[%c0_1, %c0_2] : memref<64x128xf32, #tpu.memory_space<vmem>>, vector<64x128xf32>
    %5 = arith.truncf %4 : vector<64x128xf32> to vector<64x128xbf16>
    %cst_3 = arith.constant dense<0.000000e+00> : vector<512x128xf32>
    %6 = tpu.matmul %3, %5, %cst_3 {dimension_numbers = #tpu.dot_dimension_numbers<[1], [0], [0], [1], [0, 0, 1, 1], [], []>} : vector<512x64xbf16>, vector<64x128xbf16>, vector<512x128xf32> -> vector<512x128xf32>
    %c0_4 = arith.constant 0 : index
    %c0_5 = arith.constant 0 : index
    %7 = vector.load %arg3[%c0_4, %c0_5] : memref<1x128xf32, #tpu.memory_space<vmem>>, vector<1x128xf32>
    %8 = vector.broadcast %7 : vector<1x128xf32> to vector<512x128xf32>
    %9 = arith.addf %6, %8 : vector<512x128xf32>
    %cst_6 = arith.constant 0.000000e+00 : f32
    %10 = vector.broadcast %cst_6 : f32 to vector<512x128xf32>
    %11 = arith.maximumf %9, %10 : vector<512x128xf32>
    %c0_7 = arith.constant 0 : index
    %c0_8 = arith.constant 0 : index
    %12 = vector.load %arg4[%c0_7, %c0_8] : memref<512x128xf32, #tpu.memory_space<vmem>>, vector<512x128xf32>
    tpu.vector_store %arg4[%c0_7, %c0_8], %11 {strides = array<i32>} : memref<512x128xf32, #tpu.memory_space<vmem>>, vector<512x128xf32>,
    return
  }
  func.func @transform_0(%arg0: i32) -> (i32, i32) {
    %c0_i32 = arith.constant 0 : i32
    %c0_i32_0 = arith.constant 0 : i32
    return %arg0, %c0_i32 : i32, i32
  }
  func.func @transform_1(%arg0: i32) -> (i32, i32) {
    %c0_i32 = arith.constant 0 : i32
    %c0_i32_0 = arith.constant 0 : i32
    %c0_i32_1 = arith.constant 0 : i32
    return %c0_i32, %c0_i32_0 : i32, i32
  }
  func.func @transform_2(%arg0: i32) -> (i32, i32) {
    %c0_i32 = arith.constant 0 : i32
    %c0_i32_0 = arith.constant 0 : i32
    %c0_i32_1 = arith.constant 0 : i32
    return %c0_i32, %c0_i32_0 : i32, i32
  }
  func.func @transform_3(%arg0: i32) -> (i32, i32) {
    %c0_i32 = arith.constant 0 : i32
    %c0_i32_0 = arith.constant 0 : i32
    return %arg0, %c0_i32 : i32, i32
  }
}

module attributes {stable_mosaic.version = 11 : i64} {
  func.func @_mm_kernel(%arg0: i32, %arg1: memref<512x96xf32, #tpu.memory_space<vmem>>, %arg2: memref<96x128xf32, #tpu.memory_space<vmem>>, %arg3: memref<1x128xf32, #tpu.memory_space<vmem>>, %arg4: memref<512x128xf32, #tpu.memory_space<vmem>>) attributes {dimension_semantics = [#tpu.dimension_semantics<parallel>], iteration_bounds = array<i64: 1>, scalar_prefetch = 0 : i64, scratch_operands = 0 : i64, tpu.core_type = #tpu.core_type<tc>, window_params = [{transform_indices = @transform_0, window_bounds = array<i64: 512, 96>}, {pipeline_mode = #tpu.pipeline_mode<synchronous>, transform_indices = @transform_1, window_bounds = array<i64: 96, 128>}, {pipeline_mode = #tpu.pipeline_mode<synchronous>, transform_indices = @transform_2, window_bounds = array<i64: 1, 128>}, {transform_indices = @transform_3, window_bounds = array<i64: 512, 128>}]} {
    %c0 = arith.constant 0 : index
    %c0_0 = arith.constant 0 : index
    %0 = vector.load %arg1[%c0, %c0_0] : memref<512x96xf32, #tpu.memory_space<vmem>>, vector<512x96xf32>
    %cst = arith.constant 0.000000e+00 : f32
    %1 = vector.broadcast %cst : f32 to vector<512x96xf32>
    %2 = arith.maximumf %0, %1 : vector<512x96xf32>
    %3 = arith.truncf %2 : vector<512x96xf32> to vector<512x96xbf16>
    %c0_1 = arith.constant 0 : index
    %c0_2 = arith.constant 0 : index
    %4 = vector.load %arg2[%c0_1, %c0_2] : memref<96x128xf32, #tpu.memory_space<vmem>>, vector<96x128xf32>
    %5 = arith.truncf %4 : vector<96x128xf32> to vector<96x128xbf16>
    %cst_3 = arith.constant dense<0.000000e+00> : vector<512x128xf32>
    %6 = tpu.matmul %3, %5, %cst_3 {dimension_numbers = #tpu.dot_dimension_numbers<[1], [0], [0], [1], [0, 0, 1, 1], [], []>} : vector<512x96xbf16>, vector<96x128xbf16>, vector<512x128xf32> -> vector<512x128xf32>
    %c0_4 = arith.constant 0 : index
    %c0_5 = arith.constant 0 : index
    %7 = vector.load %arg3[%c0_4, %c0_5] : memref<1x128xf32, #tpu.memory_space<vmem>>, vector<1x128xf32>
    %8 = vector.broadcast %7 : vector<1x128xf32> to vector<512x128xf32>
    %9 = arith.addf %6, %8 : vector<512x128xf32>
    %cst_6 = arith.constant 0.000000e+00 : f32
    %10 = vector.broadcast %cst_6 : f32 to vector<512x128xf32>
    %11 = arith.maximumf %9, %10 : vector<512x128xf32>
    %c0_7 = arith.constant 0 : index
    %c0_8 = arith.constant 0 : index
    %12 = vector.load %arg4[%c0_7, %c0_8] : memref<512x128xf32, #tpu.memory_space<vmem>>, vector<512x128xf32>
    tpu.vector_store %arg4[%c0_7, %c0_8], %11 {strides = array<i32>} : memref<512x128xf32, #tpu.memory_space<vmem>>, vector<512x128xf32>,
    return
  }
  func.func @transform_0(%arg0: i32) -> (i32, i32) {
    %c0_i32 = arith.constant 0 : i32
    %c0_i32_0 = arith.constant 0 : i32
    return %arg0, %c0_i32 : i32, i32
  }
  func.func @transform_1(%arg0: i32) -> (i32, i32) {
    %c0_i32 = arith.constant 0 : i32
    %c0_i32_0 = arith.constant 0 : i32
    %c0_i32_1 = arith.constant 0 : i32
    return %c0_i32, %c0_i32_0 : i32, i32
  }
  func.func @transform_2(%arg0: i32) -> (i32, i32) {
    %c0_i32 = arith.constant 0 : i32
    %c0_i32_0 = arith.constant 0 : i32
    %c0_i32_1 = arith.constant 0 : i32
    return %c0_i32, %c0_i32_0 : i32, i32
  }
  func.func @transform_3(%arg0: i32) -> (i32, i32) {
    %c0_i32 = arith.constant 0 : i32
    %c0_i32_0 = arith.constant 0 : i32
    return %arg0, %c0_i32 : i32, i32
  }
}

module attributes {stable_mosaic.version = 11 : i64} {
  func.func @_mm_kernel(%arg0: i32, %arg1: memref<512x128xf32, #tpu.memory_space<vmem>>, %arg2: memref<128x128xf32, #tpu.memory_space<vmem>>, %arg3: memref<1x128xf32, #tpu.memory_space<vmem>>, %arg4: memref<512x128xf32, #tpu.memory_space<vmem>>) attributes {dimension_semantics = [#tpu.dimension_semantics<parallel>], iteration_bounds = array<i64: 1>, scalar_prefetch = 0 : i64, scratch_operands = 0 : i64, tpu.core_type = #tpu.core_type<tc>, window_params = [{transform_indices = @transform_0, window_bounds = array<i64: 512, 128>}, {pipeline_mode = #tpu.pipeline_mode<synchronous>, transform_indices = @transform_1, window_bounds = array<i64: 128, 128>}, {pipeline_mode = #tpu.pipeline_mode<synchronous>, transform_indices = @transform_2, window_bounds = array<i64: 1, 128>}, {transform_indices = @transform_3, window_bounds = array<i64: 512, 128>}]} {
    %c0 = arith.constant 0 : index
    %c0_0 = arith.constant 0 : index
    %0 = vector.load %arg1[%c0, %c0_0] : memref<512x128xf32, #tpu.memory_space<vmem>>, vector<512x128xf32>
    %cst = arith.constant 0.000000e+00 : f32
    %1 = vector.broadcast %cst : f32 to vector<512x128xf32>
    %2 = arith.maximumf %0, %1 : vector<512x128xf32>
    %3 = arith.truncf %2 : vector<512x128xf32> to vector<512x128xbf16>
    %c0_1 = arith.constant 0 : index
    %c0_2 = arith.constant 0 : index
    %4 = vector.load %arg2[%c0_1, %c0_2] : memref<128x128xf32, #tpu.memory_space<vmem>>, vector<128x128xf32>
    %5 = arith.truncf %4 : vector<128x128xf32> to vector<128x128xbf16>
    %cst_3 = arith.constant dense<0.000000e+00> : vector<512x128xf32>
    %6 = tpu.matmul %3, %5, %cst_3 {dimension_numbers = #tpu.dot_dimension_numbers<[1], [0], [0], [1], [0, 0, 1, 1], [], []>} : vector<512x128xbf16>, vector<128x128xbf16>, vector<512x128xf32> -> vector<512x128xf32>
    %c0_4 = arith.constant 0 : index
    %c0_5 = arith.constant 0 : index
    %7 = vector.load %arg3[%c0_4, %c0_5] : memref<1x128xf32, #tpu.memory_space<vmem>>, vector<1x128xf32>
    %8 = vector.broadcast %7 : vector<1x128xf32> to vector<512x128xf32>
    %9 = arith.addf %6, %8 : vector<512x128xf32>
    %cst_6 = arith.constant 0.000000e+00 : f32
    %10 = vector.broadcast %cst_6 : f32 to vector<512x128xf32>
    %11 = arith.maximumf %9, %10 : vector<512x128xf32>
    %c0_7 = arith.constant 0 : index
    %c0_8 = arith.constant 0 : index
    %12 = vector.load %arg4[%c0_7, %c0_8] : memref<512x128xf32, #tpu.memory_space<vmem>>, vector<512x128xf32>
    tpu.vector_store %arg4[%c0_7, %c0_8], %11 {strides = array<i32>} : memref<512x128xf32, #tpu.memory_space<vmem>>, vector<512x128xf32>,
    return
  }
  func.func @transform_0(%arg0: i32) -> (i32, i32) {
    %c0_i32 = arith.constant 0 : i32
    %c0_i32_0 = arith.constant 0 : i32
    return %arg0, %c0_i32 : i32, i32
  }
  func.func @transform_1(%arg0: i32) -> (i32, i32) {
    %c0_i32 = arith.constant 0 : i32
    %c0_i32_0 = arith.constant 0 : i32
    %c0_i32_1 = arith.constant 0 : i32
    return %c0_i32, %c0_i32_0 : i32, i32
  }
  func.func @transform_2(%arg0: i32) -> (i32, i32) {
    %c0_i32 = arith.constant 0 : i32
    %c0_i32_0 = arith.constant 0 : i32
    %c0_i32_1 = arith.constant 0 : i32
    return %c0_i32, %c0_i32_0 : i32, i32
  }
  func.func @transform_3(%arg0: i32) -> (i32, i32) {
    %c0_i32 = arith.constant 0 : i32
    %c0_i32_0 = arith.constant 0 : i32
    return %arg0, %c0_i32 : i32, i32
  }
}

module attributes {stable_mosaic.version = 11 : i64} {
  func.func @_mm_kernel(%arg0: i32, %arg1: memref<512x160xf32, #tpu.memory_space<vmem>>, %arg2: memref<160x128xf32, #tpu.memory_space<vmem>>, %arg3: memref<1x128xf32, #tpu.memory_space<vmem>>, %arg4: memref<512x128xf32, #tpu.memory_space<vmem>>) attributes {dimension_semantics = [#tpu.dimension_semantics<parallel>], iteration_bounds = array<i64: 1>, scalar_prefetch = 0 : i64, scratch_operands = 0 : i64, tpu.core_type = #tpu.core_type<tc>, window_params = [{transform_indices = @transform_0, window_bounds = array<i64: 512, 160>}, {pipeline_mode = #tpu.pipeline_mode<synchronous>, transform_indices = @transform_1, window_bounds = array<i64: 160, 128>}, {pipeline_mode = #tpu.pipeline_mode<synchronous>, transform_indices = @transform_2, window_bounds = array<i64: 1, 128>}, {transform_indices = @transform_3, window_bounds = array<i64: 512, 128>}]} {
    %c0 = arith.constant 0 : index
    %c0_0 = arith.constant 0 : index
    %0 = vector.load %arg1[%c0, %c0_0] : memref<512x160xf32, #tpu.memory_space<vmem>>, vector<512x160xf32>
    %cst = arith.constant 0.000000e+00 : f32
    %1 = vector.broadcast %cst : f32 to vector<512x160xf32>
    %2 = arith.maximumf %0, %1 : vector<512x160xf32>
    %3 = arith.truncf %2 : vector<512x160xf32> to vector<512x160xbf16>
    %c0_1 = arith.constant 0 : index
    %c0_2 = arith.constant 0 : index
    %4 = vector.load %arg2[%c0_1, %c0_2] : memref<160x128xf32, #tpu.memory_space<vmem>>, vector<160x128xf32>
    %5 = arith.truncf %4 : vector<160x128xf32> to vector<160x128xbf16>
    %cst_3 = arith.constant dense<0.000000e+00> : vector<512x128xf32>
    %6 = tpu.matmul %3, %5, %cst_3 {dimension_numbers = #tpu.dot_dimension_numbers<[1], [0], [0], [1], [0, 0, 1, 1], [], []>} : vector<512x160xbf16>, vector<160x128xbf16>, vector<512x128xf32> -> vector<512x128xf32>
    %c0_4 = arith.constant 0 : index
    %c0_5 = arith.constant 0 : index
    %7 = vector.load %arg3[%c0_4, %c0_5] : memref<1x128xf32, #tpu.memory_space<vmem>>, vector<1x128xf32>
    %8 = vector.broadcast %7 : vector<1x128xf32> to vector<512x128xf32>
    %9 = arith.addf %6, %8 : vector<512x128xf32>
    %cst_6 = arith.constant 0.000000e+00 : f32
    %10 = vector.broadcast %cst_6 : f32 to vector<512x128xf32>
    %11 = arith.maximumf %9, %10 : vector<512x128xf32>
    %c0_7 = arith.constant 0 : index
    %c0_8 = arith.constant 0 : index
    %12 = vector.load %arg4[%c0_7, %c0_8] : memref<512x128xf32, #tpu.memory_space<vmem>>, vector<512x128xf32>
    tpu.vector_store %arg4[%c0_7, %c0_8], %11 {strides = array<i32>} : memref<512x128xf32, #tpu.memory_space<vmem>>, vector<512x128xf32>,
    return
  }
  func.func @transform_0(%arg0: i32) -> (i32, i32) {
    %c0_i32 = arith.constant 0 : i32
    %c0_i32_0 = arith.constant 0 : i32
    return %arg0, %c0_i32 : i32, i32
  }
  func.func @transform_1(%arg0: i32) -> (i32, i32) {
    %c0_i32 = arith.constant 0 : i32
    %c0_i32_0 = arith.constant 0 : i32
    %c0_i32_1 = arith.constant 0 : i32
    return %c0_i32, %c0_i32_0 : i32, i32
  }
  func.func @transform_2(%arg0: i32) -> (i32, i32) {
    %c0_i32 = arith.constant 0 : i32
    %c0_i32_0 = arith.constant 0 : i32
    %c0_i32_1 = arith.constant 0 : i32
    return %c0_i32, %c0_i32_0 : i32, i32
  }
  func.func @transform_3(%arg0: i32) -> (i32, i32) {
    %c0_i32 = arith.constant 0 : i32
    %c0_i32_0 = arith.constant 0 : i32
    return %arg0, %c0_i32 : i32, i32
  }
}

module attributes {stable_mosaic.version = 11 : i64} {
  func.func @_mm_kernel(%arg0: i32, %arg1: memref<512x192xf32, #tpu.memory_space<vmem>>, %arg2: memref<192x128xf32, #tpu.memory_space<vmem>>, %arg3: memref<1x128xf32, #tpu.memory_space<vmem>>, %arg4: memref<512x128xf32, #tpu.memory_space<vmem>>) attributes {dimension_semantics = [#tpu.dimension_semantics<parallel>], iteration_bounds = array<i64: 1>, scalar_prefetch = 0 : i64, scratch_operands = 0 : i64, tpu.core_type = #tpu.core_type<tc>, window_params = [{transform_indices = @transform_0, window_bounds = array<i64: 512, 192>}, {pipeline_mode = #tpu.pipeline_mode<synchronous>, transform_indices = @transform_1, window_bounds = array<i64: 192, 128>}, {pipeline_mode = #tpu.pipeline_mode<synchronous>, transform_indices = @transform_2, window_bounds = array<i64: 1, 128>}, {transform_indices = @transform_3, window_bounds = array<i64: 512, 128>}]} {
    %c0 = arith.constant 0 : index
    %c0_0 = arith.constant 0 : index
    %0 = vector.load %arg1[%c0, %c0_0] : memref<512x192xf32, #tpu.memory_space<vmem>>, vector<512x192xf32>
    %cst = arith.constant 0.000000e+00 : f32
    %1 = vector.broadcast %cst : f32 to vector<512x192xf32>
    %2 = arith.maximumf %0, %1 : vector<512x192xf32>
    %3 = arith.truncf %2 : vector<512x192xf32> to vector<512x192xbf16>
    %c0_1 = arith.constant 0 : index
    %c0_2 = arith.constant 0 : index
    %4 = vector.load %arg2[%c0_1, %c0_2] : memref<192x128xf32, #tpu.memory_space<vmem>>, vector<192x128xf32>
    %5 = arith.truncf %4 : vector<192x128xf32> to vector<192x128xbf16>
    %cst_3 = arith.constant dense<0.000000e+00> : vector<512x128xf32>
    %6 = tpu.matmul %3, %5, %cst_3 {dimension_numbers = #tpu.dot_dimension_numbers<[1], [0], [0], [1], [0, 0, 1, 1], [], []>} : vector<512x192xbf16>, vector<192x128xbf16>, vector<512x128xf32> -> vector<512x128xf32>
    %c0_4 = arith.constant 0 : index
    %c0_5 = arith.constant 0 : index
    %7 = vector.load %arg3[%c0_4, %c0_5] : memref<1x128xf32, #tpu.memory_space<vmem>>, vector<1x128xf32>
    %8 = vector.broadcast %7 : vector<1x128xf32> to vector<512x128xf32>
    %9 = arith.addf %6, %8 : vector<512x128xf32>
    %cst_6 = arith.constant 0.000000e+00 : f32
    %10 = vector.broadcast %cst_6 : f32 to vector<512x128xf32>
    %11 = arith.maximumf %9, %10 : vector<512x128xf32>
    %c0_7 = arith.constant 0 : index
    %c0_8 = arith.constant 0 : index
    %12 = vector.load %arg4[%c0_7, %c0_8] : memref<512x128xf32, #tpu.memory_space<vmem>>, vector<512x128xf32>
    tpu.vector_store %arg4[%c0_7, %c0_8], %11 {strides = array<i32>} : memref<512x128xf32, #tpu.memory_space<vmem>>, vector<512x128xf32>,
    return
  }
  func.func @transform_0(%arg0: i32) -> (i32, i32) {
    %c0_i32 = arith.constant 0 : i32
    %c0_i32_0 = arith.constant 0 : i32
    return %arg0, %c0_i32 : i32, i32
  }
  func.func @transform_1(%arg0: i32) -> (i32, i32) {
    %c0_i32 = arith.constant 0 : i32
    %c0_i32_0 = arith.constant 0 : i32
    %c0_i32_1 = arith.constant 0 : i32
    return %c0_i32, %c0_i32_0 : i32, i32
  }
  func.func @transform_2(%arg0: i32) -> (i32, i32) {
    %c0_i32 = arith.constant 0 : i32
    %c0_i32_0 = arith.constant 0 : i32
    %c0_i32_1 = arith.constant 0 : i32
    return %c0_i32, %c0_i32_0 : i32, i32
  }
  func.func @transform_3(%arg0: i32) -> (i32, i32) {
    %c0_i32 = arith.constant 0 : i32
    %c0_i32_0 = arith.constant 0 : i32
    return %arg0, %c0_i32 : i32, i32
  }
}

module attributes {stable_mosaic.version = 11 : i64} {
  func.func @_conv3x3_row_kernel(%arg0: i32, %arg1: memref<2x1x18x224xf32, #tpu.memory_space<vmem>>, %arg2: memref<2x1x18x224xf32, #tpu.memory_space<vmem>>, %arg3: memref<2x1x18x224xf32, #tpu.memory_space<vmem>>, %arg4: memref<9x224x3xf32, #tpu.memory_space<vmem>>, %arg5: memref<1x3xf32, #tpu.memory_space<vmem>>, %arg6: memref<2x1x16x3xf32, #tpu.memory_space<vmem>>) attributes {dimension_semantics = [#tpu.dimension_semantics<parallel>], iteration_bounds = array<i64: 16>, scalar_prefetch = 0 : i64, scratch_operands = 0 : i64, tpu.core_type = #tpu.core_type<tc>, window_params = [{transform_indices = @transform_0, window_bounds = array<i64: 2, 1, 18, 224>}, {transform_indices = @transform_1, window_bounds = array<i64: 2, 1, 18, 224>}, {transform_indices = @transform_2, window_bounds = array<i64: 2, 1, 18, 224>}, {pipeline_mode = #tpu.pipeline_mode<synchronous>, transform_indices = @transform_3, window_bounds = array<i64: 9, 224, 3>}, {pipeline_mode = #tpu.pipeline_mode<synchronous>, transform_indices = @transform_4, window_bounds = array<i64: 1, 3>}, {transform_indices = @transform_5, window_bounds = array<i64: 2, 1, 16, 3>}]} {
    %c0 = arith.constant 0 : index
    %c0_0 = arith.constant 0 : index
    %c0_1 = arith.constant 0 : index
    %c0_2 = arith.constant 0 : index
    %0 = vector.load %arg1[%c0, %c0_0, %c0_1, %c0_2] : memref<2x1x18x224xf32, #tpu.memory_space<vmem>>, vector<2x1x18x224xf32>
    %1 = vector.shape_cast %0 : vector<2x1x18x224xf32> to vector<2x18x224xf32>
    %c0_3 = arith.constant 0 : index
    %c0_4 = arith.constant 0 : index
    %c0_5 = arith.constant 0 : index
    %c0_6 = arith.constant 0 : index
    %2 = vector.load %arg2[%c0_3, %c0_4, %c0_5, %c0_6] : memref<2x1x18x224xf32, #tpu.memory_space<vmem>>, vector<2x1x18x224xf32>
    %3 = vector.shape_cast %2 : vector<2x1x18x224xf32> to vector<2x18x224xf32>
    %c0_7 = arith.constant 0 : index
    %c0_8 = arith.constant 0 : index
    %c0_9 = arith.constant 0 : index
    %c0_10 = arith.constant 0 : index
    %4 = vector.load %arg3[%c0_7, %c0_8, %c0_9, %c0_10] : memref<2x1x18x224xf32, #tpu.memory_space<vmem>>, vector<2x1x18x224xf32>
    %5 = vector.shape_cast %4 : vector<2x1x18x224xf32> to vector<2x18x224xf32>
    %cst = arith.constant 0.000000e+00 : f32
    %6 = vector.broadcast %cst : f32 to vector<32x3xf32>
    %7 = vector.extract_strided_slice %1 {offsets = [0, 0, 0], sizes = [2, 16, 224], strides = [1, 1, 1]} : vector<2x18x224xf32> to vector<2x16x224xf32>
    %8 = vector.shape_cast %7 : vector<2x16x224xf32> to vector<32x224xf32>
    %c0_11 = arith.constant 0 : index
    %c0_12 = arith.constant 0 : index
    %c0_13 = arith.constant 0 : index
    %9 = vector.load %arg4[%c0_11, %c0_12, %c0_13] : memref<9x224x3xf32, #tpu.memory_space<vmem>>, vector<1x224x3xf32>
    %10 = vector.shape_cast %9 : vector<1x224x3xf32> to vector<224x3xf32>
    %11 = arith.truncf %8 : vector<32x224xf32> to vector<32x224xbf16>
    %12 = arith.truncf %10 : vector<224x3xf32> to vector<224x3xbf16>
    %cst_14 = arith.constant dense<0.000000e+00> : vector<32x3xf32>
    %13 = tpu.matmul %11, %12, %cst_14 {dimension_numbers = #tpu.dot_dimension_numbers<[1], [0], [0], [1], [0, 0, 1, 1], [], []>} : vector<32x224xbf16>, vector<224x3xbf16>, vector<32x3xf32> -> vector<32x3xf32>
    %14 = arith.addf %6, %13 : vector<32x3xf32>
    %15 = vector.extract_strided_slice %1 {offsets = [0, 1, 0], sizes = [2, 16, 224], strides = [1, 1, 1]} : vector<2x18x224xf32> to vector<2x16x224xf32>
    %16 = vector.shape_cast %15 : vector<2x16x224xf32> to vector<32x224xf32>
    %c1 = arith.constant 1 : index
    %c0_15 = arith.constant 0 : index
    %c0_16 = arith.constant 0 : index
    %17 = vector.load %arg4[%c1, %c0_15, %c0_16] : memref<9x224x3xf32, #tpu.memory_space<vmem>>, vector<1x224x3xf32>
    %18 = vector.shape_cast %17 : vector<1x224x3xf32> to vector<224x3xf32>
    %19 = arith.truncf %16 : vector<32x224xf32> to vector<32x224xbf16>
    %20 = arith.truncf %18 : vector<224x3xf32> to vector<224x3xbf16>
    %cst_17 = arith.constant dense<0.000000e+00> : vector<32x3xf32>
    %21 = tpu.matmul %19, %20, %cst_17 {dimension_numbers = #tpu.dot_dimension_numbers<[1], [0], [0], [1], [0, 0, 1, 1], [], []>} : vector<32x224xbf16>, vector<224x3xbf16>, vector<32x3xf32> -> vector<32x3xf32>
    %22 = arith.addf %14, %21 : vector<32x3xf32>
    %23 = vector.extract_strided_slice %1 {offsets = [0, 2, 0], sizes = [2, 16, 224], strides = [1, 1, 1]} : vector<2x18x224xf32> to vector<2x16x224xf32>
    %24 = vector.shape_cast %23 : vector<2x16x224xf32> to vector<32x224xf32>
    %c2 = arith.constant 2 : index
    %c0_18 = arith.constant 0 : index
    %c0_19 = arith.constant 0 : index
    %25 = vector.load %arg4[%c2, %c0_18, %c0_19] : memref<9x224x3xf32, #tpu.memory_space<vmem>>, vector<1x224x3xf32>
    %26 = vector.shape_cast %25 : vector<1x224x3xf32> to vector<224x3xf32>
    %27 = arith.truncf %24 : vector<32x224xf32> to vector<32x224xbf16>
    %28 = arith.truncf %26 : vector<224x3xf32> to vector<224x3xbf16>
    %cst_20 = arith.constant dense<0.000000e+00> : vector<32x3xf32>
    %29 = tpu.matmul %27, %28, %cst_20 {dimension_numbers = #tpu.dot_dimension_numbers<[1], [0], [0], [1], [0, 0, 1, 1], [], []>} : vector<32x224xbf16>, vector<224x3xbf16>, vector<32x3xf32> -> vector<32x3xf32>
    %30 = arith.addf %22, %29 : vector<32x3xf32>
    %31 = vector.extract_strided_slice %3 {offsets = [0, 0, 0], sizes = [2, 16, 224], strides = [1, 1, 1]} : vector<2x18x224xf32> to vector<2x16x224xf32>
    %32 = vector.shape_cast %31 : vector<2x16x224xf32> to vector<32x224xf32>
    %c3 = arith.constant 3 : index
    %c0_21 = arith.constant 0 : index
    %c0_22 = arith.constant 0 : index
    %33 = vector.load %arg4[%c3, %c0_21, %c0_22] : memref<9x224x3xf32, #tpu.memory_space<vmem>>, vector<1x224x3xf32>
    %34 = vector.shape_cast %33 : vector<1x224x3xf32> to vector<224x3xf32>
    %35 = arith.truncf %32 : vector<32x224xf32> to vector<32x224xbf16>
    %36 = arith.truncf %34 : vector<224x3xf32> to vector<224x3xbf16>
    %cst_23 = arith.constant dense<0.000000e+00> : vector<32x3xf32>
    %37 = tpu.matmul %35, %36, %cst_23 {dimension_numbers = #tpu.dot_dimension_numbers<[1], [0], [0], [1], [0, 0, 1, 1], [], []>} : vector<32x224xbf16>, vector<224x3xbf16>, vector<32x3xf32> -> vector<32x3xf32>
    %38 = arith.addf %30, %37 : vector<32x3xf32>
    %39 = vector.extract_strided_slice %3 {offsets = [0, 1, 0], sizes = [2, 16, 224], strides = [1, 1, 1]} : vector<2x18x224xf32> to vector<2x16x224xf32>
    %40 = vector.shape_cast %39 : vector<2x16x224xf32> to vector<32x224xf32>
    %c4 = arith.constant 4 : index
    %c0_24 = arith.constant 0 : index
    %c0_25 = arith.constant 0 : index
    %41 = vector.load %arg4[%c4, %c0_24, %c0_25] : memref<9x224x3xf32, #tpu.memory_space<vmem>>, vector<1x224x3xf32>
    %42 = vector.shape_cast %41 : vector<1x224x3xf32> to vector<224x3xf32>
    %43 = arith.truncf %40 : vector<32x224xf32> to vector<32x224xbf16>
    %44 = arith.truncf %42 : vector<224x3xf32> to vector<224x3xbf16>
    %cst_26 = arith.constant dense<0.000000e+00> : vector<32x3xf32>
    %45 = tpu.matmul %43, %44, %cst_26 {dimension_numbers = #tpu.dot_dimension_numbers<[1], [0], [0], [1], [0, 0, 1, 1], [], []>} : vector<32x224xbf16>, vector<224x3xbf16>, vector<32x3xf32> -> vector<32x3xf32>
    %46 = arith.addf %38, %45 : vector<32x3xf32>
    %47 = vector.extract_strided_slice %3 {offsets = [0, 2, 0], sizes = [2, 16, 224], strides = [1, 1, 1]} : vector<2x18x224xf32> to vector<2x16x224xf32>
    %48 = vector.shape_cast %47 : vector<2x16x224xf32> to vector<32x224xf32>
    %c5 = arith.constant 5 : index
    %c0_27 = arith.constant 0 : index
    %c0_28 = arith.constant 0 : index
    %49 = vector.load %arg4[%c5, %c0_27, %c0_28] : memref<9x224x3xf32, #tpu.memory_space<vmem>>, vector<1x224x3xf32>
    %50 = vector.shape_cast %49 : vector<1x224x3xf32> to vector<224x3xf32>
    %51 = arith.truncf %48 : vector<32x224xf32> to vector<32x224xbf16>
    %52 = arith.truncf %50 : vector<224x3xf32> to vector<224x3xbf16>
    %cst_29 = arith.constant dense<0.000000e+00> : vector<32x3xf32>
    %53 = tpu.matmul %51, %52, %cst_29 {dimension_numbers = #tpu.dot_dimension_numbers<[1], [0], [0], [1], [0, 0, 1, 1], [], []>} : vector<32x224xbf16>, vector<224x3xbf16>, vector<32x3xf32> -> vector<32x3xf32>
    %54 = arith.addf %46, %53 : vector<32x3xf32>
    %55 = vector.extract_strided_slice %5 {offsets = [0, 0, 0], sizes = [2, 16, 224], strides = [1, 1, 1]} : vector<2x18x224xf32> to vector<2x16x224xf32>
    %56 = vector.shape_cast %55 : vector<2x16x224xf32> to vector<32x224xf32>
    %c6 = arith.constant 6 : index
    %c0_30 = arith.constant 0 : index
    %c0_31 = arith.constant 0 : index
    %57 = vector.load %arg4[%c6, %c0_30, %c0_31] : memref<9x224x3xf32, #tpu.memory_space<vmem>>, vector<1x224x3xf32>
    %58 = vector.shape_cast %57 : vector<1x224x3xf32> to vector<224x3xf32>
    %59 = arith.truncf %56 : vector<32x224xf32> to vector<32x224xbf16>
    %60 = arith.truncf %58 : vector<224x3xf32> to vector<224x3xbf16>
    %cst_32 = arith.constant dense<0.000000e+00> : vector<32x3xf32>
    %61 = tpu.matmul %59, %60, %cst_32 {dimension_numbers = #tpu.dot_dimension_numbers<[1], [0], [0], [1], [0, 0, 1, 1], [], []>} : vector<32x224xbf16>, vector<224x3xbf16>, vector<32x3xf32> -> vector<32x3xf32>
    %62 = arith.addf %54, %61 : vector<32x3xf32>
    %63 = vector.extract_strided_slice %5 {offsets = [0, 1, 0], sizes = [2, 16, 224], strides = [1, 1, 1]} : vector<2x18x224xf32> to vector<2x16x224xf32>
    %64 = vector.shape_cast %63 : vector<2x16x224xf32> to vector<32x224xf32>
    %c7 = arith.constant 7 : index
    %c0_33 = arith.constant 0 : index
    %c0_34 = arith.constant 0 : index
    %65 = vector.load %arg4[%c7, %c0_33, %c0_34] : memref<9x224x3xf32, #tpu.memory_space<vmem>>, vector<1x224x3xf32>
    %66 = vector.shape_cast %65 : vector<1x224x3xf32> to vector<224x3xf32>
    %67 = arith.truncf %64 : vector<32x224xf32> to vector<32x224xbf16>
    %68 = arith.truncf %66 : vector<224x3xf32> to vector<224x3xbf16>
    %cst_35 = arith.constant dense<0.000000e+00> : vector<32x3xf32>
    %69 = tpu.matmul %67, %68, %cst_35 {dimension_numbers = #tpu.dot_dimension_numbers<[1], [0], [0], [1], [0, 0, 1, 1], [], []>} : vector<32x224xbf16>, vector<224x3xbf16>, vector<32x3xf32> -> vector<32x3xf32>
    %70 = arith.addf %62, %69 : vector<32x3xf32>
    %71 = vector.extract_strided_slice %5 {offsets = [0, 2, 0], sizes = [2, 16, 224], strides = [1, 1, 1]} : vector<2x18x224xf32> to vector<2x16x224xf32>
    %72 = vector.shape_cast %71 : vector<2x16x224xf32> to vector<32x224xf32>
    %c8 = arith.constant 8 : index
    %c0_36 = arith.constant 0 : index
    %c0_37 = arith.constant 0 : index
    %73 = vector.load %arg4[%c8, %c0_36, %c0_37] : memref<9x224x3xf32, #tpu.memory_space<vmem>>, vector<1x224x3xf32>
    %74 = vector.shape_cast %73 : vector<1x224x3xf32> to vector<224x3xf32>
    %75 = arith.truncf %72 : vector<32x224xf32> to vector<32x224xbf16>
    %76 = arith.truncf %74 : vector<224x3xf32> to vector<224x3xbf16>
    %cst_38 = arith.constant dense<0.000000e+00> : vector<32x3xf32>
    %77 = tpu.matmul %75, %76, %cst_38 {dimension_numbers = #tpu.dot_dimension_numbers<[1], [0], [0], [1], [0, 0, 1, 1], [], []>} : vector<32x224xbf16>, vector<224x3xbf16>, vector<32x3xf32> -> vector<32x3xf32>
    %78 = arith.addf %70, %77 : vector<32x3xf32>
    %c0_39 = arith.constant 0 : index
    %c0_40 = arith.constant 0 : index
    %79 = vector.load %arg5[%c0_39, %c0_40] : memref<1x3xf32, #tpu.memory_space<vmem>>, vector<1x3xf32>
    %80 = vector.broadcast %79 : vector<1x3xf32> to vector<32x3xf32>
    %81 = arith.addf %78, %80 : vector<32x3xf32>
    %82 = vector.shape_cast %81 : vector<32x3xf32> to vector<2x1x16x3xf32>
    %c0_41 = arith.constant 0 : index
    %c0_42 = arith.constant 0 : index
    %c0_43 = arith.constant 0 : index
    %c0_44 = arith.constant 0 : index
    %83 = vector.load %arg6[%c0_41, %c0_42, %c0_43, %c0_44] : memref<2x1x16x3xf32, #tpu.memory_space<vmem>>, vector<2x1x16x3xf32>
    tpu.vector_store %arg6[%c0_41, %c0_42, %c0_43, %c0_44], %82 {strides = array<i32>} : memref<2x1x16x3xf32, #tpu.memory_space<vmem>>, vector<2x1x16x3xf32>,
    return
  }
  func.func @transform_0(%arg0: i32) -> (i32, i32, i32, i32) {
    %c0_i32 = arith.constant 0 : i32
    %0 = arith.addi %arg0, %c0_i32 : i32
    %c0_i32_0 = arith.constant 0 : i32
    %c0_i32_1 = arith.constant 0 : i32
    %c0_i32_2 = arith.constant 0 : i32
    %c0_i32_3 = arith.constant 0 : i32
    return %c0_i32_0, %0, %c0_i32_1, %c0_i32_2 : i32, i32, i32, i32
  }
  func.func @transform_1(%arg0: i32) -> (i32, i32, i32, i32) {
    %c1_i32 = arith.constant 1 : i32
    %0 = arith.addi %arg0, %c1_i32 : i32
    %c0_i32 = arith.constant 0 : i32
    %c0_i32_0 = arith.constant 0 : i32
    %c0_i32_1 = arith.constant 0 : i32
    %c0_i32_2 = arith.constant 0 : i32
    return %c0_i32, %0, %c0_i32_0, %c0_i32_1 : i32, i32, i32, i32
  }
  func.func @transform_2(%arg0: i32) -> (i32, i32, i32, i32) {
    %c2_i32 = arith.constant 2 : i32
    %0 = arith.addi %arg0, %c2_i32 : i32
    %c0_i32 = arith.constant 0 : i32
    %c0_i32_0 = arith.constant 0 : i32
    %c0_i32_1 = arith.constant 0 : i32
    %c0_i32_2 = arith.constant 0 : i32
    return %c0_i32, %0, %c0_i32_0, %c0_i32_1 : i32, i32, i32, i32
  }
  func.func @transform_3(%arg0: i32) -> (i32, i32, i32) {
    %c0_i32 = arith.constant 0 : i32
    %c0_i32_0 = arith.constant 0 : i32
    %c0_i32_1 = arith.constant 0 : i32
    %c0_i32_2 = arith.constant 0 : i32
    return %c0_i32, %c0_i32_0, %c0_i32_1 : i32, i32, i32
  }
  func.func @transform_4(%arg0: i32) -> (i32, i32) {
    %c0_i32 = arith.constant 0 : i32
    %c0_i32_0 = arith.constant 0 : i32
    %c0_i32_1 = arith.constant 0 : i32
    return %c0_i32, %c0_i32_0 : i32, i32
  }
  func.func @transform_5(%arg0: i32) -> (i32, i32, i32, i32) {
    %c0_i32 = arith.constant 0 : i32
    %c0_i32_0 = arith.constant 0 : i32
    %c0_i32_1 = arith.constant 0 : i32
    %c0_i32_2 = arith.constant 0 : i32
    return %c0_i32, %arg0, %c0_i32_0, %c0_i32_1 : i32, i32, i32, i32
  }
}

</mosaic_0001>

<llo_original>
// kernel: irednet_indrnn_forward.30
$region0: #{irednet_indrnn_forward.30}
  #allocation0 [shape = 'u32[]', space=smem, size = 0x4, offset = 0x4, fixed_abs, tag = 'smem constant byte address 0x4 - core index']
  #allocation1 [shape = 'u32[72,128]{1,0:T(1,128)}', space=vmem, size = 0x9000, scoped, tag = 'internal scratch']
  %s0 = inlined_call_operand.vmem [shape: f32[2,18,18,6], index: 0, kind: input, shape index: {}, may-alias: {0,1,2}]
  %s1 = inlined_call_operand.vmem [shape: f32[2,18,18,6], index: 1, kind: input, shape index: {}, may-alias: {0,1,2}]
  %s2 = inlined_call_operand.vmem [shape: f32[2,18,18,6], index: 2, kind: input, shape index: {}, may-alias: {0,1,2}]
  %s3 = inlined_call_operand.vmem [shape: f32[9,6,32], index: 3, kind: input, shape index: {}]
  %s4 = inlined_call_operand.vmem [shape: f32[1,32], index: 4, kind: input, shape index: {}]
  %s5 = inlined_call_operand.vmem [shape: f32[2,16,16,32], index: 5, kind: output, shape index: {}]
  %s6 = sld [smem:[#allocation0]]
  $region201: #{irednet_indrnn_forward.30} parent=0
    _
  %s8 = ssub.s32 1, %s6
  %s9 = scalar_select 0, %s8, %s6
  $region1: #{irednet_indrnn_forward.30} parent=0
    #allocation2 [shape = 'u8[49152]{0}', space=vmem, size = 0xc000, scoped, tag = 'input window, operand 0']
    #allocation3 [shape = 'u8[49152]{0}', space=vmem, size = 0xc000, scoped, tag = 'input window, operand 1']
    #allocation4 [shape = 'u8[49152]{0}', space=vmem, size = 0xc000, scoped, tag = 'input window, operand 2']
    #allocation5 [shape = 'u8[32768]{0}', space=vmem, size = 0x8000, scoped, tag = 'output window, operand 0']
    loop: start=0, step=1, limit=18
    $region2: #{irednet_indrnn_forward.30} parent=1 // loop_pre_header
      _
    $region3: #{irednet_indrnn_forward.30} parent=1 // loop_header
      %s11 = sphi 0, %s15
      %p12 = scmp.ge.s32.totalorder %s11, 18
      %s21 = sphi 0, %s23
      %s24 = sphi 0, %s21
      %s25 = sphi 0, %s24
      %s41 = sphi 0, %s25
      %s49 = sphi 0, %s51
      %s52 = sphi 0, %s49
      %s53 = sphi 0, %s52
      %s69 = sphi 0, %s53
      %s77 = sphi 0, %s79
      %s80 = sphi 0, %s77
      %s81 = sphi 0, %s80
      %s97 = sphi 0, %s81
      %s101 = sphi 0, %s101
      %s103 = sphi 0, %s101
      %s104 = sphi 0, %s103
      %s118 = sphi 0, %s104
      %s122 = sphi 0, %s122
      %s124 = sphi 0, %s122
      %s125 = sphi 0, %s124
      %s139 = sphi 0, %s125
      %s145 = sphi 0, %s147
      %s148 = sphi 0, %s145
      %s149 = sphi 0, %s148
      %s165 = sphi 0, %s149
    $region4: #{irednet_indrnn_forward.30} parent=1 // loop_header_branch
      %14 = sbr.rel (%p12) target = $region8
    $region5: #{irednet_indrnn_forward.30} parent=1 // loop_body
      %s16 = ssub.s32 %s11, 1
      %s17 = ssub.s32 %s11, 2
      %s18 = sadd.s32 %s11, 1
      %s19 = ssub.s32 %s11, %s18
      %p20 = scmp.eq.s32.totalorder %s19, 0
      %s22 = sadd.s32 %s21, 1
      %s23 = scalar_select %p20, %s21, %s22
      %p26 = pneg %p20
      %p27 = scmp.eq.s32.totalorder %s11, 15
      %p28 = por %p26, %p27
      %p29 = scmp.ne.s32.totalorder %s21, %s24
      %p30 = scmp.eq.s32.totalorder %s11, 0
      %p31 = por %p29, %p30
      %p32 = scmp.ne.s32.totalorder %s21, %s24
      %p33 = scmp.eq.s32.totalorder %s16, 15
      %p34 = por %p32, %p33
      %p35 = scmp.ne.s32.totalorder %s24, %s25
      %p36 = scmp.eq.s32.totalorder %s16, 0
      %p37 = por %p35, %p36
      %p38 = scmp.ne.s32.totalorder %s24, %s25
      %p39 = scmp.eq.s32.totalorder %s17, 15
      %p40 = por %p38, %p39
      %p42 = scmp.ne.s32.totalorder %s25, %s41
      %p43 = scmp.eq.s32.totalorder %s17, 0
      %p44 = por %p42, %p43
      %s45 = sadd.s32 %s11, 1
      %s46 = sadd.s32 %s18, 1
      %s47 = ssub.s32 %s45, %s46
      %p48 = scmp.eq.s32.totalorder %s47, 0
      %s50 = sadd.s32 %s49, 1
      %s51 = scalar_select %p48, %s49, %s50
      %p54 = pneg %p48
      %p55 = scmp.eq.s32.totalorder %s11, 15
      %p56 = por %p54, %p55
      %p57 = scmp.ne.s32.totalorder %s49, %s52
      %p58 = scmp.eq.s32.totalorder %s11, 0
      %p59 = por %p57, %p58
      %p60 = scmp.ne.s32.totalorder %s49, %s52
      %p61 = scmp.eq.s32.totalorder %s16, 15
      %p62 = por %p60, %p61
      %p63 = scmp.ne.s32.totalorder %s52, %s53
      %p64 = scmp.eq.s32.totalorder %s16, 0
      %p65 = por %p63, %p64
      %p66 = scmp.ne.s32.totalorder %s52, %s53
      %p67 = scmp.eq.s32.totalorder %s17, 15
      %p68 = por %p66, %p67
      %p70 = scmp.ne.s32.totalorder %s53, %s69
      %p71 = scmp.eq.s32.totalorder %s17, 0
      %p72 = por %p70, %p71
      %s73 = sadd.s32 %s11, 2
      %s74 = sadd.s32 %s18, 2
      %s75 = ssub.s32 %s73, %s74
      %p76 = scmp.eq.s32.totalorder %s75, 0
      %s78 = sadd.s32 %s77, 1
      %s79 = scalar_select %p76, %s77, %s78
      %p82 = pneg %p76
      %p83 = scmp.eq.s32.totalorder %s11, 15
      %p84 = por %p82, %p83
      %p85 = scmp.ne.s32.totalorder %s77, %s80
      %p86 = scmp.eq.s32.totalorder %s11, 0
      %p87 = por %p85, %p86
      %p88 = scmp.ne.s32.totalorder %s77, %s80
      %p89 = scmp.eq.s32.totalorder %s16, 15
      %p90 = por %p88, %p89
      %p91 = scmp.ne.s32.totalorder %s80, %s81
      %p92 = scmp.eq.s32.totalorder %s16, 0
      %p93 = por %p91, %p92
      %p94 = scmp.ne.s32.totalorder %s80, %s81
      %p95 = scmp.eq.s32.totalorder %s17, 15
      %p96 = por %p94, %p95
      %p98 = scmp.ne.s32.totalorder %s81, %s97
      %p99 = scmp.eq.s32.totalorder %s17, 0
      %p100 = por %p98, %p99
      %s102 = sadd.s32 %s101, 1
      %p105 = scmp.eq.s32.totalorder %s11, 15
      %p106 = scmp.ne.s32.totalorder %s101, %s103
      %p107 = scmp.eq.s32.totalorder %s11, 0
      %p108 = por %p106, %p107
      %p109 = scmp.ne.s32.totalorder %s101, %s103
      %p110 = scmp.eq.s32.totalorder %s16, 15
      %p111 = por %p109, %p110
      %p112 = scmp.ne.s32.totalorder %s103, %s104
      %p113 = scmp.eq.s32.totalorder %s16, 0
      %p114 = por %p112, %p113
      %p115 = scmp.ne.s32.totalorder %s103, %s104
      %p116 = scmp.eq.s32.totalorder %s17, 15
      %p117 = por %p115, %p116
      %p119 = scmp.ne.s32.totalorder %s104, %s118
      %p120 = scmp.eq.s32.totalorder %s17, 0
      %p121 = por %p119, %p120
      %s123 = sadd.s32 %s122, 1
      %p126 = scmp.eq.s32.totalorder %s11, 15
      %p127 = scmp.ne.s32.totalorder %s122, %s124
      %p128 = scmp.eq.s32.totalorder %s11, 0
      %p129 = por %p127, %p128
      %p130 = scmp.ne.s32.totalorder %s122, %s124
      %p131 = scmp.eq.s32.totalorder %s16, 15
      %p132 = por %p130, %p131
      %p133 = scmp.ne.s32.totalorder %s124, %s125
      %p134 = scmp.eq.s32.totalorder %s16, 0
      %p135 = por %p133, %p134
      %p136 = scmp.ne.s32.totalorder %s124, %s125
      %p137 = scmp.eq.s32.totalorder %s17, 15
      %p138 = por %p136, %p137
      %p140 = scmp.ne.s32.totalorder %s125, %s139
      %p141 = scmp.eq.s32.totalorder %s17, 0
      %p142 = por %p140, %p141
      %s143 = ssub.s32 %s11, %s18
      %p144 = scmp.eq.s32.totalorder %s143, 0
      %s146 = sadd.s32 %s145, 1
      %s147 = scalar_select %p144, %s145, %s146
      %p150 = pneg %p144
      %p151 = scmp.eq.s32.totalorder %s11, 15
      %p152 = por %p150, %p151
      %p153 = scmp.ne.s32.totalorder %s145, %s148
      %p154 = scmp.eq.s32.totalorder %s11, 0
      %p155 = por %p153, %p154
      %p156 = scmp.ne.s32.totalorder %s145, %s148
      %p157 = scmp.eq.s32.totalorder %s16, 15
      %p158 = por %p156, %p157
      %p159 = scmp.ne.s32.totalorder %s148, %s149
      %p160 = scmp.eq.s32.totalorder %s16, 0
      %p161 = por %p159, %p160
      %p162 = scmp.ne.s32.totalorder %s148, %s149
      %p163 = scmp.eq.s32.totalorder %s17, 15
      %p164 = por %p162, %p163
      %p166 = scmp.ne.s32.totalorder %s149, %s165
      %p167 = scmp.eq.s32.totalorder %s17, 0
      %p168 = por %p166, %p167
      %p169 = scmp.le.s32.totalorder 1, %s11
      %p170 = scmp.lt.s32.totalorder %s11, 17
      %p171 = pnand %p169, %p170
      %p172 = pneg %p171
      // Predicated region
      $region9: #{irednet_indrnn_forward.30} parent=5 // pred_check
        _
      $region10: #{irednet_indrnn_forward.30} parent=5 // pred_check_branch
        %174 = sbr.rel (%p171) target = $region12
      $region11: #{irednet_indrnn_forward.30} parent=5 // pred_region
        %s175 = ssub.s32 %s11, 1
        // Predicated region
        $region13: #{irednet_indrnn_forward.30} parent=11 // pred_check
          %p176 = pneg %p114
        $region14: #{irednet_indrnn_forward.30} parent=11 // pred_check_branch
          %178 = sbr.rel (%p176) target = $region16
        $region15: #{irednet_indrnn_forward.30} parent=11 // pred_region
          _
        $region16: #{irednet_indrnn_forward.30} parent=11 // pred_fallthru
          _
        // Predicated region
        $region17: #{irednet_indrnn_forward.30} parent=11 // pred_check
          %p179 = pneg %p135
        $region18: #{irednet_indrnn_forward.30} parent=11 // pred_check_branch
          %181 = sbr.rel (%p179) target = $region20
        $region19: #{irednet_indrnn_forward.30} parent=11 // pred_region
          _
        $region20: #{irednet_indrnn_forward.30} parent=11 // pred_fallthru
          _
      $region12: #{irednet_indrnn_forward.30} parent=5 // pred_fallthru
        _
      %p182 = scmp.lt.s32.totalorder %s11, 16
      // Predicated region
      $region21: #{irednet_indrnn_forward.30} parent=5 // pred_check
        %p183 = pneg %p182
      $region22: #{irednet_indrnn_forward.30} parent=5 // pred_check_branch
        %185 = sbr.rel (%p183) target = $region24
      $region23: #{irednet_indrnn_forward.30} parent=5 // pred_region
        // Predicated region
        $region25: #{irednet_indrnn_forward.30} parent=23 // pred_check
          %p186 = pneg %p31
        $region26: #{irednet_indrnn_forward.30} parent=23 // pred_check_branch
          %188 = sbr.rel (%p186) target = $region28
        $region27: #{irednet_indrnn_forward.30} parent=23 // pred_region
          %s189 = sand.u32 %s21, 1
          %s190 = sand.u32 %s21, 1
          %s191 = smul.addr %s190, 48
          %s192 = scalar_lea.vmem [#allocation2], %s191
          %s193 = smul.addr %s11, 3
          %s194 = smul.addr %s193, 8
          %s195 = scalar_lea.vmem %s0, %s194
          // Predicated region
          $region29: #{irednet_indrnn_forward.30} parent=27 // pred_check
            _
          $region30: #{irednet_indrnn_forward.30} parent=27 // pred_check_branch
            %197 = sbr.rel (0) target = $region32
          $region31: #{irednet_indrnn_forward.30} parent=27 // pred_region
            // Predicated region
            $region33: #{irednet_indrnn_forward.30} parent=31 // pred_check
              _
            $region34: #{irednet_indrnn_forward.30} parent=31 // pred_check_branch
              %199 = sbr.rel (0) target = $region36
            $region35: #{irednet_indrnn_forward.30} parent=31 // pred_region
              // Predicated region
              $region48: #{irednet_indrnn_forward.30} parent=35 // pred_check
                _
              $region49: #{irednet_indrnn_forward.30} parent=35 // pred_check_branch
                %225 = sbr.rel (0) target = $region51
              $region50: #{irednet_indrnn_forward.30} parent=35 // pred_region
                loop: start=0, step=1, limit=1
                $region52: #{irednet_indrnn_forward.30} parent=50 // loop_pre_header
                  _
                $region53: #{irednet_indrnn_forward.30} parent=50 // loop_header
                  %s227 = sphi 0, %s231
                  %p228 = scmp.ge.s32.totalorder %s227, 1
                  %s232 = sphi %s195, %s195
                  %s233 = sphi %s192, %s192
                $region54: #{irednet_indrnn_forward.30} parent=50 // loop_header_branch
                  %230 = sbr.rel (%p228) target = $region58
                $region55: #{irednet_indrnn_forward.30} parent=50 // loop_body
                  %v234 = vld [vmem:[%s232] sm:$0xff]
                  %235 = vst [vmem:[%s233] sm:$0xff] %v234
                  %v236 = vld [vmem:[%s232 + $0x8] sm:$0xff]
                  %237 = vst [vmem:[%s233 + $0x8] sm:$0xff] %v236
                  %v238 = vld [vmem:[%s232 + $0x10] sm:$0xff]
                  %239 = vst [vmem:[%s233 + $0x10] sm:$0xff] %v238
                  %v240 = vld [vmem:[%s232 + $0x1b0] sm:$0xff]
                  %241 = vst [vmem:[%s233 + $0x18] sm:$0xff] %v240
                  %v242 = vld [vmem:[%s232 + $0x1b8] sm:$0xff]
                  %243 = vst [vmem:[%s233 + $0x20] sm:$0xff] %v242
                  %v244 = vld [vmem:[%s232 + $0x1c0] sm:$0xff]
                  %245 = vst [vmem:[%s233 + $0x28] sm:$0xff] %v244
                $region56: #{irednet_indrnn_forward.30} parent=50 // loop_footer
                  %s231 = sadd.s32 1, %s227
                $region57: #{irednet_indrnn_forward.30} parent=50 // loop_footer_branch
                  %226 = sbr.rel target = $region53
                $region58: #{irednet_indrnn_forward.30} parent=50 // loop_exit
                  _
              $region51: #{irednet_indrnn_forward.30} parent=35 // pred_fallthru
                _
              // Predicated region
              $region59: #{irednet_indrnn_forward.30} parent=35 // pred_check
                _
              $region60: #{irednet_indrnn_forward.30} parent=35 // pred_check_branch
                %247 = sbr.rel target = $region62
              $region61: #{irednet_indrnn_forward.30} parent=35 // pred_region
                _
              $region62: #{irednet_indrnn_forward.30} parent=35 // pred_fallthru
                _
            $region36: #{irednet_indrnn_forward.30} parent=31 // pred_fallthru
              _
            // Predicated region
            $region37: #{irednet_indrnn_forward.30} parent=31 // pred_check
              _
            $region38: #{irednet_indrnn_forward.30} parent=31 // pred_check_branch
              %201 = sbr.rel target = $region40
            $region39: #{irednet_indrnn_forward.30} parent=31 // pred_region
              %s203 = ssub.s32 256, 1
              loop: start=0, step=1, limit=1
              $region41: #{irednet_indrnn_forward.30} parent=39 // loop_pre_header
                _
              $region42: #{irednet_indrnn_forward.30} parent=39 // loop_header
                %s205 = sphi 0, %s209
                %p206 = scmp.ge.s32.totalorder %s205, 1
                %s210 = sphi %s195, %s195
                %s211 = sphi %s192, %s192
              $region43: #{irednet_indrnn_forward.30} parent=39 // loop_header_branch
                %208 = sbr.rel (%p206) target = $region47
              $region44: #{irednet_indrnn_forward.30} parent=39 // loop_body
                %v212 = vld [vmem:[%s210] sm:%s203]
                %213 = vst [vmem:[%s211] sm:%s203] %v212
                %v214 = vld [vmem:[%s210 + $0x8] sm:%s203]
                %215 = vst [vmem:[%s211 + $0x8] sm:%s203] %v214
                %v216 = vld [vmem:[%s210 + $0x10] sm:%s203]
                %217 = vst [vmem:[%s211 + $0x10] sm:%s203] %v216
                %v218 = vld [vmem:[%s210 + $0x1b0] sm:%s203]
                %219 = vst [vmem:[%s211 + $0x18] sm:%s203] %v218
                %v220 = vld [vmem:[%s210 + $0x1b8] sm:%s203]
                %221 = vst [vmem:[%s211 + $0x20] sm:%s203] %v220
                %v222 = vld [vmem:[%s210 + $0x1c0] sm:%s203]
                %223 = vst [vmem:[%s211 + $0x28] sm:%s203] %v222
              $region45: #{irednet_indrnn_forward.30} parent=39 // loop_footer
                %s209 = sadd.s32 1, %s205
              $region46: #{irednet_indrnn_forward.30} parent=39 // loop_footer_branch
                %204 = sbr.rel target = $region42
              $region47: #{irednet_indrnn_forward.30} parent=39 // loop_exit
                _
            $region40: #{irednet_indrnn_forward.30} parent=31 // pred_fallthru
              _
          $region32: #{irednet_indrnn_forward.30} parent=27 // pred_fallthru
            _
          %248 = vnop
        $region28: #{irednet_indrnn_forward.30} parent=23 // pred_fallthru
          _
        // Predicated region
        $region63: #{irednet_indrnn_forward.30} parent=23 // pred_check
          %p249 = pneg %p59
        $region64: #{irednet_indrnn_forward.30} parent=23 // pred_check_branch
          %251 = sbr.rel (%p249) target = $region66
        $region65: #{irednet_indrnn_forward.30} parent=23 // pred_region
          %s252 = sand.u32 %s49, 1
          %s253 = sand.u32 %s49, 1
          %s254 = smul.addr %s253, 48
          %s255 = scalar_lea.vmem [#allocation3], %s254
          %s256 = sadd.s32 %s11, 1
          %s257 = smul.addr %s256, 3
          %s258 = smul.addr %s257, 8
          %s259 = scalar_lea.vmem %s1, %s258
          // Predicated region
          $region67: #{irednet_indrnn_forward.30} parent=65 // pred_check
            _
          $region68: #{irednet_indrnn_forward.30} parent=65 // pred_check_branch
            %261 = sbr.rel (0) target = $region70
          $region69: #{irednet_indrnn_forward.30} parent=65 // pred_region
            // Predicated region
            $region71: #{irednet_indrnn_forward.30} parent=69 // pred_check
              _
            $region72: #{irednet_indrnn_forward.30} parent=69 // pred_check_branch
              %263 = sbr.rel (0) target = $region74
            $region73: #{irednet_indrnn_forward.30} parent=69 // pred_region
              // Predicated region
              $region86: #{irednet_indrnn_forward.30} parent=73 // pred_check
                _
              $region87: #{irednet_indrnn_forward.30} parent=73 // pred_check_branch
                %289 = sbr.rel (0) target = $region89
              $region88: #{irednet_indrnn_forward.30} parent=73 // pred_region
                loop: start=0, step=1, limit=1
                $region90: #{irednet_indrnn_forward.30} parent=88 // loop_pre_header
                  _
                $region91: #{irednet_indrnn_forward.30} parent=88 // loop_header
                  %s291 = sphi 0, %s295
                  %p292 = scmp.ge.s32.totalorder %s291, 1
                  %s296 = sphi %s259, %s259
                  %s297 = sphi %s255, %s255
                $region92: #{irednet_indrnn_forward.30} parent=88 // loop_header_branch
                  %294 = sbr.rel (%p292) target = $region96
                $region93: #{irednet_indrnn_forward.30} parent=88 // loop_body
                  %v298 = vld [vmem:[%s296] sm:$0xff]
                  %299 = vst [vmem:[%s297] sm:$0xff] %v298
                  %v300 = vld [vmem:[%s296 + $0x8] sm:$0xff]
                  %301 = vst [vmem:[%s297 + $0x8] sm:$0xff] %v300
                  %v302 = vld [vmem:[%s296 + $0x10] sm:$0xff]
                  %303 = vst [vmem:[%s297 + $0x10] sm:$0xff] %v302
                  %v304 = vld [vmem:[%s296 + $0x1b0] sm:$0xff]
                  %305 = vst [vmem:[%s297 + $0x18] sm:$0xff] %v304
                  %v306 = vld [vmem:[%s296 + $0x1b8] sm:$0xff]
                  %307 = vst [vmem:[%s297 + $0x20] sm:$0xff] %v306
                  %v308 = vld [vmem:[%s296 + $0x1c0] sm:$0xff]
                  %309 = vst [vmem:[%s297 + $0x28] sm:$0xff] %v308
                $region94: #{irednet_indrnn_forward.30} parent=88 // loop_footer
                  %s295 = sadd.s32 1, %s291
                $region95: #{irednet_indrnn_forward.30} parent=88 // loop_footer_branch
                  %290 = sbr.rel target = $region91
                $region96: #{irednet_indrnn_forward.30} parent=88 // loop_exit
                  _
              $region89: #{irednet_indrnn_forward.30} parent=73 // pred_fallthru
                _
              // Predicated region
              $region97: #{irednet_indrnn_forward.30} parent=73 // pred_check
                _
              $region98: #{irednet_indrnn_forward.30} parent=73 // pred_check_branch
                %311 = sbr.rel target = $region100
              $region99: #{irednet_indrnn_forward.30} parent=73 // pred_region
                _
              $region100: #{irednet_indrnn_forward.30} parent=73 // pred_fallthru
                _
            $region74: #{irednet_indrnn_forward.30} parent=69 // pred_fallthru
              _
            // Predicated region
            $region75: #{irednet_indrnn_forward.30} parent=69 // pred_check
              _
            $region76: #{irednet_indrnn_forward.30} parent=69 // pred_check_branch
              %265 = sbr.rel target = $region78
            $region77: #{irednet_indrnn_forward.30} parent=69 // pred_region
              %s267 = ssub.s32 256, 1
              loop: start=0, step=1, limit=1
              $region79: #{irednet_indrnn_forward.30} parent=77 // loop_pre_header
                _
              $region80: #{irednet_indrnn_forward.30} parent=77 // loop_header
                %s269 = sphi 0, %s273
                %p270 = scmp.ge.s32.totalorder %s269, 1
                %s274 = sphi %s259, %s259
                %s275 = sphi %s255, %s255
              $region81: #{irednet_indrnn_forward.30} parent=77 // loop_header_branch
                %272 = sbr.rel (%p270) target = $region85
              $region82: #{irednet_indrnn_forward.30} parent=77 // loop_body
                %v276 = vld [vmem:[%s274] sm:%s267]
                %277 = vst [vmem:[%s275] sm:%s267] %v276
                %v278 = vld [vmem:[%s274 + $0x8] sm:%s267]
                %279 = vst [vmem:[%s275 + $0x8] sm:%s267] %v278
                %v280 = vld [vmem:[%s274 + $0x10] sm:%s267]
                %281 = vst [vmem:[%s275 + $0x10] sm:%s267] %v280
                %v282 = vld [vmem:[%s274 + $0x1b0] sm:%s267]
                %283 = vst [vmem:[%s275 + $0x18] sm:%s267] %v282
                %v284 = vld [vmem:[%s274 + $0x1b8] sm:%s267]
                %285 = vst [vmem:[%s275 + $0x20] sm:%s267] %v284
                %v286 = vld [vmem:[%s274 + $0x1c0] sm:%s267]
                %287 = vst [vmem:[%s275 + $0x28] sm:%s267] %v286
              $region83: #{irednet_indrnn_forward.30} parent=77 // loop_footer
                %s273 = sadd.s32 1, %s269
              $region84: #{irednet_indrnn_forward.30} parent=77 // loop_footer_branch
                %268 = sbr.rel target = $region80
              $region85: #{irednet_indrnn_forward.30} parent=77 // loop_exit
                _
            $region78: #{irednet_indrnn_forward.30} parent=69 // pred_fallthru
              _
          $region70: #{irednet_indrnn_forward.30} parent=65 // pred_fallthru
            _
          %312 = vnop
        $region66: #{irednet_indrnn_forward.30} parent=23 // pred_fallthru
          _
        // Predicated region
        $region101: #{irednet_indrnn_forward.30} parent=23 // pred_check
          %p313 = pneg %p87
        $region102: #{irednet_indrnn_forward.30} parent=23 // pred_check_branch
          %315 = sbr.rel (%p313) target = $region104
        $region103: #{irednet_indrnn_forward.30} parent=23 // pred_region
          %s316 = sand.u32 %s77, 1
          %s317 = sand.u32 %s77, 1
          %s318 = smul.addr %s317, 48
          %s319 = scalar_lea.vmem [#allocation4], %s318
          %s320 = sadd.s32 %s11, 2
          %s321 = smul.addr %s320, 3
          %s322 = smul.addr %s321, 8
          %s323 = scalar_lea.vmem %s2, %s322
          // Predicated region
          $region105: #{irednet_indrnn_forward.30} parent=103 // pred_check
            _
          $region106: #{irednet_indrnn_forward.30} parent=103 // pred_check_branch
            %325 = sbr.rel (0) target = $region108
          $region107: #{irednet_indrnn_forward.30} parent=103 // pred_region
            // Predicated region
            $region109: #{irednet_indrnn_forward.30} parent=107 // pred_check
              _
            $region110: #{irednet_indrnn_forward.30} parent=107 // pred_check_branch
              %327 = sbr.rel (0) target = $region112
            $region111: #{irednet_indrnn_forward.30} parent=107 // pred_region
              // Predicated region
              $region124: #{irednet_indrnn_forward.30} parent=111 // pred_check
                _
              $region125: #{irednet_indrnn_forward.30} parent=111 // pred_check_branch
                %353 = sbr.rel (0) target = $region127
              $region126: #{irednet_indrnn_forward.30} parent=111 // pred_region
                loop: start=0, step=1, limit=1
                $region128: #{irednet_indrnn_forward.30} parent=126 // loop_pre_header
                  _
                $region129: #{irednet_indrnn_forward.30} parent=126 // loop_header
                  %s355 = sphi 0, %s359
                  %p356 = scmp.ge.s32.totalorder %s355, 1
                  %s360 = sphi %s323, %s323
                  %s361 = sphi %s319, %s319
                $region130: #{irednet_indrnn_forward.30} parent=126 // loop_header_branch
                  %358 = sbr.rel (%p356) target = $region134
                $region131: #{irednet_indrnn_forward.30} parent=126 // loop_body
                  %v362 = vld [vmem:[%s360] sm:$0xff]
                  %363 = vst [vmem:[%s361] sm:$0xff] %v362
                  %v364 = vld [vmem:[%s360 + $0x8] sm:$0xff]
                  %365 = vst [vmem:[%s361 + $0x8] sm:$0xff] %v364
                  %v366 = vld [vmem:[%s360 + $0x10] sm:$0xff]
                  %367 = vst [vmem:[%s361 + $0x10] sm:$0xff] %v366
                  %v368 = vld [vmem:[%s360 + $0x1b0] sm:$0xff]
                  %369 = vst [vmem:[%s361 + $0x18] sm:$0xff] %v368
                  %v370 = vld [vmem:[%s360 + $0x1b8] sm:$0xff]
                  %371 = vst [vmem:[%s361 + $0x20] sm:$0xff] %v370
                  %v372 = vld [vmem:[%s360 + $0x1c0] sm:$0xff]
                  %373 = vst [vmem:[%s361 + $0x28] sm:$0xff] %v372
                $region132: #{irednet_indrnn_forward.30} parent=126 // loop_footer
                  %s359 = sadd.s32 1, %s355
                $region133: #{irednet_indrnn_forward.30} parent=126 // loop_footer_branch
                  %354 = sbr.rel target = $region129
                $region134: #{irednet_indrnn_forward.30} parent=126 // loop_exit
                  _
              $region127: #{irednet_indrnn_forward.30} parent=111 // pred_fallthru
                _
              // Predicated region
              $region135: #{irednet_indrnn_forward.30} parent=111 // pred_check
                _
              $region136: #{irednet_indrnn_forward.30} parent=111 // pred_check_branch
                %375 = sbr.rel target = $region138
              $region137: #{irednet_indrnn_forward.30} parent=111 // pred_region
                _
              $region138: #{irednet_indrnn_forward.30} parent=111 // pred_fallthru
                _
            $region112: #{irednet_indrnn_forward.30} parent=107 // pred_fallthru
              _
            // Predicated region
            $region113: #{irednet_indrnn_forward.30} parent=107 // pred_check
              _
            $region114: #{irednet_indrnn_forward.30} parent=107 // pred_check_branch
              %329 = sbr.rel target = $region116
            $region115: #{irednet_indrnn_forward.30} parent=107 // pred_region
              %s331 = ssub.s32 256, 1
              loop: start=0, step=1, limit=1
              $region117: #{irednet_indrnn_forward.30} parent=115 // loop_pre_header
                _
              $region118: #{irednet_indrnn_forward.30} parent=115 // loop_header
                %s333 = sphi 0, %s337
                %p334 = scmp.ge.s32.totalorder %s333, 1
                %s338 = sphi %s323, %s323
                %s339 = sphi %s319, %s319
              $region119: #{irednet_indrnn_forward.30} parent=115 // loop_header_branch
                %336 = sbr.rel (%p334) target = $region123
              $region120: #{irednet_indrnn_forward.30} parent=115 // loop_body
                %v340 = vld [vmem:[%s338] sm:%s331]
                %341 = vst [vmem:[%s339] sm:%s331] %v340
                %v342 = vld [vmem:[%s338 + $0x8] sm:%s331]
                %343 = vst [vmem:[%s339 + $0x8] sm:%s331] %v342
                %v344 = vld [vmem:[%s338 + $0x10] sm:%s331]
                %345 = vst [vmem:[%s339 + $0x10] sm:%s331] %v344
                %v346 = vld [vmem:[%s338 + $0x1b0] sm:%s331]
                %347 = vst [vmem:[%s339 + $0x18] sm:%s331] %v346
                %v348 = vld [vmem:[%s338 + $0x1b8] sm:%s331]
                %349 = vst [vmem:[%s339 + $0x20] sm:%s331] %v348
                %v350 = vld [vmem:[%s338 + $0x1c0] sm:%s331]
                %351 = vst [vmem:[%s339 + $0x28] sm:%s331] %v350
              $region121: #{irednet_indrnn_forward.30} parent=115 // loop_footer
                %s337 = sadd.s32 1, %s333
              $region122: #{irednet_indrnn_forward.30} parent=115 // loop_footer_branch
                %332 = sbr.rel target = $region118
              $region123: #{irednet_indrnn_forward.30} parent=115 // loop_exit
                _
            $region116: #{irednet_indrnn_forward.30} parent=107 // pred_fallthru
              _
          $region108: #{irednet_indrnn_forward.30} parent=103 // pred_fallthru
            _
          %376 = vnop
        $region104: #{irednet_indrnn_forward.30} parent=23 // pred_fallthru
          _
      $region24: #{irednet_indrnn_forward.30} parent=5 // pred_fallthru
        _
      %p377 = scmp.le.s32.totalorder 1, %s11
      %p378 = scmp.lt.s32.totalorder %s11, 17
      %p379 = pnand %p377, %p378
      %p380 = pneg %p379
      // Predicated region
      $region139: #{irednet_indrnn_forward.30} parent=5 // pred_check
        _
      $region140: #{irednet_indrnn_forward.30} parent=5 // pred_check_branch
        %382 = sbr.rel (%p379) target = $region142
      $region141: #{irednet_indrnn_forward.30} parent=5 // pred_region
        %s383 = ssub.s32 %s11, 1
        %s384 = sand.u32 %s24, 1
        %s385 = sand.u32 %s24, 1
        %s386 = smul.addr %s385, 48
        %s387 = scalar_lea.vmem [#allocation2], %s386
        // Predicated region
        $region143: #{irednet_indrnn_forward.30} parent=141 // pred_check
          %p388 = pneg %p37
        $region144: #{irednet_indrnn_forward.30} parent=141 // pred_check_branch
          %390 = sbr.rel (%p388) target = $region146
        $region145: #{irednet_indrnn_forward.30} parent=141 // pred_region
          _
        $region146: #{irednet_indrnn_forward.30} parent=141 // pred_fallthru
          _
        %s391 = sand.u32 %s52, 1
        %s392 = sand.u32 %s52, 1
        %s393 = smul.addr %s392, 48
        %s394 = scalar_lea.vmem [#allocation3], %s393
        // Predicated region
        $region147: #{irednet_indrnn_forward.30} parent=141 // pred_check
          %p395 = pneg %p65
        $region148: #{irednet_indrnn_forward.30} parent=141 // pred_check_branch
          %397 = sbr.rel (%p395) target = $region150
        $region149: #{irednet_indrnn_forward.30} parent=141 // pred_region
          _
        $region150: #{irednet_indrnn_forward.30} parent=141 // pred_fallthru
          _
        %s398 = sand.u32 %s80, 1
        %s399 = sand.u32 %s80, 1
        %s400 = smul.addr %s399, 48
        %s401 = scalar_lea.vmem [#allocation4], %s400
        // Predicated region
        $region151: #{irednet_indrnn_forward.30} parent=141 // pred_check
          %p402 = pneg %p93
        $region152: #{irednet_indrnn_forward.30} parent=141 // pred_check_branch
          %404 = sbr.rel (%p402) target = $region154
        $region153: #{irednet_indrnn_forward.30} parent=141 // pred_region
          _
        $region154: #{irednet_indrnn_forward.30} parent=141 // pred_fallthru
          _
        %s405 = sand.u32 %s24, 1
        %s406 = sand.u32 %s24, 1
        %s407 = smul.addr %s406, 48
        %s408 = scalar_lea.vmem [#allocation2], %s407
        %p409 = pneg %p37
        %p410 = pneg %p34
        %s411 = sand.u32 %s52, 1
        %s412 = sand.u32 %s52, 1
        %s413 = smul.addr %s412, 48
        %s414 = scalar_lea.vmem [#allocation3], %s413
        %p415 = pneg %p65
        %p416 = pneg %p62
        %s417 = sand.u32 %s80, 1
        %s418 = sand.u32 %s80, 1
        %s419 = smul.addr %s418, 48
        %s420 = scalar_lea.vmem [#allocation4], %s419
        %p421 = pneg %p93
        %p422 = pneg %p90
        %p423 = pneg %p114
        %p424 = pneg %p111
        %p425 = pneg %p135
        %p426 = pneg %p132
        %p427 = pneg %p161
        %p428 = pneg %p158
        %s429 = sand.u32 %s148, 1
        %s430 = sand.u32 %s148, 1
        %s431 = smul.addr %s430, 32
        %s432 = scalar_lea.vmem [#allocation5], %s431
        %s433 = sadd.s32 %s16, 1
        %s434 = sadd.s32 %s16, 2
        %v436 = vld [vmem:[%s387] sm:$0xff]
        %v437 = vld [vmem:[%s387 + $0x8] sm:$0xff]
        %v438 = vld [vmem:[%s387 + $0x10] sm:$0x3]
        %v439 = vld [vmem:[%s387 + $0x18] sm:$0xff]
        %v440 = vld [vmem:[%s387 + $0x20] sm:$0xff]
        %v441 = vld [vmem:[%s387 + $0x28] sm:$0x3]
        %v442 = vld [vmem:[%s394] sm:$0xff]
        %v443 = vld [vmem:[%s394 + $0x8] sm:$0xff]
        %v444 = vld [vmem:[%s394 + $0x10] sm:$0x3]
        %v445 = vld [vmem:[%s394 + $0x18] sm:$0xff]
        %v446 = vld [vmem:[%s394 + $0x20] sm:$0xff]
        %v447 = vld [vmem:[%s394 + $0x28] sm:$0x3]
        %v448 = vld [vmem:[%s401] sm:$0xff]
        %v449 = vld [vmem:[%s401 + $0x8] sm:$0xff]
        %v450 = vld [vmem:[%s401 + $0x10] sm:$0x3]
        %v451 = vld [vmem:[%s401 + $0x18] sm:$0xff]
        %v452 = vld [vmem:[%s401 + $0x20] sm:$0xff]
        %v453 = vld [vmem:[%s401 + $0x28] sm:$0x3]
        %v454 = vld [vmem:[%s3] sm:$0x3f]
        %v455 = vpack.c.bf16 %v437, %v436
        %v456 = vpack.c.bf16 %v440, %v439
        %v457 = vpack.c.bf16 %v454, %v454
        %vm464 = vcmask 1046528
        %v465 = vrot.slane %v436, 1
        %v466 = vrot.slane %v437, 1
        %v467 = vsel %vm464, %v465, %v466
        %v468 = vrot.slane %v438, 1
        %v469 = vsel %vm464, %v466, %v468
        %v470 = vrot.slane %v439, 1
        %v471 = vrot.slane %v440, 1
        %v472 = vsel %vm464, %v470, %v471
        %v473 = vrot.slane %v441, 1
        %v474 = vsel %vm464, %v471, %v473
        %s479 = scalar_lea.vmem %s3, 8
        %v480 = vld [vmem:[%s479] sm:$0x3f]
        %v481 = vpack.c.bf16 %v469, %v467
        %v482 = vpack.c.bf16 %v474, %v472
        %v483 = vpack.c.bf16 %v480, %v480
        %vm484 = vcmask 48128
        %v486 = vsel %vm484, %v481, 0
        %v489 = vsel %vm484, %v482, 0
        %vm491 = vcmask 1042432
        %v493 = vsel %vm491, %v483, 0
        %495 = vmatpush.bf16.msra.mxu0 0
        %496 = vmatpush.bf16.msra.mxu0 0
        %497 = vmatpush.bf16.msra.mxu0 0
        %498 = vmatpush.bf16.msra.mxu0 0
        %499 = vmatpush.bf16.msra.mxu0 0
        %500 = vmatpush.bf16.msra.mxu0 0
        %501 = vmatpush.bf16.msra.mxu0 0
        %502 = vmatpush.bf16.msra.mxu0 %v493
        %503 = vmatmul.bf16.gmra.mxu0 %v486
        %v504 = vpop.f32.mrf.mxu0
        %v505 = vadd.f32 0.0, %v504
        %v506 = vpop.f32.mrf.mxu0
        %v507 = vadd.f32 0.0, %v506
        %508 = vmatmul.bf16.gmra.mxu0 %v489
        %v509 = vpop.f32.mrf.mxu0
        %v510 = vadd.f32 0.0, %v509
        %v511 = vpop.f32.mrf.mxu0
        %v512 = vadd.f32 0.0, %v511
        %513 = vdwg.mxu0
        %v515 = vsel %vm484, %v455, 0
        %v518 = vsel %vm484, %v456, 0
        %v521 = vsel %vm491, %v457, 0
        %523 = vmatpush.bf16.msra.mxu0 0
        %524 = vmatpush.bf16.msra.mxu0 0
        %525 = vmatpush.bf16.msra.mxu0 0
        %526 = vmatpush.bf16.msra.mxu0 0
        %527 = vmatpush.bf16.msra.mxu0 0
        %528 = vmatpush.bf16.msra.mxu0 0
        %529 = vmatpush.bf16.msra.mxu0 0
        %530 = vmatpush.bf16.msra.mxu0 %v521
        %531 = vmatmul.bf16.gmra.mxu0 %v515
        %v532 = vpop.f32.mrf.mxu0
        %v533 = vadd.f32 %v505, %v532
        %v534 = vpop.f32.mrf.mxu0
        %v535 = vadd.f32 %v507, %v534
        %536 = vmatmul.bf16.gmra.mxu0 %v518
        %v537 = vpop.f32.mrf.mxu0
        %v538 = vadd.f32 %v510, %v537
        %v539 = vpop.f32.mrf.mxu0
        %v540 = vadd.f32 %v512, %v539
        %541 = vdwg.mxu0
        %vm542 = vcmask 1045504
        %v543 = vrot.slane %v436, 2
        %v544 = vrot.slane %v437, 2
        %v545 = vsel %vm542, %v543, %v544
        %v546 = vrot.slane %v438, 2
        %v547 = vsel %vm542, %v544, %v546
        %v548 = vrot.slane %v439, 2
        %v549 = vrot.slane %v440, 2
        %v550 = vsel %vm542, %v548, %v549
        %v551 = vrot.slane %v441, 2
        %v552 = vsel %vm542, %v549, %v551
        %s557 = scalar_lea.vmem %s3, 16
        %v558 = vld [vmem:[%s557] sm:$0x3f]
        %v559 = vpack.c.bf16 %v547, %v545
        %v560 = vpack.c.bf16 %v552, %v550
        %v561 = vpack.c.bf16 %v558, %v558
        %v563 = vsel %vm484, %v559, 0
        %v566 = vsel %vm484, %v560, 0
        %v569 = vsel %vm491, %v561, 0
        %571 = vmatpush.bf16.msra.mxu0 0
        %572 = vmatpush.bf16.msra.mxu0 0
        %573 = vmatpush.bf16.msra.mxu0 0
        %574 = vmatpush.bf16.msra.mxu0 0
        %575 = vmatpush.bf16.msra.mxu0 0
        %576 = vmatpush.bf16.msra.mxu0 0
        %577 = vmatpush.bf16.msra.mxu0 0
        %578 = vmatpush.bf16.msra.mxu0 %v569
        %579 = vmatmul.bf16.gmra.mxu0 %v563
        %v580 = vpop.f32.mrf.mxu0
        %v581 = vadd.f32 0.0, %v580
        %v582 = vpop.f32.mrf.mxu0
        %v583 = vadd.f32 0.0, %v582
        %584 = vmatmul.bf16.gmra.mxu0 %v566
        %v585 = vpop.f32.mrf.mxu0
        %v586 = vadd.f32 0.0, %v585
        %v587 = vpop.f32.mrf.mxu0
        %v588 = vadd.f32 0.0, %v587
        %589 = vdwg.mxu0
        %v590 = vadd.f32 %v533, %v581
        %v591 = vadd.f32 %v535, %v583
        %v592 = vadd.f32 %v538, %v586
        %v593 = vadd.f32 %v540, %v588
        %s594 = scalar_lea.vmem %s3, 24
        %v595 = vld [vmem:[%s594] sm:$0x3f]
        %v596 = vpack.c.bf16 %v443, %v442
        %v597 = vpack.c.bf16 %v446, %v445
        %v598 = vpack.c.bf16 %v595, %v595
        %v600 = vsel %vm484, %v596, 0
        %v603 = vsel %vm484, %v597, 0
        %v606 = vsel %vm491, %v598, 0
        %608 = vmatpush.bf16.msra.mxu0 0
        %609 = vmatpush.bf16.msra.mxu0 0
        %610 = vmatpush.bf16.msra.mxu0 0
        %611 = vmatpush.bf16.msra.mxu0 0
        %612 = vmatpush.bf16.msra.mxu0 0
        %613 = vmatpush.bf16.msra.mxu0 0
        %614 = vmatpush.bf16.msra.mxu0 0
        %615 = vmatpush.bf16.msra.mxu0 %v606
        %616 = vmatmul.bf16.gmra.mxu0 %v600
        %v617 = vpop.f32.mrf.mxu0
        %v618 = vadd.f32 0.0, %v617
        %v619 = vpop.f32.mrf.mxu0
        %v620 = vadd.f32 0.0, %v619
        %621 = vmatmul.bf16.gmra.mxu0 %v603
        %v622 = vpop.f32.mrf.mxu0
        %v623 = vadd.f32 0.0, %v622
        %v624 = vpop.f32.mrf.mxu0
        %v625 = vadd.f32 0.0, %v624
        %626 = vdwg.mxu0
        %v627 = vadd.f32 %v590, %v618
        %v628 = vadd.f32 %v591, %v620
        %v629 = vadd.f32 %v592, %v623
        %v630 = vadd.f32 %v593, %v625
        %v637 = vrot.slane %v442, 1
        %v638 = vrot.slane %v443, 1
        %v639 = vsel %vm464, %v637, %v638
        %v640 = vrot.slane %v444, 1
        %v641 = vsel %vm464, %v638, %v640
        %v642 = vrot.slane %v445, 1
        %v643 = vrot.slane %v446, 1
        %v644 = vsel %vm464, %v642, %v643
        %v645 = vrot.slane %v447, 1
        %v646 = vsel %vm464, %v643, %v645
        %s651 = scalar_lea.vmem %s3, 32
        %v652 = vld [vmem:[%s651] sm:$0x3f]
        %v653 = vpack.c.bf16 %v641, %v639
        %v654 = vpack.c.bf16 %v646, %v644
        %v655 = vpack.c.bf16 %v652, %v652
        %v657 = vsel %vm484, %v653, 0
        %v660 = vsel %vm484, %v654, 0
        %v663 = vsel %vm491, %v655, 0
        %665 = vmatpush.bf16.msra.mxu0 0
        %666 = vmatpush.bf16.msra.mxu0 0
        %667 = vmatpush.bf16.msra.mxu0 0
        %668 = vmatpush.bf16.msra.mxu0 0
        %669 = vmatpush.bf16.msra.mxu0 0
        %670 = vmatpush.bf16.msra.mxu0 0
        %671 = vmatpush.bf16.msra.mxu0 0
        %672 = vmatpush.bf16.msra.mxu0 %v663
        %673 = vmatmul.bf16.gmra.mxu0 %v657
        %v674 = vpop.f32.mrf.mxu0
        %v675 = vadd.f32 0.0, %v674
        %v676 = vpop.f32.mrf.mxu0
        %v677 = vadd.f32 0.0, %v676
        %678 = vmatmul.bf16.gmra.mxu0 %v660
        %v679 = vpop.f32.mrf.mxu0
        %v680 = vadd.f32 0.0, %v679
        %v681 = vpop.f32.mrf.mxu0
        %v682 = vadd.f32 0.0, %v681
        %683 = vdwg.mxu0
        %v684 = vadd.f32 %v627, %v675
        %v685 = vadd.f32 %v628, %v677
        %v686 = vadd.f32 %v629, %v680
        %v687 = vadd.f32 %v630, %v682
        %v688 = vrot.slane %v442, 2
        %v689 = vrot.slane %v443, 2
        %v690 = vsel %vm542, %v688, %v689
        %v691 = vrot.slane %v444, 2
        %v692 = vsel %vm542, %v689, %v691
        %v693 = vrot.slane %v445, 2
        %v694 = vrot.slane %v446, 2
        %v695 = vsel %vm542, %v693, %v694
        %v696 = vrot.slane %v447, 2
        %v697 = vsel %vm542, %v694, %v696
        %s702 = scalar_lea.vmem %s3, 40
        %v703 = vld [vmem:[%s702] sm:$0x3f]
        %v704 = vpack.c.bf16 %v692, %v690
        %v705 = vpack.c.bf16 %v697, %v695
        %v706 = vpack.c.bf16 %v703, %v703
        %v708 = vsel %vm484, %v704, 0
        %v711 = vsel %vm484, %v705, 0
        %v714 = vsel %vm491, %v706, 0
        %716 = vmatpush.bf16.msra.mxu0 0
        %717 = vmatpush.bf16.msra.mxu0 0
        %718 = vmatpush.bf16.msra.mxu0 0
        %719 = vmatpush.bf16.msra.mxu0 0
        %720 = vmatpush.bf16.msra.mxu0 0
        %721 = vmatpush.bf16.msra.mxu0 0
        %722 = vmatpush.bf16.msra.mxu0 0
        %723 = vmatpush.bf16.msra.mxu0 %v714
        %724 = vmatmul.bf16.gmra.mxu0 %v708
        %v725 = vpop.f32.mrf.mxu0
        %v726 = vadd.f32 0.0, %v725
        %v727 = vpop.f32.mrf.mxu0
        %v728 = vadd.f32 0.0, %v727
        %729 = vmatmul.bf16.gmra.mxu0 %v711
        %v730 = vpop.f32.mrf.mxu0
        %v731 = vadd.f32 0.0, %v730
        %v732 = vpop.f32.mrf.mxu0
        %v733 = vadd.f32 0.0, %v732
        %734 = vdwg.mxu0
        %v735 = vadd.f32 %v684, %v726
        %v736 = vadd.f32 %v685, %v728
        %v737 = vadd.f32 %v686, %v731
        %v738 = vadd.f32 %v687, %v733
        %s739 = scalar_lea.vmem %s3, 48
        %v740 = vld [vmem:[%s739] sm:$0x3f]
        %v741 = vpack.c.bf16 %v449, %v448
        %v742 = vpack.c.bf16 %v452, %v451
        %v743 = vpack.c.bf16 %v740, %v740
        %v745 = vsel %vm484, %v741, 0
        %v748 = vsel %vm484, %v742, 0
        %v751 = vsel %vm491, %v743, 0
        %753 = vmatpush.bf16.msra.mxu0 0
        %754 = vmatpush.bf16.msra.mxu0 0
        %755 = vmatpush.bf16.msra.mxu0 0
        %756 = vmatpush.bf16.msra.mxu0 0
        %757 = vmatpush.bf16.msra.mxu0 0
        %758 = vmatpush.bf16.msra.mxu0 0
        %759 = vmatpush.bf16.msra.mxu0 0
        %760 = vmatpush.bf16.msra.mxu0 %v751
        %761 = vmatmul.bf16.gmra.mxu0 %v745
        %v762 = vpop.f32.mrf.mxu0
        %v763 = vadd.f32 0.0, %v762
        %v764 = vpop.f32.mrf.mxu0
        %v765 = vadd.f32 0.0, %v764
        %766 = vmatmul.bf16.gmra.mxu0 %v748
        %v767 = vpop.f32.mrf.mxu0
        %v768 = vadd.f32 0.0, %v767
        %v769 = vpop.f32.mrf.mxu0
        %v770 = vadd.f32 0.0, %v769
        %771 = vdwg.mxu0
        %v772 = vadd.f32 %v735, %v763
        %v773 = vadd.f32 %v736, %v765
        %v774 = vadd.f32 %v737, %v768
        %v775 = vadd.f32 %v738, %v770
        %v782 = vrot.slane %v448, 1
        %v783 = vrot.slane %v449, 1
        %v784 = vsel %vm464, %v782, %v783
        %v785 = vrot.slane %v450, 1
        %v786 = vsel %vm464, %v783, %v785
        %v787 = vrot.slane %v451, 1
        %v788 = vrot.slane %v452, 1
        %v789 = vsel %vm464, %v787, %v788
        %v790 = vrot.slane %v453, 1
        %v791 = vsel %vm464, %v788, %v790
        %s796 = scalar_lea.vmem %s3, 56
        %v797 = vld [vmem:[%s796] sm:$0x3f]
        %v798 = vpack.c.bf16 %v786, %v784
        %v799 = vpack.c.bf16 %v791, %v789
        %v800 = vpack.c.bf16 %v797, %v797
        %v802 = vsel %vm484, %v798, 0
        %v805 = vsel %vm484, %v799, 0
        %v808 = vsel %vm491, %v800, 0
        %810 = vmatpush.bf16.msra.mxu0 0
        %811 = vmatpush.bf16.msra.mxu0 0
        %812 = vmatpush.bf16.msra.mxu0 0
        %813 = vmatpush.bf16.msra.mxu0 0
        %814 = vmatpush.bf16.msra.mxu0 0
        %815 = vmatpush.bf16.msra.mxu0 0
        %816 = vmatpush.bf16.msra.mxu0 0
        %817 = vmatpush.bf16.msra.mxu0 %v808
        %818 = vmatmul.bf16.gmra.mxu0 %v802
        %v819 = vpop.f32.mrf.mxu0
        %v820 = vadd.f32 0.0, %v819
        %v821 = vpop.f32.mrf.mxu0
        %v822 = vadd.f32 0.0, %v821
        %823 = vmatmul.bf16.gmra.mxu0 %v805
        %v824 = vpop.f32.mrf.mxu0
        %v825 = vadd.f32 0.0, %v824
        %v826 = vpop.f32.mrf.mxu0
        %v827 = vadd.f32 0.0, %v826
        %828 = vdwg.mxu0
        %v829 = vadd.f32 %v772, %v820
        %v830 = vadd.f32 %v773, %v822
        %v831 = vadd.f32 %v774, %v825
        %v832 = vadd.f32 %v775, %v827
        %v833 = vrot.slane %v448, 2
        %v834 = vrot.slane %v449, 2
        %v835 = vsel %vm542, %v833, %v834
        %v836 = vrot.slane %v450, 2
        %v837 = vsel %vm542, %v834, %v836
        %v838 = vrot.slane %v451, 2
        %v839 = vrot.slane %v452, 2
        %v840 = vsel %vm542, %v838, %v839
        %v841 = vrot.slane %v453, 2
        %v842 = vsel %vm542, %v839, %v841
        %s847 = scalar_lea.vmem %s3, 64
        %v848 = vld [vmem:[%s847] sm:$0x3f]
        %v849 = vpack.c.bf16 %v837, %v835
        %v850 = vpack.c.bf16 %v842, %v840
        %v851 = vpack.c.bf16 %v848, %v848
        %v853 = vsel %vm484, %v849, 0
        %v856 = vsel %vm484, %v850, 0
        %v859 = vsel %vm491, %v851, 0
        %861 = vmatpush.bf16.msra.mxu0 0
        %862 = vmatpush.bf16.msra.mxu0 0
        %863 = vmatpush.bf16.msra.mxu0 0
        %864 = vmatpush.bf16.msra.mxu0 0
        %865 = vmatpush.bf16.msra.mxu0 0
        %866 = vmatpush.bf16.msra.mxu0 0
        %867 = vmatpush.bf16.msra.mxu0 0
        %868 = vmatpush.bf16.msra.mxu0 %v859
        %869 = vmatmul.bf16.gmra.mxu0 %v853
        %v870 = vpop.f32.mrf.mxu0
        %v871 = vadd.f32 0.0, %v870
        %v872 = vpop.f32.mrf.mxu0
        %v873 = vadd.f32 0.0, %v872
        %874 = vmatmul.bf16.gmra.mxu0 %v856
        %v875 = vpop.f32.mrf.mxu0
        %v876 = vadd.f32 0.0, %v875
        %v877 = vpop.f32.mrf.mxu0
        %v878 = vadd.f32 0.0, %v877
        %879 = vdwg.mxu0
        %v880 = vadd.f32 %v829, %v871
        %v881 = vadd.f32 %v830, %v873
        %v882 = vadd.f32 %v831, %v876
        %v883 = vadd.f32 %v832, %v878
        %v884 = vld [vmem:[%s4] sm:$0x1]
        %v886 = vperm.slane %v884, 0
        %v888 = vadd.f32 %v880, %v886
        %v889 = vadd.f32 %v881, %v886
        %v890 = vadd.f32 %v882, %v886
        %v891 = vadd.f32 %v883, %v886
        %v892 = vmax.f32 %v888, 0.0
        %v893 = vmax.f32 %v889, 0.0
        %v894 = vmax.f32 %v890, 0.0
        %v895 = vmax.f32 %v891, 0.0
        %vm896 = vcmask 261120
        %897 = vst.msk [vmem:[%s432] sm:$0xff] %vm896, %v892
        %898 = vst.msk [vmem:[%s432 + $0x8] sm:$0xff] %vm896, %v893
        %899 = vst.msk [vmem:[%s432 + $0x10] sm:$0xff] %vm896, %v894
        %900 = vst.msk [vmem:[%s432 + $0x18] sm:$0xff] %vm896, %v895
        %s901 = sand.u32 %s148, 1
        %s902 = sand.u32 %s148, 1
        %s903 = smul.addr %s902, 32
        %s904 = scalar_lea.vmem [#allocation5], %s903
        // Predicated region
        $region155: #{irednet_indrnn_forward.30} parent=141 // pred_check
          %p905 = pneg %p158
        $region156: #{irednet_indrnn_forward.30} parent=141 // pred_check_branch
          %907 = sbr.rel (%p905) target = $region158
        $region157: #{irednet_indrnn_forward.30} parent=141 // pred_region
          %s908 = smul.addr %s16, 2
          %s909 = smul.addr %s908, 8
          %s910 = scalar_lea.vmem %s5, %s909
          // Predicated region
          $region159: #{irednet_indrnn_forward.30} parent=157 // pred_check
            _
          $region160: #{irednet_indrnn_forward.30} parent=157 // pred_check_branch
            %912 = sbr.rel (0) target = $region162
          $region161: #{irednet_indrnn_forward.30} parent=157 // pred_region
            // Predicated region
            $region163: #{irednet_indrnn_forward.30} parent=161 // pred_check
              _
            $region164: #{irednet_indrnn_forward.30} parent=161 // pred_check_branch
              %914 = sbr.rel (0) target = $region166
            $region165: #{irednet_indrnn_forward.30} parent=161 // pred_region
              // Predicated region
              $region178: #{irednet_indrnn_forward.30} parent=165 // pred_check
                _
              $region179: #{irednet_indrnn_forward.30} parent=165 // pred_check_branch
                %936 = sbr.rel (0) target = $region181
              $region180: #{irednet_indrnn_forward.30} parent=165 // pred_region
                loop: start=0, step=1, limit=1
                $region182: #{irednet_indrnn_forward.30} parent=180 // loop_pre_header
                  _
                $region183: #{irednet_indrnn_forward.30} parent=180 // loop_header
                  %s938 = sphi 0, %s942
                  %p939 = scmp.ge.s32.totalorder %s938, 1
                  %s943 = sphi %s904, %s904
                  %s944 = sphi %s910, %s910
                $region184: #{irednet_indrnn_forward.30} parent=180 // loop_header_branch
                  %941 = sbr.rel (%p939) target = $region188
                $region185: #{irednet_indrnn_forward.30} parent=180 // loop_body
                  %v945 = vld [vmem:[%s943] sm:$0xff]
                  %946 = vst [vmem:[%s944] sm:$0xff] %v945
                  %v947 = vld [vmem:[%s943 + $0x8] sm:$0xff]
                  %948 = vst [vmem:[%s944 + $0x8] sm:$0xff] %v947
                  %v949 = vld [vmem:[%s943 + $0x10] sm:$0xff]
                  %950 = vst [vmem:[%s944 + $0x100] sm:$0xff] %v949
                  %v951 = vld [vmem:[%s943 + $0x18] sm:$0xff]
                  %952 = vst [vmem:[%s944 + $0x108] sm:$0xff] %v951
                $region186: #{irednet_indrnn_forward.30} parent=180 // loop_footer
                  %s942 = sadd.s32 1, %s938
                $region187: #{irednet_indrnn_forward.30} parent=180 // loop_footer_branch
                  %937 = sbr.rel target = $region183
                $region188: #{irednet_indrnn_forward.30} parent=180 // loop_exit
                  _
              $region181: #{irednet_indrnn_forward.30} parent=165 // pred_fallthru
                _
              // Predicated region
              $region189: #{irednet_indrnn_forward.30} parent=165 // pred_check
                _
              $region190: #{irednet_indrnn_forward.30} parent=165 // pred_check_branch
                %954 = sbr.rel target = $region192
              $region191: #{irednet_indrnn_forward.30} parent=165 // pred_region
                _
              $region192: #{irednet_indrnn_forward.30} parent=165 // pred_fallthru
                _
            $region166: #{irednet_indrnn_forward.30} parent=161 // pred_fallthru
              _
            // Predicated region
            $region167: #{irednet_indrnn_forward.30} parent=161 // pred_check
              _
            $region168: #{irednet_indrnn_forward.30} parent=161 // pred_check_branch
              %916 = sbr.rel target = $region170
            $region169: #{irednet_indrnn_forward.30} parent=161 // pred_region
              %s918 = ssub.s32 256, 1
              loop: start=0, step=1, limit=1
              $region171: #{irednet_indrnn_forward.30} parent=169 // loop_pre_header
                _
              $region172: #{irednet_indrnn_forward.30} parent=169 // loop_header
                %s920 = sphi 0, %s924
                %p921 = scmp.ge.s32.totalorder %s920, 1
                %s925 = sphi %s904, %s904
                %s926 = sphi %s910, %s910
              $region173: #{irednet_indrnn_forward.30} parent=169 // loop_header_branch
                %923 = sbr.rel (%p921) target = $region177
              $region174: #{irednet_indrnn_forward.30} parent=169 // loop_body
                %v927 = vld [vmem:[%s925] sm:%s918]
                %928 = vst [vmem:[%s926] sm:%s918] %v927
                %v929 = vld [vmem:[%s925 + $0x8] sm:%s918]
                %930 = vst [vmem:[%s926 + $0x8] sm:%s918] %v929
                %v931 = vld [vmem:[%s925 + $0x10] sm:%s918]
                %932 = vst [vmem:[%s926 + $0x100] sm:%s918] %v931
                %v933 = vld [vmem:[%s925 + $0x18] sm:%s918]
                %934 = vst [vmem:[%s926 + $0x108] sm:%s918] %v933
              $region175: #{irednet_indrnn_forward.30} parent=169 // loop_footer
                %s924 = sadd.s32 1, %s920
              $region176: #{irednet_indrnn_forward.30} parent=169 // loop_footer_branch
                %919 = sbr.rel target = $region172
              $region177: #{irednet_indrnn_forward.30} parent=169 // loop_exit
                _
            $region170: #{irednet_indrnn_forward.30} parent=161 // pred_fallthru
              _
          $region162: #{irednet_indrnn_forward.30} parent=157 // pred_fallthru
            _
          %955 = vnop
        $region158: #{irednet_indrnn_forward.30} parent=141 // pred_fallthru
          _
      $region142: #{irednet_indrnn_forward.30} parent=5 // pred_fallthru
        _
      %p956 = scmp.le.s32.totalorder 2, %s11
      // Predicated region
      $region193: #{irednet_indrnn_forward.30} parent=5 // pred_check
        %p957 = pneg %p956
      $region194: #{irednet_indrnn_forward.30} parent=5 // pred_check_branch
        %959 = sbr.rel (%p957) target = $region196
      $region195: #{irednet_indrnn_forward.30} parent=5 // pred_region
        %s960 = ssub.s32 %s11, 2
        // Predicated region
        $region197: #{irednet_indrnn_forward.30} parent=195 // pred_check
          %p961 = pneg %p164
        $region198: #{irednet_indrnn_forward.30} parent=195 // pred_check_branch
          %963 = sbr.rel (%p961) target = $region200
        $region199: #{irednet_indrnn_forward.30} parent=195 // pred_region
          %s964 = sand.u32 %s149, 1
          %s965 = sand.u32 %s149, 1
          %s966 = smul.addr %s965, 32
          %s967 = scalar_lea.vmem [#allocation5], %s966
        $region200: #{irednet_indrnn_forward.30} parent=195 // pred_fallthru
          _
      $region196: #{irednet_indrnn_forward.30} parent=5 // pred_fallthru
        _
    $region6: #{irednet_indrnn_forward.30} parent=1 // loop_footer
      %s15 = sadd.s32 1, %s11
    $region7: #{irednet_indrnn_forward.30} parent=1 // loop_footer_branch
      %10 = sbr.rel target = $region3
    $region8: #{irednet_indrnn_forward.30} parent=1 // loop_exit
      _

// kernel: irednet_indrnn_forward.32
$region0: #{irednet_indrnn_forward.32}
  #allocation0 [shape = 'u32[]', space=smem, size = 0x4, offset = 0x4, fixed_abs, tag = 'smem constant byte address 0x4 - core index']
  #allocation1 [shape = 'u32[72,128]{1,0:T(1,128)}', space=vmem, size = 0x9000, scoped, tag = 'internal scratch']
  %s0 = inlined_call_operand.vmem [shape: f32[512,32], index: 0, kind: input, shape index: {}]
  %s1 = inlined_call_operand.vmem [shape: f32[32,128], index: 1, kind: input, shape index: {}]
  %s2 = inlined_call_operand.vmem [shape: f32[1,128], index: 2, kind: input, shape index: {}]
  %s3 = inlined_call_operand.vmem [shape: f32[512,128], index: 3, kind: output, shape index: {}]
  %s4 = sld [smem:[#allocation0]]
  $region22: #{irednet_indrnn_forward.32} parent=0
    _
  %s6 = ssub.s32 1, %s4
  %s7 = scalar_select 0, %s6, %s4
  // Predicated region
  $region2: #{irednet_indrnn_forward.32} parent=0 // pred_check
    _
  $region3: #{irednet_indrnn_forward.32} parent=0 // pred_check_branch
    %9 = sbr.rel (0) target = $region5
  $region4: #{irednet_indrnn_forward.32} parent=0 // pred_region
    _
  $region5: #{irednet_indrnn_forward.32} parent=0 // pred_fallthru
    _
  // Predicated region
  $region6: #{irednet_indrnn_forward.32} parent=0 // pred_check
    _
  $region7: #{irednet_indrnn_forward.32} parent=0 // pred_check_branch
    %11 = sbr.rel (0) target = $region9
  $region8: #{irednet_indrnn_forward.32} parent=0 // pred_region
    _
  $region9: #{irednet_indrnn_forward.32} parent=0 // pred_fallthru
    _
  // Predicated region
  $region10: #{irednet_indrnn_forward.32} parent=0 // pred_check
    _
  $region11: #{irednet_indrnn_forward.32} parent=0 // pred_check_branch
    %13 = sbr.rel (0) target = $region13
  $region12: #{irednet_indrnn_forward.32} parent=0 // pred_region
    _
  $region13: #{irednet_indrnn_forward.32} parent=0 // pred_fallthru
    _
  %v15 = vld [vmem:[%s0] sm:$0xff]
  %v16 = vld [vmem:[%s0 + $0x8] sm:$0xff]
  %v17 = vld [vmem:[%s0 + $0x10] sm:$0xff]
  %v18 = vld [vmem:[%s0 + $0x18] sm:$0xff]
  %v19 = vld [vmem:[%s0 + $0x20] sm:$0xff]
  %v20 = vld [vmem:[%s0 + $0x28] sm:$0xff]
  %v21 = vld [vmem:[%s0 + $0x30] sm:$0xff]
  %v22 = vld [vmem:[%s0 + $0x38] sm:$0xff]
  %v23 = vld [vmem:[%s0 + $0x40] sm:$0xff]
  %v24 = vld [vmem:[%s0 + $0x48] sm:$0xff]
  %v25 = vld [vmem:[%s0 + $0x50] sm:$0xff]
  %v26 = vld [vmem:[%s0 + $0x58] sm:$0xff]
  %v27 = vld [vmem:[%s0 + $0x60] sm:$0xff]
  %v28 = vld [vmem:[%s0 + $0x68] sm:$0xff]
  %v29 = vld [vmem:[%s0 + $0x70] sm:$0xff]
  %v30 = vld [vmem:[%s0 + $0x78] sm:$0xff]
  %v31 = vld [vmem:[%s0 + $0x80] sm:$0xff]
  %v32 = vld [vmem:[%s0 + $0x88] sm:$0xff]
  %v33 = vld [vmem:[%s0 + $0x90] sm:$0xff]
  %v34 = vld [vmem:[%s0 + $0x98] sm:$0xff]
  %v35 = vld [vmem:[%s0 + $0xa0] sm:$0xff]
  %v36 = vld [vmem:[%s0 + $0xa8] sm:$0xff]
  %v37 = vld [vmem:[%s0 + $0xb0] sm:$0xff]
  %v38 = vld [vmem:[%s0 + $0xb8] sm:$0xff]
  %v39 = vld [vmem:[%s0 + $0xc0] sm:$0xff]
  %v40 = vld [vmem:[%s0 + $0xc8] sm:$0xff]
  %v41 = vld [vmem:[%s0 + $0xd0] sm:$0xff]
  %v42 = vld [vmem:[%s0 + $0xd8] sm:$0xff]
  %v43 = vld [vmem:[%s0 + $0xe0] sm:$0xff]
  %v44 = vld [vmem:[%s0 + $0xe8] sm:$0xff]
  %v45 = vld [vmem:[%s0 + $0xf0] sm:$0xff]
  %v46 = vld [vmem:[%s0 + $0xf8] sm:$0xff]
  %v47 = vld [vmem:[%s0 + $0x100] sm:$0xff]
  %v48 = vld [vmem:[%s0 + $0x108] sm:$0xff]
  %v49 = vld [vmem:[%s0 + $0x110] sm:$0xff]
  %v50 = vld [vmem:[%s0 + $0x118] sm:$0xff]
  %v51 = vld [vmem:[%s0 + $0x120] sm:$0xff]
  %v52 = vld [vmem:[%s0 + $0x128] sm:$0xff]
  %v53 = vld [vmem:[%s0 + $0x130] sm:$0xff]
  %v54 = vld [vmem:[%s0 + $0x138] sm:$0xff]
  %v55 = vld [vmem:[%s0 + $0x140] sm:$0xff]
  %v56 = vld [vmem:[%s0 + $0x148] sm:$0xff]
  %v57 = vld [vmem:[%s0 + $0x150] sm:$0xff]
  %v58 = vld [vmem:[%s0 + $0x158] sm:$0xff]
  %v59 = vld [vmem:[%s0 + $0x160] sm:$0xff]
  %v60 = vld [vmem:[%s0 + $0x168] sm:$0xff]
  %v61 = vld [vmem:[%s0 + $0x170] sm:$0xff]
  %v62 = vld [vmem:[%s0 + $0x178] sm:$0xff]
  %v63 = vld [vmem:[%s0 + $0x180] sm:$0xff]
  %v64 = vld [vmem:[%s0 + $0x188] sm:$0xff]
  %v65 = vld [vmem:[%s0 + $0x190] sm:$0xff]
  %v66 = vld [vmem:[%s0 + $0x198] sm:$0xff]
  %v67 = vld [vmem:[%s0 + $0x1a0] sm:$0xff]
  %v68 = vld [vmem:[%s0 + $0x1a8] sm:$0xff]
  %v69 = vld [vmem:[%s0 + $0x1b0] sm:$0xff]
  %v70 = vld [vmem:[%s0 + $0x1b8] sm:$0xff]
  %v71 = vld [vmem:[%s0 + $0x1c0] sm:$0xff]
  %v72 = vld [vmem:[%s0 + $0x1c8] sm:$0xff]
  %v73 = vld [vmem:[%s0 + $0x1d0] sm:$0xff]
  %v74 = vld [vmem:[%s0 + $0x1d8] sm:$0xff]
  %v75 = vld [vmem:[%s0 + $0x1e0] sm:$0xff]
  %v76 = vld [vmem:[%s0 + $0x1e8] sm:$0xff]
  %v77 = vld [vmem:[%s0 + $0x1f0] sm:$0xff]
  %v78 = vld [vmem:[%s0 + $0x1f8] sm:$0xff]
  %v79 = vmax.f32 %v15, 0.0
  %v80 = vmax.f32 %v16, 0.0
  %v81 = vmax.f32 %v17, 0.0
  %v82 = vmax.f32 %v18, 0.0
  %v83 = vmax.f32 %v19, 0.0
  %v84 = vmax.f32 %v20, 0.0
  %v85 = vmax.f32 %v21, 0.0
  %v86 = vmax.f32 %v22, 0.0
  %v87 = vmax.f32 %v23, 0.0
  %v88 = vmax.f32 %v24, 0.0
  %v89 = vmax.f32 %v25, 0.0
  %v90 = vmax.f32 %v26, 0.0
  %v91 = vmax.f32 %v27, 0.0
  %v92 = vmax.f32 %v28, 0.0
  %v93 = vmax.f32 %v29, 0.0
  %v94 = vmax.f32 %v30, 0.0
  %v95 = vmax.f32 %v31, 0.0
  %v96 = vmax.f32 %v32, 0.0
  %v97 = vmax.f32 %v33, 0.0
  %v98 = vmax.f32 %v34, 0.0
  %v99 = vmax.f32 %v35, 0.0
  %v100 = vmax.f32 %v36, 0.0
  %v101 = vmax.f32 %v37, 0.0
  %v102 = vmax.f32 %v38, 0.0
  %v103 = vmax.f32 %v39, 0.0
  %v104 = vmax.f32 %v40, 0.0
  %v105 = vmax.f32 %v41, 0.0
  %v106 = vmax.f32 %v42, 0.0
  %v107 = vmax.f32 %v43, 0.0
  %v108 = vmax.f32 %v44, 0.0
  %v109 = vmax.f32 %v45, 0.0
  %v110 = vmax.f32 %v46, 0.0
  %v111 = vmax.f32 %v47, 0.0
  %v112 = vmax.f32 %v48, 0.0
  %v113 = vmax.f32 %v49, 0.0
  %v114 = vmax.f32 %v50, 0.0
  %v115 = vmax.f32 %v51, 0.0
  %v116 = vmax.f32 %v52, 0.0
  %v117 = vmax.f32 %v53, 0.0
  %v118 = vmax.f32 %v54, 0.0
  %v119 = vmax.f32 %v55, 0.0
  %v120 = vmax.f32 %v56, 0.0
  %v121 = vmax.f32 %v57, 0.0
  %v122 = vmax.f32 %v58, 0.0
  %v123 = vmax.f32 %v59, 0.0
  %v124 = vmax.f32 %v60, 0.0
  %v125 = vmax.f32 %v61, 0.0
  %v126 = vmax.f32 %v62, 0.0
  %v127 = vmax.f32 %v63, 0.0
  %v128 = vmax.f32 %v64, 0.0
  %v129 = vmax.f32 %v65, 0.0
  %v130 = vmax.f32 %v66, 0.0
  %v131 = vmax.f32 %v67, 0.0
  %v132 = vmax.f32 %v68, 0.0
  %v133 = vmax.f32 %v69, 0.0
  %v134 = vmax.f32 %v70, 0.0
  %v135 = vmax.f32 %v71, 0.0
  %v136 = vmax.f32 %v72, 0.0
  %v137 = vmax.f32 %v73, 0.0
  %v138 = vmax.f32 %v74, 0.0
  %v139 = vmax.f32 %v75, 0.0
  %v140 = vmax.f32 %v76, 0.0
  %v141 = vmax.f32 %v77, 0.0
  %v142 = vmax.f32 %v78, 0.0
  %v143 = vpack.c.bf16 %v80, %v79
  %v144 = vpack.c.bf16 %v82, %v81
  %v145 = vpack.c.bf16 %v84, %v83
  %v146 = vpack.c.bf16 %v86, %v85
  %v147 = vpack.c.bf16 %v88, %v87
  %v148 = vpack.c.bf16 %v90, %v89
  %v149 = vpack.c.bf16 %v92, %v91
  %v150 = vpack.c.bf16 %v94, %v93
  %v151 = vpack.c.bf16 %v96, %v95
  %v152 = vpack.c.bf16 %v98, %v97
  %v153 = vpack.c.bf16 %v100, %v99
  %v154 = vpack.c.bf16 %v102, %v101
  %v155 = vpack.c.bf16 %v104, %v103
  %v156 = vpack.c.bf16 %v106, %v105
  %v157 = vpack.c.bf16 %v108, %v107
  %v158 = vpack.c.bf16 %v110, %v109
  %v159 = vpack.c.bf16 %v112, %v111
  %v160 = vpack.c.bf16 %v114, %v113
  %v161 = vpack.c.bf16 %v116, %v115
  %v162 = vpack.c.bf16 %v118, %v117
  %v163 = vpack.c.bf16 %v120, %v119
  %v164 = vpack.c.bf16 %v122, %v121
  %v165 = vpack.c.bf16 %v124, %v123
  %v166 = vpack.c.bf16 %v126, %v125
  %v167 = vpack.c.bf16 %v128, %v127
  %v168 = vpack.c.bf16 %v130, %v129
  %v169 = vpack.c.bf16 %v132, %v131
  %v170 = vpack.c.bf16 %v134, %v133
  %v171 = vpack.c.bf16 %v136, %v135
  %v172 = vpack.c.bf16 %v138, %v137
  %v173 = vpack.c.bf16 %v140, %v139
  %v174 = vpack.c.bf16 %v142, %v141
  %v175 = vld [vmem:[%s1] sm:$0xff]
  %v176 = vld [vmem:[%s1 + $0x8] sm:$0xff]
  %v177 = vld [vmem:[%s1 + $0x10] sm:$0xff]
  %v178 = vld [vmem:[%s1 + $0x18] sm:$0xff]
  %v179 = vpack.c.bf16 %v176, %v175
  %v180 = vpack.c.bf16 %v178, %v177
  %v181 = vld [vmem:[%s2] sm:$0x1]
  %v183 = vperm.slane %v181, 0
  %vm185 = vcmask 261120
  %v187 = vsel %vm185, %v143, 0
  %v190 = vsel %vm185, %v144, 0
  %v193 = vsel %vm185, %v145, 0
  %v196 = vsel %vm185, %v146, 0
  %v199 = vsel %vm185, %v147, 0
  %v202 = vsel %vm185, %v148, 0
  %v205 = vsel %vm185, %v149, 0
  %v208 = vsel %vm185, %v150, 0
  %v211 = vsel %vm185, %v151, 0
  %v214 = vsel %vm185, %v152, 0
  %v217 = vsel %vm185, %v153, 0
  %v220 = vsel %vm185, %v154, 0
  %v223 = vsel %vm185, %v155, 0
  %v226 = vsel %vm185, %v156, 0
  %v229 = vsel %vm185, %v157, 0
  %v232 = vsel %vm185, %v158, 0
  %v235 = vsel %vm185, %v159, 0
  %v238 = vsel %vm185, %v160, 0
  %v241 = vsel %vm185, %v161, 0
  %v244 = vsel %vm185, %v162, 0
  %v247 = vsel %vm185, %v163, 0
  %v250 = vsel %vm185, %v164, 0
  %v253 = vsel %vm185, %v165, 0
  %v256 = vsel %vm185, %v166, 0
  %v259 = vsel %vm185, %v167, 0
  %v262 = vsel %vm185, %v168, 0
  %v265 = vsel %vm185, %v169, 0
  %v268 = vsel %vm185, %v170, 0
  %v271 = vsel %vm185, %v171, 0
  %v274 = vsel %vm185, %v172, 0
  %v277 = vsel %vm185, %v173, 0
  %v280 = vsel %vm185, %v174, 0
  %282 = vmatpush.bf16.msra.mxu0 0
  %283 = vmatpush.bf16.msra.mxu0 0
  %284 = vmatpush.bf16.msra.mxu0 0
  %285 = vmatpush.bf16.msra.mxu0 0
  %286 = vmatpush.bf16.msra.mxu0 0
  %287 = vmatpush.bf16.msra.mxu0 0
  %288 = vmatpush.bf16.msra.mxu0 %v180
  %289 = vmatpush.bf16.msra.mxu0 %v179
  %290 = vmatmul.bf16.gmra.mxu0 %v187
  %v291 = vpop.f32.mrf.mxu0
  %v292 = vadd.f32 %v183, %v291
  %v293 = vpop.f32.mrf.mxu0
  %v294 = vadd.f32 %v183, %v293
  %295 = vmatmul.bf16.gmra.mxu0 %v190
  %v296 = vpop.f32.mrf.mxu0
  %v297 = vadd.f32 %v183, %v296
  %v298 = vpop.f32.mrf.mxu0
  %v299 = vadd.f32 %v183, %v298
  %300 = vmatmul.bf16.gmra.mxu0 %v193
  %v301 = vpop.f32.mrf.mxu0
  %v302 = vadd.f32 %v183, %v301
  %v303 = vpop.f32.mrf.mxu0
  %v304 = vadd.f32 %v183, %v303
  %305 = vmatmul.bf16.gmra.mxu0 %v196
  %v306 = vpop.f32.mrf.mxu0
  %v307 = vadd.f32 %v183, %v306
  %v308 = vpop.f32.mrf.mxu0
  %v309 = vadd.f32 %v183, %v308
  %310 = vmatmul.bf16.gmra.mxu0 %v199
  %v311 = vpop.f32.mrf.mxu0
  %v312 = vadd.f32 %v183, %v311
  %v313 = vpop.f32.mrf.mxu0
  %v314 = vadd.f32 %v183, %v313
  %315 = vmatmul.bf16.gmra.mxu0 %v202
  %v316 = vpop.f32.mrf.mxu0
  %v317 = vadd.f32 %v183, %v316
  %v318 = vpop.f32.mrf.mxu0
  %v319 = vadd.f32 %v183, %v318
  %320 = vmatmul.bf16.gmra.mxu0 %v205
  %v321 = vpop.f32.mrf.mxu0
  %v322 = vadd.f32 %v183, %v321
  %v323 = vpop.f32.mrf.mxu0
  %v324 = vadd.f32 %v183, %v323
  %325 = vmatmul.bf16.gmra.mxu0 %v208
  %v326 = vpop.f32.mrf.mxu0
  %v327 = vadd.f32 %v183, %v326
  %v328 = vpop.f32.mrf.mxu0
  %v329 = vadd.f32 %v183, %v328
  %330 = vmatmul.bf16.gmra.mxu0 %v211
  %v331 = vpop.f32.mrf.mxu0
  %v332 = vadd.f32 %v183, %v331
  %v333 = vpop.f32.mrf.mxu0
  %v334 = vadd.f32 %v183, %v333
  %335 = vmatmul.bf16.gmra.mxu0 %v214
  %v336 = vpop.f32.mrf.mxu0
  %v337 = vadd.f32 %v183, %v336
  %v338 = vpop.f32.mrf.mxu0
  %v339 = vadd.f32 %v183, %v338
  %340 = vmatmul.bf16.gmra.mxu0 %v217
  %v341 = vpop.f32.mrf.mxu0
  %v342 = vadd.f32 %v183, %v341
  %v343 = vpop.f32.mrf.mxu0
  %v344 = vadd.f32 %v183, %v343
  %345 = vmatmul.bf16.gmra.mxu0 %v220
  %v346 = vpop.f32.mrf.mxu0
  %v347 = vadd.f32 %v183, %v346
  %v348 = vpop.f32.mrf.mxu0
  %v349 = vadd.f32 %v183, %v348
  %350 = vmatmul.bf16.gmra.mxu0 %v223
  %v351 = vpop.f32.mrf.mxu0
  %v352 = vadd.f32 %v183, %v351
  %v353 = vpop.f32.mrf.mxu0
  %v354 = vadd.f32 %v183, %v353
  %355 = vmatmul.bf16.gmra.mxu0 %v226
  %v356 = vpop.f32.mrf.mxu0
  %v357 = vadd.f32 %v183, %v356
  %v358 = vpop.f32.mrf.mxu0
  %v359 = vadd.f32 %v183, %v358
  %360 = vmatmul.bf16.gmra.mxu0 %v229
  %v361 = vpop.f32.mrf.mxu0
  %v362 = vadd.f32 %v183, %v361
  %v363 = vpop.f32.mrf.mxu0
  %v364 = vadd.f32 %v183, %v363
  %365 = vmatmul.bf16.gmra.mxu0 %v232
  %v366 = vpop.f32.mrf.mxu0
  %v367 = vadd.f32 %v183, %v366
  %v368 = vpop.f32.mrf.mxu0
  %v369 = vadd.f32 %v183, %v368
  %370 = vmatmul.bf16.gmra.mxu0 %v235
  %v371 = vpop.f32.mrf.mxu0
  %v372 = vadd.f32 %v183, %v371
  %v373 = vpop.f32.mrf.mxu0
  %v374 = vadd.f32 %v183, %v373
  %375 = vmatmul.bf16.gmra.mxu0 %v238
  %v376 = vpop.f32.mrf.mxu0
  %v377 = vadd.f32 %v183, %v376
  %v378 = vpop.f32.mrf.mxu0
  %v379 = vadd.f32 %v183, %v378
  %380 = vmatmul.bf16.gmra.mxu0 %v241
  %v381 = vpop.f32.mrf.mxu0
  %v382 = vadd.f32 %v183, %v381
  %v383 = vpop.f32.mrf.mxu0
  %v384 = vadd.f32 %v183, %v383
  %385 = vmatmul.bf16.gmra.mxu0 %v244
  %v386 = vpop.f32.mrf.mxu0
  %v387 = vadd.f32 %v183, %v386
  %v388 = vpop.f32.mrf.mxu0
  %v389 = vadd.f32 %v183, %v388
  %390 = vmatmul.bf16.gmra.mxu0 %v247
  %v391 = vpop.f32.mrf.mxu0
  %v392 = vadd.f32 %v183, %v391
  %v393 = vpop.f32.mrf.mxu0
  %v394 = vadd.f32 %v183, %v393
  %395 = vmatmul.bf16.gmra.mxu0 %v250
  %v396 = vpop.f32.mrf.mxu0
  %v397 = vadd.f32 %v183, %v396
  %v398 = vpop.f32.mrf.mxu0
  %v399 = vadd.f32 %v183, %v398
  %400 = vmatmul.bf16.gmra.mxu0 %v253
  %v401 = vpop.f32.mrf.mxu0
  %v402 = vadd.f32 %v183, %v401
  %v403 = vpop.f32.mrf.mxu0
  %v404 = vadd.f32 %v183, %v403
  %405 = vmatmul.bf16.gmra.mxu0 %v256
  %v406 = vpop.f32.mrf.mxu0
  %v407 = vadd.f32 %v183, %v406
  %v408 = vpop.f32.mrf.mxu0
  %v409 = vadd.f32 %v183, %v408
  %410 = vmatmul.bf16.gmra.mxu0 %v259
  %v411 = vpop.f32.mrf.mxu0
  %v412 = vadd.f32 %v183, %v411
  %v413 = vpop.f32.mrf.mxu0
  %v414 = vadd.f32 %v183, %v413
  %415 = vmatmul.bf16.gmra.mxu0 %v262
  %v416 = vpop.f32.mrf.mxu0
  %v417 = vadd.f32 %v183, %v416
  %v418 = vpop.f32.mrf.mxu0
  %v419 = vadd.f32 %v183, %v418
  %420 = vmatmul.bf16.gmra.mxu0 %v265
  %v421 = vpop.f32.mrf.mxu0
  %v422 = vadd.f32 %v183, %v421
  %v423 = vpop.f32.mrf.mxu0
  %v424 = vadd.f32 %v183, %v423
  %425 = vmatmul.bf16.gmra.mxu0 %v268
  %v426 = vpop.f32.mrf.mxu0
  %v427 = vadd.f32 %v183, %v426
  %v428 = vpop.f32.mrf.mxu0
  %v429 = vadd.f32 %v183, %v428
  %430 = vmatmul.bf16.gmra.mxu0 %v271
  %v431 = vpop.f32.mrf.mxu0
  %v432 = vadd.f32 %v183, %v431
  %v433 = vpop.f32.mrf.mxu0
  %v434 = vadd.f32 %v183, %v433
  %435 = vmatmul.bf16.gmra.mxu0 %v274
  %v436 = vpop.f32.mrf.mxu0
  %v437 = vadd.f32 %v183, %v436
  %v438 = vpop.f32.mrf.mxu0
  %v439 = vadd.f32 %v183, %v438
  %440 = vmatmul.bf16.gmra.mxu0 %v277
  %v441 = vpop.f32.mrf.mxu0
  %v442 = vadd.f32 %v183, %v441
  %v443 = vpop.f32.mrf.mxu0
  %v444 = vadd.f32 %v183, %v443
  %445 = vmatmul.bf16.gmra.mxu0 %v280
  %v446 = vpop.f32.mrf.mxu0
  %v447 = vadd.f32 %v183, %v446
  %v448 = vpop.f32.mrf.mxu0
  %v449 = vadd.f32 %v183, %v448
  %450 = vdwg.mxu0
  %v451 = vmax.f32 %v292, 0.0
  %v452 = vmax.f32 %v294, 0.0
  %v453 = vmax.f32 %v297, 0.0
  %v454 = vmax.f32 %v299, 0.0
  %v455 = vmax.f32 %v302, 0.0
  %v456 = vmax.f32 %v304, 0.0
  %v457 = vmax.f32 %v307, 0.0
  %v458 = vmax.f32 %v309, 0.0
  %v459 = vmax.f32 %v312, 0.0
  %v460 = vmax.f32 %v314, 0.0
  %v461 = vmax.f32 %v317, 0.0
  %v462 = vmax.f32 %v319, 0.0
  %v463 = vmax.f32 %v322, 0.0
  %v464 = vmax.f32 %v324, 0.0
  %v465 = vmax.f32 %v327, 0.0
  %v466 = vmax.f32 %v329, 0.0
  %v467 = vmax.f32 %v332, 0.0
  %v468 = vmax.f32 %v334, 0.0
  %v469 = vmax.f32 %v337, 0.0
  %v470 = vmax.f32 %v339, 0.0
  %v471 = vmax.f32 %v342, 0.0
  %v472 = vmax.f32 %v344, 0.0
  %v473 = vmax.f32 %v347, 0.0
  %v474 = vmax.f32 %v349, 0.0
  %v475 = vmax.f32 %v352, 0.0
  %v476 = vmax.f32 %v354, 0.0
  %v477 = vmax.f32 %v357, 0.0
  %v478 = vmax.f32 %v359, 0.0
  %v479 = vmax.f32 %v362, 0.0
  %v480 = vmax.f32 %v364, 0.0
  %v481 = vmax.f32 %v367, 0.0
  %v482 = vmax.f32 %v369, 0.0
  %v483 = vmax.f32 %v372, 0.0
  %v484 = vmax.f32 %v374, 0.0
  %v485 = vmax.f32 %v377, 0.0
  %v486 = vmax.f32 %v379, 0.0
  %v487 = vmax.f32 %v382, 0.0
  %v488 = vmax.f32 %v384, 0.0
  %v489 = vmax.f32 %v387, 0.0
  %v490 = vmax.f32 %v389, 0.0
  %v491 = vmax.f32 %v392, 0.0
  %v492 = vmax.f32 %v394, 0.0
  %v493 = vmax.f32 %v397, 0.0
  %v494 = vmax.f32 %v399, 0.0
  %v495 = vmax.f32 %v402, 0.0
  %v496 = vmax.f32 %v404, 0.0
  %v497 = vmax.f32 %v407, 0.0
  %v498 = vmax.f32 %v409, 0.0
  %v499 = vmax.f32 %v412, 0.0
  %v500 = vmax.f32 %v414, 0.0
  %v501 = vmax.f32 %v417, 0.0
  %v502 = vmax.f32 %v419, 0.0
  %v503 = vmax.f32 %v422, 0.0
  %v504 = vmax.f32 %v424, 0.0
  %v505 = vmax.f32 %v427, 0.0
  %v506 = vmax.f32 %v429, 0.0
  %v507 = vmax.f32 %v432, 0.0
  %v508 = vmax.f32 %v434, 0.0
  %v509 = vmax.f32 %v437, 0.0
  %v510 = vmax.f32 %v439, 0.0
  %v511 = vmax.f32 %v442, 0.0
  %v512 = vmax.f32 %v444, 0.0
  %v513 = vmax.f32 %v447, 0.0
  %v514 = vmax.f32 %v449, 0.0
  %515 = vst [vmem:[%s3] sm:$0xff] %v451
  %516 = vst [vmem:[%s3 + $0x8] sm:$0xff] %v452
  %517 = vst [vmem:[%s3 + $0x10] sm:$0xff] %v453
  %518 = vst [vmem:[%s3 + $0x18] sm:$0xff] %v454
  %519 = vst [vmem:[%s3 + $0x20] sm:$0xff] %v455
  %520 = vst [vmem:[%s3 + $0x28] sm:$0xff] %v456
  %521 = vst [vmem:[%s3 + $0x30] sm:$0xff] %v457
  %522 = vst [vmem:[%s3 + $0x38] sm:$0xff] %v458
  %523 = vst [vmem:[%s3 + $0x40] sm:$0xff] %v459
  %524 = vst [vmem:[%s3 + $0x48] sm:$0xff] %v460
  %525 = vst [vmem:[%s3 + $0x50] sm:$0xff] %v461
  %526 = vst [vmem:[%s3 + $0x58] sm:$0xff] %v462
  %527 = vst [vmem:[%s3 + $0x60] sm:$0xff] %v463
  %528 = vst [vmem:[%s3 + $0x68] sm:$0xff] %v464
  %529 = vst [vmem:[%s3 + $0x70] sm:$0xff] %v465
  %530 = vst [vmem:[%s3 + $0x78] sm:$0xff] %v466
  %531 = vst [vmem:[%s3 + $0x80] sm:$0xff] %v467
  %532 = vst [vmem:[%s3 + $0x88] sm:$0xff] %v468
  %533 = vst [vmem:[%s3 + $0x90] sm:$0xff] %v469
  %534 = vst [vmem:[%s3 + $0x98] sm:$0xff] %v470
  %535 = vst [vmem:[%s3 + $0xa0] sm:$0xff] %v471
  %536 = vst [vmem:[%s3 + $0xa8] sm:$0xff] %v472
  %537 = vst [vmem:[%s3 + $0xb0] sm:$0xff] %v473
  %538 = vst [vmem:[%s3 + $0xb8] sm:$0xff] %v474
  %539 = vst [vmem:[%s3 + $0xc0] sm:$0xff] %v475
  %540 = vst [vmem:[%s3 + $0xc8] sm:$0xff] %v476
  %541 = vst [vmem:[%s3 + $0xd0] sm:$0xff] %v477
  %542 = vst [vmem:[%s3 + $0xd8] sm:$0xff] %v478
  %543 = vst [vmem:[%s3 + $0xe0] sm:$0xff] %v479
  %544 = vst [vmem:[%s3 + $0xe8] sm:$0xff] %v480
  %545 = vst [vmem:[%s3 + $0xf0] sm:$0xff] %v481
  %546 = vst [vmem:[%s3 + $0xf8] sm:$0xff] %v482
  %547 = vst [vmem:[%s3 + $0x100] sm:$0xff] %v483
  %548 = vst [vmem:[%s3 + $0x108] sm:$0xff] %v484
  %549 = vst [vmem:[%s3 + $0x110] sm:$0xff] %v485
  %550 = vst [vmem:[%s3 + $0x118] sm:$0xff] %v486
  %551 = vst [vmem:[%s3 + $0x120] sm:$0xff] %v487
  %552 = vst [vmem:[%s3 + $0x128] sm:$0xff] %v488
  %553 = vst [vmem:[%s3 + $0x130] sm:$0xff] %v489
  %554 = vst [vmem:[%s3 + $0x138] sm:$0xff] %v490
  %555 = vst [vmem:[%s3 + $0x140] sm:$0xff] %v491
  %556 = vst [vmem:[%s3 + $0x148] sm:$0xff] %v492
  %557 = vst [vmem:[%s3 + $0x150] sm:$0xff] %v493
  %558 = vst [vmem:[%s3 + $0x158] sm:$0xff] %v494
  %559 = vst [vmem:[%s3 + $0x160] sm:$0xff] %v495
  %560 = vst [vmem:[%s3 + $0x168] sm:$0xff] %v496
  %561 = vst [vmem:[%s3 + $0x170] sm:$0xff] %v497
  %562 = vst [vmem:[%s3 + $0x178] sm:$0xff] %v498
  %563 = vst [vmem:[%s3 + $0x180] sm:$0xff] %v499
  %564 = vst [vmem:[%s3 + $0x188] sm:$0xff] %v500
  %565 = vst [vmem:[%s3 + $0x190] sm:$0xff] %v501
  %566 = vst [vmem:[%s3 + $0x198] sm:$0xff] %v502
  %567 = vst [vmem:[%s3 + $0x1a0] sm:$0xff] %v503
  %568 = vst [vmem:[%s3 + $0x1a8] sm:$0xff] %v504
  %569 = vst [vmem:[%s3 + $0x1b0] sm:$0xff] %v505
  %570 = vst [vmem:[%s3 + $0x1b8] sm:$0xff] %v506
  %571 = vst [vmem:[%s3 + $0x1c0] sm:$0xff] %v507
  %572 = vst [vmem:[%s3 + $0x1c8] sm:$0xff] %v508
  %573 = vst [vmem:[%s3 + $0x1d0] sm:$0xff] %v509
  %574 = vst [vmem:[%s3 + $0x1d8] sm:$0xff] %v510
  %575 = vst [vmem:[%s3 + $0x1e0] sm:$0xff] %v511
  %576 = vst [vmem:[%s3 + $0x1e8] sm:$0xff] %v512
  %577 = vst [vmem:[%s3 + $0x1f0] sm:$0xff] %v513
  %578 = vst [vmem:[%s3 + $0x1f8] sm:$0xff] %v514
  // Predicated region
  $region14: #{irednet_indrnn_forward.32} parent=0 // pred_check
    _
  $region15: #{irednet_indrnn_forward.32} parent=0 // pred_check_branch
    %580 = sbr.rel (0) target = $region17
  $region16: #{irednet_indrnn_forward.32} parent=0 // pred_region
    _
  $region17: #{irednet_indrnn_forward.32} parent=0 // pred_fallthru
    _
  // Predicated region
  $region18: #{irednet_indrnn_forward.32} parent=0 // pred_check
    _
  $region19: #{irednet_indrnn_forward.32} parent=0 // pred_check_branch
    %582 = sbr.rel (0) target = $region21
  $region20: #{irednet_indrnn_forward.32} parent=0 // pred_region
    _
  $region21: #{irednet_indrnn_forward.32} parent=0 // pred_fallthru
    _

// kernel: irednet_indrnn_forward.31
$region0: #{irednet_indrnn_forward.31}
  #allocation0 [shape = 'u32[]', space=smem, size = 0x4, offset = 0x4, fixed_abs, tag = 'smem constant byte address 0x4 - core index']
  #allocation1 [shape = 'u32[72,128]{1,0:T(1,128)}', space=vmem, size = 0x9000, scoped, tag = 'internal scratch']
  %s0 = inlined_call_operand.vmem [shape: f32[2,18,18,64], index: 0, kind: input, shape index: {}, may-alias: {0,1,2}]
  %s1 = inlined_call_operand.vmem [shape: f32[2,18,18,64], index: 1, kind: input, shape index: {}, may-alias: {0,1,2}]
  %s2 = inlined_call_operand.vmem [shape: f32[2,18,18,64], index: 2, kind: input, shape index: {}, may-alias: {0,1,2}]
  %s3 = inlined_call_operand.vmem [shape: f32[9,64,32], index: 3, kind: input, shape index: {}]
  %s4 = inlined_call_operand.vmem [shape: f32[1,32], index: 4, kind: input, shape index: {}]
  %s5 = inlined_call_operand.vmem [shape: f32[2,16,16,32], index: 5, kind: output, shape index: {}]
  %s6 = sld [smem:[#allocation0]]
  $region201: #{irednet_indrnn_forward.31} parent=0
    _
  %s8 = ssub.s32 1, %s6
  %s9 = scalar_select 0, %s8, %s6
  $region1: #{irednet_indrnn_forward.31} parent=0
    #allocation2 [shape = 'u8[49152]{0}', space=vmem, size = 0xc000, scoped, tag = 'input window, operand 0']
    #allocation3 [shape = 'u8[49152]{0}', space=vmem, size = 0xc000, scoped, tag = 'input window, operand 1']
    #allocation4 [shape = 'u8[49152]{0}', space=vmem, size = 0xc000, scoped, tag = 'input window, operand 2']
    #allocation5 [shape = 'u8[32768]{0}', space=vmem, size = 0x8000, scoped, tag = 'output window, operand 0']
    loop: start=0, step=1, limit=18
    $region2: #{irednet_indrnn_forward.31} parent=1 // loop_pre_header
      _
    $region3: #{irednet_indrnn_forward.31} parent=1 // loop_header
      %s11 = sphi 0, %s15
      %p12 = scmp.ge.s32.totalorder %s11, 18
      %s21 = sphi 0, %s23
      %s24 = sphi 0, %s21
      %s25 = sphi 0, %s24
      %s41 = sphi 0, %s25
      %s49 = sphi 0, %s51
      %s52 = sphi 0, %s49
      %s53 = sphi 0, %s52
      %s69 = sphi 0, %s53
      %s77 = sphi 0, %s79
      %s80 = sphi 0, %s77
      %s81 = sphi 0, %s80
      %s97 = sphi 0, %s81
      %s101 = sphi 0, %s101
      %s103 = sphi 0, %s101
      %s104 = sphi 0, %s103
      %s118 = sphi 0, %s104
      %s122 = sphi 0, %s122
      %s124 = sphi 0, %s122
      %s125 = sphi 0, %s124
      %s139 = sphi 0, %s125
      %s145 = sphi 0, %s147
      %s148 = sphi 0, %s145
      %s149 = sphi 0, %s148
      %s165 = sphi 0, %s149
    $region4: #{irednet_indrnn_forward.31} parent=1 // loop_header_branch
      %14 = sbr.rel (%p12) target = $region8
    $region5: #{irednet_indrnn_forward.31} parent=1 // loop_body
      %s16 = ssub.s32 %s11, 1
      %s17 = ssub.s32 %s11, 2
      %s18 = sadd.s32 %s11, 1
      %s19 = ssub.s32 %s11, %s18
      %p20 = scmp.eq.s32.totalorder %s19, 0
      %s22 = sadd.s32 %s21, 1
      %s23 = scalar_select %p20, %s21, %s22
      %p26 = pneg %p20
      %p27 = scmp.eq.s32.totalorder %s11, 15
      %p28 = por %p26, %p27
      %p29 = scmp.ne.s32.totalorder %s21, %s24
      %p30 = scmp.eq.s32.totalorder %s11, 0
      %p31 = por %p29, %p30
      %p32 = scmp.ne.s32.totalorder %s21, %s24
      %p33 = scmp.eq.s32.totalorder %s16, 15
      %p34 = por %p32, %p33
      %p35 = scmp.ne.s32.totalorder %s24, %s25
      %p36 = scmp.eq.s32.totalorder %s16, 0
      %p37 = por %p35, %p36
      %p38 = scmp.ne.s32.totalorder %s24, %s25
      %p39 = scmp.eq.s32.totalorder %s17, 15
      %p40 = por %p38, %p39
      %p42 = scmp.ne.s32.totalorder %s25, %s41
      %p43 = scmp.eq.s32.totalorder %s17, 0
      %p44 = por %p42, %p43
      %s45 = sadd.s32 %s11, 1
      %s46 = sadd.s32 %s18, 1
      %s47 = ssub.s32 %s45, %s46
      %p48 = scmp.eq.s32.totalorder %s47, 0
      %s50 = sadd.s32 %s49, 1
      %s51 = scalar_select %p48, %s49, %s50
      %p54 = pneg %p48
      %p55 = scmp.eq.s32.totalorder %s11, 15
      %p56 = por %p54, %p55
      %p57 = scmp.ne.s32.totalorder %s49, %s52
      %p58 = scmp.eq.s32.totalorder %s11, 0
      %p59 = por %p57, %p58
      %p60 = scmp.ne.s32.totalorder %s49, %s52
      %p61 = scmp.eq.s32.totalorder %s16, 15
      %p62 = por %p60, %p61
      %p63 = scmp.ne.s32.totalorder %s52, %s53
      %p64 = scmp.eq.s32.totalorder %s16, 0
      %p65 = por %p63, %p64
      %p66 = scmp.ne.s32.totalorder %s52, %s53
      %p67 = scmp.eq.s32.totalorder %s17, 15
      %p68 = por %p66, %p67
      %p70 = scmp.ne.s32.totalorder %s53, %s69
      %p71 = scmp.eq.s32.totalorder %s17, 0
      %p72 = por %p70, %p71
      %s73 = sadd.s32 %s11, 2
      %s74 = sadd.s32 %s18, 2
      %s75 = ssub.s32 %s73, %s74
      %p76 = scmp.eq.s32.totalorder %s75, 0
      %s78 = sadd.s32 %s77, 1
      %s79 = scalar_select %p76, %s77, %s78
      %p82 = pneg %p76
      %p83 = scmp.eq.s32.totalorder %s11, 15
      %p84 = por %p82, %p83
      %p85 = scmp.ne.s32.totalorder %s77, %s80
      %p86 = scmp.eq.s32.totalorder %s11, 0
      %p87 = por %p85, %p86
      %p88 = scmp.ne.s32.totalorder %s77, %s80
      %p89 = scmp.eq.s32.totalorder %s16, 15
      %p90 = por %p88, %p89
      %p91 = scmp.ne.s32.totalorder %s80, %s81
      %p92 = scmp.eq.s32.totalorder %s16, 0
      %p93 = por %p91, %p92
      %p94 = scmp.ne.s32.totalorder %s80, %s81
      %p95 = scmp.eq.s32.totalorder %s17, 15
      %p96 = por %p94, %p95
      %p98 = scmp.ne.s32.totalorder %s81, %s97
      %p99 = scmp.eq.s32.totalorder %s17, 0
      %p100 = por %p98, %p99
      %s102 = sadd.s32 %s101, 1
      %p105 = scmp.eq.s32.totalorder %s11, 15
      %p106 = scmp.ne.s32.totalorder %s101, %s103
      %p107 = scmp.eq.s32.totalorder %s11, 0
      %p108 = por %p106, %p107
      %p109 = scmp.ne.s32.totalorder %s101, %s103
      %p110 = scmp.eq.s32.totalorder %s16, 15
      %p111 = por %p109, %p110
      %p112 = scmp.ne.s32.totalorder %s103, %s104
      %p113 = scmp.eq.s32.totalorder %s16, 0
      %p114 = por %p112, %p113
      %p115 = scmp.ne.s32.totalorder %s103, %s104
      %p116 = scmp.eq.s32.totalorder %s17, 15
      %p117 = por %p115, %p116
      %p119 = scmp.ne.s32.totalorder %s104, %s118
      %p120 = scmp.eq.s32.totalorder %s17, 0
      %p121 = por %p119, %p120
      %s123 = sadd.s32 %s122, 1
      %p126 = scmp.eq.s32.totalorder %s11, 15
      %p127 = scmp.ne.s32.totalorder %s122, %s124
      %p128 = scmp.eq.s32.totalorder %s11, 0
      %p129 = por %p127, %p128
      %p130 = scmp.ne.s32.totalorder %s122, %s124
      %p131 = scmp.eq.s32.totalorder %s16, 15
      %p132 = por %p130, %p131
      %p133 = scmp.ne.s32.totalorder %s124, %s125
      %p134 = scmp.eq.s32.totalorder %s16, 0
      %p135 = por %p133, %p134
      %p136 = scmp.ne.s32.totalorder %s124, %s125
      %p137 = scmp.eq.s32.totalorder %s17, 15
      %p138 = por %p136, %p137
      %p140 = scmp.ne.s32.totalorder %s125, %s139
      %p141 = scmp.eq.s32.totalorder %s17, 0
      %p142 = por %p140, %p141
      %s143 = ssub.s32 %s11, %s18
      %p144 = scmp.eq.s32.totalorder %s143, 0
      %s146 = sadd.s32 %s145, 1
      %s147 = scalar_select %p144, %s145, %s146
      %p150 = pneg %p144
      %p151 = scmp.eq.s32.totalorder %s11, 15
      %p152 = por %p150, %p151
      %p153 = scmp.ne.s32.totalorder %s145, %s148
      %p154 = scmp.eq.s32.totalorder %s11, 0
      %p155 = por %p153, %p154
      %p156 = scmp.ne.s32.totalorder %s145, %s148
      %p157 = scmp.eq.s32.totalorder %s16, 15
      %p158 = por %p156, %p157
      %p159 = scmp.ne.s32.totalorder %s148, %s149
      %p160 = scmp.eq.s32.totalorder %s16, 0
      %p161 = por %p159, %p160
      %p162 = scmp.ne.s32.totalorder %s148, %s149
      %p163 = scmp.eq.s32.totalorder %s17, 15
      %p164 = por %p162, %p163
      %p166 = scmp.ne.s32.totalorder %s149, %s165
      %p167 = scmp.eq.s32.totalorder %s17, 0
      %p168 = por %p166, %p167
      %p169 = scmp.le.s32.totalorder 1, %s11
      %p170 = scmp.lt.s32.totalorder %s11, 17
      %p171 = pnand %p169, %p170
      %p172 = pneg %p171
      // Predicated region
      $region9: #{irednet_indrnn_forward.31} parent=5 // pred_check
        _
      $region10: #{irednet_indrnn_forward.31} parent=5 // pred_check_branch
        %174 = sbr.rel (%p171) target = $region12
      $region11: #{irednet_indrnn_forward.31} parent=5 // pred_region
        %s175 = ssub.s32 %s11, 1
        // Predicated region
        $region13: #{irednet_indrnn_forward.31} parent=11 // pred_check
          %p176 = pneg %p114
        $region14: #{irednet_indrnn_forward.31} parent=11 // pred_check_branch
          %178 = sbr.rel (%p176) target = $region16
        $region15: #{irednet_indrnn_forward.31} parent=11 // pred_region
          _
        $region16: #{irednet_indrnn_forward.31} parent=11 // pred_fallthru
          _
        // Predicated region
        $region17: #{irednet_indrnn_forward.31} parent=11 // pred_check
          %p179 = pneg %p135
        $region18: #{irednet_indrnn_forward.31} parent=11 // pred_check_branch
          %181 = sbr.rel (%p179) target = $region20
        $region19: #{irednet_indrnn_forward.31} parent=11 // pred_region
          _
        $region20: #{irednet_indrnn_forward.31} parent=11 // pred_fallthru
          _
      $region12: #{irednet_indrnn_forward.31} parent=5 // pred_fallthru
        _
      %p182 = scmp.lt.s32.totalorder %s11, 16
      // Predicated region
      $region21: #{irednet_indrnn_forward.31} parent=5 // pred_check
        %p183 = pneg %p182
      $region22: #{irednet_indrnn_forward.31} parent=5 // pred_check_branch
        %185 = sbr.rel (%p183) target = $region24
      $region23: #{irednet_indrnn_forward.31} parent=5 // pred_region
        // Predicated region
        $region25: #{irednet_indrnn_forward.31} parent=23 // pred_check
          %p186 = pneg %p31
        $region26: #{irednet_indrnn_forward.31} parent=23 // pred_check_branch
          %188 = sbr.rel (%p186) target = $region28
        $region27: #{irednet_indrnn_forward.31} parent=23 // pred_region
          %s189 = sand.u32 %s21, 1
          %s190 = sand.u32 %s21, 1
          %s191 = smul.addr %s190, 48
          %s192 = scalar_lea.vmem [#allocation2], %s191
          %s193 = smul.addr %s11, 3
          %s194 = smul.addr %s193, 8
          %s195 = scalar_lea.vmem %s0, %s194
          // Predicated region
          $region29: #{irednet_indrnn_forward.31} parent=27 // pred_check
            _
          $region30: #{irednet_indrnn_forward.31} parent=27 // pred_check_branch
            %197 = sbr.rel (0) target = $region32
          $region31: #{irednet_indrnn_forward.31} parent=27 // pred_region
            // Predicated region
            $region33: #{irednet_indrnn_forward.31} parent=31 // pred_check
              _
            $region34: #{irednet_indrnn_forward.31} parent=31 // pred_check_branch
              %199 = sbr.rel (0) target = $region36
            $region35: #{irednet_indrnn_forward.31} parent=31 // pred_region
              // Predicated region
              $region48: #{irednet_indrnn_forward.31} parent=35 // pred_check
                _
              $region49: #{irednet_indrnn_forward.31} parent=35 // pred_check_branch
                %225 = sbr.rel (0) target = $region51
              $region50: #{irednet_indrnn_forward.31} parent=35 // pred_region
                loop: start=0, step=1, limit=1
                $region52: #{irednet_indrnn_forward.31} parent=50 // loop_pre_header
                  _
                $region53: #{irednet_indrnn_forward.31} parent=50 // loop_header
                  %s227 = sphi 0, %s231
                  %p228 = scmp.ge.s32.totalorder %s227, 1
                  %s232 = sphi %s195, %s195
                  %s233 = sphi %s192, %s192
                $region54: #{irednet_indrnn_forward.31} parent=50 // loop_header_branch
                  %230 = sbr.rel (%p228) target = $region58
                $region55: #{irednet_indrnn_forward.31} parent=50 // loop_body
                  %v234 = vld [vmem:[%s232] sm:$0xff]
                  %235 = vst [vmem:[%s233] sm:$0xff] %v234
                  %v236 = vld [vmem:[%s232 + $0x8] sm:$0xff]
                  %237 = vst [vmem:[%s233 + $0x8] sm:$0xff] %v236
                  %v238 = vld [vmem:[%s232 + $0x10] sm:$0xff]
                  %239 = vst [vmem:[%s233 + $0x10] sm:$0xff] %v238
                  %v240 = vld [vmem:[%s232 + $0x1b0] sm:$0xff]
                  %241 = vst [vmem:[%s233 + $0x18] sm:$0xff] %v240
                  %v242 = vld [vmem:[%s232 + $0x1b8] sm:$0xff]
                  %243 = vst [vmem:[%s233 + $0x20] sm:$0xff] %v242
                  %v244 = vld [vmem:[%s232 + $0x1c0] sm:$0xff]
                  %245 = vst [vmem:[%s233 + $0x28] sm:$0xff] %v244
                $region56: #{irednet_indrnn_forward.31} parent=50 // loop_footer
                  %s231 = sadd.s32 1, %s227
                $region57: #{irednet_indrnn_forward.31} parent=50 // loop_footer_branch
                  %226 = sbr.rel target = $region53
                $region58: #{irednet_indrnn_forward.31} parent=50 // loop_exit
                  _
              $region51: #{irednet_indrnn_forward.31} parent=35 // pred_fallthru
                _
              // Predicated region
              $region59: #{irednet_indrnn_forward.31} parent=35 // pred_check
                _
              $region60: #{irednet_indrnn_forward.31} parent=35 // pred_check_branch
                %247 = sbr.rel target = $region62
              $region61: #{irednet_indrnn_forward.31} parent=35 // pred_region
                _
              $region62: #{irednet_indrnn_forward.31} parent=35 // pred_fallthru
                _
            $region36: #{irednet_indrnn_forward.31} parent=31 // pred_fallthru
              _
            // Predicated region
            $region37: #{irednet_indrnn_forward.31} parent=31 // pred_check
              _
            $region38: #{irednet_indrnn_forward.31} parent=31 // pred_check_branch
              %201 = sbr.rel target = $region40
            $region39: #{irednet_indrnn_forward.31} parent=31 // pred_region
              %s203 = ssub.s32 256, 1
              loop: start=0, step=1, limit=1
              $region41: #{irednet_indrnn_forward.31} parent=39 // loop_pre_header
                _
              $region42: #{irednet_indrnn_forward.31} parent=39 // loop_header
                %s205 = sphi 0, %s209
                %p206 = scmp.ge.s32.totalorder %s205, 1
                %s210 = sphi %s195, %s195
                %s211 = sphi %s192, %s192
              $region43: #{irednet_indrnn_forward.31} parent=39 // loop_header_branch
                %208 = sbr.rel (%p206) target = $region47
              $region44: #{irednet_indrnn_forward.31} parent=39 // loop_body
                %v212 = vld [vmem:[%s210] sm:%s203]
                %213 = vst [vmem:[%s211] sm:%s203] %v212
                %v214 = vld [vmem:[%s210 + $0x8] sm:%s203]
                %215 = vst [vmem:[%s211 + $0x8] sm:%s203] %v214
                %v216 = vld [vmem:[%s210 + $0x10] sm:%s203]
                %217 = vst [vmem:[%s211 + $0x10] sm:%s203] %v216
                %v218 = vld [vmem:[%s210 + $0x1b0] sm:%s203]
                %219 = vst [vmem:[%s211 + $0x18] sm:%s203] %v218
                %v220 = vld [vmem:[%s210 + $0x1b8] sm:%s203]
                %221 = vst [vmem:[%s211 + $0x20] sm:%s203] %v220
                %v222 = vld [vmem:[%s210 + $0x1c0] sm:%s203]
                %223 = vst [vmem:[%s211 + $0x28] sm:%s203] %v222
              $region45: #{irednet_indrnn_forward.31} parent=39 // loop_footer
                %s209 = sadd.s32 1, %s205
              $region46: #{irednet_indrnn_forward.31} parent=39 // loop_footer_branch
                %204 = sbr.rel target = $region42
              $region47: #{irednet_indrnn_forward.31} parent=39 // loop_exit
                _
            $region40: #{irednet_indrnn_forward.31} parent=31 // pred_fallthru
              _
          $region32: #{irednet_indrnn_forward.31} parent=27 // pred_fallthru
            _
          %248 = vnop
        $region28: #{irednet_indrnn_forward.31} parent=23 // pred_fallthru
          _
        // Predicated region
        $region63: #{irednet_indrnn_forward.31} parent=23 // pred_check
          %p249 = pneg %p59
        $region64: #{irednet_indrnn_forward.31} parent=23 // pred_check_branch
          %251 = sbr.rel (%p249) target = $region66
        $region65: #{irednet_indrnn_forward.31} parent=23 // pred_region
          %s252 = sand.u32 %s49, 1
          %s253 = sand.u32 %s49, 1
          %s254 = smul.addr %s253, 48
          %s255 = scalar_lea.vmem [#allocation3], %s254
          %s256 = sadd.s32 %s11, 1
          %s257 = smul.addr %s256, 3
          %s258 = smul.addr %s257, 8
          %s259 = scalar_lea.vmem %s1, %s258
          // Predicated region
          $region67: #{irednet_indrnn_forward.31} parent=65 // pred_check
            _
          $region68: #{irednet_indrnn_forward.31} parent=65 // pred_check_branch
            %261 = sbr.rel (0) target = $region70
          $region69: #{irednet_indrnn_forward.31} parent=65 // pred_region
            // Predicated region
            $region71: #{irednet_indrnn_forward.31} parent=69 // pred_check
              _
            $region72: #{irednet_indrnn_forward.31} parent=69 // pred_check_branch
              %263 = sbr.rel (0) target = $region74
            $region73: #{irednet_indrnn_forward.31} parent=69 // pred_region
              // Predicated region
              $region86: #{irednet_indrnn_forward.31} parent=73 // pred_check
                _
              $region87: #{irednet_indrnn_forward.31} parent=73 // pred_check_branch
                %289 = sbr.rel (0) target = $region89
              $region88: #{irednet_indrnn_forward.31} parent=73 // pred_region
                loop: start=0, step=1, limit=1
                $region90: #{irednet_indrnn_forward.31} parent=88 // loop_pre_header
                  _
                $region91: #{irednet_indrnn_forward.31} parent=88 // loop_header
                  %s291 = sphi 0, %s295
                  %p292 = scmp.ge.s32.totalorder %s291, 1
                  %s296 = sphi %s259, %s259
                  %s297 = sphi %s255, %s255
                $region92: #{irednet_indrnn_forward.31} parent=88 // loop_header_branch
                  %294 = sbr.rel (%p292) target = $region96
                $region93: #{irednet_indrnn_forward.31} parent=88 // loop_body
                  %v298 = vld [vmem:[%s296] sm:$0xff]
                  %299 = vst [vmem:[%s297] sm:$0xff] %v298
                  %v300 = vld [vmem:[%s296 + $0x8] sm:$0xff]
                  %301 = vst [vmem:[%s297 + $0x8] sm:$0xff] %v300
                  %v302 = vld [vmem:[%s296 + $0x10] sm:$0xff]
                  %303 = vst [vmem:[%s297 + $0x10] sm:$0xff] %v302
                  %v304 = vld [vmem:[%s296 + $0x1b0] sm:$0xff]
                  %305 = vst [vmem:[%s297 + $0x18] sm:$0xff] %v304
                  %v306 = vld [vmem:[%s296 + $0x1b8] sm:$0xff]
                  %307 = vst [vmem:[%s297 + $0x20] sm:$0xff] %v306
                  %v308 = vld [vmem:[%s296 + $0x1c0] sm:$0xff]
                  %309 = vst [vmem:[%s297 + $0x28] sm:$0xff] %v308
                $region94: #{irednet_indrnn_forward.31} parent=88 // loop_footer
                  %s295 = sadd.s32 1, %s291
                $region95: #{irednet_indrnn_forward.31} parent=88 // loop_footer_branch
                  %290 = sbr.rel target = $region91
                $region96: #{irednet_indrnn_forward.31} parent=88 // loop_exit
                  _
              $region89: #{irednet_indrnn_forward.31} parent=73 // pred_fallthru
                _
              // Predicated region
              $region97: #{irednet_indrnn_forward.31} parent=73 // pred_check
                _
              $region98: #{irednet_indrnn_forward.31} parent=73 // pred_check_branch
                %311 = sbr.rel target = $region100
              $region99: #{irednet_indrnn_forward.31} parent=73 // pred_region
                _
              $region100: #{irednet_indrnn_forward.31} parent=73 // pred_fallthru
                _
            $region74: #{irednet_indrnn_forward.31} parent=69 // pred_fallthru
              _
            // Predicated region
            $region75: #{irednet_indrnn_forward.31} parent=69 // pred_check
              _
            $region76: #{irednet_indrnn_forward.31} parent=69 // pred_check_branch
              %265 = sbr.rel target = $region78
            $region77: #{irednet_indrnn_forward.31} parent=69 // pred_region
              %s267 = ssub.s32 256, 1
              loop: start=0, step=1, limit=1
              $region79: #{irednet_indrnn_forward.31} parent=77 // loop_pre_header
                _
              $region80: #{irednet_indrnn_forward.31} parent=77 // loop_header
                %s269 = sphi 0, %s273
                %p270 = scmp.ge.s32.totalorder %s269, 1
                %s274 = sphi %s259, %s259
                %s275 = sphi %s255, %s255
              $region81: #{irednet_indrnn_forward.31} parent=77 // loop_header_branch
                %272 = sbr.rel (%p270) target = $region85
              $region82: #{irednet_indrnn_forward.31} parent=77 // loop_body
                %v276 = vld [vmem:[%s274] sm:%s267]
                %277 = vst [vmem:[%s275] sm:%s267] %v276
                %v278 = vld [vmem:[%s274 + $0x8] sm:%s267]
                %279 = vst [vmem:[%s275 + $0x8] sm:%s267] %v278
                %v280 = vld [vmem:[%s274 + $0x10] sm:%s267]
                %281 = vst [vmem:[%s275 + $0x10] sm:%s267] %v280
                %v282 = vld [vmem:[%s274 + $0x1b0] sm:%s267]
                %283 = vst [vmem:[%s275 + $0x18] sm:%s267] %v282
                %v284 = vld [vmem:[%s274 + $0x1b8] sm:%s267]
                %285 = vst [vmem:[%s275 + $0x20] sm:%s267] %v284
                %v286 = vld [vmem:[%s274 + $0x1c0] sm:%s267]
                %287 = vst [vmem:[%s275 + $0x28] sm:%s267] %v286
              $region83: #{irednet_indrnn_forward.31} parent=77 // loop_footer
                %s273 = sadd.s32 1, %s269
              $region84: #{irednet_indrnn_forward.31} parent=77 // loop_footer_branch
                %268 = sbr.rel target = $region80
              $region85: #{irednet_indrnn_forward.31} parent=77 // loop_exit
                _
            $region78: #{irednet_indrnn_forward.31} parent=69 // pred_fallthru
              _
          $region70: #{irednet_indrnn_forward.31} parent=65 // pred_fallthru
            _
          %312 = vnop
        $region66: #{irednet_indrnn_forward.31} parent=23 // pred_fallthru
          _
        // Predicated region
        $region101: #{irednet_indrnn_forward.31} parent=23 // pred_check
          %p313 = pneg %p87
        $region102: #{irednet_indrnn_forward.31} parent=23 // pred_check_branch
          %315 = sbr.rel (%p313) target = $region104
        $region103: #{irednet_indrnn_forward.31} parent=23 // pred_region
          %s316 = sand.u32 %s77, 1
          %s317 = sand.u32 %s77, 1
          %s318 = smul.addr %s317, 48
          %s319 = scalar_lea.vmem [#allocation4], %s318
          %s320 = sadd.s32 %s11, 2
          %s321 = smul.addr %s320, 3
          %s322 = smul.addr %s321, 8
          %s323 = scalar_lea.vmem %s2, %s322
          // Predicated region
          $region105: #{irednet_indrnn_forward.31} parent=103 // pred_check
            _
          $region106: #{irednet_indrnn_forward.31} parent=103 // pred_check_branch
            %325 = sbr.rel (0) target = $region108
          $region107: #{irednet_indrnn_forward.31} parent=103 // pred_region
            // Predicated region
            $region109: #{irednet_indrnn_forward.31} parent=107 // pred_check
              _
            $region110: #{irednet_indrnn_forward.31} parent=107 // pred_check_branch
              %327 = sbr.rel (0) target = $region112
            $region111: #{irednet_indrnn_forward.31} parent=107 // pred_region
              // Predicated region
              $region124: #{irednet_indrnn_forward.31} parent=111 // pred_check
                _
              $region125: #{irednet_indrnn_forward.31} parent=111 // pred_check_branch
                %353 = sbr.rel (0) target = $region127
              $region126: #{irednet_indrnn_forward.31} parent=111 // pred_region
                loop: start=0, step=1, limit=1
                $region128: #{irednet_indrnn_forward.31} parent=126 // loop_pre_header
                  _
                $region129: #{irednet_indrnn_forward.31} parent=126 // loop_header
                  %s355 = sphi 0, %s359
                  %p356 = scmp.ge.s32.totalorder %s355, 1
                  %s360 = sphi %s323, %s323
                  %s361 = sphi %s319, %s319
                $region130: #{irednet_indrnn_forward.31} parent=126 // loop_header_branch
                  %358 = sbr.rel (%p356) target = $region134
                $region131: #{irednet_indrnn_forward.31} parent=126 // loop_body
                  %v362 = vld [vmem:[%s360] sm:$0xff]
                  %363 = vst [vmem:[%s361] sm:$0xff] %v362
                  %v364 = vld [vmem:[%s360 + $0x8] sm:$0xff]
                  %365 = vst [vmem:[%s361 + $0x8] sm:$0xff] %v364
                  %v366 = vld [vmem:[%s360 + $0x10] sm:$0xff]
                  %367 = vst [vmem:[%s361 + $0x10] sm:$0xff] %v366
                  %v368 = vld [vmem:[%s360 + $0x1b0] sm:$0xff]
                  %369 = vst [vmem:[%s361 + $0x18] sm:$0xff] %v368
                  %v370 = vld [vmem:[%s360 + $0x1b8] sm:$0xff]
                  %371 = vst [vmem:[%s361 + $0x20] sm:$0xff] %v370
                  %v372 = vld [vmem:[%s360 + $0x1c0] sm:$0xff]
                  %373 = vst [vmem:[%s361 + $0x28] sm:$0xff] %v372
                $region132: #{irednet_indrnn_forward.31} parent=126 // loop_footer
                  %s359 = sadd.s32 1, %s355
                $region133: #{irednet_indrnn_forward.31} parent=126 // loop_footer_branch
                  %354 = sbr.rel target = $region129
                $region134: #{irednet_indrnn_forward.31} parent=126 // loop_exit
                  _
              $region127: #{irednet_indrnn_forward.31} parent=111 // pred_fallthru
                _
              // Predicated region
              $region135: #{irednet_indrnn_forward.31} parent=111 // pred_check
                _
              $region136: #{irednet_indrnn_forward.31} parent=111 // pred_check_branch
                %375 = sbr.rel target = $region138
              $region137: #{irednet_indrnn_forward.31} parent=111 // pred_region
                _
              $region138: #{irednet_indrnn_forward.31} parent=111 // pred_fallthru
                _
            $region112: #{irednet_indrnn_forward.31} parent=107 // pred_fallthru
              _
            // Predicated region
            $region113: #{irednet_indrnn_forward.31} parent=107 // pred_check
              _
            $region114: #{irednet_indrnn_forward.31} parent=107 // pred_check_branch
              %329 = sbr.rel target = $region116
            $region115: #{irednet_indrnn_forward.31} parent=107 // pred_region
              %s331 = ssub.s32 256, 1
              loop: start=0, step=1, limit=1
              $region117: #{irednet_indrnn_forward.31} parent=115 // loop_pre_header
                _
              $region118: #{irednet_indrnn_forward.31} parent=115 // loop_header
                %s333 = sphi 0, %s337
                %p334 = scmp.ge.s32.totalorder %s333, 1
                %s338 = sphi %s323, %s323
                %s339 = sphi %s319, %s319
              $region119: #{irednet_indrnn_forward.31} parent=115 // loop_header_branch
                %336 = sbr.rel (%p334) target = $region123
              $region120: #{irednet_indrnn_forward.31} parent=115 // loop_body
                %v340 = vld [vmem:[%s338] sm:%s331]
                %341 = vst [vmem:[%s339] sm:%s331] %v340
                %v342 = vld [vmem:[%s338 + $0x8] sm:%s331]
                %343 = vst [vmem:[%s339 + $0x8] sm:%s331] %v342
                %v344 = vld [vmem:[%s338 + $0x10] sm:%s331]
                %345 = vst [vmem:[%s339 + $0x10] sm:%s331] %v344
                %v346 = vld [vmem:[%s338 + $0x1b0] sm:%s331]
                %347 = vst [vmem:[%s339 + $0x18] sm:%s331] %v346
                %v348 = vld [vmem:[%s338 + $0x1b8] sm:%s331]
                %349 = vst [vmem:[%s339 + $0x20] sm:%s331] %v348
                %v350 = vld [vmem:[%s338 + $0x1c0] sm:%s331]
                %351 = vst [vmem:[%s339 + $0x28] sm:%s331] %v350
              $region121: #{irednet_indrnn_forward.31} parent=115 // loop_footer
                %s337 = sadd.s32 1, %s333
              $region122: #{irednet_indrnn_forward.31} parent=115 // loop_footer_branch
                %332 = sbr.rel target = $region118
              $region123: #{irednet_indrnn_forward.31} parent=115 // loop_exit
                _
            $region116: #{irednet_indrnn_forward.31} parent=107 // pred_fallthru
              _
          $region108: #{irednet_indrnn_forward.31} parent=103 // pred_fallthru
            _
          %376 = vnop
        $region104: #{irednet_indrnn_forward.31} parent=23 // pred_fallthru
          _
      $region24: #{irednet_indrnn_forward.31} parent=5 // pred_fallthru
        _
      %p377 = scmp.le.s32.totalorder 1, %s11
      %p378 = scmp.lt.s32.totalorder %s11, 17
      %p379 = pnand %p377, %p378
      %p380 = pneg %p379
      // Predicated region
      $region139: #{irednet_indrnn_forward.31} parent=5 // pred_check
        _
      $region140: #{irednet_indrnn_forward.31} parent=5 // pred_check_branch
        %382 = sbr.rel (%p379) target = $region142
      $region141: #{irednet_indrnn_forward.31} parent=5 // pred_region
        %s383 = ssub.s32 %s11, 1
        %s384 = sand.u32 %s24, 1
        %s385 = sand.u32 %s24, 1
        %s386 = smul.addr %s385, 48
        %s387 = scalar_lea.vmem [#allocation2], %s386
        // Predicated region
        $region143: #{irednet_indrnn_forward.31} parent=141 // pred_check
          %p388 = pneg %p37
        $region144: #{irednet_indrnn_forward.31} parent=141 // pred_check_branch
          %390 = sbr.rel (%p388) target = $region146
        $region145: #{irednet_indrnn_forward.31} parent=141 // pred_region
          _
        $region146: #{irednet_indrnn_forward.31} parent=141 // pred_fallthru
          _
        %s391 = sand.u32 %s52, 1
        %s392 = sand.u32 %s52, 1
        %s393 = smul.addr %s392, 48
        %s394 = scalar_lea.vmem [#allocation3], %s393
        // Predicated region
        $region147: #{irednet_indrnn_forward.31} parent=141 // pred_check
          %p395 = pneg %p65
        $region148: #{irednet_indrnn_forward.31} parent=141 // pred_check_branch
          %397 = sbr.rel (%p395) target = $region150
        $region149: #{irednet_indrnn_forward.31} parent=141 // pred_region
          _
        $region150: #{irednet_indrnn_forward.31} parent=141 // pred_fallthru
          _
        %s398 = sand.u32 %s80, 1
        %s399 = sand.u32 %s80, 1
        %s400 = smul.addr %s399, 48
        %s401 = scalar_lea.vmem [#allocation4], %s400
        // Predicated region
        $region151: #{irednet_indrnn_forward.31} parent=141 // pred_check
          %p402 = pneg %p93
        $region152: #{irednet_indrnn_forward.31} parent=141 // pred_check_branch
          %404 = sbr.rel (%p402) target = $region154
        $region153: #{irednet_indrnn_forward.31} parent=141 // pred_region
          _
        $region154: #{irednet_indrnn_forward.31} parent=141 // pred_fallthru
          _
        %s405 = sand.u32 %s24, 1
        %s406 = sand.u32 %s24, 1
        %s407 = smul.addr %s406, 48
        %s408 = scalar_lea.vmem [#allocation2], %s407
        %p409 = pneg %p37
        %p410 = pneg %p34
        %s411 = sand.u32 %s52, 1
        %s412 = sand.u32 %s52, 1
        %s413 = smul.addr %s412, 48
        %s414 = scalar_lea.vmem [#allocation3], %s413
        %p415 = pneg %p65
        %p416 = pneg %p62
        %s417 = sand.u32 %s80, 1
        %s418 = sand.u32 %s80, 1
        %s419 = smul.addr %s418, 48
        %s420 = scalar_lea.vmem [#allocation4], %s419
        %p421 = pneg %p93
        %p422 = pneg %p90
        %p423 = pneg %p114
        %p424 = pneg %p111
        %p425 = pneg %p135
        %p426 = pneg %p132
        %p427 = pneg %p161
        %p428 = pneg %p158
        %s429 = sand.u32 %s148, 1
        %s430 = sand.u32 %s148, 1
        %s431 = smul.addr %s430, 32
        %s432 = scalar_lea.vmem [#allocation5], %s431
        %s433 = sadd.s32 %s16, 1
        %s434 = sadd.s32 %s16, 2
        %v436 = vld [vmem:[%s387] sm:$0xff]
        %v437 = vld [vmem:[%s387 + $0x8] sm:$0xff]
        %v438 = vld [vmem:[%s387 + $0x10] sm:$0x3]
        %v439 = vld [vmem:[%s387 + $0x18] sm:$0xff]
        %v440 = vld [vmem:[%s387 + $0x20] sm:$0xff]
        %v441 = vld [vmem:[%s387 + $0x28] sm:$0x3]
        %v442 = vld [vmem:[%s394] sm:$0xff]
        %v443 = vld [vmem:[%s394 + $0x8] sm:$0xff]
        %v444 = vld [vmem:[%s394 + $0x10] sm:$0x3]
        %v445 = vld [vmem:[%s394 + $0x18] sm:$0xff]
        %v446 = vld [vmem:[%s394 + $0x20] sm:$0xff]
        %v447 = vld [vmem:[%s394 + $0x28] sm:$0x3]
        %v448 = vld [vmem:[%s401] sm:$0xff]
        %v449 = vld [vmem:[%s401 + $0x8] sm:$0xff]
        %v450 = vld [vmem:[%s401 + $0x10] sm:$0x3]
        %v451 = vld [vmem:[%s401 + $0x18] sm:$0xff]
        %v452 = vld [vmem:[%s401 + $0x20] sm:$0xff]
        %v453 = vld [vmem:[%s401 + $0x28] sm:$0x3]
        %v454 = vld [vmem:[%s3] sm:$0xff]
        %v455 = vld [vmem:[%s3 + $0x8] sm:$0xff]
        %v456 = vld [vmem:[%s3 + $0x10] sm:$0xff]
        %v457 = vld [vmem:[%s3 + $0x18] sm:$0xff]
        %v458 = vld [vmem:[%s3 + $0x20] sm:$0xff]
        %v459 = vld [vmem:[%s3 + $0x28] sm:$0xff]
        %v460 = vld [vmem:[%s3 + $0x30] sm:$0xff]
        %v461 = vld [vmem:[%s3 + $0x38] sm:$0xff]
        %v462 = vpack.c.bf16 %v437, %v436
        %v463 = vpack.c.bf16 %v440, %v439
        %v464 = vpack.c.bf16 %v455, %v454
        %v465 = vpack.c.bf16 %v457, %v456
        %v466 = vpack.c.bf16 %v459, %v458
        %v467 = vpack.c.bf16 %v461, %v460
        %vm474 = vcmask 1046528
        %v475 = vrot.slane %v436, 1
        %v476 = vrot.slane %v437, 1
        %v477 = vsel %vm474, %v475, %v476
        %v478 = vrot.slane %v438, 1
        %v479 = vsel %vm474, %v476, %v478
        %v480 = vrot.slane %v439, 1
        %v481 = vrot.slane %v440, 1
        %v482 = vsel %vm474, %v480, %v481
        %v483 = vrot.slane %v441, 1
        %v484 = vsel %vm474, %v481, %v483
        %s489 = scalar_lea.vmem %s3, 64
        %v490 = vld [vmem:[%s489] sm:$0xff]
        %v491 = vld [vmem:[%s489 + $0x8] sm:$0xff]
        %v492 = vld [vmem:[%s489 + $0x10] sm:$0xff]
        %v493 = vld [vmem:[%s489 + $0x18] sm:$0xff]
        %v494 = vld [vmem:[%s489 + $0x20] sm:$0xff]
        %v495 = vld [vmem:[%s489 + $0x28] sm:$0xff]
        %v496 = vld [vmem:[%s489 + $0x30] sm:$0xff]
        %v497 = vld [vmem:[%s489 + $0x38] sm:$0xff]
        %v498 = vpack.c.bf16 %v479, %v477
        %v499 = vpack.c.bf16 %v484, %v482
        %v500 = vpack.c.bf16 %v491, %v490
        %v501 = vpack.c.bf16 %v493, %v492
        %v502 = vpack.c.bf16 %v495, %v494
        %v503 = vpack.c.bf16 %v497, %v496
        %vm504 = vcmask 523264
        %v506 = vsel %vm504, %v498, 0
        %v509 = vsel %vm504, %v499, 0
        %511 = vmatpush.bf16.msra.mxu0 0
        %512 = vmatpush.bf16.msra.mxu0 0
        %513 = vmatpush.bf16.msra.mxu0 0
        %514 = vmatpush.bf16.msra.mxu0 0
        %515 = vmatpush.bf16.msra.mxu0 %v503
        %516 = vmatpush.bf16.msra.mxu0 %v502
        %517 = vmatpush.bf16.msra.mxu0 %v501
        %518 = vmatpush.bf16.msra.mxu0 %v500
        %519 = vmatmul.bf16.gmra.mxu0 %v506
        %v520 = vpop.f32.mrf.mxu0
        %v521 = vadd.f32 0.0, %v520
        %v522 = vpop.f32.mrf.mxu0
        %v523 = vadd.f32 0.0, %v522
        %524 = vmatmul.bf16.gmra.mxu0 %v509
        %v525 = vpop.f32.mrf.mxu0
        %v526 = vadd.f32 0.0, %v525
        %v527 = vpop.f32.mrf.mxu0
        %v528 = vadd.f32 0.0, %v527
        %529 = vdwg.mxu0
        %v531 = vsel %vm504, %v462, 0
        %v534 = vsel %vm504, %v463, 0
        %536 = vmatpush.bf16.msra.mxu0 0
        %537 = vmatpush.bf16.msra.mxu0 0
        %538 = vmatpush.bf16.msra.mxu0 0
        %539 = vmatpush.bf16.msra.mxu0 0
        %540 = vmatpush.bf16.msra.mxu0 %v467
        %541 = vmatpush.bf16.msra.mxu0 %v466
        %542 = vmatpush.bf16.msra.mxu0 %v465
        %543 = vmatpush.bf16.msra.mxu0 %v464
        %544 = vmatmul.bf16.gmra.mxu0 %v531
        %v545 = vpop.f32.mrf.mxu0
        %v546 = vadd.f32 %v521, %v545
        %v547 = vpop.f32.mrf.mxu0
        %v548 = vadd.f32 %v523, %v547
        %549 = vmatmul.bf16.gmra.mxu0 %v534
        %v550 = vpop.f32.mrf.mxu0
        %v551 = vadd.f32 %v526, %v550
        %v552 = vpop.f32.mrf.mxu0
        %v553 = vadd.f32 %v528, %v552
        %554 = vdwg.mxu0
        %vm555 = vcmask 1045504
        %v556 = vrot.slane %v436, 2
        %v557 = vrot.slane %v437, 2
        %v558 = vsel %vm555, %v556, %v557
        %v559 = vrot.slane %v438, 2
        %v560 = vsel %vm555, %v557, %v559
        %v561 = vrot.slane %v439, 2
        %v562 = vrot.slane %v440, 2
        %v563 = vsel %vm555, %v561, %v562
        %v564 = vrot.slane %v441, 2
        %v565 = vsel %vm555, %v562, %v564
        %s570 = scalar_lea.vmem %s3, 128
        %v571 = vld [vmem:[%s570] sm:$0xff]
        %v572 = vld [vmem:[%s570 + $0x8] sm:$0xff]
        %v573 = vld [vmem:[%s570 + $0x10] sm:$0xff]
        %v574 = vld [vmem:[%s570 + $0x18] sm:$0xff]
        %v575 = vld [vmem:[%s570 + $0x20] sm:$0xff]
        %v576 = vld [vmem:[%s570 + $0x28] sm:$0xff]
        %v577 = vld [vmem:[%s570 + $0x30] sm:$0xff]
        %v578 = vld [vmem:[%s570 + $0x38] sm:$0xff]
        %v579 = vpack.c.bf16 %v560, %v558
        %v580 = vpack.c.bf16 %v565, %v563
        %v581 = vpack.c.bf16 %v572, %v571
        %v582 = vpack.c.bf16 %v574, %v573
        %v583 = vpack.c.bf16 %v576, %v575
        %v584 = vpack.c.bf16 %v578, %v577
        %v586 = vsel %vm504, %v579, 0
        %v589 = vsel %vm504, %v580, 0
        %591 = vmatpush.bf16.msra.mxu0 0
        %592 = vmatpush.bf16.msra.mxu0 0
        %593 = vmatpush.bf16.msra.mxu0 0
        %594 = vmatpush.bf16.msra.mxu0 0
        %595 = vmatpush.bf16.msra.mxu0 %v584
        %596 = vmatpush.bf16.msra.mxu0 %v583
        %597 = vmatpush.bf16.msra.mxu0 %v582
        %598 = vmatpush.bf16.msra.mxu0 %v581
        %599 = vmatmul.bf16.gmra.mxu0 %v586
        %v600 = vpop.f32.mrf.mxu0
        %v601 = vadd.f32 0.0, %v600
        %v602 = vpop.f32.mrf.mxu0
        %v603 = vadd.f32 0.0, %v602
        %604 = vmatmul.bf16.gmra.mxu0 %v589
        %v605 = vpop.f32.mrf.mxu0
        %v606 = vadd.f32 0.0, %v605
        %v607 = vpop.f32.mrf.mxu0
        %v608 = vadd.f32 0.0, %v607
        %609 = vdwg.mxu0
        %v610 = vadd.f32 %v546, %v601
        %v611 = vadd.f32 %v548, %v603
        %v612 = vadd.f32 %v551, %v606
        %v613 = vadd.f32 %v553, %v608
        %s614 = scalar_lea.vmem %s3, 192
        %v615 = vld [vmem:[%s614] sm:$0xff]
        %v616 = vld [vmem:[%s614 + $0x8] sm:$0xff]
        %v617 = vld [vmem:[%s614 + $0x10] sm:$0xff]
        %v618 = vld [vmem:[%s614 + $0x18] sm:$0xff]
        %v619 = vld [vmem:[%s614 + $0x20] sm:$0xff]
        %v620 = vld [vmem:[%s614 + $0x28] sm:$0xff]
        %v621 = vld [vmem:[%s614 + $0x30] sm:$0xff]
        %v622 = vld [vmem:[%s614 + $0x38] sm:$0xff]
        %v623 = vpack.c.bf16 %v443, %v442
        %v624 = vpack.c.bf16 %v446, %v445
        %v625 = vpack.c.bf16 %v616, %v615
        %v626 = vpack.c.bf16 %v618, %v617
        %v627 = vpack.c.bf16 %v620, %v619
        %v628 = vpack.c.bf16 %v622, %v621
        %v630 = vsel %vm504, %v623, 0
        %v633 = vsel %vm504, %v624, 0
        %635 = vmatpush.bf16.msra.mxu0 0
        %636 = vmatpush.bf16.msra.mxu0 0
        %637 = vmatpush.bf16.msra.mxu0 0
        %638 = vmatpush.bf16.msra.mxu0 0
        %639 = vmatpush.bf16.msra.mxu0 %v628
        %640 = vmatpush.bf16.msra.mxu0 %v627
        %641 = vmatpush.bf16.msra.mxu0 %v626
        %642 = vmatpush.bf16.msra.mxu0 %v625
        %643 = vmatmul.bf16.gmra.mxu0 %v630
        %v644 = vpop.f32.mrf.mxu0
        %v645 = vadd.f32 0.0, %v644
        %v646 = vpop.f32.mrf.mxu0
        %v647 = vadd.f32 0.0, %v646
        %648 = vmatmul.bf16.gmra.mxu0 %v633
        %v649 = vpop.f32.mrf.mxu0
        %v650 = vadd.f32 0.0, %v649
        %v651 = vpop.f32.mrf.mxu0
        %v652 = vadd.f32 0.0, %v651
        %653 = vdwg.mxu0
        %v654 = vadd.f32 %v610, %v645
        %v655 = vadd.f32 %v611, %v647
        %v656 = vadd.f32 %v612, %v650
        %v657 = vadd.f32 %v613, %v652
        %v664 = vrot.slane %v442, 1
        %v665 = vrot.slane %v443, 1
        %v666 = vsel %vm474, %v664, %v665
        %v667 = vrot.slane %v444, 1
        %v668 = vsel %vm474, %v665, %v667
        %v669 = vrot.slane %v445, 1
        %v670 = vrot.slane %v446, 1
        %v671 = vsel %vm474, %v669, %v670
        %v672 = vrot.slane %v447, 1
        %v673 = vsel %vm474, %v670, %v672
        %s678 = scalar_lea.vmem %s3, 256
        %v679 = vld [vmem:[%s678] sm:$0xff]
        %v680 = vld [vmem:[%s678 + $0x8] sm:$0xff]
        %v681 = vld [vmem:[%s678 + $0x10] sm:$0xff]
        %v682 = vld [vmem:[%s678 + $0x18] sm:$0xff]
        %v683 = vld [vmem:[%s678 + $0x20] sm:$0xff]
        %v684 = vld [vmem:[%s678 + $0x28] sm:$0xff]
        %v685 = vld [vmem:[%s678 + $0x30] sm:$0xff]
        %v686 = vld [vmem:[%s678 + $0x38] sm:$0xff]
        %v687 = vpack.c.bf16 %v668, %v666
        %v688 = vpack.c.bf16 %v673, %v671
        %v689 = vpack.c.bf16 %v680, %v679
        %v690 = vpack.c.bf16 %v682, %v681
        %v691 = vpack.c.bf16 %v684, %v683
        %v692 = vpack.c.bf16 %v686, %v685
        %v694 = vsel %vm504, %v687, 0
        %v697 = vsel %vm504, %v688, 0
        %699 = vmatpush.bf16.msra.mxu0 0
        %700 = vmatpush.bf16.msra.mxu0 0
        %701 = vmatpush.bf16.msra.mxu0 0
        %702 = vmatpush.bf16.msra.mxu0 0
        %703 = vmatpush.bf16.msra.mxu0 %v692
        %704 = vmatpush.bf16.msra.mxu0 %v691
        %705 = vmatpush.bf16.msra.mxu0 %v690
        %706 = vmatpush.bf16.msra.mxu0 %v689
        %707 = vmatmul.bf16.gmra.mxu0 %v694
        %v708 = vpop.f32.mrf.mxu0
        %v709 = vadd.f32 0.0, %v708
        %v710 = vpop.f32.mrf.mxu0
        %v711 = vadd.f32 0.0, %v710
        %712 = vmatmul.bf16.gmra.mxu0 %v697
        %v713 = vpop.f32.mrf.mxu0
        %v714 = vadd.f32 0.0, %v713
        %v715 = vpop.f32.mrf.mxu0
        %v716 = vadd.f32 0.0, %v715
        %717 = vdwg.mxu0
        %v718 = vadd.f32 %v654, %v709
        %v719 = vadd.f32 %v655, %v711
        %v720 = vadd.f32 %v656, %v714
        %v721 = vadd.f32 %v657, %v716
        %v722 = vrot.slane %v442, 2
        %v723 = vrot.slane %v443, 2
        %v724 = vsel %vm555, %v722, %v723
        %v725 = vrot.slane %v444, 2
        %v726 = vsel %vm555, %v723, %v725
        %v727 = vrot.slane %v445, 2
        %v728 = vrot.slane %v446, 2
        %v729 = vsel %vm555, %v727, %v728
        %v730 = vrot.slane %v447, 2
        %v731 = vsel %vm555, %v728, %v730
        %s736 = scalar_lea.vmem %s3, 320
        %v737 = vld [vmem:[%s736] sm:$0xff]
        %v738 = vld [vmem:[%s736 + $0x8] sm:$0xff]
        %v739 = vld [vmem:[%s736 + $0x10] sm:$0xff]
        %v740 = vld [vmem:[%s736 + $0x18] sm:$0xff]
        %v741 = vld [vmem:[%s736 + $0x20] sm:$0xff]
        %v742 = vld [vmem:[%s736 + $0x28] sm:$0xff]
        %v743 = vld [vmem:[%s736 + $0x30] sm:$0xff]
        %v744 = vld [vmem:[%s736 + $0x38] sm:$0xff]
        %v745 = vpack.c.bf16 %v726, %v724
        %v746 = vpack.c.bf16 %v731, %v729
        %v747 = vpack.c.bf16 %v738, %v737
        %v748 = vpack.c.bf16 %v740, %v739
        %v749 = vpack.c.bf16 %v742, %v741
        %v750 = vpack.c.bf16 %v744, %v743
        %v752 = vsel %vm504, %v745, 0
        %v755 = vsel %vm504, %v746, 0
        %757 = vmatpush.bf16.msra.mxu0 0
        %758 = vmatpush.bf16.msra.mxu0 0
        %759 = vmatpush.bf16.msra.mxu0 0
        %760 = vmatpush.bf16.msra.mxu0 0
        %761 = vmatpush.bf16.msra.mxu0 %v750
        %762 = vmatpush.bf16.msra.mxu0 %v749
        %763 = vmatpush.bf16.msra.mxu0 %v748
        %764 = vmatpush.bf16.msra.mxu0 %v747
        %765 = vmatmul.bf16.gmra.mxu0 %v752
        %v766 = vpop.f32.mrf.mxu0
        %v767 = vadd.f32 0.0, %v766
        %v768 = vpop.f32.mrf.mxu0
        %v769 = vadd.f32 0.0, %v768
        %770 = vmatmul.bf16.gmra.mxu0 %v755
        %v771 = vpop.f32.mrf.mxu0
        %v772 = vadd.f32 0.0, %v771
        %v773 = vpop.f32.mrf.mxu0
        %v774 = vadd.f32 0.0, %v773
        %775 = vdwg.mxu0
        %v776 = vadd.f32 %v718, %v767
        %v777 = vadd.f32 %v719, %v769
        %v778 = vadd.f32 %v720, %v772
        %v779 = vadd.f32 %v721, %v774
        %s780 = scalar_lea.vmem %s3, 384
        %v781 = vld [vmem:[%s780] sm:$0xff]
        %v782 = vld [vmem:[%s780 + $0x8] sm:$0xff]
        %v783 = vld [vmem:[%s780 + $0x10] sm:$0xff]
        %v784 = vld [vmem:[%s780 + $0x18] sm:$0xff]
        %v785 = vld [vmem:[%s780 + $0x20] sm:$0xff]
        %v786 = vld [vmem:[%s780 + $0x28] sm:$0xff]
        %v787 = vld [vmem:[%s780 + $0x30] sm:$0xff]
        %v788 = vld [vmem:[%s780 + $0x38] sm:$0xff]
        %v789 = vpack.c.bf16 %v449, %v448
        %v790 = vpack.c.bf16 %v452, %v451
        %v791 = vpack.c.bf16 %v782, %v781
        %v792 = vpack.c.bf16 %v784, %v783
        %v793 = vpack.c.bf16 %v786, %v785
        %v794 = vpack.c.bf16 %v788, %v787
        %v796 = vsel %vm504, %v789, 0
        %v799 = vsel %vm504, %v790, 0
        %801 = vmatpush.bf16.msra.mxu0 0
        %802 = vmatpush.bf16.msra.mxu0 0
        %803 = vmatpush.bf16.msra.mxu0 0
        %804 = vmatpush.bf16.msra.mxu0 0
        %805 = vmatpush.bf16.msra.mxu0 %v794
        %806 = vmatpush.bf16.msra.mxu0 %v793
        %807 = vmatpush.bf16.msra.mxu0 %v792
        %808 = vmatpush.bf16.msra.mxu0 %v791
        %809 = vmatmul.bf16.gmra.mxu0 %v796
        %v810 = vpop.f32.mrf.mxu0
        %v811 = vadd.f32 0.0, %v810
        %v812 = vpop.f32.mrf.mxu0
        %v813 = vadd.f32 0.0, %v812
        %814 = vmatmul.bf16.gmra.mxu0 %v799
        %v815 = vpop.f32.mrf.mxu0
        %v816 = vadd.f32 0.0, %v815
        %v817 = vpop.f32.mrf.mxu0
        %v818 = vadd.f32 0.0, %v817
        %819 = vdwg.mxu0
        %v820 = vadd.f32 %v776, %v811
        %v821 = vadd.f32 %v777, %v813
        %v822 = vadd.f32 %v778, %v816
        %v823 = vadd.f32 %v779, %v818
        %v830 = vrot.slane %v448, 1
        %v831 = vrot.slane %v449, 1
        %v832 = vsel %vm474, %v830, %v831
        %v833 = vrot.slane %v450, 1
        %v834 = vsel %vm474, %v831, %v833
        %v835 = vrot.slane %v451, 1
        %v836 = vrot.slane %v452, 1
        %v837 = vsel %vm474, %v835, %v836
        %v838 = vrot.slane %v453, 1
        %v839 = vsel %vm474, %v836, %v838
        %s844 = scalar_lea.vmem %s3, 448
        %v845 = vld [vmem:[%s844] sm:$0xff]
        %v846 = vld [vmem:[%s844 + $0x8] sm:$0xff]
        %v847 = vld [vmem:[%s844 + $0x10] sm:$0xff]
        %v848 = vld [vmem:[%s844 + $0x18] sm:$0xff]
        %v849 = vld [vmem:[%s844 + $0x20] sm:$0xff]
        %v850 = vld [vmem:[%s844 + $0x28] sm:$0xff]
        %v851 = vld [vmem:[%s844 + $0x30] sm:$0xff]
        %v852 = vld [vmem:[%s844 + $0x38] sm:$0xff]
        %v853 = vpack.c.bf16 %v834, %v832
        %v854 = vpack.c.bf16 %v839, %v837
        %v855 = vpack.c.bf16 %v846, %v845
        %v856 = vpack.c.bf16 %v848, %v847
        %v857 = vpack.c.bf16 %v850, %v849
        %v858 = vpack.c.bf16 %v852, %v851
        %v860 = vsel %vm504, %v853, 0
        %v863 = vsel %vm504, %v854, 0
        %865 = vmatpush.bf16.msra.mxu0 0
        %866 = vmatpush.bf16.msra.mxu0 0
        %867 = vmatpush.bf16.msra.mxu0 0
        %868 = vmatpush.bf16.msra.mxu0 0
        %869 = vmatpush.bf16.msra.mxu0 %v858
        %870 = vmatpush.bf16.msra.mxu0 %v857
        %871 = vmatpush.bf16.msra.mxu0 %v856
        %872 = vmatpush.bf16.msra.mxu0 %v855
        %873 = vmatmul.bf16.gmra.mxu0 %v860
        %v874 = vpop.f32.mrf.mxu0
        %v875 = vadd.f32 0.0, %v874
        %v876 = vpop.f32.mrf.mxu0
        %v877 = vadd.f32 0.0, %v876
        %878 = vmatmul.bf16.gmra.mxu0 %v863
        %v879 = vpop.f32.mrf.mxu0
        %v880 = vadd.f32 0.0, %v879
        %v881 = vpop.f32.mrf.mxu0
        %v882 = vadd.f32 0.0, %v881
        %883 = vdwg.mxu0
        %v884 = vadd.f32 %v820, %v875
        %v885 = vadd.f32 %v821, %v877
        %v886 = vadd.f32 %v822, %v880
        %v887 = vadd.f32 %v823, %v882
        %v888 = vrot.slane %v448, 2
        %v889 = vrot.slane %v449, 2
        %v890 = vsel %vm555, %v888, %v889
        %v891 = vrot.slane %v450, 2
        %v892 = vsel %vm555, %v889, %v891
        %v893 = vrot.slane %v451, 2
        %v894 = vrot.slane %v452, 2
        %v895 = vsel %vm555, %v893, %v894
        %v896 = vrot.slane %v453, 2
        %v897 = vsel %vm555, %v894, %v896
        %s902 = scalar_lea.vmem %s3, 512
        %v903 = vld [vmem:[%s902] sm:$0xff]
        %v904 = vld [vmem:[%s902 + $0x8] sm:$0xff]
        %v905 = vld [vmem:[%s902 + $0x10] sm:$0xff]
        %v906 = vld [vmem:[%s902 + $0x18] sm:$0xff]
        %v907 = vld [vmem:[%s902 + $0x20] sm:$0xff]
        %v908 = vld [vmem:[%s902 + $0x28] sm:$0xff]
        %v909 = vld [vmem:[%s902 + $0x30] sm:$0xff]
        %v910 = vld [vmem:[%s902 + $0x38] sm:$0xff]
        %v911 = vpack.c.bf16 %v892, %v890
        %v912 = vpack.c.bf16 %v897, %v895
        %v913 = vpack.c.bf16 %v904, %v903
        %v914 = vpack.c.bf16 %v906, %v905
        %v915 = vpack.c.bf16 %v908, %v907
        %v916 = vpack.c.bf16 %v910, %v909
        %v918 = vsel %vm504, %v911, 0
        %v921 = vsel %vm504, %v912, 0
        %923 = vmatpush.bf16.msra.mxu0 0
        %924 = vmatpush.bf16.msra.mxu0 0
        %925 = vmatpush.bf16.msra.mxu0 0
        %926 = vmatpush.bf16.msra.mxu0 0
        %927 = vmatpush.bf16.msra.mxu0 %v916
        %928 = vmatpush.bf16.msra.mxu0 %v915
        %929 = vmatpush.bf16.msra.mxu0 %v914
        %930 = vmatpush.bf16.msra.mxu0 %v913
        %931 = vmatmul.bf16.gmra.mxu0 %v918
        %v932 = vpop.f32.mrf.mxu0
        %v933 = vadd.f32 0.0, %v932
        %v934 = vpop.f32.mrf.mxu0
        %v935 = vadd.f32 0.0, %v934
        %936 = vmatmul.bf16.gmra.mxu0 %v921
        %v937 = vpop.f32.mrf.mxu0
        %v938 = vadd.f32 0.0, %v937
        %v939 = vpop.f32.mrf.mxu0
        %v940 = vadd.f32 0.0, %v939
        %941 = vdwg.mxu0
        %v942 = vadd.f32 %v884, %v933
        %v943 = vadd.f32 %v885, %v935
        %v944 = vadd.f32 %v886, %v938
        %v945 = vadd.f32 %v887, %v940
        %v946 = vld [vmem:[%s4] sm:$0x1]
        %v948 = vperm.slane %v946, 0
        %v950 = vadd.f32 %v942, %v948
        %v951 = vadd.f32 %v943, %v948
        %v952 = vadd.f32 %v944, %v948
        %v953 = vadd.f32 %v945, %v948
        %v954 = vmax.f32 %v950, 0.0
        %v955 = vmax.f32 %v951, 0.0
        %v956 = vmax.f32 %v952, 0.0
        %v957 = vmax.f32 %v953, 0.0
        %vm958 = vcmask 261120
        %959 = vst.msk [vmem:[%s432] sm:$0xff] %vm958, %v954
        %960 = vst.msk [vmem:[%s432 + $0x8] sm:$0xff] %vm958, %v955
        %961 = vst.msk [vmem:[%s432 + $0x10] sm:$0xff] %vm958, %v956
        %962 = vst.msk [vmem:[%s432 + $0x18] sm:$0xff] %vm958, %v957
        %s963 = sand.u32 %s148, 1
        %s964 = sand.u32 %s148, 1
        %s965 = smul.addr %s964, 32
        %s966 = scalar_lea.vmem [#allocation5], %s965
        // Predicated region
        $region155: #{irednet_indrnn_forward.31} parent=141 // pred_check
          %p967 = pneg %p158
        $region156: #{irednet_indrnn_forward.31} parent=141 // pred_check_branch
          %969 = sbr.rel (%p967) target = $region158
        $region157: #{irednet_indrnn_forward.31} parent=141 // pred_region
          %s970 = smul.addr %s16, 2
          %s971 = smul.addr %s970, 8
          %s972 = scalar_lea.vmem %s5, %s971
          // Predicated region
          $region159: #{irednet_indrnn_forward.31} parent=157 // pred_check
            _
          $region160: #{irednet_indrnn_forward.31} parent=157 // pred_check_branch
            %974 = sbr.rel (0) target = $region162
          $region161: #{irednet_indrnn_forward.31} parent=157 // pred_region
            // Predicated region
            $region163: #{irednet_indrnn_forward.31} parent=161 // pred_check
              _
            $region164: #{irednet_indrnn_forward.31} parent=161 // pred_check_branch
              %976 = sbr.rel (0) target = $region166
            $region165: #{irednet_indrnn_forward.31} parent=161 // pred_region
              // Predicated region
              $region178: #{irednet_indrnn_forward.31} parent=165 // pred_check
                _
              $region179: #{irednet_indrnn_forward.31} parent=165 // pred_check_branch
                %998 = sbr.rel (0) target = $region181
              $region180: #{irednet_indrnn_forward.31} parent=165 // pred_region
                loop: start=0, step=1, limit=1
                $region182: #{irednet_indrnn_forward.31} parent=180 // loop_pre_header
                  _
                $region183: #{irednet_indrnn_forward.31} parent=180 // loop_header
                  %s1000 = sphi 0, %s1004
                  %p1001 = scmp.ge.s32.totalorder %s1000, 1
                  %s1005 = sphi %s966, %s966
                  %s1006 = sphi %s972, %s972
                $region184: #{irednet_indrnn_forward.31} parent=180 // loop_header_branch
                  %1003 = sbr.rel (%p1001) target = $region188
                $region185: #{irednet_indrnn_forward.31} parent=180 // loop_body
                  %v1007 = vld [vmem:[%s1005] sm:$0xff]
                  %1008 = vst [vmem:[%s1006] sm:$0xff] %v1007
                  %v1009 = vld [vmem:[%s1005 + $0x8] sm:$0xff]
                  %1010 = vst [vmem:[%s1006 + $0x8] sm:$0xff] %v1009
                  %v1011 = vld [vmem:[%s1005 + $0x10] sm:$0xff]
                  %1012 = vst [vmem:[%s1006 + $0x100] sm:$0xff] %v1011
                  %v1013 = vld [vmem:[%s1005 + $0x18] sm:$0xff]
                  %1014 = vst [vmem:[%s1006 + $0x108] sm:$0xff] %v1013
                $region186: #{irednet_indrnn_forward.31} parent=180 // loop_footer
                  %s1004 = sadd.s32 1, %s1000
                $region187: #{irednet_indrnn_forward.31} parent=180 // loop_footer_branch
                  %999 = sbr.rel target = $region183
                $region188: #{irednet_indrnn_forward.31} parent=180 // loop_exit
                  _
              $region181: #{irednet_indrnn_forward.31} parent=165 // pred_fallthru
                _
              // Predicated region
              $region189: #{irednet_indrnn_forward.31} parent=165 // pred_check
                _
              $region190: #{irednet_indrnn_forward.31} parent=165 // pred_check_branch
                %1016 = sbr.rel target = $region192
              $region191: #{irednet_indrnn_forward.31} parent=165 // pred_region
                _
              $region192: #{irednet_indrnn_forward.31} parent=165 // pred_fallthru
                _
            $region166: #{irednet_indrnn_forward.31} parent=161 // pred_fallthru
              _
            // Predicated region
            $region167: #{irednet_indrnn_forward.31} parent=161 // pred_check
              _
            $region168: #{irednet_indrnn_forward.31} parent=161 // pred_check_branch
              %978 = sbr.rel target = $region170
            $region169: #{irednet_indrnn_forward.31} parent=161 // pred_region
              %s980 = ssub.s32 256, 1
              loop: start=0, step=1, limit=1
              $region171: #{irednet_indrnn_forward.31} parent=169 // loop_pre_header
                _
              $region172: #{irednet_indrnn_forward.31} parent=169 // loop_header
                %s982 = sphi 0, %s986
                %p983 = scmp.ge.s32.totalorder %s982, 1
                %s987 = sphi %s966, %s966
                %s988 = sphi %s972, %s972
              $region173: #{irednet_indrnn_forward.31} parent=169 // loop_header_branch
                %985 = sbr.rel (%p983) target = $region177
              $region174: #{irednet_indrnn_forward.31} parent=169 // loop_body
                %v989 = vld [vmem:[%s987] sm:%s980]
                %990 = vst [vmem:[%s988] sm:%s980] %v989
                %v991 = vld [vmem:[%s987 + $0x8] sm:%s980]
                %992 = vst [vmem:[%s988 + $0x8] sm:%s980] %v991
                %v993 = vld [vmem:[%s987 + $0x10] sm:%s980]
                %994 = vst [vmem:[%s988 + $0x100] sm:%s980] %v993
                %v995 = vld [vmem:[%s987 + $0x18] sm:%s980]
                %996 = vst [vmem:[%s988 + $0x108] sm:%s980] %v995
              $region175: #{irednet_indrnn_forward.31} parent=169 // loop_footer
                %s986 = sadd.s32 1, %s982
              $region176: #{irednet_indrnn_forward.31} parent=169 // loop_footer_branch
                %981 = sbr.rel target = $region172
              $region177: #{irednet_indrnn_forward.31} parent=169 // loop_exit
                _
            $region170: #{irednet_indrnn_forward.31} parent=161 // pred_fallthru
              _
          $region162: #{irednet_indrnn_forward.31} parent=157 // pred_fallthru
            _
          %1017 = vnop
        $region158: #{irednet_indrnn_forward.31} parent=141 // pred_fallthru
          _
      $region142: #{irednet_indrnn_forward.31} parent=5 // pred_fallthru
        _
      %p1018 = scmp.le.s32.totalorder 2, %s11
      // Predicated region
      $region193: #{irednet_indrnn_forward.31} parent=5 // pred_check
        %p1019 = pneg %p1018
      $region194: #{irednet_indrnn_forward.31} parent=5 // pred_check_branch
        %1021 = sbr.rel (%p1019) target = $region196
      $region195: #{irednet_indrnn_forward.31} parent=5 // pred_region
        %s1022 = ssub.s32 %s11, 2
        // Predicated region
        $region197: #{irednet_indrnn_forward.31} parent=195 // pred_check
          %p1023 = pneg %p164
        $region198: #{irednet_indrnn_forward.31} parent=195 // pred_check_branch
          %1025 = sbr.rel (%p1023) target = $region200
        $region199: #{irednet_indrnn_forward.31} parent=195 // pred_region
          %s1026 = sand.u32 %s149, 1
          %s1027 = sand.u32 %s149, 1
          %s1028 = smul.addr %s1027, 32
          %s1029 = scalar_lea.vmem [#allocation5], %s1028
        $region200: #{irednet_indrnn_forward.31} parent=195 // pred_fallthru
          _
      $region196: #{irednet_indrnn_forward.31} parent=5 // pred_fallthru
        _
    $region6: #{irednet_indrnn_forward.31} parent=1 // loop_footer
      %s15 = sadd.s32 1, %s11
    $region7: #{irednet_indrnn_forward.31} parent=1 // loop_footer_branch
      %10 = sbr.rel target = $region3
    $region8: #{irednet_indrnn_forward.31} parent=1 // loop_exit
      _

// kernel: irednet_indrnn_forward.34
$region0: #{irednet_indrnn_forward.34}
  #allocation0 [shape = 'u32[]', space=smem, size = 0x4, offset = 0x4, fixed_abs, tag = 'smem constant byte address 0x4 - core index']
  #allocation1 [shape = 'u32[72,128]{1,0:T(1,128)}', space=vmem, size = 0x9000, scoped, tag = 'internal scratch']
  %s0 = inlined_call_operand.vmem [shape: f32[512,64], index: 0, kind: input, shape index: {}]
  %s1 = inlined_call_operand.vmem [shape: f32[64,128], index: 1, kind: input, shape index: {}]
  %s2 = inlined_call_operand.vmem [shape: f32[1,128], index: 2, kind: input, shape index: {}]
  %s3 = inlined_call_operand.vmem [shape: f32[512,128], index: 3, kind: output, shape index: {}]
  %s4 = sld [smem:[#allocation0]]
  $region22: #{irednet_indrnn_forward.34} parent=0
    _
  %s6 = ssub.s32 1, %s4
  %s7 = scalar_select 0, %s6, %s4
  // Predicated region
  $region2: #{irednet_indrnn_forward.34} parent=0 // pred_check
    _
  $region3: #{irednet_indrnn_forward.34} parent=0 // pred_check_branch
    %9 = sbr.rel (0) target = $region5
  $region4: #{irednet_indrnn_forward.34} parent=0 // pred_region
    _
  $region5: #{irednet_indrnn_forward.34} parent=0 // pred_fallthru
    _
  // Predicated region
  $region6: #{irednet_indrnn_forward.34} parent=0 // pred_check
    _
  $region7: #{irednet_indrnn_forward.34} parent=0 // pred_check_branch
    %11 = sbr.rel (0) target = $region9
  $region8: #{irednet_indrnn_forward.34} parent=0 // pred_region
    _
  $region9: #{irednet_indrnn_forward.34} parent=0 // pred_fallthru
    _
  // Predicated region
  $region10: #{irednet_indrnn_forward.34} parent=0 // pred_check
    _
  $region11: #{irednet_indrnn_forward.34} parent=0 // pred_check_branch
    %13 = sbr.rel (0) target = $region13
  $region12: #{irednet_indrnn_forward.34} parent=0 // pred_region
    _
  $region13: #{irednet_indrnn_forward.34} parent=0 // pred_fallthru
    _
  %v15 = vld [vmem:[%s0] sm:$0xff]
  %v16 = vld [vmem:[%s0 + $0x8] sm:$0xff]
  %v17 = vld [vmem:[%s0 + $0x10] sm:$0xff]
  %v18 = vld [vmem:[%s0 + $0x18] sm:$0xff]
  %v19 = vld [vmem:[%s0 + $0x20] sm:$0xff]
  %v20 = vld [vmem:[%s0 + $0x28] sm:$0xff]
  %v21 = vld [vmem:[%s0 + $0x30] sm:$0xff]
  %v22 = vld [vmem:[%s0 + $0x38] sm:$0xff]
  %v23 = vld [vmem:[%s0 + $0x40] sm:$0xff]
  %v24 = vld [vmem:[%s0 + $0x48] sm:$0xff]
  %v25 = vld [vmem:[%s0 + $0x50] sm:$0xff]
  %v26 = vld [vmem:[%s0 + $0x58] sm:$0xff]
  %v27 = vld [vmem:[%s0 + $0x60] sm:$0xff]
  %v28 = vld [vmem:[%s0 + $0x68] sm:$0xff]
  %v29 = vld [vmem:[%s0 + $0x70] sm:$0xff]
  %v30 = vld [vmem:[%s0 + $0x78] sm:$0xff]
  %v31 = vld [vmem:[%s0 + $0x80] sm:$0xff]
  %v32 = vld [vmem:[%s0 + $0x88] sm:$0xff]
  %v33 = vld [vmem:[%s0 + $0x90] sm:$0xff]
  %v34 = vld [vmem:[%s0 + $0x98] sm:$0xff]
  %v35 = vld [vmem:[%s0 + $0xa0] sm:$0xff]
  %v36 = vld [vmem:[%s0 + $0xa8] sm:$0xff]
  %v37 = vld [vmem:[%s0 + $0xb0] sm:$0xff]
  %v38 = vld [vmem:[%s0 + $0xb8] sm:$0xff]
  %v39 = vld [vmem:[%s0 + $0xc0] sm:$0xff]
  %v40 = vld [vmem:[%s0 + $0xc8] sm:$0xff]
  %v41 = vld [vmem:[%s0 + $0xd0] sm:$0xff]
  %v42 = vld [vmem:[%s0 + $0xd8] sm:$0xff]
  %v43 = vld [vmem:[%s0 + $0xe0] sm:$0xff]
  %v44 = vld [vmem:[%s0 + $0xe8] sm:$0xff]
  %v45 = vld [vmem:[%s0 + $0xf0] sm:$0xff]
  %v46 = vld [vmem:[%s0 + $0xf8] sm:$0xff]
  %v47 = vld [vmem:[%s0 + $0x100] sm:$0xff]
  %v48 = vld [vmem:[%s0 + $0x108] sm:$0xff]
  %v49 = vld [vmem:[%s0 + $0x110] sm:$0xff]
  %v50 = vld [vmem:[%s0 + $0x118] sm:$0xff]
  %v51 = vld [vmem:[%s0 + $0x120] sm:$0xff]
  %v52 = vld [vmem:[%s0 + $0x128] sm:$0xff]
  %v53 = vld [vmem:[%s0 + $0x130] sm:$0xff]
  %v54 = vld [vmem:[%s0 + $0x138] sm:$0xff]
  %v55 = vld [vmem:[%s0 + $0x140] sm:$0xff]
  %v56 = vld [vmem:[%s0 + $0x148] sm:$0xff]
  %v57 = vld [vmem:[%s0 + $0x150] sm:$0xff]
  %v58 = vld [vmem:[%s0 + $0x158] sm:$0xff]
  %v59 = vld [vmem:[%s0 + $0x160] sm:$0xff]
  %v60 = vld [vmem:[%s0 + $0x168] sm:$0xff]
  %v61 = vld [vmem:[%s0 + $0x170] sm:$0xff]
  %v62 = vld [vmem:[%s0 + $0x178] sm:$0xff]
  %v63 = vld [vmem:[%s0 + $0x180] sm:$0xff]
  %v64 = vld [vmem:[%s0 + $0x188] sm:$0xff]
  %v65 = vld [vmem:[%s0 + $0x190] sm:$0xff]
  %v66 = vld [vmem:[%s0 + $0x198] sm:$0xff]
  %v67 = vld [vmem:[%s0 + $0x1a0] sm:$0xff]
  %v68 = vld [vmem:[%s0 + $0x1a8] sm:$0xff]
  %v69 = vld [vmem:[%s0 + $0x1b0] sm:$0xff]
  %v70 = vld [vmem:[%s0 + $0x1b8] sm:$0xff]
  %v71 = vld [vmem:[%s0 + $0x1c0] sm:$0xff]
  %v72 = vld [vmem:[%s0 + $0x1c8] sm:$0xff]
  %v73 = vld [vmem:[%s0 + $0x1d0] sm:$0xff]
  %v74 = vld [vmem:[%s0 + $0x1d8] sm:$0xff]
  %v75 = vld [vmem:[%s0 + $0x1e0] sm:$0xff]
  %v76 = vld [vmem:[%s0 + $0x1e8] sm:$0xff]
  %v77 = vld [vmem:[%s0 + $0x1f0] sm:$0xff]
  %v78 = vld [vmem:[%s0 + $0x1f8] sm:$0xff]
  %v79 = vmax.f32 %v15, 0.0
  %v80 = vmax.f32 %v16, 0.0
  %v81 = vmax.f32 %v17, 0.0
  %v82 = vmax.f32 %v18, 0.0
  %v83 = vmax.f32 %v19, 0.0
  %v84 = vmax.f32 %v20, 0.0
  %v85 = vmax.f32 %v21, 0.0
  %v86 = vmax.f32 %v22, 0.0
  %v87 = vmax.f32 %v23, 0.0
  %v88 = vmax.f32 %v24, 0.0
  %v89 = vmax.f32 %v25, 0.0
  %v90 = vmax.f32 %v26, 0.0
  %v91 = vmax.f32 %v27, 0.0
  %v92 = vmax.f32 %v28, 0.0
  %v93 = vmax.f32 %v29, 0.0
  %v94 = vmax.f32 %v30, 0.0
  %v95 = vmax.f32 %v31, 0.0
  %v96 = vmax.f32 %v32, 0.0
  %v97 = vmax.f32 %v33, 0.0
  %v98 = vmax.f32 %v34, 0.0
  %v99 = vmax.f32 %v35, 0.0
  %v100 = vmax.f32 %v36, 0.0
  %v101 = vmax.f32 %v37, 0.0
  %v102 = vmax.f32 %v38, 0.0
  %v103 = vmax.f32 %v39, 0.0
  %v104 = vmax.f32 %v40, 0.0
  %v105 = vmax.f32 %v41, 0.0
  %v106 = vmax.f32 %v42, 0.0
  %v107 = vmax.f32 %v43, 0.0
  %v108 = vmax.f32 %v44, 0.0
  %v109 = vmax.f32 %v45, 0.0
  %v110 = vmax.f32 %v46, 0.0
  %v111 = vmax.f32 %v47, 0.0
  %v112 = vmax.f32 %v48, 0.0
  %v113 = vmax.f32 %v49, 0.0
  %v114 = vmax.f32 %v50, 0.0
  %v115 = vmax.f32 %v51, 0.0
  %v116 = vmax.f32 %v52, 0.0
  %v117 = vmax.f32 %v53, 0.0
  %v118 = vmax.f32 %v54, 0.0
  %v119 = vmax.f32 %v55, 0.0
  %v120 = vmax.f32 %v56, 0.0
  %v121 = vmax.f32 %v57, 0.0
  %v122 = vmax.f32 %v58, 0.0
  %v123 = vmax.f32 %v59, 0.0
  %v124 = vmax.f32 %v60, 0.0
  %v125 = vmax.f32 %v61, 0.0
  %v126 = vmax.f32 %v62, 0.0
  %v127 = vmax.f32 %v63, 0.0
  %v128 = vmax.f32 %v64, 0.0
  %v129 = vmax.f32 %v65, 0.0
  %v130 = vmax.f32 %v66, 0.0
  %v131 = vmax.f32 %v67, 0.0
  %v132 = vmax.f32 %v68, 0.0
  %v133 = vmax.f32 %v69, 0.0
  %v134 = vmax.f32 %v70, 0.0
  %v135 = vmax.f32 %v71, 0.0
  %v136 = vmax.f32 %v72, 0.0
  %v137 = vmax.f32 %v73, 0.0
  %v138 = vmax.f32 %v74, 0.0
  %v139 = vmax.f32 %v75, 0.0
  %v140 = vmax.f32 %v76, 0.0
  %v141 = vmax.f32 %v77, 0.0
  %v142 = vmax.f32 %v78, 0.0
  %v143 = vpack.c.bf16 %v80, %v79
  %v144 = vpack.c.bf16 %v82, %v81
  %v145 = vpack.c.bf16 %v84, %v83
  %v146 = vpack.c.bf16 %v86, %v85
  %v147 = vpack.c.bf16 %v88, %v87
  %v148 = vpack.c.bf16 %v90, %v89
  %v149 = vpack.c.bf16 %v92, %v91
  %v150 = vpack.c.bf16 %v94, %v93
  %v151 = vpack.c.bf16 %v96, %v95
  %v152 = vpack.c.bf16 %v98, %v97
  %v153 = vpack.c.bf16 %v100, %v99
  %v154 = vpack.c.bf16 %v102, %v101
  %v155 = vpack.c.bf16 %v104, %v103
  %v156 = vpack.c.bf16 %v106, %v105
  %v157 = vpack.c.bf16 %v108, %v107
  %v158 = vpack.c.bf16 %v110, %v109
  %v159 = vpack.c.bf16 %v112, %v111
  %v160 = vpack.c.bf16 %v114, %v113
  %v161 = vpack.c.bf16 %v116, %v115
  %v162 = vpack.c.bf16 %v118, %v117
  %v163 = vpack.c.bf16 %v120, %v119
  %v164 = vpack.c.bf16 %v122, %v121
  %v165 = vpack.c.bf16 %v124, %v123
  %v166 = vpack.c.bf16 %v126, %v125
  %v167 = vpack.c.bf16 %v128, %v127
  %v168 = vpack.c.bf16 %v130, %v129
  %v169 = vpack.c.bf16 %v132, %v131
  %v170 = vpack.c.bf16 %v134, %v133
  %v171 = vpack.c.bf16 %v136, %v135
  %v172 = vpack.c.bf16 %v138, %v137
  %v173 = vpack.c.bf16 %v140, %v139
  %v174 = vpack.c.bf16 %v142, %v141
  %v175 = vld [vmem:[%s1] sm:$0xff]
  %v176 = vld [vmem:[%s1 + $0x8] sm:$0xff]
  %v177 = vld [vmem:[%s1 + $0x10] sm:$0xff]
  %v178 = vld [vmem:[%s1 + $0x18] sm:$0xff]
  %v179 = vld [vmem:[%s1 + $0x20] sm:$0xff]
  %v180 = vld [vmem:[%s1 + $0x28] sm:$0xff]
  %v181 = vld [vmem:[%s1 + $0x30] sm:$0xff]
  %v182 = vld [vmem:[%s1 + $0x38] sm:$0xff]
  %v183 = vpack.c.bf16 %v176, %v175
  %v184 = vpack.c.bf16 %v178, %v177
  %v185 = vpack.c.bf16 %v180, %v179
  %v186 = vpack.c.bf16 %v182, %v181
  %v187 = vld [vmem:[%s2] sm:$0x1]
  %v189 = vperm.slane %v187, 0
  %vm191 = vcmask 523264
  %v193 = vsel %vm191, %v143, 0
  %v196 = vsel %vm191, %v144, 0
  %v199 = vsel %vm191, %v145, 0
  %v202 = vsel %vm191, %v146, 0
  %v205 = vsel %vm191, %v147, 0
  %v208 = vsel %vm191, %v148, 0
  %v211 = vsel %vm191, %v149, 0
  %v214 = vsel %vm191, %v150, 0
  %v217 = vsel %vm191, %v151, 0
  %v220 = vsel %vm191, %v152, 0
  %v223 = vsel %vm191, %v153, 0
  %v226 = vsel %vm191, %v154, 0
  %v229 = vsel %vm191, %v155, 0
  %v232 = vsel %vm191, %v156, 0
  %v235 = vsel %vm191, %v157, 0
  %v238 = vsel %vm191, %v158, 0
  %v241 = vsel %vm191, %v159, 0
  %v244 = vsel %vm191, %v160, 0
  %v247 = vsel %vm191, %v161, 0
  %v250 = vsel %vm191, %v162, 0
  %v253 = vsel %vm191, %v163, 0
  %v256 = vsel %vm191, %v164, 0
  %v259 = vsel %vm191, %v165, 0
  %v262 = vsel %vm191, %v166, 0
  %v265 = vsel %vm191, %v167, 0
  %v268 = vsel %vm191, %v168, 0
  %v271 = vsel %vm191, %v169, 0
  %v274 = vsel %vm191, %v170, 0
  %v277 = vsel %vm191, %v171, 0
  %v280 = vsel %vm191, %v172, 0
  %v283 = vsel %vm191, %v173, 0
  %v286 = vsel %vm191, %v174, 0
  %288 = vmatpush.bf16.msra.mxu0 0
  %289 = vmatpush.bf16.msra.mxu0 0
  %290 = vmatpush.bf16.msra.mxu0 0
  %291 = vmatpush.bf16.msra.mxu0 0
  %292 = vmatpush.bf16.msra.mxu0 %v186
  %293 = vmatpush.bf16.msra.mxu0 %v185
  %294 = vmatpush.bf16.msra.mxu0 %v184
  %295 = vmatpush.bf16.msra.mxu0 %v183
  %296 = vmatmul.bf16.gmra.mxu0 %v193
  %v297 = vpop.f32.mrf.mxu0
  %v298 = vadd.f32 %v189, %v297
  %v299 = vpop.f32.mrf.mxu0
  %v300 = vadd.f32 %v189, %v299
  %301 = vmatmul.bf16.gmra.mxu0 %v196
  %v302 = vpop.f32.mrf.mxu0
  %v303 = vadd.f32 %v189, %v302
  %v304 = vpop.f32.mrf.mxu0
  %v305 = vadd.f32 %v189, %v304
  %306 = vmatmul.bf16.gmra.mxu0 %v199
  %v307 = vpop.f32.mrf.mxu0
  %v308 = vadd.f32 %v189, %v307
  %v309 = vpop.f32.mrf.mxu0
  %v310 = vadd.f32 %v189, %v309
  %311 = vmatmul.bf16.gmra.mxu0 %v202
  %v312 = vpop.f32.mrf.mxu0
  %v313 = vadd.f32 %v189, %v312
  %v314 = vpop.f32.mrf.mxu0
  %v315 = vadd.f32 %v189, %v314
  %316 = vmatmul.bf16.gmra.mxu0 %v205
  %v317 = vpop.f32.mrf.mxu0
  %v318 = vadd.f32 %v189, %v317
  %v319 = vpop.f32.mrf.mxu0
  %v320 = vadd.f32 %v189, %v319
  %321 = vmatmul.bf16.gmra.mxu0 %v208
  %v322 = vpop.f32.mrf.mxu0
  %v323 = vadd.f32 %v189, %v322
  %v324 = vpop.f32.mrf.mxu0
  %v325 = vadd.f32 %v189, %v324
  %326 = vmatmul.bf16.gmra.mxu0 %v211
  %v327 = vpop.f32.mrf.mxu0
  %v328 = vadd.f32 %v189, %v327
  %v329 = vpop.f32.mrf.mxu0
  %v330 = vadd.f32 %v189, %v329
  %331 = vmatmul.bf16.gmra.mxu0 %v214
  %v332 = vpop.f32.mrf.mxu0
  %v333 = vadd.f32 %v189, %v332
  %v334 = vpop.f32.mrf.mxu0
  %v335 = vadd.f32 %v189, %v334
  %336 = vmatmul.bf16.gmra.mxu0 %v217
  %v337 = vpop.f32.mrf.mxu0
  %v338 = vadd.f32 %v189, %v337
  %v339 = vpop.f32.mrf.mxu0
  %v340 = vadd.f32 %v189, %v339
  %341 = vmatmul.bf16.gmra.mxu0 %v220
  %v342 = vpop.f32.mrf.mxu0
  %v343 = vadd.f32 %v189, %v342
  %v344 = vpop.f32.mrf.mxu0
  %v345 = vadd.f32 %v189, %v344
  %346 = vmatmul.bf16.gmra.mxu0 %v223
  %v347 = vpop.f32.mrf.mxu0
  %v348 = vadd.f32 %v189, %v347
  %v349 = vpop.f32.mrf.mxu0
  %v350 = vadd.f32 %v189, %v349
  %351 = vmatmul.bf16.gmra.mxu0 %v226
  %v352 = vpop.f32.mrf.mxu0
  %v353 = vadd.f32 %v189, %v352
  %v354 = vpop.f32.mrf.mxu0
  %v355 = vadd.f32 %v189, %v354
  %356 = vmatmul.bf16.gmra.mxu0 %v229
  %v357 = vpop.f32.mrf.mxu0
  %v358 = vadd.f32 %v189, %v357
  %v359 = vpop.f32.mrf.mxu0
  %v360 = vadd.f32 %v189, %v359
  %361 = vmatmul.bf16.gmra.mxu0 %v232
  %v362 = vpop.f32.mrf.mxu0
  %v363 = vadd.f32 %v189, %v362
  %v364 = vpop.f32.mrf.mxu0
  %v365 = vadd.f32 %v189, %v364
  %366 = vmatmul.bf16.gmra.mxu0 %v235
  %v367 = vpop.f32.mrf.mxu0
  %v368 = vadd.f32 %v189, %v367
  %v369 = vpop.f32.mrf.mxu0
  %v370 = vadd.f32 %v189, %v369
  %371 = vmatmul.bf16.gmra.mxu0 %v238
  %v372 = vpop.f32.mrf.mxu0
  %v373 = vadd.f32 %v189, %v372
  %v374 = vpop.f32.mrf.mxu0
  %v375 = vadd.f32 %v189, %v374
  %376 = vmatmul.bf16.gmra.mxu0 %v241
  %v377 = vpop.f32.mrf.mxu0
  %v378 = vadd.f32 %v189, %v377
  %v379 = vpop.f32.mrf.mxu0
  %v380 = vadd.f32 %v189, %v379
  %381 = vmatmul.bf16.gmra.mxu0 %v244
  %v382 = vpop.f32.mrf.mxu0
  %v383 = vadd.f32 %v189, %v382
  %v384 = vpop.f32.mrf.mxu0
  %v385 = vadd.f32 %v189, %v384
  %386 = vmatmul.bf16.gmra.mxu0 %v247
  %v387 = vpop.f32.mrf.mxu0
  %v388 = vadd.f32 %v189, %v387
  %v389 = vpop.f32.mrf.mxu0
  %v390 = vadd.f32 %v189, %v389
  %391 = vmatmul.bf16.gmra.mxu0 %v250
  %v392 = vpop.f32.mrf.mxu0
  %v393 = vadd.f32 %v189, %v392
  %v394 = vpop.f32.mrf.mxu0
  %v395 = vadd.f32 %v189, %v394
  %396 = vmatmul.bf16.gmra.mxu0 %v253
  %v397 = vpop.f32.mrf.mxu0
  %v398 = vadd.f32 %v189, %v397
  %v399 = vpop.f32.mrf.mxu0
  %v400 = vadd.f32 %v189, %v399
  %401 = vmatmul.bf16.gmra.mxu0 %v256
  %v402 = vpop.f32.mrf.mxu0
  %v403 = vadd.f32 %v189, %v402
  %v404 = vpop.f32.mrf.mxu0
  %v405 = vadd.f32 %v189, %v404
  %406 = vmatmul.bf16.gmra.mxu0 %v259
  %v407 = vpop.f32.mrf.mxu0
  %v408 = vadd.f32 %v189, %v407
  %v409 = vpop.f32.mrf.mxu0
  %v410 = vadd.f32 %v189, %v409
  %411 = vmatmul.bf16.gmra.mxu0 %v262
  %v412 = vpop.f32.mrf.mxu0
  %v413 = vadd.f32 %v189, %v412
  %v414 = vpop.f32.mrf.mxu0
  %v415 = vadd.f32 %v189, %v414
  %416 = vmatmul.bf16.gmra.mxu0 %v265
  %v417 = vpop.f32.mrf.mxu0
  %v418 = vadd.f32 %v189, %v417
  %v419 = vpop.f32.mrf.mxu0
  %v420 = vadd.f32 %v189, %v419
  %421 = vmatmul.bf16.gmra.mxu0 %v268
  %v422 = vpop.f32.mrf.mxu0
  %v423 = vadd.f32 %v189, %v422
  %v424 = vpop.f32.mrf.mxu0
  %v425 = vadd.f32 %v189, %v424
  %426 = vmatmul.bf16.gmra.mxu0 %v271
  %v427 = vpop.f32.mrf.mxu0
  %v428 = vadd.f32 %v189, %v427
  %v429 = vpop.f32.mrf.mxu0
  %v430 = vadd.f32 %v189, %v429
  %431 = vmatmul.bf16.gmra.mxu0 %v274
  %v432 = vpop.f32.mrf.mxu0
  %v433 = vadd.f32 %v189, %v432
  %v434 = vpop.f32.mrf.mxu0
  %v435 = vadd.f32 %v189, %v434
  %436 = vmatmul.bf16.gmra.mxu0 %v277
  %v437 = vpop.f32.mrf.mxu0
  %v438 = vadd.f32 %v189, %v437
  %v439 = vpop.f32.mrf.mxu0
  %v440 = vadd.f32 %v189, %v439
  %441 = vmatmul.bf16.gmra.mxu0 %v280
  %v442 = vpop.f32.mrf.mxu0
  %v443 = vadd.f32 %v189, %v442
  %v444 = vpop.f32.mrf.mxu0
  %v445 = vadd.f32 %v189, %v444
  %446 = vmatmul.bf16.gmra.mxu0 %v283
  %v447 = vpop.f32.mrf.mxu0
  %v448 = vadd.f32 %v189, %v447
  %v449 = vpop.f32.mrf.mxu0
  %v450 = vadd.f32 %v189, %v449
  %451 = vmatmul.bf16.gmra.mxu0 %v286
  %v452 = vpop.f32.mrf.mxu0
  %v453 = vadd.f32 %v189, %v452
  %v454 = vpop.f32.mrf.mxu0
  %v455 = vadd.f32 %v189, %v454
  %456 = vdwg.mxu0
  %v457 = vmax.f32 %v298, 0.0
  %v458 = vmax.f32 %v300, 0.0
  %v459 = vmax.f32 %v303, 0.0
  %v460 = vmax.f32 %v305, 0.0
  %v461 = vmax.f32 %v308, 0.0
  %v462 = vmax.f32 %v310, 0.0
  %v463 = vmax.f32 %v313, 0.0
  %v464 = vmax.f32 %v315, 0.0
  %v465 = vmax.f32 %v318, 0.0
  %v466 = vmax.f32 %v320, 0.0
  %v467 = vmax.f32 %v323, 0.0
  %v468 = vmax.f32 %v325, 0.0
  %v469 = vmax.f32 %v328, 0.0
  %v470 = vmax.f32 %v330, 0.0
  %v471 = vmax.f32 %v333, 0.0
  %v472 = vmax.f32 %v335, 0.0
  %v473 = vmax.f32 %v338, 0.0
  %v474 = vmax.f32 %v340, 0.0
  %v475 = vmax.f32 %v343, 0.0
  %v476 = vmax.f32 %v345, 0.0
  %v477 = vmax.f32 %v348, 0.0
  %v478 = vmax.f32 %v350, 0.0
  %v479 = vmax.f32 %v353, 0.0
  %v480 = vmax.f32 %v355, 0.0
  %v481 = vmax.f32 %v358, 0.0
  %v482 = vmax.f32 %v360, 0.0
  %v483 = vmax.f32 %v363, 0.0
  %v484 = vmax.f32 %v365, 0.0
  %v485 = vmax.f32 %v368, 0.0
  %v486 = vmax.f32 %v370, 0.0
  %v487 = vmax.f32 %v373, 0.0
  %v488 = vmax.f32 %v375, 0.0
  %v489 = vmax.f32 %v378, 0.0
  %v490 = vmax.f32 %v380, 0.0
  %v491 = vmax.f32 %v383, 0.0
  %v492 = vmax.f32 %v385, 0.0
  %v493 = vmax.f32 %v388, 0.0
  %v494 = vmax.f32 %v390, 0.0
  %v495 = vmax.f32 %v393, 0.0
  %v496 = vmax.f32 %v395, 0.0
  %v497 = vmax.f32 %v398, 0.0
  %v498 = vmax.f32 %v400, 0.0
  %v499 = vmax.f32 %v403, 0.0
  %v500 = vmax.f32 %v405, 0.0
  %v501 = vmax.f32 %v408, 0.0
  %v502 = vmax.f32 %v410, 0.0
  %v503 = vmax.f32 %v413, 0.0
  %v504 = vmax.f32 %v415, 0.0
  %v505 = vmax.f32 %v418, 0.0
  %v506 = vmax.f32 %v420, 0.0
  %v507 = vmax.f32 %v423, 0.0
  %v508 = vmax.f32 %v425, 0.0
  %v509 = vmax.f32 %v428, 0.0
  %v510 = vmax.f32 %v430, 0.0
  %v511 = vmax.f32 %v433, 0.0
  %v512 = vmax.f32 %v435, 0.0
  %v513 = vmax.f32 %v438, 0.0
  %v514 = vmax.f32 %v440, 0.0
  %v515 = vmax.f32 %v443, 0.0
  %v516 = vmax.f32 %v445, 0.0
  %v517 = vmax.f32 %v448, 0.0
  %v518 = vmax.f32 %v450, 0.0
  %v519 = vmax.f32 %v453, 0.0
  %v520 = vmax.f32 %v455, 0.0
  %521 = vst [vmem:[%s3] sm:$0xff] %v457
  %522 = vst [vmem:[%s3 + $0x8] sm:$0xff] %v458
  %523 = vst [vmem:[%s3 + $0x10] sm:$0xff] %v459
  %524 = vst [vmem:[%s3 + $0x18] sm:$0xff] %v460
  %525 = vst [vmem:[%s3 + $0x20] sm:$0xff] %v461
  %526 = vst [vmem:[%s3 + $0x28] sm:$0xff] %v462
  %527 = vst [vmem:[%s3 + $0x30] sm:$0xff] %v463
  %528 = vst [vmem:[%s3 + $0x38] sm:$0xff] %v464
  %529 = vst [vmem:[%s3 + $0x40] sm:$0xff] %v465
  %530 = vst [vmem:[%s3 + $0x48] sm:$0xff] %v466
  %531 = vst [vmem:[%s3 + $0x50] sm:$0xff] %v467
  %532 = vst [vmem:[%s3 + $0x58] sm:$0xff] %v468
  %533 = vst [vmem:[%s3 + $0x60] sm:$0xff] %v469
  %534 = vst [vmem:[%s3 + $0x68] sm:$0xff] %v470
  %535 = vst [vmem:[%s3 + $0x70] sm:$0xff] %v471
  %536 = vst [vmem:[%s3 + $0x78] sm:$0xff] %v472
  %537 = vst [vmem:[%s3 + $0x80] sm:$0xff] %v473
  %538 = vst [vmem:[%s3 + $0x88] sm:$0xff] %v474
  %539 = vst [vmem:[%s3 + $0x90] sm:$0xff] %v475
  %540 = vst [vmem:[%s3 + $0x98] sm:$0xff] %v476
  %541 = vst [vmem:[%s3 + $0xa0] sm:$0xff] %v477
  %542 = vst [vmem:[%s3 + $0xa8] sm:$0xff] %v478
  %543 = vst [vmem:[%s3 + $0xb0] sm:$0xff] %v479
  %544 = vst [vmem:[%s3 + $0xb8] sm:$0xff] %v480
  %545 = vst [vmem:[%s3 + $0xc0] sm:$0xff] %v481
  %546 = vst [vmem:[%s3 + $0xc8] sm:$0xff] %v482
  %547 = vst [vmem:[%s3 + $0xd0] sm:$0xff] %v483
  %548 = vst [vmem:[%s3 + $0xd8] sm:$0xff] %v484
  %549 = vst [vmem:[%s3 + $0xe0] sm:$0xff] %v485
  %550 = vst [vmem:[%s3 + $0xe8] sm:$0xff] %v486
  %551 = vst [vmem:[%s3 + $0xf0] sm:$0xff] %v487
  %552 = vst [vmem:[%s3 + $0xf8] sm:$0xff] %v488
  %553 = vst [vmem:[%s3 + $0x100] sm:$0xff] %v489
  %554 = vst [vmem:[%s3 + $0x108] sm:$0xff] %v490
  %555 = vst [vmem:[%s3 + $0x110] sm:$0xff] %v491
  %556 = vst [vmem:[%s3 + $0x118] sm:$0xff] %v492
  %557 = vst [vmem:[%s3 + $0x120] sm:$0xff] %v493
  %558 = vst [vmem:[%s3 + $0x128] sm:$0xff] %v494
  %559 = vst [vmem:[%s3 + $0x130] sm:$0xff] %v495
  %560 = vst [vmem:[%s3 + $0x138] sm:$0xff] %v496
  %561 = vst [vmem:[%s3 + $0x140] sm:$0xff] %v497
  %562 = vst [vmem:[%s3 + $0x148] sm:$0xff] %v498
  %563 = vst [vmem:[%s3 + $0x150] sm:$0xff] %v499
  %564 = vst [vmem:[%s3 + $0x158] sm:$0xff] %v500
  %565 = vst [vmem:[%s3 + $0x160] sm:$0xff] %v501
  %566 = vst [vmem:[%s3 + $0x168] sm:$0xff] %v502
  %567 = vst [vmem:[%s3 + $0x170] sm:$0xff] %v503
  %568 = vst [vmem:[%s3 + $0x178] sm:$0xff] %v504
  %569 = vst [vmem:[%s3 + $0x180] sm:$0xff] %v505
  %570 = vst [vmem:[%s3 + $0x188] sm:$0xff] %v506
  %571 = vst [vmem:[%s3 + $0x190] sm:$0xff] %v507
  %572 = vst [vmem:[%s3 + $0x198] sm:$0xff] %v508
  %573 = vst [vmem:[%s3 + $0x1a0] sm:$0xff] %v509
  %574 = vst [vmem:[%s3 + $0x1a8] sm:$0xff] %v510
  %575 = vst [vmem:[%s3 + $0x1b0] sm:$0xff] %v511
  %576 = vst [vmem:[%s3 + $0x1b8] sm:$0xff] %v512
  %577 = vst [vmem:[%s3 + $0x1c0] sm:$0xff] %v513
  %578 = vst [vmem:[%s3 + $0x1c8] sm:$0xff] %v514
  %579 = vst [vmem:[%s3 + $0x1d0] sm:$0xff] %v515
  %580 = vst [vmem:[%s3 + $0x1d8] sm:$0xff] %v516
  %581 = vst [vmem:[%s3 + $0x1e0] sm:$0xff] %v517
  %582 = vst [vmem:[%s3 + $0x1e8] sm:$0xff] %v518
  %583 = vst [vmem:[%s3 + $0x1f0] sm:$0xff] %v519
  %584 = vst [vmem:[%s3 + $0x1f8] sm:$0xff] %v520
  // Predicated region
  $region14: #{irednet_indrnn_forward.34} parent=0 // pred_check
    _
  $region15: #{irednet_indrnn_forward.34} parent=0 // pred_check_branch
    %586 = sbr.rel (0) target = $region17
  $region16: #{irednet_indrnn_forward.34} parent=0 // pred_region
    _
  $region17: #{irednet_indrnn_forward.34} parent=0 // pred_fallthru
    _
  // Predicated region
  $region18: #{irednet_indrnn_forward.34} parent=0 // pred_check
    _
  $region19: #{irednet_indrnn_forward.34} parent=0 // pred_check_branch
    %588 = sbr.rel (0) target = $region21
  $region20: #{irednet_indrnn_forward.34} parent=0 // pred_region
    _
  $region21: #{irednet_indrnn_forward.34} parent=0 // pred_fallthru
    _

// kernel: irednet_indrnn_forward.33
$region0: #{irednet_indrnn_forward.33}
  #allocation0 [shape = 'u32[]', space=smem, size = 0x4, offset = 0x4, fixed_abs, tag = 'smem constant byte address 0x4 - core index']
  #allocation1 [shape = 'u32[72,128]{1,0:T(1,128)}', space=vmem, size = 0x9000, scoped, tag = 'internal scratch']
  %s0 = inlined_call_operand.vmem [shape: f32[2,18,18,128], index: 0, kind: input, shape index: {}, may-alias: {0,1,2}]
  %s1 = inlined_call_operand.vmem [shape: f32[2,18,18,128], index: 1, kind: input, shape index: {}, may-alias: {0,1,2}]
  %s2 = inlined_call_operand.vmem [shape: f32[2,18,18,128], index: 2, kind: input, shape index: {}, may-alias: {0,1,2}]
  %s3 = inlined_call_operand.vmem [shape: f32[9,128,32], index: 3, kind: input, shape index: {}]
  %s4 = inlined_call_operand.vmem [shape: f32[1,32], index: 4, kind: input, shape index: {}]
  %s5 = inlined_call_operand.vmem [shape: f32[2,16,16,32], index: 5, kind: output, shape index: {}]
  %s6 = sld [smem:[#allocation0]]
  $region201: #{irednet_indrnn_forward.33} parent=0
    _
  %s8 = ssub.s32 1, %s6
  %s9 = scalar_select 0, %s8, %s6
  $region1: #{irednet_indrnn_forward.33} parent=0
    #allocation2 [shape = 'u8[49152]{0}', space=vmem, size = 0xc000, scoped, tag = 'input window, operand 0']
    #allocation3 [shape = 'u8[49152]{0}', space=vmem, size = 0xc000, scoped, tag = 'input window, operand 1']
    #allocation4 [shape = 'u8[49152]{0}', space=vmem, size = 0xc000, scoped, tag = 'input window, operand 2']
    #allocation5 [shape = 'u8[32768]{0}', space=vmem, size = 0x8000, scoped, tag = 'output window, operand 0']
    loop: start=0, step=1, limit=18
    $region2: #{irednet_indrnn_forward.33} parent=1 // loop_pre_header
      _
    $region3: #{irednet_indrnn_forward.33} parent=1 // loop_header
      %s11 = sphi 0, %s15
      %p12 = scmp.ge.s32.totalorder %s11, 18
      %s21 = sphi 0, %s23
      %s24 = sphi 0, %s21
      %s25 = sphi 0, %s24
      %s41 = sphi 0, %s25
      %s49 = sphi 0, %s51
      %s52 = sphi 0, %s49
      %s53 = sphi 0, %s52
      %s69 = sphi 0, %s53
      %s77 = sphi 0, %s79
      %s80 = sphi 0, %s77
      %s81 = sphi 0, %s80
      %s97 = sphi 0, %s81
      %s101 = sphi 0, %s101
      %s103 = sphi 0, %s101
      %s104 = sphi 0, %s103
      %s118 = sphi 0, %s104
      %s122 = sphi 0, %s122
      %s124 = sphi 0, %s122
      %s125 = sphi 0, %s124
      %s139 = sphi 0, %s125
      %s145 = sphi 0, %s147
      %s148 = sphi 0, %s145
      %s149 = sphi 0, %s148
      %s165 = sphi 0, %s149
    $region4: #{irednet_indrnn_forward.33} parent=1 // loop_header_branch
      %14 = sbr.rel (%p12) target = $region8
    $region5: #{irednet_indrnn_forward.33} parent=1 // loop_body
      %s16 = ssub.s32 %s11, 1
      %s17 = ssub.s32 %s11, 2
      %s18 = sadd.s32 %s11, 1
      %s19 = ssub.s32 %s11, %s18
      %p20 = scmp.eq.s32.totalorder %s19, 0
      %s22 = sadd.s32 %s21, 1
      %s23 = scalar_select %p20, %s21, %s22
      %p26 = pneg %p20
      %p27 = scmp.eq.s32.totalorder %s11, 15
      %p28 = por %p26, %p27
      %p29 = scmp.ne.s32.totalorder %s21, %s24
      %p30 = scmp.eq.s32.totalorder %s11, 0
      %p31 = por %p29, %p30
      %p32 = scmp.ne.s32.totalorder %s21, %s24
      %p33 = scmp.eq.s32.totalorder %s16, 15
      %p34 = por %p32, %p33
      %p35 = scmp.ne.s32.totalorder %s24, %s25
      %p36 = scmp.eq.s32.totalorder %s16, 0
      %p37 = por %p35, %p36
      %p38 = scmp.ne.s32.totalorder %s24, %s25
      %p39 = scmp.eq.s32.totalorder %s17, 15
      %p40 = por %p38, %p39
      %p42 = scmp.ne.s32.totalorder %s25, %s41
      %p43 = scmp.eq.s32.totalorder %s17, 0
      %p44 = por %p42, %p43
      %s45 = sadd.s32 %s11, 1
      %s46 = sadd.s32 %s18, 1
      %s47 = ssub.s32 %s45, %s46
      %p48 = scmp.eq.s32.totalorder %s47, 0
      %s50 = sadd.s32 %s49, 1
      %s51 = scalar_select %p48, %s49, %s50
      %p54 = pneg %p48
      %p55 = scmp.eq.s32.totalorder %s11, 15
      %p56 = por %p54, %p55
      %p57 = scmp.ne.s32.totalorder %s49, %s52
      %p58 = scmp.eq.s32.totalorder %s11, 0
      %p59 = por %p57, %p58
      %p60 = scmp.ne.s32.totalorder %s49, %s52
      %p61 = scmp.eq.s32.totalorder %s16, 15
      %p62 = por %p60, %p61
      %p63 = scmp.ne.s32.totalorder %s52, %s53
      %p64 = scmp.eq.s32.totalorder %s16, 0
      %p65 = por %p63, %p64
      %p66 = scmp.ne.s32.totalorder %s52, %s53
      %p67 = scmp.eq.s32.totalorder %s17, 15
      %p68 = por %p66, %p67
      %p70 = scmp.ne.s32.totalorder %s53, %s69
      %p71 = scmp.eq.s32.totalorder %s17, 0
      %p72 = por %p70, %p71
      %s73 = sadd.s32 %s11, 2
      %s74 = sadd.s32 %s18, 2
      %s75 = ssub.s32 %s73, %s74
      %p76 = scmp.eq.s32.totalorder %s75, 0
      %s78 = sadd.s32 %s77, 1
      %s79 = scalar_select %p76, %s77, %s78
      %p82 = pneg %p76
      %p83 = scmp.eq.s32.totalorder %s11, 15
      %p84 = por %p82, %p83
      %p85 = scmp.ne.s32.totalorder %s77, %s80
      %p86 = scmp.eq.s32.totalorder %s11, 0
      %p87 = por %p85, %p86
      %p88 = scmp.ne.s32.totalorder %s77, %s80
      %p89 = scmp.eq.s32.totalorder %s16, 15
      %p90 = por %p88, %p89
      %p91 = scmp.ne.s32.totalorder %s80, %s81
      %p92 = scmp.eq.s32.totalorder %s16, 0
      %p93 = por %p91, %p92
      %p94 = scmp.ne.s32.totalorder %s80, %s81
      %p95 = scmp.eq.s32.totalorder %s17, 15
      %p96 = por %p94, %p95
      %p98 = scmp.ne.s32.totalorder %s81, %s97
      %p99 = scmp.eq.s32.totalorder %s17, 0
      %p100 = por %p98, %p99
      %s102 = sadd.s32 %s101, 1
      %p105 = scmp.eq.s32.totalorder %s11, 15
      %p106 = scmp.ne.s32.totalorder %s101, %s103
      %p107 = scmp.eq.s32.totalorder %s11, 0
      %p108 = por %p106, %p107
      %p109 = scmp.ne.s32.totalorder %s101, %s103
      %p110 = scmp.eq.s32.totalorder %s16, 15
      %p111 = por %p109, %p110
      %p112 = scmp.ne.s32.totalorder %s103, %s104
      %p113 = scmp.eq.s32.totalorder %s16, 0
      %p114 = por %p112, %p113
      %p115 = scmp.ne.s32.totalorder %s103, %s104
      %p116 = scmp.eq.s32.totalorder %s17, 15
      %p117 = por %p115, %p116
      %p119 = scmp.ne.s32.totalorder %s104, %s118
      %p120 = scmp.eq.s32.totalorder %s17, 0
      %p121 = por %p119, %p120
      %s123 = sadd.s32 %s122, 1
      %p126 = scmp.eq.s32.totalorder %s11, 15
      %p127 = scmp.ne.s32.totalorder %s122, %s124
      %p128 = scmp.eq.s32.totalorder %s11, 0
      %p129 = por %p127, %p128
      %p130 = scmp.ne.s32.totalorder %s122, %s124
      %p131 = scmp.eq.s32.totalorder %s16, 15
      %p132 = por %p130, %p131
      %p133 = scmp.ne.s32.totalorder %s124, %s125
      %p134 = scmp.eq.s32.totalorder %s16, 0
      %p135 = por %p133, %p134
      %p136 = scmp.ne.s32.totalorder %s124, %s125
      %p137 = scmp.eq.s32.totalorder %s17, 15
      %p138 = por %p136, %p137
      %p140 = scmp.ne.s32.totalorder %s125, %s139
      %p141 = scmp.eq.s32.totalorder %s17, 0
      %p142 = por %p140, %p141
      %s143 = ssub.s32 %s11, %s18
      %p144 = scmp.eq.s32.totalorder %s143, 0
      %s146 = sadd.s32 %s145, 1
      %s147 = scalar_select %p144, %s145, %s146
      %p150 = pneg %p144
      %p151 = scmp.eq.s32.totalorder %s11, 15
      %p152 = por %p150, %p151
      %p153 = scmp.ne.s32.totalorder %s145, %s148
      %p154 = scmp.eq.s32.totalorder %s11, 0
      %p155 = por %p153, %p154
      %p156 = scmp.ne.s32.totalorder %s145, %s148
      %p157 = scmp.eq.s32.totalorder %s16, 15
      %p158 = por %p156, %p157
      %p159 = scmp.ne.s32.totalorder %s148, %s149
      %p160 = scmp.eq.s32.totalorder %s16, 0
      %p161 = por %p159, %p160
      %p162 = scmp.ne.s32.totalorder %s148, %s149
      %p163 = scmp.eq.s32.totalorder %s17, 15
      %p164 = por %p162, %p163
      %p166 = scmp.ne.s32.totalorder %s149, %s165
      %p167 = scmp.eq.s32.totalorder %s17, 0
      %p168 = por %p166, %p167
      %p169 = scmp.le.s32.totalorder 1, %s11
      %p170 = scmp.lt.s32.totalorder %s11, 17
      %p171 = pnand %p169, %p170
      %p172 = pneg %p171
      // Predicated region
      $region9: #{irednet_indrnn_forward.33} parent=5 // pred_check
        _
      $region10: #{irednet_indrnn_forward.33} parent=5 // pred_check_branch
        %174 = sbr.rel (%p171) target = $region12
      $region11: #{irednet_indrnn_forward.33} parent=5 // pred_region
        %s175 = ssub.s32 %s11, 1
        // Predicated region
        $region13: #{irednet_indrnn_forward.33} parent=11 // pred_check
          %p176 = pneg %p114
        $region14: #{irednet_indrnn_forward.33} parent=11 // pred_check_branch
          %178 = sbr.rel (%p176) target = $region16
        $region15: #{irednet_indrnn_forward.33} parent=11 // pred_region
          _
        $region16: #{irednet_indrnn_forward.33} parent=11 // pred_fallthru
          _
        // Predicated region
        $region17: #{irednet_indrnn_forward.33} parent=11 // pred_check
          %p179 = pneg %p135
        $region18: #{irednet_indrnn_forward.33} parent=11 // pred_check_branch
          %181 = sbr.rel (%p179) target = $region20
        $region19: #{irednet_indrnn_forward.33} parent=11 // pred_region
          _
        $region20: #{irednet_indrnn_forward.33} parent=11 // pred_fallthru
          _
      $region12: #{irednet_indrnn_forward.33} parent=5 // pred_fallthru
        _
      %p182 = scmp.lt.s32.totalorder %s11, 16
      // Predicated region
      $region21: #{irednet_indrnn_forward.33} parent=5 // pred_check
        %p183 = pneg %p182
      $region22: #{irednet_indrnn_forward.33} parent=5 // pred_check_branch
        %185 = sbr.rel (%p183) target = $region24
      $region23: #{irednet_indrnn_forward.33} parent=5 // pred_region
        // Predicated region
        $region25: #{irednet_indrnn_forward.33} parent=23 // pred_check
          %p186 = pneg %p31
        $region26: #{irednet_indrnn_forward.33} parent=23 // pred_check_branch
          %188 = sbr.rel (%p186) target = $region28
        $region27: #{irednet_indrnn_forward.33} parent=23 // pred_region
          %s189 = sand.u32 %s21, 1
          %s190 = sand.u32 %s21, 1
          %s191 = smul.addr %s190, 48
          %s192 = scalar_lea.vmem [#allocation2], %s191
          %s193 = smul.addr %s11, 3
          %s194 = smul.addr %s193, 8
          %s195 = scalar_lea.vmem %s0, %s194
          // Predicated region
          $region29: #{irednet_indrnn_forward.33} parent=27 // pred_check
            _
          $region30: #{irednet_indrnn_forward.33} parent=27 // pred_check_branch
            %197 = sbr.rel (0) target = $region32
          $region31: #{irednet_indrnn_forward.33} parent=27 // pred_region
            // Predicated region
            $region33: #{irednet_indrnn_forward.33} parent=31 // pred_check
              _
            $region34: #{irednet_indrnn_forward.33} parent=31 // pred_check_branch
              %199 = sbr.rel (0) target = $region36
            $region35: #{irednet_indrnn_forward.33} parent=31 // pred_region
              // Predicated region
              $region48: #{irednet_indrnn_forward.33} parent=35 // pred_check
                _
              $region49: #{irednet_indrnn_forward.33} parent=35 // pred_check_branch
                %225 = sbr.rel (0) target = $region51
              $region50: #{irednet_indrnn_forward.33} parent=35 // pred_region
                loop: start=0, step=1, limit=1
                $region52: #{irednet_indrnn_forward.33} parent=50 // loop_pre_header
                  _
                $region53: #{irednet_indrnn_forward.33} parent=50 // loop_header
                  %s227 = sphi 0, %s231
                  %p228 = scmp.ge.s32.totalorder %s227, 1
                  %s232 = sphi %s195, %s195
                  %s233 = sphi %s192, %s192
                $region54: #{irednet_indrnn_forward.33} parent=50 // loop_header_branch
                  %230 = sbr.rel (%p228) target = $region58
                $region55: #{irednet_indrnn_forward.33} parent=50 // loop_body
                  %v234 = vld [vmem:[%s232] sm:$0xff]
                  %235 = vst [vmem:[%s233] sm:$0xff] %v234
                  %v236 = vld [vmem:[%s232 + $0x8] sm:$0xff]
                  %237 = vst [vmem:[%s233 + $0x8] sm:$0xff] %v236
                  %v238 = vld [vmem:[%s232 + $0x10] sm:$0xff]
                  %239 = vst [vmem:[%s233 + $0x10] sm:$0xff] %v238
                  %v240 = vld [vmem:[%s232 + $0x1b0] sm:$0xff]
                  %241 = vst [vmem:[%s233 + $0x18] sm:$0xff] %v240
                  %v242 = vld [vmem:[%s232 + $0x1b8] sm:$0xff]
                  %243 = vst [vmem:[%s233 + $0x20] sm:$0xff] %v242
                  %v244 = vld [vmem:[%s232 + $0x1c0] sm:$0xff]
                  %245 = vst [vmem:[%s233 + $0x28] sm:$0xff] %v244
                $region56: #{irednet_indrnn_forward.33} parent=50 // loop_footer
                  %s231 = sadd.s32 1, %s227
                $region57: #{irednet_indrnn_forward.33} parent=50 // loop_footer_branch
                  %226 = sbr.rel target = $region53
                $region58: #{irednet_indrnn_forward.33} parent=50 // loop_exit
                  _
              $region51: #{irednet_indrnn_forward.33} parent=35 // pred_fallthru
                _
              // Predicated region
              $region59: #{irednet_indrnn_forward.33} parent=35 // pred_check
                _
              $region60: #{irednet_indrnn_forward.33} parent=35 // pred_check_branch
                %247 = sbr.rel target = $region62
              $region61: #{irednet_indrnn_forward.33} parent=35 // pred_region
                _
              $region62: #{irednet_indrnn_forward.33} parent=35 // pred_fallthru
                _
            $region36: #{irednet_indrnn_forward.33} parent=31 // pred_fallthru
              _
            // Predicated region
            $region37: #{irednet_indrnn_forward.33} parent=31 // pred_check
              _
            $region38: #{irednet_indrnn_forward.33} parent=31 // pred_check_branch
              %201 = sbr.rel target = $region40
            $region39: #{irednet_indrnn_forward.33} parent=31 // pred_region
              %s203 = ssub.s32 256, 1
              loop: start=0, step=1, limit=1
              $region41: #{irednet_indrnn_forward.33} parent=39 // loop_pre_header
                _
              $region42: #{irednet_indrnn_forward.33} parent=39 // loop_header
                %s205 = sphi 0, %s209
                %p206 = scmp.ge.s32.totalorder %s205, 1
                %s210 = sphi %s195, %s195
                %s211 = sphi %s192, %s192
              $region43: #{irednet_indrnn_forward.33} parent=39 // loop_header_branch
                %208 = sbr.rel (%p206) target = $region47
              $region44: #{irednet_indrnn_forward.33} parent=39 // loop_body
                %v212 = vld [vmem:[%s210] sm:%s203]
                %213 = vst [vmem:[%s211] sm:%s203] %v212
                %v214 = vld [vmem:[%s210 + $0x8] sm:%s203]
                %215 = vst [vmem:[%s211 + $0x8] sm:%s203] %v214
                %v216 = vld [vmem:[%s210 + $0x10] sm:%s203]
                %217 = vst [vmem:[%s211 + $0x10] sm:%s203] %v216
                %v218 = vld [vmem:[%s210 + $0x1b0] sm:%s203]
                %219 = vst [vmem:[%s211 + $0x18] sm:%s203] %v218
                %v220 = vld [vmem:[%s210 + $0x1b8] sm:%s203]
                %221 = vst [vmem:[%s211 + $0x20] sm:%s203] %v220
                %v222 = vld [vmem:[%s210 + $0x1c0] sm:%s203]
                %223 = vst [vmem:[%s211 + $0x28] sm:%s203] %v222
              $region45: #{irednet_indrnn_forward.33} parent=39 // loop_footer
                %s209 = sadd.s32 1, %s205
              $region46: #{irednet_indrnn_forward.33} parent=39 // loop_footer_branch
                %204 = sbr.rel target = $region42
              $region47: #{irednet_indrnn_forward.33} parent=39 // loop_exit
                _
            $region40: #{irednet_indrnn_forward.33} parent=31 // pred_fallthru
              _
          $region32: #{irednet_indrnn_forward.33} parent=27 // pred_fallthru
            _
          %248 = vnop
        $region28: #{irednet_indrnn_forward.33} parent=23 // pred_fallthru
          _
        // Predicated region
        $region63: #{irednet_indrnn_forward.33} parent=23 // pred_check
          %p249 = pneg %p59
        $region64: #{irednet_indrnn_forward.33} parent=23 // pred_check_branch
          %251 = sbr.rel (%p249) target = $region66
        $region65: #{irednet_indrnn_forward.33} parent=23 // pred_region
          %s252 = sand.u32 %s49, 1
          %s253 = sand.u32 %s49, 1
          %s254 = smul.addr %s253, 48
          %s255 = scalar_lea.vmem [#allocation3], %s254
          %s256 = sadd.s32 %s11, 1
          %s257 = smul.addr %s256, 3
          %s258 = smul.addr %s257, 8
          %s259 = scalar_lea.vmem %s1, %s258
          // Predicated region
          $region67: #{irednet_indrnn_forward.33} parent=65 // pred_check
            _
          $region68: #{irednet_indrnn_forward.33} parent=65 // pred_check_branch
            %261 = sbr.rel (0) target = $region70
          $region69: #{irednet_indrnn_forward.33} parent=65 // pred_region
            // Predicated region
            $region71: #{irednet_indrnn_forward.33} parent=69 // pred_check
              _
            $region72: #{irednet_indrnn_forward.33} parent=69 // pred_check_branch
              %263 = sbr.rel (0) target = $region74
            $region73: #{irednet_indrnn_forward.33} parent=69 // pred_region
              // Predicated region
              $region86: #{irednet_indrnn_forward.33} parent=73 // pred_check
                _
              $region87: #{irednet_indrnn_forward.33} parent=73 // pred_check_branch
                %289 = sbr.rel (0) target = $region89
              $region88: #{irednet_indrnn_forward.33} parent=73 // pred_region
                loop: start=0, step=1, limit=1
                $region90: #{irednet_indrnn_forward.33} parent=88 // loop_pre_header
                  _
                $region91: #{irednet_indrnn_forward.33} parent=88 // loop_header
                  %s291 = sphi 0, %s295
                  %p292 = scmp.ge.s32.totalorder %s291, 1
                  %s296 = sphi %s259, %s259
                  %s297 = sphi %s255, %s255
                $region92: #{irednet_indrnn_forward.33} parent=88 // loop_header_branch
                  %294 = sbr.rel (%p292) target = $region96
                $region93: #{irednet_indrnn_forward.33} parent=88 // loop_body
                  %v298 = vld [vmem:[%s296] sm:$0xff]
                  %299 = vst [vmem:[%s297] sm:$0xff] %v298
                  %v300 = vld [vmem:[%s296 + $0x8] sm:$0xff]
                  %301 = vst [vmem:[%s297 + $0x8] sm:$0xff] %v300
                  %v302 = vld [vmem:[%s296 + $0x10] sm:$0xff]
                  %303 = vst [vmem:[%s297 + $0x10] sm:$0xff] %v302
                  %v304 = vld [vmem:[%s296 + $0x1b0] sm:$0xff]
                  %305 = vst [vmem:[%s297 + $0x18] sm:$0xff] %v304
                  %v306 = vld [vmem:[%s296 + $0x1b8] sm:$0xff]
                  %307 = vst [vmem:[%s297 + $0x20] sm:$0xff] %v306
                  %v308 = vld [vmem:[%s296 + $0x1c0] sm:$0xff]
                  %309 = vst [vmem:[%s297 + $0x28] sm:$0xff] %v308
                $region94: #{irednet_indrnn_forward.33} parent=88 // loop_footer
                  %s295 = sadd.s32 1, %s291
                $region95: #{irednet_indrnn_forward.33} parent=88 // loop_footer_branch
                  %290 = sbr.rel target = $region91
                $region96: #{irednet_indrnn_forward.33} parent=88 // loop_exit
                  _
              $region89: #{irednet_indrnn_forward.33} parent=73 // pred_fallthru
                _
              // Predicated region
              $region97: #{irednet_indrnn_forward.33} parent=73 // pred_check
                _
              $region98: #{irednet_indrnn_forward.33} parent=73 // pred_check_branch
                %311 = sbr.rel target = $region100
              $region99: #{irednet_indrnn_forward.33} parent=73 // pred_region
                _
              $region100: #{irednet_indrnn_forward.33} parent=73 // pred_fallthru
                _
            $region74: #{irednet_indrnn_forward.33} parent=69 // pred_fallthru
              _
            // Predicated region
            $region75: #{irednet_indrnn_forward.33} parent=69 // pred_check
              _
            $region76: #{irednet_indrnn_forward.33} parent=69 // pred_check_branch
              %265 = sbr.rel target = $region78
            $region77: #{irednet_indrnn_forward.33} parent=69 // pred_region
              %s267 = ssub.s32 256, 1
              loop: start=0, step=1, limit=1
              $region79: #{irednet_indrnn_forward.33} parent=77 // loop_pre_header
                _
              $region80: #{irednet_indrnn_forward.33} parent=77 // loop_header
                %s269 = sphi 0, %s273
                %p270 = scmp.ge.s32.totalorder %s269, 1
                %s274 = sphi %s259, %s259
                %s275 = sphi %s255, %s255
              $region81: #{irednet_indrnn_forward.33} parent=77 // loop_header_branch
                %272 = sbr.rel (%p270) target = $region85
              $region82: #{irednet_indrnn_forward.33} parent=77 // loop_body
                %v276 = vld [vmem:[%s274] sm:%s267]
                %277 = vst [vmem:[%s275] sm:%s267] %v276
                %v278 = vld [vmem:[%s274 + $0x8] sm:%s267]
                %279 = vst [vmem:[%s275 + $0x8] sm:%s267] %v278
                %v280 = vld [vmem:[%s274 + $0x10] sm:%s267]
                %281 = vst [vmem:[%s275 + $0x10] sm:%s267] %v280
                %v282 = vld [vmem:[%s274 + $0x1b0] sm:%s267]
                %283 = vst [vmem:[%s275 + $0x18] sm:%s267] %v282
                %v284 = vld [vmem:[%s274 + $0x1b8] sm:%s267]
                %285 = vst [vmem:[%s275 + $0x20] sm:%s267] %v284
                %v286 = vld [vmem:[%s274 + $0x1c0] sm:%s267]
                %287 = vst [vmem:[%s275 + $0x28] sm:%s267] %v286
              $region83: #{irednet_indrnn_forward.33} parent=77 // loop_footer
                %s273 = sadd.s32 1, %s269
              $region84: #{irednet_indrnn_forward.33} parent=77 // loop_footer_branch
                %268 = sbr.rel target = $region80
              $region85: #{irednet_indrnn_forward.33} parent=77 // loop_exit
                _
            $region78: #{irednet_indrnn_forward.33} parent=69 // pred_fallthru
              _
          $region70: #{irednet_indrnn_forward.33} parent=65 // pred_fallthru
            _
          %312 = vnop
        $region66: #{irednet_indrnn_forward.33} parent=23 // pred_fallthru
          _
        // Predicated region
        $region101: #{irednet_indrnn_forward.33} parent=23 // pred_check
          %p313 = pneg %p87
        $region102: #{irednet_indrnn_forward.33} parent=23 // pred_check_branch
          %315 = sbr.rel (%p313) target = $region104
        $region103: #{irednet_indrnn_forward.33} parent=23 // pred_region
          %s316 = sand.u32 %s77, 1
          %s317 = sand.u32 %s77, 1
          %s318 = smul.addr %s317, 48
          %s319 = scalar_lea.vmem [#allocation4], %s318
          %s320 = sadd.s32 %s11, 2
          %s321 = smul.addr %s320, 3
          %s322 = smul.addr %s321, 8
          %s323 = scalar_lea.vmem %s2, %s322
          // Predicated region
          $region105: #{irednet_indrnn_forward.33} parent=103 // pred_check
            _
          $region106: #{irednet_indrnn_forward.33} parent=103 // pred_check_branch
            %325 = sbr.rel (0) target = $region108
          $region107: #{irednet_indrnn_forward.33} parent=103 // pred_region
            // Predicated region
            $region109: #{irednet_indrnn_forward.33} parent=107 // pred_check
              _
            $region110: #{irednet_indrnn_forward.33} parent=107 // pred_check_branch
              %327 = sbr.rel (0) target = $region112
            $region111: #{irednet_indrnn_forward.33} parent=107 // pred_region
              // Predicated region
              $region124: #{irednet_indrnn_forward.33} parent=111 // pred_check
                _
              $region125: #{irednet_indrnn_forward.33} parent=111 // pred_check_branch
                %353 = sbr.rel (0) target = $region127
              $region126: #{irednet_indrnn_forward.33} parent=111 // pred_region
                loop: start=0, step=1, limit=1
                $region128: #{irednet_indrnn_forward.33} parent=126 // loop_pre_header
                  _
                $region129: #{irednet_indrnn_forward.33} parent=126 // loop_header
                  %s355 = sphi 0, %s359
                  %p356 = scmp.ge.s32.totalorder %s355, 1
                  %s360 = sphi %s323, %s323
                  %s361 = sphi %s319, %s319
                $region130: #{irednet_indrnn_forward.33} parent=126 // loop_header_branch
                  %358 = sbr.rel (%p356) target = $region134
                $region131: #{irednet_indrnn_forward.33} parent=126 // loop_body
                  %v362 = vld [vmem:[%s360] sm:$0xff]
                  %363 = vst [vmem:[%s361] sm:$0xff] %v362
                  %v364 = vld [vmem:[%s360 + $0x8] sm:$0xff]
                  %365 = vst [vmem:[%s361 + $0x8] sm:$0xff] %v364
                  %v366 = vld [vmem:[%s360 + $0x10] sm:$0xff]
                  %367 = vst [vmem:[%s361 + $0x10] sm:$0xff] %v366
                  %v368 = vld [vmem:[%s360 + $0x1b0] sm:$0xff]
                  %369 = vst [vmem:[%s361 + $0x18] sm:$0xff] %v368
                  %v370 = vld [vmem:[%s360 + $0x1b8] sm:$0xff]
                  %371 = vst [vmem:[%s361 + $0x20] sm:$0xff] %v370
                  %v372 = vld [vmem:[%s360 + $0x1c0] sm:$0xff]
                  %373 = vst [vmem:[%s361 + $0x28] sm:$0xff] %v372
                $region132: #{irednet_indrnn_forward.33} parent=126 // loop_footer
                  %s359 = sadd.s32 1, %s355
                $region133: #{irednet_indrnn_forward.33} parent=126 // loop_footer_branch
                  %354 = sbr.rel target = $region129
                $region134: #{irednet_indrnn_forward.33} parent=126 // loop_exit
                  _
              $region127: #{irednet_indrnn_forward.33} parent=111 // pred_fallthru
                _
              // Predicated region
              $region135: #{irednet_indrnn_forward.33} parent=111 // pred_check
                _
              $region136: #{irednet_indrnn_forward.33} parent=111 // pred_check_branch
                %375 = sbr.rel target = $region138
              $region137: #{irednet_indrnn_forward.33} parent=111 // pred_region
                _
              $region138: #{irednet_indrnn_forward.33} parent=111 // pred_fallthru
                _
            $region112: #{irednet_indrnn_forward.33} parent=107 // pred_fallthru
              _
            // Predicated region
            $region113: #{irednet_indrnn_forward.33} parent=107 // pred_check
              _
            $region114: #{irednet_indrnn_forward.33} parent=107 // pred_check_branch
              %329 = sbr.rel target = $region116
            $region115: #{irednet_indrnn_forward.33} parent=107 // pred_region
              %s331 = ssub.s32 256, 1
              loop: start=0, step=1, limit=1
              $region117: #{irednet_indrnn_forward.33} parent=115 // loop_pre_header
                _
              $region118: #{irednet_indrnn_forward.33} parent=115 // loop_header
                %s333 = sphi 0, %s337
                %p334 = scmp.ge.s32.totalorder %s333, 1
                %s338 = sphi %s323, %s323
                %s339 = sphi %s319, %s319
              $region119: #{irednet_indrnn_forward.33} parent=115 // loop_header_branch
                %336 = sbr.rel (%p334) target = $region123
              $region120: #{irednet_indrnn_forward.33} parent=115 // loop_body
                %v340 = vld [vmem:[%s338] sm:%s331]
                %341 = vst [vmem:[%s339] sm:%s331] %v340
                %v342 = vld [vmem:[%s338 + $0x8] sm:%s331]
                %343 = vst [vmem:[%s339 + $0x8] sm:%s331] %v342
                %v344 = vld [vmem:[%s338 + $0x10] sm:%s331]
                %345 = vst [vmem:[%s339 + $0x10] sm:%s331] %v344
                %v346 = vld [vmem:[%s338 + $0x1b0] sm:%s331]
                %347 = vst [vmem:[%s339 + $0x18] sm:%s331] %v346
                %v348 = vld [vmem:[%s338 + $0x1b8] sm:%s331]
                %349 = vst [vmem:[%s339 + $0x20] sm:%s331] %v348
                %v350 = vld [vmem:[%s338 + $0x1c0] sm:%s331]
                %351 = vst [vmem:[%s339 + $0x28] sm:%s331] %v350
              $region121: #{irednet_indrnn_forward.33} parent=115 // loop_footer
                %s337 = sadd.s32 1, %s333
              $region122: #{irednet_indrnn_forward.33} parent=115 // loop_footer_branch
                %332 = sbr.rel target = $region118
              $region123: #{irednet_indrnn_forward.33} parent=115 // loop_exit
                _
            $region116: #{irednet_indrnn_forward.33} parent=107 // pred_fallthru
              _
          $region108: #{irednet_indrnn_forward.33} parent=103 // pred_fallthru
            _
          %376 = vnop
        $region104: #{irednet_indrnn_forward.33} parent=23 // pred_fallthru
          _
      $region24: #{irednet_indrnn_forward.33} parent=5 // pred_fallthru
        _
      %p377 = scmp.le.s32.totalorder 1, %s11
      %p378 = scmp.lt.s32.totalorder %s11, 17
      %p379 = pnand %p377, %p378
      %p380 = pneg %p379
      // Predicated region
      $region139: #{irednet_indrnn_forward.33} parent=5 // pred_check
        _
      $region140: #{irednet_indrnn_forward.33} parent=5 // pred_check_branch
        %382 = sbr.rel (%p379) target = $region142
      $region141: #{irednet_indrnn_forward.33} parent=5 // pred_region
        %s383 = ssub.s32 %s11, 1
        %s384 = sand.u32 %s24, 1
        %s385 = sand.u32 %s24, 1
        %s386 = smul.addr %s385, 48
        %s387 = scalar_lea.vmem [#allocation2], %s386
        // Predicated region
        $region143: #{irednet_indrnn_forward.33} parent=141 // pred_check
          %p388 = pneg %p37
        $region144: #{irednet_indrnn_forward.33} parent=141 // pred_check_branch
          %390 = sbr.rel (%p388) target = $region146
        $region145: #{irednet_indrnn_forward.33} parent=141 // pred_region
          _
        $region146: #{irednet_indrnn_forward.33} parent=141 // pred_fallthru
          _
        %s391 = sand.u32 %s52, 1
        %s392 = sand.u32 %s52, 1
        %s393 = smul.addr %s392, 48
        %s394 = scalar_lea.vmem [#allocation3], %s393
        // Predicated region
        $region147: #{irednet_indrnn_forward.33} parent=141 // pred_check
          %p395 = pneg %p65
        $region148: #{irednet_indrnn_forward.33} parent=141 // pred_check_branch
          %397 = sbr.rel (%p395) target = $region150
        $region149: #{irednet_indrnn_forward.33} parent=141 // pred_region
          _
        $region150: #{irednet_indrnn_forward.33} parent=141 // pred_fallthru
          _
        %s398 = sand.u32 %s80, 1
        %s399 = sand.u32 %s80, 1
        %s400 = smul.addr %s399, 48
        %s401 = scalar_lea.vmem [#allocation4], %s400
        // Predicated region
        $region151: #{irednet_indrnn_forward.33} parent=141 // pred_check
          %p402 = pneg %p93
        $region152: #{irednet_indrnn_forward.33} parent=141 // pred_check_branch
          %404 = sbr.rel (%p402) target = $region154
        $region153: #{irednet_indrnn_forward.33} parent=141 // pred_region
          _
        $region154: #{irednet_indrnn_forward.33} parent=141 // pred_fallthru
          _
        %s405 = sand.u32 %s24, 1
        %s406 = sand.u32 %s24, 1
        %s407 = smul.addr %s406, 48
        %s408 = scalar_lea.vmem [#allocation2], %s407
        %p409 = pneg %p37
        %p410 = pneg %p34
        %s411 = sand.u32 %s52, 1
        %s412 = sand.u32 %s52, 1
        %s413 = smul.addr %s412, 48
        %s414 = scalar_lea.vmem [#allocation3], %s413
        %p415 = pneg %p65
        %p416 = pneg %p62
        %s417 = sand.u32 %s80, 1
        %s418 = sand.u32 %s80, 1
        %s419 = smul.addr %s418, 48
        %s420 = scalar_lea.vmem [#allocation4], %s419
        %p421 = pneg %p93
        %p422 = pneg %p90
        %p423 = pneg %p114
        %p424 = pneg %p111
        %p425 = pneg %p135
        %p426 = pneg %p132
        %p427 = pneg %p161
        %p428 = pneg %p158
        %s429 = sand.u32 %s148, 1
        %s430 = sand.u32 %s148, 1
        %s431 = smul.addr %s430, 32
        %s432 = scalar_lea.vmem [#allocation5], %s431
        %s433 = sadd.s32 %s16, 1
        %s434 = sadd.s32 %s16, 2
        %v435 = vld [vmem:[%s387] sm:$0xff]
        %v436 = vld [vmem:[%s387 + $0x8] sm:$0xff]
        %v437 = vld [vmem:[%s387 + $0x10] sm:$0x3]
        %v438 = vld [vmem:[%s387 + $0x18] sm:$0xff]
        %v439 = vld [vmem:[%s387 + $0x20] sm:$0xff]
        %v440 = vld [vmem:[%s387 + $0x28] sm:$0x3]
        %v441 = vld [vmem:[%s394] sm:$0xff]
        %v442 = vld [vmem:[%s394 + $0x8] sm:$0xff]
        %v443 = vld [vmem:[%s394 + $0x10] sm:$0x3]
        %v444 = vld [vmem:[%s394 + $0x18] sm:$0xff]
        %v445 = vld [vmem:[%s394 + $0x20] sm:$0xff]
        %v446 = vld [vmem:[%s394 + $0x28] sm:$0x3]
        %v447 = vld [vmem:[%s401] sm:$0xff]
        %v448 = vld [vmem:[%s401 + $0x8] sm:$0xff]
        %v449 = vld [vmem:[%s401 + $0x10] sm:$0x3]
        %v450 = vld [vmem:[%s401 + $0x18] sm:$0xff]
        %v451 = vld [vmem:[%s401 + $0x20] sm:$0xff]
        %v452 = vld [vmem:[%s401 + $0x28] sm:$0x3]
        %v453 = vld [vmem:[%s3] sm:$0xff]
        %v454 = vld [vmem:[%s3 + $0x8] sm:$0xff]
        %v455 = vld [vmem:[%s3 + $0x10] sm:$0xff]
        %v456 = vld [vmem:[%s3 + $0x18] sm:$0xff]
        %v457 = vld [vmem:[%s3 + $0x20] sm:$0xff]
        %v458 = vld [vmem:[%s3 + $0x28] sm:$0xff]
        %v459 = vld [vmem:[%s3 + $0x30] sm:$0xff]
        %v460 = vld [vmem:[%s3 + $0x38] sm:$0xff]
        %v461 = vld [vmem:[%s3 + $0x40] sm:$0xff]
        %v462 = vld [vmem:[%s3 + $0x48] sm:$0xff]
        %v463 = vld [vmem:[%s3 + $0x50] sm:$0xff]
        %v464 = vld [vmem:[%s3 + $0x58] sm:$0xff]
        %v465 = vld [vmem:[%s3 + $0x60] sm:$0xff]
        %v466 = vld [vmem:[%s3 + $0x68] sm:$0xff]
        %v467 = vld [vmem:[%s3 + $0x70] sm:$0xff]
        %v468 = vld [vmem:[%s3 + $0x78] sm:$0xff]
        %v469 = vpack.c.bf16 %v436, %v435
        %v470 = vpack.c.bf16 %v439, %v438
        %v471 = vpack.c.bf16 %v454, %v453
        %v472 = vpack.c.bf16 %v456, %v455
        %v473 = vpack.c.bf16 %v458, %v457
        %v474 = vpack.c.bf16 %v460, %v459
        %v475 = vpack.c.bf16 %v462, %v461
        %v476 = vpack.c.bf16 %v464, %v463
        %v477 = vpack.c.bf16 %v466, %v465
        %v478 = vpack.c.bf16 %v468, %v467
        %vm485 = vcmask 1046528
        %v486 = vrot.slane %v435, 1
        %v487 = vrot.slane %v436, 1
        %v488 = vsel %vm485, %v486, %v487
        %v489 = vrot.slane %v437, 1
        %v490 = vsel %vm485, %v487, %v489
        %v491 = vrot.slane %v438, 1
        %v492 = vrot.slane %v439, 1
        %v493 = vsel %vm485, %v491, %v492
        %v494 = vrot.slane %v440, 1
        %v495 = vsel %vm485, %v492, %v494
        %s500 = scalar_lea.vmem %s3, 128
        %v501 = vld [vmem:[%s500] sm:$0xff]
        %v502 = vld [vmem:[%s500 + $0x8] sm:$0xff]
        %v503 = vld [vmem:[%s500 + $0x10] sm:$0xff]
        %v504 = vld [vmem:[%s500 + $0x18] sm:$0xff]
        %v505 = vld [vmem:[%s500 + $0x20] sm:$0xff]
        %v506 = vld [vmem:[%s500 + $0x28] sm:$0xff]
        %v507 = vld [vmem:[%s500 + $0x30] sm:$0xff]
        %v508 = vld [vmem:[%s500 + $0x38] sm:$0xff]
        %v509 = vld [vmem:[%s500 + $0x40] sm:$0xff]
        %v510 = vld [vmem:[%s500 + $0x48] sm:$0xff]
        %v511 = vld [vmem:[%s500 + $0x50] sm:$0xff]
        %v512 = vld [vmem:[%s500 + $0x58] sm:$0xff]
        %v513 = vld [vmem:[%s500 + $0x60] sm:$0xff]
        %v514 = vld [vmem:[%s500 + $0x68] sm:$0xff]
        %v515 = vld [vmem:[%s500 + $0x70] sm:$0xff]
        %v516 = vld [vmem:[%s500 + $0x78] sm:$0xff]
        %v517 = vpack.c.bf16 %v490, %v488
        %v518 = vpack.c.bf16 %v495, %v493
        %v519 = vpack.c.bf16 %v502, %v501
        %v520 = vpack.c.bf16 %v504, %v503
        %v521 = vpack.c.bf16 %v506, %v505
        %v522 = vpack.c.bf16 %v508, %v507
        %v523 = vpack.c.bf16 %v510, %v509
        %v524 = vpack.c.bf16 %v512, %v511
        %v525 = vpack.c.bf16 %v514, %v513
        %v526 = vpack.c.bf16 %v516, %v515
        %527 = vmatpush.bf16.msra.mxu0 %v526
        %528 = vmatpush.bf16.msra.mxu0 %v525
        %529 = vmatpush.bf16.msra.mxu0 %v524
        %530 = vmatpush.bf16.msra.mxu0 %v523
        %531 = vmatpush.bf16.msra.mxu0 %v522
        %532 = vmatpush.bf16.msra.mxu0 %v521
        %533 = vmatpush.bf16.msra.mxu0 %v520
        %534 = vmatpush.bf16.msra.mxu0 %v519
        %535 = vmatmul.bf16.gmra.mxu0 %v517
        %v536 = vpop.f32.mrf.mxu0
        %v537 = vadd.f32 0.0, %v536
        %v538 = vpop.f32.mrf.mxu0
        %v539 = vadd.f32 0.0, %v538
        %540 = vmatmul.bf16.gmra.mxu0 %v518
        %v541 = vpop.f32.mrf.mxu0
        %v542 = vadd.f32 0.0, %v541
        %v543 = vpop.f32.mrf.mxu0
        %v544 = vadd.f32 0.0, %v543
        %545 = vdwg.mxu0
        %546 = vmatpush.bf16.msra.mxu0 %v478
        %547 = vmatpush.bf16.msra.mxu0 %v477
        %548 = vmatpush.bf16.msra.mxu0 %v476
        %549 = vmatpush.bf16.msra.mxu0 %v475
        %550 = vmatpush.bf16.msra.mxu0 %v474
        %551 = vmatpush.bf16.msra.mxu0 %v473
        %552 = vmatpush.bf16.msra.mxu0 %v472
        %553 = vmatpush.bf16.msra.mxu0 %v471
        %554 = vmatmul.bf16.gmra.mxu0 %v469
        %v555 = vpop.f32.mrf.mxu0
        %v556 = vadd.f32 %v537, %v555
        %v557 = vpop.f32.mrf.mxu0
        %v558 = vadd.f32 %v539, %v557
        %559 = vmatmul.bf16.gmra.mxu0 %v470
        %v560 = vpop.f32.mrf.mxu0
        %v561 = vadd.f32 %v542, %v560
        %v562 = vpop.f32.mrf.mxu0
        %v563 = vadd.f32 %v544, %v562
        %564 = vdwg.mxu0
        %vm565 = vcmask 1045504
        %v566 = vrot.slane %v435, 2
        %v567 = vrot.slane %v436, 2
        %v568 = vsel %vm565, %v566, %v567
        %v569 = vrot.slane %v437, 2
        %v570 = vsel %vm565, %v567, %v569
        %v571 = vrot.slane %v438, 2
        %v572 = vrot.slane %v439, 2
        %v573 = vsel %vm565, %v571, %v572
        %v574 = vrot.slane %v440, 2
        %v575 = vsel %vm565, %v572, %v574
        %s580 = scalar_lea.vmem %s3, 256
        %v581 = vld [vmem:[%s580] sm:$0xff]
        %v582 = vld [vmem:[%s580 + $0x8] sm:$0xff]
        %v583 = vld [vmem:[%s580 + $0x10] sm:$0xff]
        %v584 = vld [vmem:[%s580 + $0x18] sm:$0xff]
        %v585 = vld [vmem:[%s580 + $0x20] sm:$0xff]
        %v586 = vld [vmem:[%s580 + $0x28] sm:$0xff]
        %v587 = vld [vmem:[%s580 + $0x30] sm:$0xff]
        %v588 = vld [vmem:[%s580 + $0x38] sm:$0xff]
        %v589 = vld [vmem:[%s580 + $0x40] sm:$0xff]
        %v590 = vld [vmem:[%s580 + $0x48] sm:$0xff]
        %v591 = vld [vmem:[%s580 + $0x50] sm:$0xff]
        %v592 = vld [vmem:[%s580 + $0x58] sm:$0xff]
        %v593 = vld [vmem:[%s580 + $0x60] sm:$0xff]
        %v594 = vld [vmem:[%s580 + $0x68] sm:$0xff]
        %v595 = vld [vmem:[%s580 + $0x70] sm:$0xff]
        %v596 = vld [vmem:[%s580 + $0x78] sm:$0xff]
        %v597 = vpack.c.bf16 %v570, %v568
        %v598 = vpack.c.bf16 %v575, %v573
        %v599 = vpack.c.bf16 %v582, %v581
        %v600 = vpack.c.bf16 %v584, %v583
        %v601 = vpack.c.bf16 %v586, %v585
        %v602 = vpack.c.bf16 %v588, %v587
        %v603 = vpack.c.bf16 %v590, %v589
        %v604 = vpack.c.bf16 %v592, %v591
        %v605 = vpack.c.bf16 %v594, %v593
        %v606 = vpack.c.bf16 %v596, %v595
        %607 = vmatpush.bf16.msra.mxu0 %v606
        %608 = vmatpush.bf16.msra.mxu0 %v605
        %609 = vmatpush.bf16.msra.mxu0 %v604
        %610 = vmatpush.bf16.msra.mxu0 %v603
        %611 = vmatpush.bf16.msra.mxu0 %v602
        %612 = vmatpush.bf16.msra.mxu0 %v601
        %613 = vmatpush.bf16.msra.mxu0 %v600
        %614 = vmatpush.bf16.msra.mxu0 %v599
        %615 = vmatmul.bf16.gmra.mxu0 %v597
        %v616 = vpop.f32.mrf.mxu0
        %v617 = vadd.f32 0.0, %v616
        %v618 = vpop.f32.mrf.mxu0
        %v619 = vadd.f32 0.0, %v618
        %620 = vmatmul.bf16.gmra.mxu0 %v598
        %v621 = vpop.f32.mrf.mxu0
        %v622 = vadd.f32 0.0, %v621
        %v623 = vpop.f32.mrf.mxu0
        %v624 = vadd.f32 0.0, %v623
        %625 = vdwg.mxu0
        %v626 = vadd.f32 %v556, %v617
        %v627 = vadd.f32 %v558, %v619
        %v628 = vadd.f32 %v561, %v622
        %v629 = vadd.f32 %v563, %v624
        %s630 = scalar_lea.vmem %s3, 384
        %v631 = vld [vmem:[%s630] sm:$0xff]
        %v632 = vld [vmem:[%s630 + $0x8] sm:$0xff]
        %v633 = vld [vmem:[%s630 + $0x10] sm:$0xff]
        %v634 = vld [vmem:[%s630 + $0x18] sm:$0xff]
        %v635 = vld [vmem:[%s630 + $0x20] sm:$0xff]
        %v636 = vld [vmem:[%s630 + $0x28] sm:$0xff]
        %v637 = vld [vmem:[%s630 + $0x30] sm:$0xff]
        %v638 = vld [vmem:[%s630 + $0x38] sm:$0xff]
        %v639 = vld [vmem:[%s630 + $0x40] sm:$0xff]
        %v640 = vld [vmem:[%s630 + $0x48] sm:$0xff]
        %v641 = vld [vmem:[%s630 + $0x50] sm:$0xff]
        %v642 = vld [vmem:[%s630 + $0x58] sm:$0xff]
        %v643 = vld [vmem:[%s630 + $0x60] sm:$0xff]
        %v644 = vld [vmem:[%s630 + $0x68] sm:$0xff]
        %v645 = vld [vmem:[%s630 + $0x70] sm:$0xff]
        %v646 = vld [vmem:[%s630 + $0x78] sm:$0xff]
        %v647 = vpack.c.bf16 %v442, %v441
        %v648 = vpack.c.bf16 %v445, %v444
        %v649 = vpack.c.bf16 %v632, %v631
        %v650 = vpack.c.bf16 %v634, %v633
        %v651 = vpack.c.bf16 %v636, %v635
        %v652 = vpack.c.bf16 %v638, %v637
        %v653 = vpack.c.bf16 %v640, %v639
        %v654 = vpack.c.bf16 %v642, %v641
        %v655 = vpack.c.bf16 %v644, %v643
        %v656 = vpack.c.bf16 %v646, %v645
        %657 = vmatpush.bf16.msra.mxu0 %v656
        %658 = vmatpush.bf16.msra.mxu0 %v655
        %659 = vmatpush.bf16.msra.mxu0 %v654
        %660 = vmatpush.bf16.msra.mxu0 %v653
        %661 = vmatpush.bf16.msra.mxu0 %v652
        %662 = vmatpush.bf16.msra.mxu0 %v651
        %663 = vmatpush.bf16.msra.mxu0 %v650
        %664 = vmatpush.bf16.msra.mxu0 %v649
        %665 = vmatmul.bf16.gmra.mxu0 %v647
        %v666 = vpop.f32.mrf.mxu0
        %v667 = vadd.f32 0.0, %v666
        %v668 = vpop.f32.mrf.mxu0
        %v669 = vadd.f32 0.0, %v668
        %670 = vmatmul.bf16.gmra.mxu0 %v648
        %v671 = vpop.f32.mrf.mxu0
        %v672 = vadd.f32 0.0, %v671
        %v673 = vpop.f32.mrf.mxu0
        %v674 = vadd.f32 0.0, %v673
        %675 = vdwg.mxu0
        %v676 = vadd.f32 %v626, %v667
        %v677 = vadd.f32 %v627, %v669
        %v678 = vadd.f32 %v628, %v672
        %v679 = vadd.f32 %v629, %v674
        %v686 = vrot.slane %v441, 1
        %v687 = vrot.slane %v442, 1
        %v688 = vsel %vm485, %v686, %v687
        %v689 = vrot.slane %v443, 1
        %v690 = vsel %vm485, %v687, %v689
        %v691 = vrot.slane %v444, 1
        %v692 = vrot.slane %v445, 1
        %v693 = vsel %vm485, %v691, %v692
        %v694 = vrot.slane %v446, 1
        %v695 = vsel %vm485, %v692, %v694
        %s700 = scalar_lea.vmem %s3, 512
        %v701 = vld [vmem:[%s700] sm:$0xff]
        %v702 = vld [vmem:[%s700 + $0x8] sm:$0xff]
        %v703 = vld [vmem:[%s700 + $0x10] sm:$0xff]
        %v704 = vld [vmem:[%s700 + $0x18] sm:$0xff]
        %v705 = vld [vmem:[%s700 + $0x20] sm:$0xff]
        %v706 = vld [vmem:[%s700 + $0x28] sm:$0xff]
        %v707 = vld [vmem:[%s700 + $0x30] sm:$0xff]
        %v708 = vld [vmem:[%s700 + $0x38] sm:$0xff]
        %v709 = vld [vmem:[%s700 + $0x40] sm:$0xff]
        %v710 = vld [vmem:[%s700 + $0x48] sm:$0xff]
        %v711 = vld [vmem:[%s700 + $0x50] sm:$0xff]
        %v712 = vld [vmem:[%s700 + $0x58] sm:$0xff]
        %v713 = vld [vmem:[%s700 + $0x60] sm:$0xff]
        %v714 = vld [vmem:[%s700 + $0x68] sm:$0xff]
        %v715 = vld [vmem:[%s700 + $0x70] sm:$0xff]
        %v716 = vld [vmem:[%s700 + $0x78] sm:$0xff]
        %v717 = vpack.c.bf16 %v690, %v688
        %v718 = vpack.c.bf16 %v695, %v693
        %v719 = vpack.c.bf16 %v702, %v701
        %v720 = vpack.c.bf16 %v704, %v703
        %v721 = vpack.c.bf16 %v706, %v705
        %v722 = vpack.c.bf16 %v708, %v707
        %v723 = vpack.c.bf16 %v710, %v709
        %v724 = vpack.c.bf16 %v712, %v711
        %v725 = vpack.c.bf16 %v714, %v713
        %v726 = vpack.c.bf16 %v716, %v715
        %727 = vmatpush.bf16.msra.mxu0 %v726
        %728 = vmatpush.bf16.msra.mxu0 %v725
        %729 = vmatpush.bf16.msra.mxu0 %v724
        %730 = vmatpush.bf16.msra.mxu0 %v723
        %731 = vmatpush.bf16.msra.mxu0 %v722
        %732 = vmatpush.bf16.msra.mxu0 %v721
        %733 = vmatpush.bf16.msra.mxu0 %v720
        %734 = vmatpush.bf16.msra.mxu0 %v719
        %735 = vmatmul.bf16.gmra.mxu0 %v717
        %v736 = vpop.f32.mrf.mxu0
        %v737 = vadd.f32 0.0, %v736
        %v738 = vpop.f32.mrf.mxu0
        %v739 = vadd.f32 0.0, %v738
        %740 = vmatmul.bf16.gmra.mxu0 %v718
        %v741 = vpop.f32.mrf.mxu0
        %v742 = vadd.f32 0.0, %v741
        %v743 = vpop.f32.mrf.mxu0
        %v744 = vadd.f32 0.0, %v743
        %745 = vdwg.mxu0
        %v746 = vadd.f32 %v676, %v737
        %v747 = vadd.f32 %v677, %v739
        %v748 = vadd.f32 %v678, %v742
        %v749 = vadd.f32 %v679, %v744
        %v750 = vrot.slane %v441, 2
        %v751 = vrot.slane %v442, 2
        %v752 = vsel %vm565, %v750, %v751
        %v753 = vrot.slane %v443, 2
        %v754 = vsel %vm565, %v751, %v753
        %v755 = vrot.slane %v444, 2
        %v756 = vrot.slane %v445, 2
        %v757 = vsel %vm565, %v755, %v756
        %v758 = vrot.slane %v446, 2
        %v759 = vsel %vm565, %v756, %v758
        %s764 = scalar_lea.vmem %s3, 640
        %v765 = vld [vmem:[%s764] sm:$0xff]
        %v766 = vld [vmem:[%s764 + $0x8] sm:$0xff]
        %v767 = vld [vmem:[%s764 + $0x10] sm:$0xff]
        %v768 = vld [vmem:[%s764 + $0x18] sm:$0xff]
        %v769 = vld [vmem:[%s764 + $0x20] sm:$0xff]
        %v770 = vld [vmem:[%s764 + $0x28] sm:$0xff]
        %v771 = vld [vmem:[%s764 + $0x30] sm:$0xff]
        %v772 = vld [vmem:[%s764 + $0x38] sm:$0xff]
        %v773 = vld [vmem:[%s764 + $0x40] sm:$0xff]
        %v774 = vld [vmem:[%s764 + $0x48] sm:$0xff]
        %v775 = vld [vmem:[%s764 + $0x50] sm:$0xff]
        %v776 = vld [vmem:[%s764 + $0x58] sm:$0xff]
        %v777 = vld [vmem:[%s764 + $0x60] sm:$0xff]
        %v778 = vld [vmem:[%s764 + $0x68] sm:$0xff]
        %v779 = vld [vmem:[%s764 + $0x70] sm:$0xff]
        %v780 = vld [vmem:[%s764 + $0x78] sm:$0xff]
        %v781 = vpack.c.bf16 %v754, %v752
        %v782 = vpack.c.bf16 %v759, %v757
        %v783 = vpack.c.bf16 %v766, %v765
        %v784 = vpack.c.bf16 %v768, %v767
        %v785 = vpack.c.bf16 %v770, %v769
        %v786 = vpack.c.bf16 %v772, %v771
        %v787 = vpack.c.bf16 %v774, %v773
        %v788 = vpack.c.bf16 %v776, %v775
        %v789 = vpack.c.bf16 %v778, %v777
        %v790 = vpack.c.bf16 %v780, %v779
        %791 = vmatpush.bf16.msra.mxu0 %v790
        %792 = vmatpush.bf16.msra.mxu0 %v789
        %793 = vmatpush.bf16.msra.mxu0 %v788
        %794 = vmatpush.bf16.msra.mxu0 %v787
        %795 = vmatpush.bf16.msra.mxu0 %v786
        %796 = vmatpush.bf16.msra.mxu0 %v785
        %797 = vmatpush.bf16.msra.mxu0 %v784
        %798 = vmatpush.bf16.msra.mxu0 %v783
        %799 = vmatmul.bf16.gmra.mxu0 %v781
        %v800 = vpop.f32.mrf.mxu0
        %v801 = vadd.f32 0.0, %v800
        %v802 = vpop.f32.mrf.mxu0
        %v803 = vadd.f32 0.0, %v802
        %804 = vmatmul.bf16.gmra.mxu0 %v782
        %v805 = vpop.f32.mrf.mxu0
        %v806 = vadd.f32 0.0, %v805
        %v807 = vpop.f32.mrf.mxu0
        %v808 = vadd.f32 0.0, %v807
        %809 = vdwg.mxu0
        %v810 = vadd.f32 %v746, %v801
        %v811 = vadd.f32 %v747, %v803
        %v812 = vadd.f32 %v748, %v806
        %v813 = vadd.f32 %v749, %v808
        %s814 = scalar_lea.vmem %s3, 768
        %v815 = vld [vmem:[%s814] sm:$0xff]
        %v816 = vld [vmem:[%s814 + $0x8] sm:$0xff]
        %v817 = vld [vmem:[%s814 + $0x10] sm:$0xff]
        %v818 = vld [vmem:[%s814 + $0x18] sm:$0xff]
        %v819 = vld [vmem:[%s814 + $0x20] sm:$0xff]
        %v820 = vld [vmem:[%s814 + $0x28] sm:$0xff]
        %v821 = vld [vmem:[%s814 + $0x30] sm:$0xff]
        %v822 = vld [vmem:[%s814 + $0x38] sm:$0xff]
        %v823 = vld [vmem:[%s814 + $0x40] sm:$0xff]
        %v824 = vld [vmem:[%s814 + $0x48] sm:$0xff]
        %v825 = vld [vmem:[%s814 + $0x50] sm:$0xff]
        %v826 = vld [vmem:[%s814 + $0x58] sm:$0xff]
        %v827 = vld [vmem:[%s814 + $0x60] sm:$0xff]
        %v828 = vld [vmem:[%s814 + $0x68] sm:$0xff]
        %v829 = vld [vmem:[%s814 + $0x70] sm:$0xff]
        %v830 = vld [vmem:[%s814 + $0x78] sm:$0xff]
        %v831 = vpack.c.bf16 %v448, %v447
        %v832 = vpack.c.bf16 %v451, %v450
        %v833 = vpack.c.bf16 %v816, %v815
        %v834 = vpack.c.bf16 %v818, %v817
        %v835 = vpack.c.bf16 %v820, %v819
        %v836 = vpack.c.bf16 %v822, %v821
        %v837 = vpack.c.bf16 %v824, %v823
        %v838 = vpack.c.bf16 %v826, %v825
        %v839 = vpack.c.bf16 %v828, %v827
        %v840 = vpack.c.bf16 %v830, %v829
        %841 = vmatpush.bf16.msra.mxu0 %v840
        %842 = vmatpush.bf16.msra.mxu0 %v839
        %843 = vmatpush.bf16.msra.mxu0 %v838
        %844 = vmatpush.bf16.msra.mxu0 %v837
        %845 = vmatpush.bf16.msra.mxu0 %v836
        %846 = vmatpush.bf16.msra.mxu0 %v835
        %847 = vmatpush.bf16.msra.mxu0 %v834
        %848 = vmatpush.bf16.msra.mxu0 %v833
        %849 = vmatmul.bf16.gmra.mxu0 %v831
        %v850 = vpop.f32.mrf.mxu0
        %v851 = vadd.f32 0.0, %v850
        %v852 = vpop.f32.mrf.mxu0
        %v853 = vadd.f32 0.0, %v852
        %854 = vmatmul.bf16.gmra.mxu0 %v832
        %v855 = vpop.f32.mrf.mxu0
        %v856 = vadd.f32 0.0, %v855
        %v857 = vpop.f32.mrf.mxu0
        %v858 = vadd.f32 0.0, %v857
        %859 = vdwg.mxu0
        %v860 = vadd.f32 %v810, %v851
        %v861 = vadd.f32 %v811, %v853
        %v862 = vadd.f32 %v812, %v856
        %v863 = vadd.f32 %v813, %v858
        %v870 = vrot.slane %v447, 1
        %v871 = vrot.slane %v448, 1
        %v872 = vsel %vm485, %v870, %v871
        %v873 = vrot.slane %v449, 1
        %v874 = vsel %vm485, %v871, %v873
        %v875 = vrot.slane %v450, 1
        %v876 = vrot.slane %v451, 1
        %v877 = vsel %vm485, %v875, %v876
        %v878 = vrot.slane %v452, 1
        %v879 = vsel %vm485, %v876, %v878
        %s884 = scalar_lea.vmem %s3, 896
        %v885 = vld [vmem:[%s884] sm:$0xff]
        %v886 = vld [vmem:[%s884 + $0x8] sm:$0xff]
        %v887 = vld [vmem:[%s884 + $0x10] sm:$0xff]
        %v888 = vld [vmem:[%s884 + $0x18] sm:$0xff]
        %v889 = vld [vmem:[%s884 + $0x20] sm:$0xff]
        %v890 = vld [vmem:[%s884 + $0x28] sm:$0xff]
        %v891 = vld [vmem:[%s884 + $0x30] sm:$0xff]
        %v892 = vld [vmem:[%s884 + $0x38] sm:$0xff]
        %v893 = vld [vmem:[%s884 + $0x40] sm:$0xff]
        %v894 = vld [vmem:[%s884 + $0x48] sm:$0xff]
        %v895 = vld [vmem:[%s884 + $0x50] sm:$0xff]
        %v896 = vld [vmem:[%s884 + $0x58] sm:$0xff]
        %v897 = vld [vmem:[%s884 + $0x60] sm:$0xff]
        %v898 = vld [vmem:[%s884 + $0x68] sm:$0xff]
        %v899 = vld [vmem:[%s884 + $0x70] sm:$0xff]
        %v900 = vld [vmem:[%s884 + $0x78] sm:$0xff]
        %v901 = vpack.c.bf16 %v874, %v872
        %v902 = vpack.c.bf16 %v879, %v877
        %v903 = vpack.c.bf16 %v886, %v885
        %v904 = vpack.c.bf16 %v888, %v887
        %v905 = vpack.c.bf16 %v890, %v889
        %v906 = vpack.c.bf16 %v892, %v891
        %v907 = vpack.c.bf16 %v894, %v893
        %v908 = vpack.c.bf16 %v896, %v895
        %v909 = vpack.c.bf16 %v898, %v897
        %v910 = vpack.c.bf16 %v900, %v899
        %911 = vmatpush.bf16.msra.mxu0 %v910
        %912 = vmatpush.bf16.msra.mxu0 %v909
        %913 = vmatpush.bf16.msra.mxu0 %v908
        %914 = vmatpush.bf16.msra.mxu0 %v907
        %915 = vmatpush.bf16.msra.mxu0 %v906
        %916 = vmatpush.bf16.msra.mxu0 %v905
        %917 = vmatpush.bf16.msra.mxu0 %v904
        %918 = vmatpush.bf16.msra.mxu0 %v903
        %919 = vmatmul.bf16.gmra.mxu0 %v901
        %v920 = vpop.f32.mrf.mxu0
        %v921 = vadd.f32 0.0, %v920
        %v922 = vpop.f32.mrf.mxu0
        %v923 = vadd.f32 0.0, %v922
        %924 = vmatmul.bf16.gmra.mxu0 %v902
        %v925 = vpop.f32.mrf.mxu0
        %v926 = vadd.f32 0.0, %v925
        %v927 = vpop.f32.mrf.mxu0
        %v928 = vadd.f32 0.0, %v927
        %929 = vdwg.mxu0
        %v930 = vadd.f32 %v860, %v921
        %v931 = vadd.f32 %v861, %v923
        %v932 = vadd.f32 %v862, %v926
        %v933 = vadd.f32 %v863, %v928
        %v934 = vrot.slane %v447, 2
        %v935 = vrot.slane %v448, 2
        %v936 = vsel %vm565, %v934, %v935
        %v937 = vrot.slane %v449, 2
        %v938 = vsel %vm565, %v935, %v937
        %v939 = vrot.slane %v450, 2
        %v940 = vrot.slane %v451, 2
        %v941 = vsel %vm565, %v939, %v940
        %v942 = vrot.slane %v452, 2
        %v943 = vsel %vm565, %v940, %v942
        %s948 = scalar_lea.vmem %s3, 1024
        %v949 = vld [vmem:[%s948] sm:$0xff]
        %v950 = vld [vmem:[%s948 + $0x8] sm:$0xff]
        %v951 = vld [vmem:[%s948 + $0x10] sm:$0xff]
        %v952 = vld [vmem:[%s948 + $0x18] sm:$0xff]
        %v953 = vld [vmem:[%s948 + $0x20] sm:$0xff]
        %v954 = vld [vmem:[%s948 + $0x28] sm:$0xff]
        %v955 = vld [vmem:[%s948 + $0x30] sm:$0xff]
        %v956 = vld [vmem:[%s948 + $0x38] sm:$0xff]
        %v957 = vld [vmem:[%s948 + $0x40] sm:$0xff]
        %v958 = vld [vmem:[%s948 + $0x48] sm:$0xff]
        %v959 = vld [vmem:[%s948 + $0x50] sm:$0xff]
        %v960 = vld [vmem:[%s948 + $0x58] sm:$0xff]
        %v961 = vld [vmem:[%s948 + $0x60] sm:$0xff]
        %v962 = vld [vmem:[%s948 + $0x68] sm:$0xff]
        %v963 = vld [vmem:[%s948 + $0x70] sm:$0xff]
        %v964 = vld [vmem:[%s948 + $0x78] sm:$0xff]
        %v965 = vpack.c.bf16 %v938, %v936
        %v966 = vpack.c.bf16 %v943, %v941
        %v967 = vpack.c.bf16 %v950, %v949
        %v968 = vpack.c.bf16 %v952, %v951
        %v969 = vpack.c.bf16 %v954, %v953
        %v970 = vpack.c.bf16 %v956, %v955
        %v971 = vpack.c.bf16 %v958, %v957
        %v972 = vpack.c.bf16 %v960, %v959
        %v973 = vpack.c.bf16 %v962, %v961
        %v974 = vpack.c.bf16 %v964, %v963
        %975 = vmatpush.bf16.msra.mxu0 %v974
        %976 = vmatpush.bf16.msra.mxu0 %v973
        %977 = vmatpush.bf16.msra.mxu0 %v972
        %978 = vmatpush.bf16.msra.mxu0 %v971
        %979 = vmatpush.bf16.msra.mxu0 %v970
        %980 = vmatpush.bf16.msra.mxu0 %v969
        %981 = vmatpush.bf16.msra.mxu0 %v968
        %982 = vmatpush.bf16.msra.mxu0 %v967
        %983 = vmatmul.bf16.gmra.mxu0 %v965
        %v984 = vpop.f32.mrf.mxu0
        %v985 = vadd.f32 0.0, %v984
        %v986 = vpop.f32.mrf.mxu0
        %v987 = vadd.f32 0.0, %v986
        %988 = vmatmul.bf16.gmra.mxu0 %v966
        %v989 = vpop.f32.mrf.mxu0
        %v990 = vadd.f32 0.0, %v989
        %v991 = vpop.f32.mrf.mxu0
        %v992 = vadd.f32 0.0, %v991
        %993 = vdwg.mxu0
        %v994 = vadd.f32 %v930, %v985
        %v995 = vadd.f32 %v931, %v987
        %v996 = vadd.f32 %v932, %v990
        %v997 = vadd.f32 %v933, %v992
        %v998 = vld [vmem:[%s4] sm:$0x1]
        %v1000 = vperm.slane %v998, 0
        %v1002 = vadd.f32 %v994, %v1000
        %v1003 = vadd.f32 %v995, %v1000
        %v1004 = vadd.f32 %v996, %v1000
        %v1005 = vadd.f32 %v997, %v1000
        %vm1006 = vcmask 261120
        %1007 = vst.msk [vmem:[%s432] sm:$0xff] %vm1006, %v1002
        %1008 = vst.msk [vmem:[%s432 + $0x8] sm:$0xff] %vm1006, %v1003
        %1009 = vst.msk [vmem:[%s432 + $0x10] sm:$0xff] %vm1006, %v1004
        %1010 = vst.msk [vmem:[%s432 + $0x18] sm:$0xff] %vm1006, %v1005
        %s1011 = sand.u32 %s148, 1
        %s1012 = sand.u32 %s148, 1
        %s1013 = smul.addr %s1012, 32
        %s1014 = scalar_lea.vmem [#allocation5], %s1013
        // Predicated region
        $region155: #{irednet_indrnn_forward.33} parent=141 // pred_check
          %p1015 = pneg %p158
        $region156: #{irednet_indrnn_forward.33} parent=141 // pred_check_branch
          %1017 = sbr.rel (%p1015) target = $region158
        $region157: #{irednet_indrnn_forward.33} parent=141 // pred_region
          %s1018 = smul.addr %s16, 2
          %s1019 = smul.addr %s1018, 8
          %s1020 = scalar_lea.vmem %s5, %s1019
          // Predicated region
          $region159: #{irednet_indrnn_forward.33} parent=157 // pred_check
            _
          $region160: #{irednet_indrnn_forward.33} parent=157 // pred_check_branch
            %1022 = sbr.rel (0) target = $region162
          $region161: #{irednet_indrnn_forward.33} parent=157 // pred_region
            // Predicated region
            $region163: #{irednet_indrnn_forward.33} parent=161 // pred_check
              _
            $region164: #{irednet_indrnn_forward.33} parent=161 // pred_check_branch
              %1024 = sbr.rel (0) target = $region166
            $region165: #{irednet_indrnn_forward.33} parent=161 // pred_region
              // Predicated region
              $region178: #{irednet_indrnn_forward.33} parent=165 // pred_check
                _
              $region179: #{irednet_indrnn_forward.33} parent=165 // pred_check_branch
                %1046 = sbr.rel (0) target = $region181
              $region180: #{irednet_indrnn_forward.33} parent=165 // pred_region
                loop: start=0, step=1, limit=1
                $region182: #{irednet_indrnn_forward.33} parent=180 // loop_pre_header
                  _
                $region183: #{irednet_indrnn_forward.33} parent=180 // loop_header
                  %s1048 = sphi 0, %s1052
                  %p1049 = scmp.ge.s32.totalorder %s1048, 1
                  %s1053 = sphi %s1014, %s1014
                  %s1054 = sphi %s1020, %s1020
                $region184: #{irednet_indrnn_forward.33} parent=180 // loop_header_branch
                  %1051 = sbr.rel (%p1049) target = $region188
                $region185: #{irednet_indrnn_forward.33} parent=180 // loop_body
                  %v1055 = vld [vmem:[%s1053] sm:$0xff]
                  %1056 = vst [vmem:[%s1054] sm:$0xff] %v1055
                  %v1057 = vld [vmem:[%s1053 + $0x8] sm:$0xff]
                  %1058 = vst [vmem:[%s1054 + $0x8] sm:$0xff] %v1057
                  %v1059 = vld [vmem:[%s1053 + $0x10] sm:$0xff]
                  %1060 = vst [vmem:[%s1054 + $0x100] sm:$0xff] %v1059
                  %v1061 = vld [vmem:[%s1053 + $0x18] sm:$0xff]
                  %1062 = vst [vmem:[%s1054 + $0x108] sm:$0xff] %v1061
                $region186: #{irednet_indrnn_forward.33} parent=180 // loop_footer
                  %s1052 = sadd.s32 1, %s1048
                $region187: #{irednet_indrnn_forward.33} parent=180 // loop_footer_branch
                  %1047 = sbr.rel target = $region183
                $region188: #{irednet_indrnn_forward.33} parent=180 // loop_exit
                  _
              $region181: #{irednet_indrnn_forward.33} parent=165 // pred_fallthru
                _
              // Predicated region
              $region189: #{irednet_indrnn_forward.33} parent=165 // pred_check
                _
              $region190: #{irednet_indrnn_forward.33} parent=165 // pred_check_branch
                %1064 = sbr.rel target = $region192
              $region191: #{irednet_indrnn_forward.33} parent=165 // pred_region
                _
              $region192: #{irednet_indrnn_forward.33} parent=165 // pred_fallthru
                _
            $region166: #{irednet_indrnn_forward.33} parent=161 // pred_fallthru
              _
            // Predicated region
            $region167: #{irednet_indrnn_forward.33} parent=161 // pred_check
              _
            $region168: #{irednet_indrnn_forward.33} parent=161 // pred_check_branch
              %1026 = sbr.rel target = $region170
            $region169: #{irednet_indrnn_forward.33} parent=161 // pred_region
              %s1028 = ssub.s32 256, 1
              loop: start=0, step=1, limit=1
              $region171: #{irednet_indrnn_forward.33} parent=169 // loop_pre_header
                _
              $region172: #{irednet_indrnn_forward.33} parent=169 // loop_header
                %s1030 = sphi 0, %s1034
                %p1031 = scmp.ge.s32.totalorder %s1030, 1
                %s1035 = sphi %s1014, %s1014
                %s1036 = sphi %s1020, %s1020
              $region173: #{irednet_indrnn_forward.33} parent=169 // loop_header_branch
                %1033 = sbr.rel (%p1031) target = $region177
              $region174: #{irednet_indrnn_forward.33} parent=169 // loop_body
                %v1037 = vld [vmem:[%s1035] sm:%s1028]
                %1038 = vst [vmem:[%s1036] sm:%s1028] %v1037
                %v1039 = vld [vmem:[%s1035 + $0x8] sm:%s1028]
                %1040 = vst [vmem:[%s1036 + $0x8] sm:%s1028] %v1039
                %v1041 = vld [vmem:[%s1035 + $0x10] sm:%s1028]
                %1042 = vst [vmem:[%s1036 + $0x100] sm:%s1028] %v1041
                %v1043 = vld [vmem:[%s1035 + $0x18] sm:%s1028]
                %1044 = vst [vmem:[%s1036 + $0x108] sm:%s1028] %v1043
              $region175: #{irednet_indrnn_forward.33} parent=169 // loop_footer
                %s1034 = sadd.s32 1, %s1030
              $region176: #{irednet_indrnn_forward.33} parent=169 // loop_footer_branch
                %1029 = sbr.rel target = $region172
              $region177: #{irednet_indrnn_forward.33} parent=169 // loop_exit
                _
            $region170: #{irednet_indrnn_forward.33} parent=161 // pred_fallthru
              _
          $region162: #{irednet_indrnn_forward.33} parent=157 // pred_fallthru
            _
          %1065 = vnop
        $region158: #{irednet_indrnn_forward.33} parent=141 // pred_fallthru
          _
      $region142: #{irednet_indrnn_forward.33} parent=5 // pred_fallthru
        _
      %p1066 = scmp.le.s32.totalorder 2, %s11
      // Predicated region
      $region193: #{irednet_indrnn_forward.33} parent=5 // pred_check
        %p1067 = pneg %p1066
      $region194: #{irednet_indrnn_forward.33} parent=5 // pred_check_branch
        %1069 = sbr.rel (%p1067) target = $region196
      $region195: #{irednet_indrnn_forward.33} parent=5 // pred_region
        %s1070 = ssub.s32 %s11, 2
        // Predicated region
        $region197: #{irednet_indrnn_forward.33} parent=195 // pred_check
          %p1071 = pneg %p164
        $region198: #{irednet_indrnn_forward.33} parent=195 // pred_check_branch
          %1073 = sbr.rel (%p1071) target = $region200
        $region199: #{irednet_indrnn_forward.33} parent=195 // pred_region
          %s1074 = sand.u32 %s149, 1
          %s1075 = sand.u32 %s149, 1
          %s1076 = smul.addr %s1075, 32
          %s1077 = scalar_lea.vmem [#allocation5], %s1076
        $region200: #{irednet_indrnn_forward.33} parent=195 // pred_fallthru
          _
      $region196: #{irednet_indrnn_forward.33} parent=5 // pred_fallthru
        _
    $region6: #{irednet_indrnn_forward.33} parent=1 // loop_footer
      %s15 = sadd.s32 1, %s11
    $region7: #{irednet_indrnn_forward.33} parent=1 // loop_footer_branch
      %10 = sbr.rel target = $region3
    $region8: #{irednet_indrnn_forward.33} parent=1 // loop_exit
      _

// kernel: irednet_indrnn_forward.36
$region0: #{irednet_indrnn_forward.36}
  #allocation0 [shape = 'u32[]', space=smem, size = 0x4, offset = 0x4, fixed_abs, tag = 'smem constant byte address 0x4 - core index']
  #allocation1 [shape = 'u32[72,128]{1,0:T(1,128)}', space=vmem, size = 0x9000, scoped, tag = 'internal scratch']
  %s0 = inlined_call_operand.vmem [shape: f32[512,96], index: 0, kind: input, shape index: {}]
  %s1 = inlined_call_operand.vmem [shape: f32[96,128], index: 1, kind: input, shape index: {}]
  %s2 = inlined_call_operand.vmem [shape: f32[1,128], index: 2, kind: input, shape index: {}]
  %s3 = inlined_call_operand.vmem [shape: f32[512,128], index: 3, kind: output, shape index: {}]
  %s4 = sld [smem:[#allocation0]]
  $region22: #{irednet_indrnn_forward.36} parent=0
    _
  %s6 = ssub.s32 1, %s4
  %s7 = scalar_select 0, %s6, %s4
  // Predicated region
  $region2: #{irednet_indrnn_forward.36} parent=0 // pred_check
    _
  $region3: #{irednet_indrnn_forward.36} parent=0 // pred_check_branch
    %9 = sbr.rel (0) target = $region5
  $region4: #{irednet_indrnn_forward.36} parent=0 // pred_region
    _
  $region5: #{irednet_indrnn_forward.36} parent=0 // pred_fallthru
    _
  // Predicated region
  $region6: #{irednet_indrnn_forward.36} parent=0 // pred_check
    _
  $region7: #{irednet_indrnn_forward.36} parent=0 // pred_check_branch
    %11 = sbr.rel (0) target = $region9
  $region8: #{irednet_indrnn_forward.36} parent=0 // pred_region
    _
  $region9: #{irednet_indrnn_forward.36} parent=0 // pred_fallthru
    _
  // Predicated region
  $region10: #{irednet_indrnn_forward.36} parent=0 // pred_check
    _
  $region11: #{irednet_indrnn_forward.36} parent=0 // pred_check_branch
    %13 = sbr.rel (0) target = $region13
  $region12: #{irednet_indrnn_forward.36} parent=0 // pred_region
    _
  $region13: #{irednet_indrnn_forward.36} parent=0 // pred_fallthru
    _
  %v15 = vld [vmem:[%s0] sm:$0xff]
  %v16 = vld [vmem:[%s0 + $0x8] sm:$0xff]
  %v17 = vld [vmem:[%s0 + $0x10] sm:$0xff]
  %v18 = vld [vmem:[%s0 + $0x18] sm:$0xff]
  %v19 = vld [vmem:[%s0 + $0x20] sm:$0xff]
  %v20 = vld [vmem:[%s0 + $0x28] sm:$0xff]
  %v21 = vld [vmem:[%s0 + $0x30] sm:$0xff]
  %v22 = vld [vmem:[%s0 + $0x38] sm:$0xff]
  %v23 = vld [vmem:[%s0 + $0x40] sm:$0xff]
  %v24 = vld [vmem:[%s0 + $0x48] sm:$0xff]
  %v25 = vld [vmem:[%s0 + $0x50] sm:$0xff]
  %v26 = vld [vmem:[%s0 + $0x58] sm:$0xff]
  %v27 = vld [vmem:[%s0 + $0x60] sm:$0xff]
  %v28 = vld [vmem:[%s0 + $0x68] sm:$0xff]
  %v29 = vld [vmem:[%s0 + $0x70] sm:$0xff]
  %v30 = vld [vmem:[%s0 + $0x78] sm:$0xff]
  %v31 = vld [vmem:[%s0 + $0x80] sm:$0xff]
  %v32 = vld [vmem:[%s0 + $0x88] sm:$0xff]
  %v33 = vld [vmem:[%s0 + $0x90] sm:$0xff]
  %v34 = vld [vmem:[%s0 + $0x98] sm:$0xff]
  %v35 = vld [vmem:[%s0 + $0xa0] sm:$0xff]
  %v36 = vld [vmem:[%s0 + $0xa8] sm:$0xff]
  %v37 = vld [vmem:[%s0 + $0xb0] sm:$0xff]
  %v38 = vld [vmem:[%s0 + $0xb8] sm:$0xff]
  %v39 = vld [vmem:[%s0 + $0xc0] sm:$0xff]
  %v40 = vld [vmem:[%s0 + $0xc8] sm:$0xff]
  %v41 = vld [vmem:[%s0 + $0xd0] sm:$0xff]
  %v42 = vld [vmem:[%s0 + $0xd8] sm:$0xff]
  %v43 = vld [vmem:[%s0 + $0xe0] sm:$0xff]
  %v44 = vld [vmem:[%s0 + $0xe8] sm:$0xff]
  %v45 = vld [vmem:[%s0 + $0xf0] sm:$0xff]
  %v46 = vld [vmem:[%s0 + $0xf8] sm:$0xff]
  %v47 = vld [vmem:[%s0 + $0x100] sm:$0xff]
  %v48 = vld [vmem:[%s0 + $0x108] sm:$0xff]
  %v49 = vld [vmem:[%s0 + $0x110] sm:$0xff]
  %v50 = vld [vmem:[%s0 + $0x118] sm:$0xff]
  %v51 = vld [vmem:[%s0 + $0x120] sm:$0xff]
  %v52 = vld [vmem:[%s0 + $0x128] sm:$0xff]
  %v53 = vld [vmem:[%s0 + $0x130] sm:$0xff]
  %v54 = vld [vmem:[%s0 + $0x138] sm:$0xff]
  %v55 = vld [vmem:[%s0 + $0x140] sm:$0xff]
  %v56 = vld [vmem:[%s0 + $0x148] sm:$0xff]
  %v57 = vld [vmem:[%s0 + $0x150] sm:$0xff]
  %v58 = vld [vmem:[%s0 + $0x158] sm:$0xff]
  %v59 = vld [vmem:[%s0 + $0x160] sm:$0xff]
  %v60 = vld [vmem:[%s0 + $0x168] sm:$0xff]
  %v61 = vld [vmem:[%s0 + $0x170] sm:$0xff]
  %v62 = vld [vmem:[%s0 + $0x178] sm:$0xff]
  %v63 = vld [vmem:[%s0 + $0x180] sm:$0xff]
  %v64 = vld [vmem:[%s0 + $0x188] sm:$0xff]
  %v65 = vld [vmem:[%s0 + $0x190] sm:$0xff]
  %v66 = vld [vmem:[%s0 + $0x198] sm:$0xff]
  %v67 = vld [vmem:[%s0 + $0x1a0] sm:$0xff]
  %v68 = vld [vmem:[%s0 + $0x1a8] sm:$0xff]
  %v69 = vld [vmem:[%s0 + $0x1b0] sm:$0xff]
  %v70 = vld [vmem:[%s0 + $0x1b8] sm:$0xff]
  %v71 = vld [vmem:[%s0 + $0x1c0] sm:$0xff]
  %v72 = vld [vmem:[%s0 + $0x1c8] sm:$0xff]
  %v73 = vld [vmem:[%s0 + $0x1d0] sm:$0xff]
  %v74 = vld [vmem:[%s0 + $0x1d8] sm:$0xff]
  %v75 = vld [vmem:[%s0 + $0x1e0] sm:$0xff]
  %v76 = vld [vmem:[%s0 + $0x1e8] sm:$0xff]
  %v77 = vld [vmem:[%s0 + $0x1f0] sm:$0xff]
  %v78 = vld [vmem:[%s0 + $0x1f8] sm:$0xff]
  %v79 = vmax.f32 %v15, 0.0
  %v80 = vmax.f32 %v16, 0.0
  %v81 = vmax.f32 %v17, 0.0
  %v82 = vmax.f32 %v18, 0.0
  %v83 = vmax.f32 %v19, 0.0
  %v84 = vmax.f32 %v20, 0.0
  %v85 = vmax.f32 %v21, 0.0
  %v86 = vmax.f32 %v22, 0.0
  %v87 = vmax.f32 %v23, 0.0
  %v88 = vmax.f32 %v24, 0.0
  %v89 = vmax.f32 %v25, 0.0
  %v90 = vmax.f32 %v26, 0.0
  %v91 = vmax.f32 %v27, 0.0
  %v92 = vmax.f32 %v28, 0.0
  %v93 = vmax.f32 %v29, 0.0
  %v94 = vmax.f32 %v30, 0.0
  %v95 = vmax.f32 %v31, 0.0
  %v96 = vmax.f32 %v32, 0.0
  %v97 = vmax.f32 %v33, 0.0
  %v98 = vmax.f32 %v34, 0.0
  %v99 = vmax.f32 %v35, 0.0
  %v100 = vmax.f32 %v36, 0.0
  %v101 = vmax.f32 %v37, 0.0
  %v102 = vmax.f32 %v38, 0.0
  %v103 = vmax.f32 %v39, 0.0
  %v104 = vmax.f32 %v40, 0.0
  %v105 = vmax.f32 %v41, 0.0
  %v106 = vmax.f32 %v42, 0.0
  %v107 = vmax.f32 %v43, 0.0
  %v108 = vmax.f32 %v44, 0.0
  %v109 = vmax.f32 %v45, 0.0
  %v110 = vmax.f32 %v46, 0.0
  %v111 = vmax.f32 %v47, 0.0
  %v112 = vmax.f32 %v48, 0.0
  %v113 = vmax.f32 %v49, 0.0
  %v114 = vmax.f32 %v50, 0.0
  %v115 = vmax.f32 %v51, 0.0
  %v116 = vmax.f32 %v52, 0.0
  %v117 = vmax.f32 %v53, 0.0
  %v118 = vmax.f32 %v54, 0.0
  %v119 = vmax.f32 %v55, 0.0
  %v120 = vmax.f32 %v56, 0.0
  %v121 = vmax.f32 %v57, 0.0
  %v122 = vmax.f32 %v58, 0.0
  %v123 = vmax.f32 %v59, 0.0
  %v124 = vmax.f32 %v60, 0.0
  %v125 = vmax.f32 %v61, 0.0
  %v126 = vmax.f32 %v62, 0.0
  %v127 = vmax.f32 %v63, 0.0
  %v128 = vmax.f32 %v64, 0.0
  %v129 = vmax.f32 %v65, 0.0
  %v130 = vmax.f32 %v66, 0.0
  %v131 = vmax.f32 %v67, 0.0
  %v132 = vmax.f32 %v68, 0.0
  %v133 = vmax.f32 %v69, 0.0
  %v134 = vmax.f32 %v70, 0.0
  %v135 = vmax.f32 %v71, 0.0
  %v136 = vmax.f32 %v72, 0.0
  %v137 = vmax.f32 %v73, 0.0
  %v138 = vmax.f32 %v74, 0.0
  %v139 = vmax.f32 %v75, 0.0
  %v140 = vmax.f32 %v76, 0.0
  %v141 = vmax.f32 %v77, 0.0
  %v142 = vmax.f32 %v78, 0.0
  %v143 = vpack.c.bf16 %v80, %v79
  %v144 = vpack.c.bf16 %v82, %v81
  %v145 = vpack.c.bf16 %v84, %v83
  %v146 = vpack.c.bf16 %v86, %v85
  %v147 = vpack.c.bf16 %v88, %v87
  %v148 = vpack.c.bf16 %v90, %v89
  %v149 = vpack.c.bf16 %v92, %v91
  %v150 = vpack.c.bf16 %v94, %v93
  %v151 = vpack.c.bf16 %v96, %v95
  %v152 = vpack.c.bf16 %v98, %v97
  %v153 = vpack.c.bf16 %v100, %v99
  %v154 = vpack.c.bf16 %v102, %v101
  %v155 = vpack.c.bf16 %v104, %v103
  %v156 = vpack.c.bf16 %v106, %v105
  %v157 = vpack.c.bf16 %v108, %v107
  %v158 = vpack.c.bf16 %v110, %v109
  %v159 = vpack.c.bf16 %v112, %v111
  %v160 = vpack.c.bf16 %v114, %v113
  %v161 = vpack.c.bf16 %v116, %v115
  %v162 = vpack.c.bf16 %v118, %v117
  %v163 = vpack.c.bf16 %v120, %v119
  %v164 = vpack.c.bf16 %v122, %v121
  %v165 = vpack.c.bf16 %v124, %v123
  %v166 = vpack.c.bf16 %v126, %v125
  %v167 = vpack.c.bf16 %v128, %v127
  %v168 = vpack.c.bf16 %v130, %v129
  %v169 = vpack.c.bf16 %v132, %v131
  %v170 = vpack.c.bf16 %v134, %v133
  %v171 = vpack.c.bf16 %v136, %v135
  %v172 = vpack.c.bf16 %v138, %v137
  %v173 = vpack.c.bf16 %v140, %v139
  %v174 = vpack.c.bf16 %v142, %v141
  %v175 = vld [vmem:[%s1] sm:$0xff]
  %v176 = vld [vmem:[%s1 + $0x8] sm:$0xff]
  %v177 = vld [vmem:[%s1 + $0x10] sm:$0xff]
  %v178 = vld [vmem:[%s1 + $0x18] sm:$0xff]
  %v179 = vld [vmem:[%s1 + $0x20] sm:$0xff]
  %v180 = vld [vmem:[%s1 + $0x28] sm:$0xff]
  %v181 = vld [vmem:[%s1 + $0x30] sm:$0xff]
  %v182 = vld [vmem:[%s1 + $0x38] sm:$0xff]
  %v183 = vld [vmem:[%s1 + $0x40] sm:$0xff]
  %v184 = vld [vmem:[%s1 + $0x48] sm:$0xff]
  %v185 = vld [vmem:[%s1 + $0x50] sm:$0xff]
  %v186 = vld [vmem:[%s1 + $0x58] sm:$0xff]
  %v187 = vpack.c.bf16 %v176, %v175
  %v188 = vpack.c.bf16 %v178, %v177
  %v189 = vpack.c.bf16 %v180, %v179
  %v190 = vpack.c.bf16 %v182, %v181
  %v191 = vpack.c.bf16 %v184, %v183
  %v192 = vpack.c.bf16 %v186, %v185
  %v193 = vld [vmem:[%s2] sm:$0x1]
  %v195 = vperm.slane %v193, 0
  %vm197 = vcmask 785408
  %v199 = vsel %vm197, %v143, 0
  %v202 = vsel %vm197, %v144, 0
  %v205 = vsel %vm197, %v145, 0
  %v208 = vsel %vm197, %v146, 0
  %v211 = vsel %vm197, %v147, 0
  %v214 = vsel %vm197, %v148, 0
  %v217 = vsel %vm197, %v149, 0
  %v220 = vsel %vm197, %v150, 0
  %v223 = vsel %vm197, %v151, 0
  %v226 = vsel %vm197, %v152, 0
  %v229 = vsel %vm197, %v153, 0
  %v232 = vsel %vm197, %v154, 0
  %v235 = vsel %vm197, %v155, 0
  %v238 = vsel %vm197, %v156, 0
  %v241 = vsel %vm197, %v157, 0
  %v244 = vsel %vm197, %v158, 0
  %v247 = vsel %vm197, %v159, 0
  %v250 = vsel %vm197, %v160, 0
  %v253 = vsel %vm197, %v161, 0
  %v256 = vsel %vm197, %v162, 0
  %v259 = vsel %vm197, %v163, 0
  %v262 = vsel %vm197, %v164, 0
  %v265 = vsel %vm197, %v165, 0
  %v268 = vsel %vm197, %v166, 0
  %v271 = vsel %vm197, %v167, 0
  %v274 = vsel %vm197, %v168, 0
  %v277 = vsel %vm197, %v169, 0
  %v280 = vsel %vm197, %v170, 0
  %v283 = vsel %vm197, %v171, 0
  %v286 = vsel %vm197, %v172, 0
  %v289 = vsel %vm197, %v173, 0
  %v292 = vsel %vm197, %v174, 0
  %294 = vmatpush.bf16.msra.mxu0 0
  %295 = vmatpush.bf16.msra.mxu0 0
  %296 = vmatpush.bf16.msra.mxu0 %v192
  %297 = vmatpush.bf16.msra.mxu0 %v191
  %298 = vmatpush.bf16.msra.mxu0 %v190
  %299 = vmatpush.bf16.msra.mxu0 %v189
  %300 = vmatpush.bf16.msra.mxu0 %v188
  %301 = vmatpush.bf16.msra.mxu0 %v187
  %302 = vmatmul.bf16.gmra.mxu0 %v199
  %v303 = vpop.f32.mrf.mxu0
  %v304 = vadd.f32 %v195, %v303
  %v305 = vpop.f32.mrf.mxu0
  %v306 = vadd.f32 %v195, %v305
  %307 = vmatmul.bf16.gmra.mxu0 %v202
  %v308 = vpop.f32.mrf.mxu0
  %v309 = vadd.f32 %v195, %v308
  %v310 = vpop.f32.mrf.mxu0
  %v311 = vadd.f32 %v195, %v310
  %312 = vmatmul.bf16.gmra.mxu0 %v205
  %v313 = vpop.f32.mrf.mxu0
  %v314 = vadd.f32 %v195, %v313
  %v315 = vpop.f32.mrf.mxu0
  %v316 = vadd.f32 %v195, %v315
  %317 = vmatmul.bf16.gmra.mxu0 %v208
  %v318 = vpop.f32.mrf.mxu0
  %v319 = vadd.f32 %v195, %v318
  %v320 = vpop.f32.mrf.mxu0
  %v321 = vadd.f32 %v195, %v320
  %322 = vmatmul.bf16.gmra.mxu0 %v211
  %v323 = vpop.f32.mrf.mxu0
  %v324 = vadd.f32 %v195, %v323
  %v325 = vpop.f32.mrf.mxu0
  %v326 = vadd.f32 %v195, %v325
  %327 = vmatmul.bf16.gmra.mxu0 %v214
  %v328 = vpop.f32.mrf.mxu0
  %v329 = vadd.f32 %v195, %v328
  %v330 = vpop.f32.mrf.mxu0
  %v331 = vadd.f32 %v195, %v330
  %332 = vmatmul.bf16.gmra.mxu0 %v217
  %v333 = vpop.f32.mrf.mxu0
  %v334 = vadd.f32 %v195, %v333
  %v335 = vpop.f32.mrf.mxu0
  %v336 = vadd.f32 %v195, %v335
  %337 = vmatmul.bf16.gmra.mxu0 %v220
  %v338 = vpop.f32.mrf.mxu0
  %v339 = vadd.f32 %v195, %v338
  %v340 = vpop.f32.mrf.mxu0
  %v341 = vadd.f32 %v195, %v340
  %342 = vmatmul.bf16.gmra.mxu0 %v223
  %v343 = vpop.f32.mrf.mxu0
  %v344 = vadd.f32 %v195, %v343
  %v345 = vpop.f32.mrf.mxu0
  %v346 = vadd.f32 %v195, %v345
  %347 = vmatmul.bf16.gmra.mxu0 %v226
  %v348 = vpop.f32.mrf.mxu0
  %v349 = vadd.f32 %v195, %v348
  %v350 = vpop.f32.mrf.mxu0
  %v351 = vadd.f32 %v195, %v350
  %352 = vmatmul.bf16.gmra.mxu0 %v229
  %v353 = vpop.f32.mrf.mxu0
  %v354 = vadd.f32 %v195, %v353
  %v355 = vpop.f32.mrf.mxu0
  %v356 = vadd.f32 %v195, %v355
  %357 = vmatmul.bf16.gmra.mxu0 %v232
  %v358 = vpop.f32.mrf.mxu0
  %v359 = vadd.f32 %v195, %v358
  %v360 = vpop.f32.mrf.mxu0
  %v361 = vadd.f32 %v195, %v360
  %362 = vmatmul.bf16.gmra.mxu0 %v235
  %v363 = vpop.f32.mrf.mxu0
  %v364 = vadd.f32 %v195, %v363
  %v365 = vpop.f32.mrf.mxu0
  %v366 = vadd.f32 %v195, %v365
  %367 = vmatmul.bf16.gmra.mxu0 %v238
  %v368 = vpop.f32.mrf.mxu0
  %v369 = vadd.f32 %v195, %v368
  %v370 = vpop.f32.mrf.mxu0
  %v371 = vadd.f32 %v195, %v370
  %372 = vmatmul.bf16.gmra.mxu0 %v241
  %v373 = vpop.f32.mrf.mxu0
  %v374 = vadd.f32 %v195, %v373
  %v375 = vpop.f32.mrf.mxu0
  %v376 = vadd.f32 %v195, %v375
  %377 = vmatmul.bf16.gmra.mxu0 %v244
  %v378 = vpop.f32.mrf.mxu0
  %v379 = vadd.f32 %v195, %v378
  %v380 = vpop.f32.mrf.mxu0
  %v381 = vadd.f32 %v195, %v380
  %382 = vmatmul.bf16.gmra.mxu0 %v247
  %v383 = vpop.f32.mrf.mxu0
  %v384 = vadd.f32 %v195, %v383
  %v385 = vpop.f32.mrf.mxu0
  %v386 = vadd.f32 %v195, %v385
  %387 = vmatmul.bf16.gmra.mxu0 %v250
  %v388 = vpop.f32.mrf.mxu0
  %v389 = vadd.f32 %v195, %v388
  %v390 = vpop.f32.mrf.mxu0
  %v391 = vadd.f32 %v195, %v390
  %392 = vmatmul.bf16.gmra.mxu0 %v253
  %v393 = vpop.f32.mrf.mxu0
  %v394 = vadd.f32 %v195, %v393
  %v395 = vpop.f32.mrf.mxu0
  %v396 = vadd.f32 %v195, %v395
  %397 = vmatmul.bf16.gmra.mxu0 %v256
  %v398 = vpop.f32.mrf.mxu0
  %v399 = vadd.f32 %v195, %v398
  %v400 = vpop.f32.mrf.mxu0
  %v401 = vadd.f32 %v195, %v400
  %402 = vmatmul.bf16.gmra.mxu0 %v259
  %v403 = vpop.f32.mrf.mxu0
  %v404 = vadd.f32 %v195, %v403
  %v405 = vpop.f32.mrf.mxu0
  %v406 = vadd.f32 %v195, %v405
  %407 = vmatmul.bf16.gmra.mxu0 %v262
  %v408 = vpop.f32.mrf.mxu0
  %v409 = vadd.f32 %v195, %v408
  %v410 = vpop.f32.mrf.mxu0
  %v411 = vadd.f32 %v195, %v410
  %412 = vmatmul.bf16.gmra.mxu0 %v265
  %v413 = vpop.f32.mrf.mxu0
  %v414 = vadd.f32 %v195, %v413
  %v415 = vpop.f32.mrf.mxu0
  %v416 = vadd.f32 %v195, %v415
  %417 = vmatmul.bf16.gmra.mxu0 %v268
  %v418 = vpop.f32.mrf.mxu0
  %v419 = vadd.f32 %v195, %v418
  %v420 = vpop.f32.mrf.mxu0
  %v421 = vadd.f32 %v195, %v420
  %422 = vmatmul.bf16.gmra.mxu0 %v271
  %v423 = vpop.f32.mrf.mxu0
  %v424 = vadd.f32 %v195, %v423
  %v425 = vpop.f32.mrf.mxu0
  %v426 = vadd.f32 %v195, %v425
  %427 = vmatmul.bf16.gmra.mxu0 %v274
  %v428 = vpop.f32.mrf.mxu0
  %v429 = vadd.f32 %v195, %v428
  %v430 = vpop.f32.mrf.mxu0
  %v431 = vadd.f32 %v195, %v430
  %432 = vmatmul.bf16.gmra.mxu0 %v277
  %v433 = vpop.f32.mrf.mxu0
  %v434 = vadd.f32 %v195, %v433
  %v435 = vpop.f32.mrf.mxu0
  %v436 = vadd.f32 %v195, %v435
  %437 = vmatmul.bf16.gmra.mxu0 %v280
  %v438 = vpop.f32.mrf.mxu0
  %v439 = vadd.f32 %v195, %v438
  %v440 = vpop.f32.mrf.mxu0
  %v441 = vadd.f32 %v195, %v440
  %442 = vmatmul.bf16.gmra.mxu0 %v283
  %v443 = vpop.f32.mrf.mxu0
  %v444 = vadd.f32 %v195, %v443
  %v445 = vpop.f32.mrf.mxu0
  %v446 = vadd.f32 %v195, %v445
  %447 = vmatmul.bf16.gmra.mxu0 %v286
  %v448 = vpop.f32.mrf.mxu0
  %v449 = vadd.f32 %v195, %v448
  %v450 = vpop.f32.mrf.mxu0
  %v451 = vadd.f32 %v195, %v450
  %452 = vmatmul.bf16.gmra.mxu0 %v289
  %v453 = vpop.f32.mrf.mxu0
  %v454 = vadd.f32 %v195, %v453
  %v455 = vpop.f32.mrf.mxu0
  %v456 = vadd.f32 %v195, %v455
  %457 = vmatmul.bf16.gmra.mxu0 %v292
  %v458 = vpop.f32.mrf.mxu0
  %v459 = vadd.f32 %v195, %v458
  %v460 = vpop.f32.mrf.mxu0
  %v461 = vadd.f32 %v195, %v460
  %462 = vdwg.mxu0
  %v463 = vmax.f32 %v304, 0.0
  %v464 = vmax.f32 %v306, 0.0
  %v465 = vmax.f32 %v309, 0.0
  %v466 = vmax.f32 %v311, 0.0
  %v467 = vmax.f32 %v314, 0.0
  %v468 = vmax.f32 %v316, 0.0
  %v469 = vmax.f32 %v319, 0.0
  %v470 = vmax.f32 %v321, 0.0
  %v471 = vmax.f32 %v324, 0.0
  %v472 = vmax.f32 %v326, 0.0
  %v473 = vmax.f32 %v329, 0.0
  %v474 = vmax.f32 %v331, 0.0
  %v475 = vmax.f32 %v334, 0.0
  %v476 = vmax.f32 %v336, 0.0
  %v477 = vmax.f32 %v339, 0.0
  %v478 = vmax.f32 %v341, 0.0
  %v479 = vmax.f32 %v344, 0.0
  %v480 = vmax.f32 %v346, 0.0
  %v481 = vmax.f32 %v349, 0.0
  %v482 = vmax.f32 %v351, 0.0
  %v483 = vmax.f32 %v354, 0.0
  %v484 = vmax.f32 %v356, 0.0
  %v485 = vmax.f32 %v359, 0.0
  %v486 = vmax.f32 %v361, 0.0
  %v487 = vmax.f32 %v364, 0.0
  %v488 = vmax.f32 %v366, 0.0
  %v489 = vmax.f32 %v369, 0.0
  %v490 = vmax.f32 %v371, 0.0
  %v491 = vmax.f32 %v374, 0.0
  %v492 = vmax.f32 %v376, 0.0
  %v493 = vmax.f32 %v379, 0.0
  %v494 = vmax.f32 %v381, 0.0
  %v495 = vmax.f32 %v384, 0.0
  %v496 = vmax.f32 %v386, 0.0
  %v497 = vmax.f32 %v389, 0.0
  %v498 = vmax.f32 %v391, 0.0
  %v499 = vmax.f32 %v394, 0.0
  %v500 = vmax.f32 %v396, 0.0
  %v501 = vmax.f32 %v399, 0.0
  %v502 = vmax.f32 %v401, 0.0
  %v503 = vmax.f32 %v404, 0.0
  %v504 = vmax.f32 %v406, 0.0
  %v505 = vmax.f32 %v409, 0.0
  %v506 = vmax.f32 %v411, 0.0
  %v507 = vmax.f32 %v414, 0.0
  %v508 = vmax.f32 %v416, 0.0
  %v509 = vmax.f32 %v419, 0.0
  %v510 = vmax.f32 %v421, 0.0
  %v511 = vmax.f32 %v424, 0.0
  %v512 = vmax.f32 %v426, 0.0
  %v513 = vmax.f32 %v429, 0.0
  %v514 = vmax.f32 %v431, 0.0
  %v515 = vmax.f32 %v434, 0.0
  %v516 = vmax.f32 %v436, 0.0
  %v517 = vmax.f32 %v439, 0.0
  %v518 = vmax.f32 %v441, 0.0
  %v519 = vmax.f32 %v444, 0.0
  %v520 = vmax.f32 %v446, 0.0
  %v521 = vmax.f32 %v449, 0.0
  %v522 = vmax.f32 %v451, 0.0
  %v523 = vmax.f32 %v454, 0.0
  %v524 = vmax.f32 %v456, 0.0
  %v525 = vmax.f32 %v459, 0.0
  %v526 = vmax.f32 %v461, 0.0
  %527 = vst [vmem:[%s3] sm:$0xff] %v463
  %528 = vst [vmem:[%s3 + $0x8] sm:$0xff] %v464
  %529 = vst [vmem:[%s3 + $0x10] sm:$0xff] %v465
  %530 = vst [vmem:[%s3 + $0x18] sm:$0xff] %v466
  %531 = vst [vmem:[%s3 + $0x20] sm:$0xff] %v467
  %532 = vst [vmem:[%s3 + $0x28] sm:$0xff] %v468
  %533 = vst [vmem:[%s3 + $0x30] sm:$0xff] %v469
  %534 = vst [vmem:[%s3 + $0x38] sm:$0xff] %v470
  %535 = vst [vmem:[%s3 + $0x40] sm:$0xff] %v471
  %536 = vst [vmem:[%s3 + $0x48] sm:$0xff] %v472
  %537 = vst [vmem:[%s3 + $0x50] sm:$0xff] %v473
  %538 = vst [vmem:[%s3 + $0x58] sm:$0xff] %v474
  %539 = vst [vmem:[%s3 + $0x60] sm:$0xff] %v475
  %540 = vst [vmem:[%s3 + $0x68] sm:$0xff] %v476
  %541 = vst [vmem:[%s3 + $0x70] sm:$0xff] %v477
  %542 = vst [vmem:[%s3 + $0x78] sm:$0xff] %v478
  %543 = vst [vmem:[%s3 + $0x80] sm:$0xff] %v479
  %544 = vst [vmem:[%s3 + $0x88] sm:$0xff] %v480
  %545 = vst [vmem:[%s3 + $0x90] sm:$0xff] %v481
  %546 = vst [vmem:[%s3 + $0x98] sm:$0xff] %v482
  %547 = vst [vmem:[%s3 + $0xa0] sm:$0xff] %v483
  %548 = vst [vmem:[%s3 + $0xa8] sm:$0xff] %v484
  %549 = vst [vmem:[%s3 + $0xb0] sm:$0xff] %v485
  %550 = vst [vmem:[%s3 + $0xb8] sm:$0xff] %v486
  %551 = vst [vmem:[%s3 + $0xc0] sm:$0xff] %v487
  %552 = vst [vmem:[%s3 + $0xc8] sm:$0xff] %v488
  %553 = vst [vmem:[%s3 + $0xd0] sm:$0xff] %v489
  %554 = vst [vmem:[%s3 + $0xd8] sm:$0xff] %v490
  %555 = vst [vmem:[%s3 + $0xe0] sm:$0xff] %v491
  %556 = vst [vmem:[%s3 + $0xe8] sm:$0xff] %v492
  %557 = vst [vmem:[%s3 + $0xf0] sm:$0xff] %v493
  %558 = vst [vmem:[%s3 + $0xf8] sm:$0xff] %v494
  %559 = vst [vmem:[%s3 + $0x100] sm:$0xff] %v495
  %560 = vst [vmem:[%s3 + $0x108] sm:$0xff] %v496
  %561 = vst [vmem:[%s3 + $0x110] sm:$0xff] %v497
  %562 = vst [vmem:[%s3 + $0x118] sm:$0xff] %v498
  %563 = vst [vmem:[%s3 + $0x120] sm:$0xff] %v499
  %564 = vst [vmem:[%s3 + $0x128] sm:$0xff] %v500
  %565 = vst [vmem:[%s3 + $0x130] sm:$0xff] %v501
  %566 = vst [vmem:[%s3 + $0x138] sm:$0xff] %v502
  %567 = vst [vmem:[%s3 + $0x140] sm:$0xff] %v503
  %568 = vst [vmem:[%s3 + $0x148] sm:$0xff] %v504
  %569 = vst [vmem:[%s3 + $0x150] sm:$0xff] %v505
  %570 = vst [vmem:[%s3 + $0x158] sm:$0xff] %v506
  %571 = vst [vmem:[%s3 + $0x160] sm:$0xff] %v507
  %572 = vst [vmem:[%s3 + $0x168] sm:$0xff] %v508
  %573 = vst [vmem:[%s3 + $0x170] sm:$0xff] %v509
  %574 = vst [vmem:[%s3 + $0x178] sm:$0xff] %v510
  %575 = vst [vmem:[%s3 + $0x180] sm:$0xff] %v511
  %576 = vst [vmem:[%s3 + $0x188] sm:$0xff] %v512
  %577 = vst [vmem:[%s3 + $0x190] sm:$0xff] %v513
  %578 = vst [vmem:[%s3 + $0x198] sm:$0xff] %v514
  %579 = vst [vmem:[%s3 + $0x1a0] sm:$0xff] %v515
  %580 = vst [vmem:[%s3 + $0x1a8] sm:$0xff] %v516
  %581 = vst [vmem:[%s3 + $0x1b0] sm:$0xff] %v517
  %582 = vst [vmem:[%s3 + $0x1b8] sm:$0xff] %v518
  %583 = vst [vmem:[%s3 + $0x1c0] sm:$0xff] %v519
  %584 = vst [vmem:[%s3 + $0x1c8] sm:$0xff] %v520
  %585 = vst [vmem:[%s3 + $0x1d0] sm:$0xff] %v521
  %586 = vst [vmem:[%s3 + $0x1d8] sm:$0xff] %v522
  %587 = vst [vmem:[%s3 + $0x1e0] sm:$0xff] %v523
  %588 = vst [vmem:[%s3 + $0x1e8] sm:$0xff] %v524
  %589 = vst [vmem:[%s3 + $0x1f0] sm:$0xff] %v525
  %590 = vst [vmem:[%s3 + $0x1f8] sm:$0xff] %v526
  // Predicated region
  $region14: #{irednet_indrnn_forward.36} parent=0 // pred_check
    _
  $region15: #{irednet_indrnn_forward.36} parent=0 // pred_check_branch
    %592 = sbr.rel (0) target = $region17
  $region16: #{irednet_indrnn_forward.36} parent=0 // pred_region
    _
  $region17: #{irednet_indrnn_forward.36} parent=0 // pred_fallthru
    _
  // Predicated region
  $region18: #{irednet_indrnn_forward.36} parent=0 // pred_check
    _
  $region19: #{irednet_indrnn_forward.36} parent=0 // pred_check_branch
    %594 = sbr.rel (0) target = $region21
  $region20: #{irednet_indrnn_forward.36} parent=0 // pred_region
    _
  $region21: #{irednet_indrnn_forward.36} parent=0 // pred_fallthru
    _

// kernel: irednet_indrnn_forward.38
$region0: #{irednet_indrnn_forward.38}
  #allocation0 [shape = 'u32[]', space=smem, size = 0x4, offset = 0x4, fixed_abs, tag = 'smem constant byte address 0x4 - core index']
  #allocation1 [shape = 'u32[72,128]{1,0:T(1,128)}', space=vmem, size = 0x9000, scoped, tag = 'internal scratch']
  %s0 = inlined_call_operand.vmem [shape: f32[512,128], index: 0, kind: input, shape index: {}]
  %s1 = inlined_call_operand.vmem [shape: f32[128,128], index: 1, kind: input, shape index: {}]
  %s2 = inlined_call_operand.vmem [shape: f32[1,128], index: 2, kind: input, shape index: {}]
  %s3 = inlined_call_operand.vmem [shape: f32[512,128], index: 3, kind: output, shape index: {}]
  %s4 = sld [smem:[#allocation0]]
  $region22: #{irednet_indrnn_forward.38} parent=0
    _
  %s6 = ssub.s32 1, %s4
  %s7 = scalar_select 0, %s6, %s4
  // Predicated region
  $region2: #{irednet_indrnn_forward.38} parent=0 // pred_check
    _
  $region3: #{irednet_indrnn_forward.38} parent=0 // pred_check_branch
    %9 = sbr.rel (0) target = $region5
  $region4: #{irednet_indrnn_forward.38} parent=0 // pred_region
    _
  $region5: #{irednet_indrnn_forward.38} parent=0 // pred_fallthru
    _
  // Predicated region
  $region6: #{irednet_indrnn_forward.38} parent=0 // pred_check
    _
  $region7: #{irednet_indrnn_forward.38} parent=0 // pred_check_branch
    %11 = sbr.rel (0) target = $region9
  $region8: #{irednet_indrnn_forward.38} parent=0 // pred_region
    _
  $region9: #{irednet_indrnn_forward.38} parent=0 // pred_fallthru
    _
  // Predicated region
  $region10: #{irednet_indrnn_forward.38} parent=0 // pred_check
    _
  $region11: #{irednet_indrnn_forward.38} parent=0 // pred_check_branch
    %13 = sbr.rel (0) target = $region13
  $region12: #{irednet_indrnn_forward.38} parent=0 // pred_region
    _
  $region13: #{irednet_indrnn_forward.38} parent=0 // pred_fallthru
    _
  %v14 = vld [vmem:[%s0] sm:$0xff]
  %v15 = vld [vmem:[%s0 + $0x8] sm:$0xff]
  %v16 = vld [vmem:[%s0 + $0x10] sm:$0xff]
  %v17 = vld [vmem:[%s0 + $0x18] sm:$0xff]
  %v18 = vld [vmem:[%s0 + $0x20] sm:$0xff]
  %v19 = vld [vmem:[%s0 + $0x28] sm:$0xff]
  %v20 = vld [vmem:[%s0 + $0x30] sm:$0xff]
  %v21 = vld [vmem:[%s0 + $0x38] sm:$0xff]
  %v22 = vld [vmem:[%s0 + $0x40] sm:$0xff]
  %v23 = vld [vmem:[%s0 + $0x48] sm:$0xff]
  %v24 = vld [vmem:[%s0 + $0x50] sm:$0xff]
  %v25 = vld [vmem:[%s0 + $0x58] sm:$0xff]
  %v26 = vld [vmem:[%s0 + $0x60] sm:$0xff]
  %v27 = vld [vmem:[%s0 + $0x68] sm:$0xff]
  %v28 = vld [vmem:[%s0 + $0x70] sm:$0xff]
  %v29 = vld [vmem:[%s0 + $0x78] sm:$0xff]
  %v30 = vld [vmem:[%s0 + $0x80] sm:$0xff]
  %v31 = vld [vmem:[%s0 + $0x88] sm:$0xff]
  %v32 = vld [vmem:[%s0 + $0x90] sm:$0xff]
  %v33 = vld [vmem:[%s0 + $0x98] sm:$0xff]
  %v34 = vld [vmem:[%s0 + $0xa0] sm:$0xff]
  %v35 = vld [vmem:[%s0 + $0xa8] sm:$0xff]
  %v36 = vld [vmem:[%s0 + $0xb0] sm:$0xff]
  %v37 = vld [vmem:[%s0 + $0xb8] sm:$0xff]
  %v38 = vld [vmem:[%s0 + $0xc0] sm:$0xff]
  %v39 = vld [vmem:[%s0 + $0xc8] sm:$0xff]
  %v40 = vld [vmem:[%s0 + $0xd0] sm:$0xff]
  %v41 = vld [vmem:[%s0 + $0xd8] sm:$0xff]
  %v42 = vld [vmem:[%s0 + $0xe0] sm:$0xff]
  %v43 = vld [vmem:[%s0 + $0xe8] sm:$0xff]
  %v44 = vld [vmem:[%s0 + $0xf0] sm:$0xff]
  %v45 = vld [vmem:[%s0 + $0xf8] sm:$0xff]
  %v46 = vld [vmem:[%s0 + $0x100] sm:$0xff]
  %v47 = vld [vmem:[%s0 + $0x108] sm:$0xff]
  %v48 = vld [vmem:[%s0 + $0x110] sm:$0xff]
  %v49 = vld [vmem:[%s0 + $0x118] sm:$0xff]
  %v50 = vld [vmem:[%s0 + $0x120] sm:$0xff]
  %v51 = vld [vmem:[%s0 + $0x128] sm:$0xff]
  %v52 = vld [vmem:[%s0 + $0x130] sm:$0xff]
  %v53 = vld [vmem:[%s0 + $0x138] sm:$0xff]
  %v54 = vld [vmem:[%s0 + $0x140] sm:$0xff]
  %v55 = vld [vmem:[%s0 + $0x148] sm:$0xff]
  %v56 = vld [vmem:[%s0 + $0x150] sm:$0xff]
  %v57 = vld [vmem:[%s0 + $0x158] sm:$0xff]
  %v58 = vld [vmem:[%s0 + $0x160] sm:$0xff]
  %v59 = vld [vmem:[%s0 + $0x168] sm:$0xff]
  %v60 = vld [vmem:[%s0 + $0x170] sm:$0xff]
  %v61 = vld [vmem:[%s0 + $0x178] sm:$0xff]
  %v62 = vld [vmem:[%s0 + $0x180] sm:$0xff]
  %v63 = vld [vmem:[%s0 + $0x188] sm:$0xff]
  %v64 = vld [vmem:[%s0 + $0x190] sm:$0xff]
  %v65 = vld [vmem:[%s0 + $0x198] sm:$0xff]
  %v66 = vld [vmem:[%s0 + $0x1a0] sm:$0xff]
  %v67 = vld [vmem:[%s0 + $0x1a8] sm:$0xff]
  %v68 = vld [vmem:[%s0 + $0x1b0] sm:$0xff]
  %v69 = vld [vmem:[%s0 + $0x1b8] sm:$0xff]
  %v70 = vld [vmem:[%s0 + $0x1c0] sm:$0xff]
  %v71 = vld [vmem:[%s0 + $0x1c8] sm:$0xff]
  %v72 = vld [vmem:[%s0 + $0x1d0] sm:$0xff]
  %v73 = vld [vmem:[%s0 + $0x1d8] sm:$0xff]
  %v74 = vld [vmem:[%s0 + $0x1e0] sm:$0xff]
  %v75 = vld [vmem:[%s0 + $0x1e8] sm:$0xff]
  %v76 = vld [vmem:[%s0 + $0x1f0] sm:$0xff]
  %v77 = vld [vmem:[%s0 + $0x1f8] sm:$0xff]
  %v78 = vmax.f32 %v14, 0.0
  %v79 = vmax.f32 %v15, 0.0
  %v80 = vmax.f32 %v16, 0.0
  %v81 = vmax.f32 %v17, 0.0
  %v82 = vmax.f32 %v18, 0.0
  %v83 = vmax.f32 %v19, 0.0
  %v84 = vmax.f32 %v20, 0.0
  %v85 = vmax.f32 %v21, 0.0
  %v86 = vmax.f32 %v22, 0.0
  %v87 = vmax.f32 %v23, 0.0
  %v88 = vmax.f32 %v24, 0.0
  %v89 = vmax.f32 %v25, 0.0
  %v90 = vmax.f32 %v26, 0.0
  %v91 = vmax.f32 %v27, 0.0
  %v92 = vmax.f32 %v28, 0.0
  %v93 = vmax.f32 %v29, 0.0
  %v94 = vmax.f32 %v30, 0.0
  %v95 = vmax.f32 %v31, 0.0
  %v96 = vmax.f32 %v32, 0.0
  %v97 = vmax.f32 %v33, 0.0
  %v98 = vmax.f32 %v34, 0.0
  %v99 = vmax.f32 %v35, 0.0
  %v100 = vmax.f32 %v36, 0.0
  %v101 = vmax.f32 %v37, 0.0
  %v102 = vmax.f32 %v38, 0.0
  %v103 = vmax.f32 %v39, 0.0
  %v104 = vmax.f32 %v40, 0.0
  %v105 = vmax.f32 %v41, 0.0
  %v106 = vmax.f32 %v42, 0.0
  %v107 = vmax.f32 %v43, 0.0
  %v108 = vmax.f32 %v44, 0.0
  %v109 = vmax.f32 %v45, 0.0
  %v110 = vmax.f32 %v46, 0.0
  %v111 = vmax.f32 %v47, 0.0
  %v112 = vmax.f32 %v48, 0.0
  %v113 = vmax.f32 %v49, 0.0
  %v114 = vmax.f32 %v50, 0.0
  %v115 = vmax.f32 %v51, 0.0
  %v116 = vmax.f32 %v52, 0.0
  %v117 = vmax.f32 %v53, 0.0
  %v118 = vmax.f32 %v54, 0.0
  %v119 = vmax.f32 %v55, 0.0
  %v120 = vmax.f32 %v56, 0.0
  %v121 = vmax.f32 %v57, 0.0
  %v122 = vmax.f32 %v58, 0.0
  %v123 = vmax.f32 %v59, 0.0
  %v124 = vmax.f32 %v60, 0.0
  %v125 = vmax.f32 %v61, 0.0
  %v126 = vmax.f32 %v62, 0.0
  %v127 = vmax.f32 %v63, 0.0
  %v128 = vmax.f32 %v64, 0.0
  %v129 = vmax.f32 %v65, 0.0
  %v130 = vmax.f32 %v66, 0.0
  %v131 = vmax.f32 %v67, 0.0
  %v132 = vmax.f32 %v68, 0.0
  %v133 = vmax.f32 %v69, 0.0
  %v134 = vmax.f32 %v70, 0.0
  %v135 = vmax.f32 %v71, 0.0
  %v136 = vmax.f32 %v72, 0.0
  %v137 = vmax.f32 %v73, 0.0
  %v138 = vmax.f32 %v74, 0.0
  %v139 = vmax.f32 %v75, 0.0
  %v140 = vmax.f32 %v76, 0.0
  %v141 = vmax.f32 %v77, 0.0
  %v142 = vpack.c.bf16 %v79, %v78
  %v143 = vpack.c.bf16 %v81, %v80
  %v144 = vpack.c.bf16 %v83, %v82
  %v145 = vpack.c.bf16 %v85, %v84
  %v146 = vpack.c.bf16 %v87, %v86
  %v147 = vpack.c.bf16 %v89, %v88
  %v148 = vpack.c.bf16 %v91, %v90
  %v149 = vpack.c.bf16 %v93, %v92
  %v150 = vpack.c.bf16 %v95, %v94
  %v151 = vpack.c.bf16 %v97, %v96
  %v152 = vpack.c.bf16 %v99, %v98
  %v153 = vpack.c.bf16 %v101, %v100
  %v154 = vpack.c.bf16 %v103, %v102
  %v155 = vpack.c.bf16 %v105, %v104
  %v156 = vpack.c.bf16 %v107, %v106
  %v157 = vpack.c.bf16 %v109, %v108
  %v158 = vpack.c.bf16 %v111, %v110
  %v159 = vpack.c.bf16 %v113, %v112
  %v160 = vpack.c.bf16 %v115, %v114
  %v161 = vpack.c.bf16 %v117, %v116
  %v162 = vpack.c.bf16 %v119, %v118
  %v163 = vpack.c.bf16 %v121, %v120
  %v164 = vpack.c.bf16 %v123, %v122
  %v165 = vpack.c.bf16 %v125, %v124
  %v166 = vpack.c.bf16 %v127, %v126
  %v167 = vpack.c.bf16 %v129, %v128
  %v168 = vpack.c.bf16 %v131, %v130
  %v169 = vpack.c.bf16 %v133, %v132
  %v170 = vpack.c.bf16 %v135, %v134
  %v171 = vpack.c.bf16 %v137, %v136
  %v172 = vpack.c.bf16 %v139, %v138
  %v173 = vpack.c.bf16 %v141, %v140
  %v174 = vld [vmem:[%s1] sm:$0xff]
  %v175 = vld [vmem:[%s1 + $0x8] sm:$0xff]
  %v176 = vld [vmem:[%s1 + $0x10] sm:$0xff]
  %v177 = vld [vmem:[%s1 + $0x18] sm:$0xff]
  %v178 = vld [vmem:[%s1 + $0x20] sm:$0xff]
  %v179 = vld [vmem:[%s1 + $0x28] sm:$0xff]
  %v180 = vld [vmem:[%s1 + $0x30] sm:$0xff]
  %v181 = vld [vmem:[%s1 + $0x38] sm:$0xff]
  %v182 = vld [vmem:[%s1 + $0x40] sm:$0xff]
  %v183 = vld [vmem:[%s1 + $0x48] sm:$0xff]
  %v184 = vld [vmem:[%s1 + $0x50] sm:$0xff]
  %v185 = vld [vmem:[%s1 + $0x58] sm:$0xff]
  %v186 = vld [vmem:[%s1 + $0x60] sm:$0xff]
  %v187 = vld [vmem:[%s1 + $0x68] sm:$0xff]
  %v188 = vld [vmem:[%s1 + $0x70] sm:$0xff]
  %v189 = vld [vmem:[%s1 + $0x78] sm:$0xff]
  %v190 = vpack.c.bf16 %v175, %v174
  %v191 = vpack.c.bf16 %v177, %v176
  %v192 = vpack.c.bf16 %v179, %v178
  %v193 = vpack.c.bf16 %v181, %v180
  %v194 = vpack.c.bf16 %v183, %v182
  %v195 = vpack.c.bf16 %v185, %v184
  %v196 = vpack.c.bf16 %v187, %v186
  %v197 = vpack.c.bf16 %v189, %v188
  %v198 = vld [vmem:[%s2] sm:$0x1]
  %v200 = vperm.slane %v198, 0
  %202 = vmatpush.bf16.msra.mxu0 %v197
  %203 = vmatpush.bf16.msra.mxu0 %v196
  %204 = vmatpush.bf16.msra.mxu0 %v195
  %205 = vmatpush.bf16.msra.mxu0 %v194
  %206 = vmatpush.bf16.msra.mxu0 %v193
  %207 = vmatpush.bf16.msra.mxu0 %v192
  %208 = vmatpush.bf16.msra.mxu0 %v191
  %209 = vmatpush.bf16.msra.mxu0 %v190
  %210 = vmatmul.bf16.gmra.mxu0 %v142
  %v211 = vpop.f32.mrf.mxu0
  %v212 = vadd.f32 %v200, %v211
  %v213 = vpop.f32.mrf.mxu0
  %v214 = vadd.f32 %v200, %v213
  %215 = vmatmul.bf16.gmra.mxu0 %v143
  %v216 = vpop.f32.mrf.mxu0
  %v217 = vadd.f32 %v200, %v216
  %v218 = vpop.f32.mrf.mxu0
  %v219 = vadd.f32 %v200, %v218
  %220 = vmatmul.bf16.gmra.mxu0 %v144
  %v221 = vpop.f32.mrf.mxu0
  %v222 = vadd.f32 %v200, %v221
  %v223 = vpop.f32.mrf.mxu0
  %v224 = vadd.f32 %v200, %v223
  %225 = vmatmul.bf16.gmra.mxu0 %v145
  %v226 = vpop.f32.mrf.mxu0
  %v227 = vadd.f32 %v200, %v226
  %v228 = vpop.f32.mrf.mxu0
  %v229 = vadd.f32 %v200, %v228
  %230 = vmatmul.bf16.gmra.mxu0 %v146
  %v231 = vpop.f32.mrf.mxu0
  %v232 = vadd.f32 %v200, %v231
  %v233 = vpop.f32.mrf.mxu0
  %v234 = vadd.f32 %v200, %v233
  %235 = vmatmul.bf16.gmra.mxu0 %v147
  %v236 = vpop.f32.mrf.mxu0
  %v237 = vadd.f32 %v200, %v236
  %v238 = vpop.f32.mrf.mxu0
  %v239 = vadd.f32 %v200, %v238
  %240 = vmatmul.bf16.gmra.mxu0 %v148
  %v241 = vpop.f32.mrf.mxu0
  %v242 = vadd.f32 %v200, %v241
  %v243 = vpop.f32.mrf.mxu0
  %v244 = vadd.f32 %v200, %v243
  %245 = vmatmul.bf16.gmra.mxu0 %v149
  %v246 = vpop.f32.mrf.mxu0
  %v247 = vadd.f32 %v200, %v246
  %v248 = vpop.f32.mrf.mxu0
  %v249 = vadd.f32 %v200, %v248
  %250 = vmatmul.bf16.gmra.mxu0 %v150
  %v251 = vpop.f32.mrf.mxu0
  %v252 = vadd.f32 %v200, %v251
  %v253 = vpop.f32.mrf.mxu0
  %v254 = vadd.f32 %v200, %v253
  %255 = vmatmul.bf16.gmra.mxu0 %v151
  %v256 = vpop.f32.mrf.mxu0
  %v257 = vadd.f32 %v200, %v256
  %v258 = vpop.f32.mrf.mxu0
  %v259 = vadd.f32 %v200, %v258
  %260 = vmatmul.bf16.gmra.mxu0 %v152
  %v261 = vpop.f32.mrf.mxu0
  %v262 = vadd.f32 %v200, %v261
  %v263 = vpop.f32.mrf.mxu0
  %v264 = vadd.f32 %v200, %v263
  %265 = vmatmul.bf16.gmra.mxu0 %v153
  %v266 = vpop.f32.mrf.mxu0
  %v267 = vadd.f32 %v200, %v266
  %v268 = vpop.f32.mrf.mxu0
  %v269 = vadd.f32 %v200, %v268
  %270 = vmatmul.bf16.gmra.mxu0 %v154
  %v271 = vpop.f32.mrf.mxu0
  %v272 = vadd.f32 %v200, %v271
  %v273 = vpop.f32.mrf.mxu0
  %v274 = vadd.f32 %v200, %v273
  %275 = vmatmul.bf16.gmra.mxu0 %v155
  %v276 = vpop.f32.mrf.mxu0
  %v277 = vadd.f32 %v200, %v276
  %v278 = vpop.f32.mrf.mxu0
  %v279 = vadd.f32 %v200, %v278
  %280 = vmatmul.bf16.gmra.mxu0 %v156
  %v281 = vpop.f32.mrf.mxu0
  %v282 = vadd.f32 %v200, %v281
  %v283 = vpop.f32.mrf.mxu0
  %v284 = vadd.f32 %v200, %v283
  %285 = vmatmul.bf16.gmra.mxu0 %v157
  %v286 = vpop.f32.mrf.mxu0
  %v287 = vadd.f32 %v200, %v286
  %v288 = vpop.f32.mrf.mxu0
  %v289 = vadd.f32 %v200, %v288
  %290 = vmatmul.bf16.gmra.mxu0 %v158
  %v291 = vpop.f32.mrf.mxu0
  %v292 = vadd.f32 %v200, %v291
  %v293 = vpop.f32.mrf.mxu0
  %v294 = vadd.f32 %v200, %v293
  %295 = vmatmul.bf16.gmra.mxu0 %v159
  %v296 = vpop.f32.mrf.mxu0
  %v297 = vadd.f32 %v200, %v296
  %v298 = vpop.f32.mrf.mxu0
  %v299 = vadd.f32 %v200, %v298
  %300 = vmatmul.bf16.gmra.mxu0 %v160
  %v301 = vpop.f32.mrf.mxu0
  %v302 = vadd.f32 %v200, %v301
  %v303 = vpop.f32.mrf.mxu0
  %v304 = vadd.f32 %v200, %v303
  %305 = vmatmul.bf16.gmra.mxu0 %v161
  %v306 = vpop.f32.mrf.mxu0
  %v307 = vadd.f32 %v200, %v306
  %v308 = vpop.f32.mrf.mxu0
  %v309 = vadd.f32 %v200, %v308
  %310 = vmatmul.bf16.gmra.mxu0 %v162
  %v311 = vpop.f32.mrf.mxu0
  %v312 = vadd.f32 %v200, %v311
  %v313 = vpop.f32.mrf.mxu0
  %v314 = vadd.f32 %v200, %v313
  %315 = vmatmul.bf16.gmra.mxu0 %v163
  %v316 = vpop.f32.mrf.mxu0
  %v317 = vadd.f32 %v200, %v316
  %v318 = vpop.f32.mrf.mxu0
  %v319 = vadd.f32 %v200, %v318
  %320 = vmatmul.bf16.gmra.mxu0 %v164
  %v321 = vpop.f32.mrf.mxu0
  %v322 = vadd.f32 %v200, %v321
  %v323 = vpop.f32.mrf.mxu0
  %v324 = vadd.f32 %v200, %v323
  %325 = vmatmul.bf16.gmra.mxu0 %v165
  %v326 = vpop.f32.mrf.mxu0
  %v327 = vadd.f32 %v200, %v326
  %v328 = vpop.f32.mrf.mxu0
  %v329 = vadd.f32 %v200, %v328
  %330 = vmatmul.bf16.gmra.mxu0 %v166
  %v331 = vpop.f32.mrf.mxu0
  %v332 = vadd.f32 %v200, %v331
  %v333 = vpop.f32.mrf.mxu0
  %v334 = vadd.f32 %v200, %v333
  %335 = vmatmul.bf16.gmra.mxu0 %v167
  %v336 = vpop.f32.mrf.mxu0
  %v337 = vadd.f32 %v200, %v336
  %v338 = vpop.f32.mrf.mxu0
  %v339 = vadd.f32 %v200, %v338
  %340 = vmatmul.bf16.gmra.mxu0 %v168
  %v341 = vpop.f32.mrf.mxu0
  %v342 = vadd.f32 %v200, %v341
  %v343 = vpop.f32.mrf.mxu0
  %v344 = vadd.f32 %v200, %v343
  %345 = vmatmul.bf16.gmra.mxu0 %v169
  %v346 = vpop.f32.mrf.mxu0
  %v347 = vadd.f32 %v200, %v346
  %v348 = vpop.f32.mrf.mxu0
  %v349 = vadd.f32 %v200, %v348
  %350 = vmatmul.bf16.gmra.mxu0 %v170
  %v351 = vpop.f32.mrf.mxu0
  %v352 = vadd.f32 %v200, %v351
  %v353 = vpop.f32.mrf.mxu0
  %v354 = vadd.f32 %v200, %v353
  %355 = vmatmul.bf16.gmra.mxu0 %v171
  %v356 = vpop.f32.mrf.mxu0
  %v357 = vadd.f32 %v200, %v356
  %v358 = vpop.f32.mrf.mxu0
  %v359 = vadd.f32 %v200, %v358
  %360 = vmatmul.bf16.gmra.mxu0 %v172
  %v361 = vpop.f32.mrf.mxu0
  %v362 = vadd.f32 %v200, %v361
  %v363 = vpop.f32.mrf.mxu0
  %v364 = vadd.f32 %v200, %v363
  %365 = vmatmul.bf16.gmra.mxu0 %v173
  %v366 = vpop.f32.mrf.mxu0
  %v367 = vadd.f32 %v200, %v366
  %v368 = vpop.f32.mrf.mxu0
  %v369 = vadd.f32 %v200, %v368
  %370 = vdwg.mxu0
  %v371 = vmax.f32 %v212, 0.0
  %v372 = vmax.f32 %v214, 0.0
  %v373 = vmax.f32 %v217, 0.0
  %v374 = vmax.f32 %v219, 0.0
  %v375 = vmax.f32 %v222, 0.0
  %v376 = vmax.f32 %v224, 0.0
  %v377 = vmax.f32 %v227, 0.0
  %v378 = vmax.f32 %v229, 0.0
  %v379 = vmax.f32 %v232, 0.0
  %v380 = vmax.f32 %v234, 0.0
  %v381 = vmax.f32 %v237, 0.0
  %v382 = vmax.f32 %v239, 0.0
  %v383 = vmax.f32 %v242, 0.0
  %v384 = vmax.f32 %v244, 0.0
  %v385 = vmax.f32 %v247, 0.0
  %v386 = vmax.f32 %v249, 0.0
  %v387 = vmax.f32 %v252, 0.0
  %v388 = vmax.f32 %v254, 0.0
  %v389 = vmax.f32 %v257, 0.0
  %v390 = vmax.f32 %v259, 0.0
  %v391 = vmax.f32 %v262, 0.0
  %v392 = vmax.f32 %v264, 0.0
  %v393 = vmax.f32 %v267, 0.0
  %v394 = vmax.f32 %v269, 0.0
  %v395 = vmax.f32 %v272, 0.0
  %v396 = vmax.f32 %v274, 0.0
  %v397 = vmax.f32 %v277, 0.0
  %v398 = vmax.f32 %v279, 0.0
  %v399 = vmax.f32 %v282, 0.0
  %v400 = vmax.f32 %v284, 0.0
  %v401 = vmax.f32 %v287, 0.0
  %v402 = vmax.f32 %v289, 0.0
  %v403 = vmax.f32 %v292, 0.0
  %v404 = vmax.f32 %v294, 0.0
  %v405 = vmax.f32 %v297, 0.0
  %v406 = vmax.f32 %v299, 0.0
  %v407 = vmax.f32 %v302, 0.0
  %v408 = vmax.f32 %v304, 0.0
  %v409 = vmax.f32 %v307, 0.0
  %v410 = vmax.f32 %v309, 0.0
  %v411 = vmax.f32 %v312, 0.0
  %v412 = vmax.f32 %v314, 0.0
  %v413 = vmax.f32 %v317, 0.0
  %v414 = vmax.f32 %v319, 0.0
  %v415 = vmax.f32 %v322, 0.0
  %v416 = vmax.f32 %v324, 0.0
  %v417 = vmax.f32 %v327, 0.0
  %v418 = vmax.f32 %v329, 0.0
  %v419 = vmax.f32 %v332, 0.0
  %v420 = vmax.f32 %v334, 0.0
  %v421 = vmax.f32 %v337, 0.0
  %v422 = vmax.f32 %v339, 0.0
  %v423 = vmax.f32 %v342, 0.0
  %v424 = vmax.f32 %v344, 0.0
  %v425 = vmax.f32 %v347, 0.0
  %v426 = vmax.f32 %v349, 0.0
  %v427 = vmax.f32 %v352, 0.0
  %v428 = vmax.f32 %v354, 0.0
  %v429 = vmax.f32 %v357, 0.0
  %v430 = vmax.f32 %v359, 0.0
  %v431 = vmax.f32 %v362, 0.0
  %v432 = vmax.f32 %v364, 0.0
  %v433 = vmax.f32 %v367, 0.0
  %v434 = vmax.f32 %v369, 0.0
  %435 = vst [vmem:[%s3] sm:$0xff] %v371
  %436 = vst [vmem:[%s3 + $0x8] sm:$0xff] %v372
  %437 = vst [vmem:[%s3 + $0x10] sm:$0xff] %v373
  %438 = vst [vmem:[%s3 + $0x18] sm:$0xff] %v374
  %439 = vst [vmem:[%s3 + $0x20] sm:$0xff] %v375
  %440 = vst [vmem:[%s3 + $0x28] sm:$0xff] %v376
  %441 = vst [vmem:[%s3 + $0x30] sm:$0xff] %v377
  %442 = vst [vmem:[%s3 + $0x38] sm:$0xff] %v378
  %443 = vst [vmem:[%s3 + $0x40] sm:$0xff] %v379
  %444 = vst [vmem:[%s3 + $0x48] sm:$0xff] %v380
  %445 = vst [vmem:[%s3 + $0x50] sm:$0xff] %v381
  %446 = vst [vmem:[%s3 + $0x58] sm:$0xff] %v382
  %447 = vst [vmem:[%s3 + $0x60] sm:$0xff] %v383
  %448 = vst [vmem:[%s3 + $0x68] sm:$0xff] %v384
  %449 = vst [vmem:[%s3 + $0x70] sm:$0xff] %v385
  %450 = vst [vmem:[%s3 + $0x78] sm:$0xff] %v386
  %451 = vst [vmem:[%s3 + $0x80] sm:$0xff] %v387
  %452 = vst [vmem:[%s3 + $0x88] sm:$0xff] %v388
  %453 = vst [vmem:[%s3 + $0x90] sm:$0xff] %v389
  %454 = vst [vmem:[%s3 + $0x98] sm:$0xff] %v390
  %455 = vst [vmem:[%s3 + $0xa0] sm:$0xff] %v391
  %456 = vst [vmem:[%s3 + $0xa8] sm:$0xff] %v392
  %457 = vst [vmem:[%s3 + $0xb0] sm:$0xff] %v393
  %458 = vst [vmem:[%s3 + $0xb8] sm:$0xff] %v394
  %459 = vst [vmem:[%s3 + $0xc0] sm:$0xff] %v395
  %460 = vst [vmem:[%s3 + $0xc8] sm:$0xff] %v396
  %461 = vst [vmem:[%s3 + $0xd0] sm:$0xff] %v397
  %462 = vst [vmem:[%s3 + $0xd8] sm:$0xff] %v398
  %463 = vst [vmem:[%s3 + $0xe0] sm:$0xff] %v399
  %464 = vst [vmem:[%s3 + $0xe8] sm:$0xff] %v400
  %465 = vst [vmem:[%s3 + $0xf0] sm:$0xff] %v401
  %466 = vst [vmem:[%s3 + $0xf8] sm:$0xff] %v402
  %467 = vst [vmem:[%s3 + $0x100] sm:$0xff] %v403
  %468 = vst [vmem:[%s3 + $0x108] sm:$0xff] %v404
  %469 = vst [vmem:[%s3 + $0x110] sm:$0xff] %v405
  %470 = vst [vmem:[%s3 + $0x118] sm:$0xff] %v406
  %471 = vst [vmem:[%s3 + $0x120] sm:$0xff] %v407
  %472 = vst [vmem:[%s3 + $0x128] sm:$0xff] %v408
  %473 = vst [vmem:[%s3 + $0x130] sm:$0xff] %v409
  %474 = vst [vmem:[%s3 + $0x138] sm:$0xff] %v410
  %475 = vst [vmem:[%s3 + $0x140] sm:$0xff] %v411
  %476 = vst [vmem:[%s3 + $0x148] sm:$0xff] %v412
  %477 = vst [vmem:[%s3 + $0x150] sm:$0xff] %v413
  %478 = vst [vmem:[%s3 + $0x158] sm:$0xff] %v414
  %479 = vst [vmem:[%s3 + $0x160] sm:$0xff] %v415
  %480 = vst [vmem:[%s3 + $0x168] sm:$0xff] %v416
  %481 = vst [vmem:[%s3 + $0x170] sm:$0xff] %v417
  %482 = vst [vmem:[%s3 + $0x178] sm:$0xff] %v418
  %483 = vst [vmem:[%s3 + $0x180] sm:$0xff] %v419
  %484 = vst [vmem:[%s3 + $0x188] sm:$0xff] %v420
  %485 = vst [vmem:[%s3 + $0x190] sm:$0xff] %v421
  %486 = vst [vmem:[%s3 + $0x198] sm:$0xff] %v422
  %487 = vst [vmem:[%s3 + $0x1a0] sm:$0xff] %v423
  %488 = vst [vmem:[%s3 + $0x1a8] sm:$0xff] %v424
  %489 = vst [vmem:[%s3 + $0x1b0] sm:$0xff] %v425
  %490 = vst [vmem:[%s3 + $0x1b8] sm:$0xff] %v426
  %491 = vst [vmem:[%s3 + $0x1c0] sm:$0xff] %v427
  %492 = vst [vmem:[%s3 + $0x1c8] sm:$0xff] %v428
  %493 = vst [vmem:[%s3 + $0x1d0] sm:$0xff] %v429
  %494 = vst [vmem:[%s3 + $0x1d8] sm:$0xff] %v430
  %495 = vst [vmem:[%s3 + $0x1e0] sm:$0xff] %v431
  %496 = vst [vmem:[%s3 + $0x1e8] sm:$0xff] %v432
  %497 = vst [vmem:[%s3 + $0x1f0] sm:$0xff] %v433
  %498 = vst [vmem:[%s3 + $0x1f8] sm:$0xff] %v434
  // Predicated region
  $region14: #{irednet_indrnn_forward.38} parent=0 // pred_check
    _
  $region15: #{irednet_indrnn_forward.38} parent=0 // pred_check_branch
    %500 = sbr.rel (0) target = $region17
  $region16: #{irednet_indrnn_forward.38} parent=0 // pred_region
    _
  $region17: #{irednet_indrnn_forward.38} parent=0 // pred_fallthru
    _
  // Predicated region
  $region18: #{irednet_indrnn_forward.38} parent=0 // pred_check
    _
  $region19: #{irednet_indrnn_forward.38} parent=0 // pred_check_branch
    %502 = sbr.rel (0) target = $region21
  $region20: #{irednet_indrnn_forward.38} parent=0 // pred_region
    _
  $region21: #{irednet_indrnn_forward.38} parent=0 // pred_fallthru
    _

// kernel: irednet_indrnn_forward.40
$region0: #{irednet_indrnn_forward.40}
  #allocation0 [shape = 'u32[]', space=smem, size = 0x4, offset = 0x4, fixed_abs, tag = 'smem constant byte address 0x4 - core index']
  #allocation1 [shape = 'u32[72,128]{1,0:T(1,128)}', space=vmem, size = 0x9000, scoped, tag = 'internal scratch']
  %s0 = inlined_call_operand.vmem [shape: f32[512,160], index: 0, kind: input, shape index: {}]
  %s1 = inlined_call_operand.vmem [shape: f32[160,128], index: 1, kind: input, shape index: {}]
  %s2 = inlined_call_operand.vmem [shape: f32[1,128], index: 2, kind: input, shape index: {}]
  %s3 = inlined_call_operand.vmem [shape: f32[512,128], index: 3, kind: output, shape index: {}]
  %s4 = sld [smem:[#allocation0]]
  $region22: #{irednet_indrnn_forward.40} parent=0
    _
  %s6 = ssub.s32 1, %s4
  %s7 = scalar_select 0, %s6, %s4
  // Predicated region
  $region2: #{irednet_indrnn_forward.40} parent=0 // pred_check
    _
  $region3: #{irednet_indrnn_forward.40} parent=0 // pred_check_branch
    %9 = sbr.rel (0) target = $region5
  $region4: #{irednet_indrnn_forward.40} parent=0 // pred_region
    _
  $region5: #{irednet_indrnn_forward.40} parent=0 // pred_fallthru
    _
  // Predicated region
  $region6: #{irednet_indrnn_forward.40} parent=0 // pred_check
    _
  $region7: #{irednet_indrnn_forward.40} parent=0 // pred_check_branch
    %11 = sbr.rel (0) target = $region9
  $region8: #{irednet_indrnn_forward.40} parent=0 // pred_region
    _
  $region9: #{irednet_indrnn_forward.40} parent=0 // pred_fallthru
    _
  // Predicated region
  $region10: #{irednet_indrnn_forward.40} parent=0 // pred_check
    _
  $region11: #{irednet_indrnn_forward.40} parent=0 // pred_check_branch
    %13 = sbr.rel (0) target = $region13
  $region12: #{irednet_indrnn_forward.40} parent=0 // pred_region
    _
  $region13: #{irednet_indrnn_forward.40} parent=0 // pred_fallthru
    _
  %v15 = vld [vmem:[%s0] sm:$0xff]
  %v16 = vld [vmem:[%s0 + $0x8] sm:$0xff]
  %v17 = vld [vmem:[%s0 + $0x10] sm:$0xff]
  %v18 = vld [vmem:[%s0 + $0x18] sm:$0xff]
  %v19 = vld [vmem:[%s0 + $0x20] sm:$0xff]
  %v20 = vld [vmem:[%s0 + $0x28] sm:$0xff]
  %v21 = vld [vmem:[%s0 + $0x30] sm:$0xff]
  %v22 = vld [vmem:[%s0 + $0x38] sm:$0xff]
  %v23 = vld [vmem:[%s0 + $0x40] sm:$0xff]
  %v24 = vld [vmem:[%s0 + $0x48] sm:$0xff]
  %v25 = vld [vmem:[%s0 + $0x50] sm:$0xff]
  %v26 = vld [vmem:[%s0 + $0x58] sm:$0xff]
  %v27 = vld [vmem:[%s0 + $0x60] sm:$0xff]
  %v28 = vld [vmem:[%s0 + $0x68] sm:$0xff]
  %v29 = vld [vmem:[%s0 + $0x70] sm:$0xff]
  %v30 = vld [vmem:[%s0 + $0x78] sm:$0xff]
  %v31 = vld [vmem:[%s0 + $0x80] sm:$0xff]
  %v32 = vld [vmem:[%s0 + $0x88] sm:$0xff]
  %v33 = vld [vmem:[%s0 + $0x90] sm:$0xff]
  %v34 = vld [vmem:[%s0 + $0x98] sm:$0xff]
  %v35 = vld [vmem:[%s0 + $0xa0] sm:$0xff]
  %v36 = vld [vmem:[%s0 + $0xa8] sm:$0xff]
  %v37 = vld [vmem:[%s0 + $0xb0] sm:$0xff]
  %v38 = vld [vmem:[%s0 + $0xb8] sm:$0xff]
  %v39 = vld [vmem:[%s0 + $0xc0] sm:$0xff]
  %v40 = vld [vmem:[%s0 + $0xc8] sm:$0xff]
  %v41 = vld [vmem:[%s0 + $0xd0] sm:$0xff]
  %v42 = vld [vmem:[%s0 + $0xd8] sm:$0xff]
  %v43 = vld [vmem:[%s0 + $0xe0] sm:$0xff]
  %v44 = vld [vmem:[%s0 + $0xe8] sm:$0xff]
  %v45 = vld [vmem:[%s0 + $0xf0] sm:$0xff]
  %v46 = vld [vmem:[%s0 + $0xf8] sm:$0xff]
  %v47 = vld [vmem:[%s0 + $0x100] sm:$0xff]
  %v48 = vld [vmem:[%s0 + $0x108] sm:$0xff]
  %v49 = vld [vmem:[%s0 + $0x110] sm:$0xff]
  %v50 = vld [vmem:[%s0 + $0x118] sm:$0xff]
  %v51 = vld [vmem:[%s0 + $0x120] sm:$0xff]
  %v52 = vld [vmem:[%s0 + $0x128] sm:$0xff]
  %v53 = vld [vmem:[%s0 + $0x130] sm:$0xff]
  %v54 = vld [vmem:[%s0 + $0x138] sm:$0xff]
  %v55 = vld [vmem:[%s0 + $0x140] sm:$0xff]
  %v56 = vld [vmem:[%s0 + $0x148] sm:$0xff]
  %v57 = vld [vmem:[%s0 + $0x150] sm:$0xff]
  %v58 = vld [vmem:[%s0 + $0x158] sm:$0xff]
  %v59 = vld [vmem:[%s0 + $0x160] sm:$0xff]
  %v60 = vld [vmem:[%s0 + $0x168] sm:$0xff]
  %v61 = vld [vmem:[%s0 + $0x170] sm:$0xff]
  %v62 = vld [vmem:[%s0 + $0x178] sm:$0xff]
  %v63 = vld [vmem:[%s0 + $0x180] sm:$0xff]
  %v64 = vld [vmem:[%s0 + $0x188] sm:$0xff]
  %v65 = vld [vmem:[%s0 + $0x190] sm:$0xff]
  %v66 = vld [vmem:[%s0 + $0x198] sm:$0xff]
  %v67 = vld [vmem:[%s0 + $0x1a0] sm:$0xff]
  %v68 = vld [vmem:[%s0 + $0x1a8] sm:$0xff]
  %v69 = vld [vmem:[%s0 + $0x1b0] sm:$0xff]
  %v70 = vld [vmem:[%s0 + $0x1b8] sm:$0xff]
  %v71 = vld [vmem:[%s0 + $0x1c0] sm:$0xff]
  %v72 = vld [vmem:[%s0 + $0x1c8] sm:$0xff]
  %v73 = vld [vmem:[%s0 + $0x1d0] sm:$0xff]
  %v74 = vld [vmem:[%s0 + $0x1d8] sm:$0xff]
  %v75 = vld [vmem:[%s0 + $0x1e0] sm:$0xff]
  %v76 = vld [vmem:[%s0 + $0x1e8] sm:$0xff]
  %v77 = vld [vmem:[%s0 + $0x1f0] sm:$0xff]
  %v78 = vld [vmem:[%s0 + $0x1f8] sm:$0xff]
  %v79 = vld [vmem:[%s0 + $0x200] sm:$0xff]
  %v80 = vld [vmem:[%s0 + $0x208] sm:$0xff]
  %v81 = vld [vmem:[%s0 + $0x210] sm:$0xff]
  %v82 = vld [vmem:[%s0 + $0x218] sm:$0xff]
  %v83 = vld [vmem:[%s0 + $0x220] sm:$0xff]
  %v84 = vld [vmem:[%s0 + $0x228] sm:$0xff]
  %v85 = vld [vmem:[%s0 + $0x230] sm:$0xff]
  %v86 = vld [vmem:[%s0 + $0x238] sm:$0xff]
  %v87 = vld [vmem:[%s0 + $0x240] sm:$0xff]
  %v88 = vld [vmem:[%s0 + $0x248] sm:$0xff]
  %v89 = vld [vmem:[%s0 + $0x250] sm:$0xff]
  %v90 = vld [vmem:[%s0 + $0x258] sm:$0xff]
  %v91 = vld [vmem:[%s0 + $0x260] sm:$0xff]
  %v92 = vld [vmem:[%s0 + $0x268] sm:$0xff]
  %v93 = vld [vmem:[%s0 + $0x270] sm:$0xff]
  %v94 = vld [vmem:[%s0 + $0x278] sm:$0xff]
  %v95 = vld [vmem:[%s0 + $0x280] sm:$0xff]
  %v96 = vld [vmem:[%s0 + $0x288] sm:$0xff]
  %v97 = vld [vmem:[%s0 + $0x290] sm:$0xff]
  %v98 = vld [vmem:[%s0 + $0x298] sm:$0xff]
  %v99 = vld [vmem:[%s0 + $0x2a0] sm:$0xff]
  %v100 = vld [vmem:[%s0 + $0x2a8] sm:$0xff]
  %v101 = vld [vmem:[%s0 + $0x2b0] sm:$0xff]
  %v102 = vld [vmem:[%s0 + $0x2b8] sm:$0xff]
  %v103 = vld [vmem:[%s0 + $0x2c0] sm:$0xff]
  %v104 = vld [vmem:[%s0 + $0x2c8] sm:$0xff]
  %v105 = vld [vmem:[%s0 + $0x2d0] sm:$0xff]
  %v106 = vld [vmem:[%s0 + $0x2d8] sm:$0xff]
  %v107 = vld [vmem:[%s0 + $0x2e0] sm:$0xff]
  %v108 = vld [vmem:[%s0 + $0x2e8] sm:$0xff]
  %v109 = vld [vmem:[%s0 + $0x2f0] sm:$0xff]
  %v110 = vld [vmem:[%s0 + $0x2f8] sm:$0xff]
  %v111 = vld [vmem:[%s0 + $0x300] sm:$0xff]
  %v112 = vld [vmem:[%s0 + $0x308] sm:$0xff]
  %v113 = vld [vmem:[%s0 + $0x310] sm:$0xff]
  %v114 = vld [vmem:[%s0 + $0x318] sm:$0xff]
  %v115 = vld [vmem:[%s0 + $0x320] sm:$0xff]
  %v116 = vld [vmem:[%s0 + $0x328] sm:$0xff]
  %v117 = vld [vmem:[%s0 + $0x330] sm:$0xff]
  %v118 = vld [vmem:[%s0 + $0x338] sm:$0xff]
  %v119 = vld [vmem:[%s0 + $0x340] sm:$0xff]
  %v120 = vld [vmem:[%s0 + $0x348] sm:$0xff]
  %v121 = vld [vmem:[%s0 + $0x350] sm:$0xff]
  %v122 = vld [vmem:[%s0 + $0x358] sm:$0xff]
  %v123 = vld [vmem:[%s0 + $0x360] sm:$0xff]
  %v124 = vld [vmem:[%s0 + $0x368] sm:$0xff]
  %v125 = vld [vmem:[%s0 + $0x370] sm:$0xff]
  %v126 = vld [vmem:[%s0 + $0x378] sm:$0xff]
  %v127 = vld [vmem:[%s0 + $0x380] sm:$0xff]
  %v128 = vld [vmem:[%s0 + $0x388] sm:$0xff]
  %v129 = vld [vmem:[%s0 + $0x390] sm:$0xff]
  %v130 = vld [vmem:[%s0 + $0x398] sm:$0xff]
  %v131 = vld [vmem:[%s0 + $0x3a0] sm:$0xff]
  %v132 = vld [vmem:[%s0 + $0x3a8] sm:$0xff]
  %v133 = vld [vmem:[%s0 + $0x3b0] sm:$0xff]
  %v134 = vld [vmem:[%s0 + $0x3b8] sm:$0xff]
  %v135 = vld [vmem:[%s0 + $0x3c0] sm:$0xff]
  %v136 = vld [vmem:[%s0 + $0x3c8] sm:$0xff]
  %v137 = vld [vmem:[%s0 + $0x3d0] sm:$0xff]
  %v138 = vld [vmem:[%s0 + $0x3d8] sm:$0xff]
  %v139 = vld [vmem:[%s0 + $0x3e0] sm:$0xff]
  %v140 = vld [vmem:[%s0 + $0x3e8] sm:$0xff]
  %v141 = vld [vmem:[%s0 + $0x3f0] sm:$0xff]
  %v142 = vld [vmem:[%s0 + $0x3f8] sm:$0xff]
  %v143 = vmax.f32 %v15, 0.0
  %v144 = vmax.f32 %v16, 0.0
  %v145 = vmax.f32 %v17, 0.0
  %v146 = vmax.f32 %v18, 0.0
  %v147 = vmax.f32 %v19, 0.0
  %v148 = vmax.f32 %v20, 0.0
  %v149 = vmax.f32 %v21, 0.0
  %v150 = vmax.f32 %v22, 0.0
  %v151 = vmax.f32 %v23, 0.0
  %v152 = vmax.f32 %v24, 0.0
  %v153 = vmax.f32 %v25, 0.0
  %v154 = vmax.f32 %v26, 0.0
  %v155 = vmax.f32 %v27, 0.0
  %v156 = vmax.f32 %v28, 0.0
  %v157 = vmax.f32 %v29, 0.0
  %v158 = vmax.f32 %v30, 0.0
  %v159 = vmax.f32 %v31, 0.0
  %v160 = vmax.f32 %v32, 0.0
  %v161 = vmax.f32 %v33, 0.0
  %v162 = vmax.f32 %v34, 0.0
  %v163 = vmax.f32 %v35, 0.0
  %v164 = vmax.f32 %v36, 0.0
  %v165 = vmax.f32 %v37, 0.0
  %v166 = vmax.f32 %v38, 0.0
  %v167 = vmax.f32 %v39, 0.0
  %v168 = vmax.f32 %v40, 0.0
  %v169 = vmax.f32 %v41, 0.0
  %v170 = vmax.f32 %v42, 0.0
  %v171 = vmax.f32 %v43, 0.0
  %v172 = vmax.f32 %v44, 0.0
  %v173 = vmax.f32 %v45, 0.0
  %v174 = vmax.f32 %v46, 0.0
  %v175 = vmax.f32 %v47, 0.0
  %v176 = vmax.f32 %v48, 0.0
  %v177 = vmax.f32 %v49, 0.0
  %v178 = vmax.f32 %v50, 0.0
  %v179 = vmax.f32 %v51, 0.0
  %v180 = vmax.f32 %v52, 0.0
  %v181 = vmax.f32 %v53, 0.0
  %v182 = vmax.f32 %v54, 0.0
  %v183 = vmax.f32 %v55, 0.0
  %v184 = vmax.f32 %v56, 0.0
  %v185 = vmax.f32 %v57, 0.0
  %v186 = vmax.f32 %v58, 0.0
  %v187 = vmax.f32 %v59, 0.0
  %v188 = vmax.f32 %v60, 0.0
  %v189 = vmax.f32 %v61, 0.0
  %v190 = vmax.f32 %v62, 0.0
  %v191 = vmax.f32 %v63, 0.0
  %v192 = vmax.f32 %v64, 0.0
  %v193 = vmax.f32 %v65, 0.0
  %v194 = vmax.f32 %v66, 0.0
  %v195 = vmax.f32 %v67, 0.0
  %v196 = vmax.f32 %v68, 0.0
  %v197 = vmax.f32 %v69, 0.0
  %v198 = vmax.f32 %v70, 0.0
  %v199 = vmax.f32 %v71, 0.0
  %v200 = vmax.f32 %v72, 0.0
  %v201 = vmax.f32 %v73, 0.0
  %v202 = vmax.f32 %v74, 0.0
  %v203 = vmax.f32 %v75, 0.0
  %v204 = vmax.f32 %v76, 0.0
  %v205 = vmax.f32 %v77, 0.0
  %v206 = vmax.f32 %v78, 0.0
  %v207 = vmax.f32 %v79, 0.0
  %v208 = vmax.f32 %v80, 0.0
  %v209 = vmax.f32 %v81, 0.0
  %v210 = vmax.f32 %v82, 0.0
  %v211 = vmax.f32 %v83, 0.0
  %v212 = vmax.f32 %v84, 0.0
  %v213 = vmax.f32 %v85, 0.0
  %v214 = vmax.f32 %v86, 0.0
  %v215 = vmax.f32 %v87, 0.0
  %v216 = vmax.f32 %v88, 0.0
  %v217 = vmax.f32 %v89, 0.0
  %v218 = vmax.f32 %v90, 0.0
  %v219 = vmax.f32 %v91, 0.0
  %v220 = vmax.f32 %v92, 0.0
  %v221 = vmax.f32 %v93, 0.0
  %v222 = vmax.f32 %v94, 0.0
  %v223 = vmax.f32 %v95, 0.0
  %v224 = vmax.f32 %v96, 0.0
  %v225 = vmax.f32 %v97, 0.0
  %v226 = vmax.f32 %v98, 0.0
  %v227 = vmax.f32 %v99, 0.0
  %v228 = vmax.f32 %v100, 0.0
  %v229 = vmax.f32 %v101, 0.0
  %v230 = vmax.f32 %v102, 0.0
  %v231 = vmax.f32 %v103, 0.0
  %v232 = vmax.f32 %v104, 0.0
  %v233 = vmax.f32 %v105, 0.0
  %v234 = vmax.f32 %v106, 0.0
  %v235 = vmax.f32 %v107, 0.0
  %v236 = vmax.f32 %v108, 0.0
  %v237 = vmax.f32 %v109, 0.0
  %v238 = vmax.f32 %v110, 0.0
  %v239 = vmax.f32 %v111, 0.0
  %v240 = vmax.f32 %v112, 0.0
  %v241 = vmax.f32 %v113, 0.0
  %v242 = vmax.f32 %v114, 0.0
  %v243 = vmax.f32 %v115, 0.0
  %v244 = vmax.f32 %v116, 0.0
  %v245 = vmax.f32 %v117, 0.0
  %v246 = vmax.f32 %v118, 0.0
  %v247 = vmax.f32 %v119, 0.0
  %v248 = vmax.f32 %v120, 0.0
  %v249 = vmax.f32 %v121, 0.0
  %v250 = vmax.f32 %v122, 0.0
  %v251 = vmax.f32 %v123, 0.0
  %v252 = vmax.f32 %v124, 0.0
  %v253 = vmax.f32 %v125, 0.0
  %v254 = vmax.f32 %v126, 0.0
  %v255 = vmax.f32 %v127, 0.0
  %v256 = vmax.f32 %v128, 0.0
  %v257 = vmax.f32 %v129, 0.0
  %v258 = vmax.f32 %v130, 0.0
  %v259 = vmax.f32 %v131, 0.0
  %v260 = vmax.f32 %v132, 0.0
  %v261 = vmax.f32 %v133, 0.0
  %v262 = vmax.f32 %v134, 0.0
  %v263 = vmax.f32 %v135, 0.0
  %v264 = vmax.f32 %v136, 0.0
  %v265 = vmax.f32 %v137, 0.0
  %v266 = vmax.f32 %v138, 0.0
  %v267 = vmax.f32 %v139, 0.0
  %v268 = vmax.f32 %v140, 0.0
  %v269 = vmax.f32 %v141, 0.0
  %v270 = vmax.f32 %v142, 0.0
  %v271 = vpack.c.bf16 %v145, %v143
  %v272 = vpack.c.bf16 %v146, %v144
  %v273 = vpack.c.bf16 %v149, %v147
  %v274 = vpack.c.bf16 %v150, %v148
  %v275 = vpack.c.bf16 %v153, %v151
  %v276 = vpack.c.bf16 %v154, %v152
  %v277 = vpack.c.bf16 %v157, %v155
  %v278 = vpack.c.bf16 %v158, %v156
  %v279 = vpack.c.bf16 %v161, %v159
  %v280 = vpack.c.bf16 %v162, %v160
  %v281 = vpack.c.bf16 %v165, %v163
  %v282 = vpack.c.bf16 %v166, %v164
  %v283 = vpack.c.bf16 %v169, %v167
  %v284 = vpack.c.bf16 %v170, %v168
  %v285 = vpack.c.bf16 %v173, %v171
  %v286 = vpack.c.bf16 %v174, %v172
  %v287 = vpack.c.bf16 %v177, %v175
  %v288 = vpack.c.bf16 %v178, %v176
  %v289 = vpack.c.bf16 %v181, %v179
  %v290 = vpack.c.bf16 %v182, %v180
  %v291 = vpack.c.bf16 %v185, %v183
  %v292 = vpack.c.bf16 %v186, %v184
  %v293 = vpack.c.bf16 %v189, %v187
  %v294 = vpack.c.bf16 %v190, %v188
  %v295 = vpack.c.bf16 %v193, %v191
  %v296 = vpack.c.bf16 %v194, %v192
  %v297 = vpack.c.bf16 %v197, %v195
  %v298 = vpack.c.bf16 %v198, %v196
  %v299 = vpack.c.bf16 %v201, %v199
  %v300 = vpack.c.bf16 %v202, %v200
  %v301 = vpack.c.bf16 %v205, %v203
  %v302 = vpack.c.bf16 %v206, %v204
  %v303 = vpack.c.bf16 %v209, %v207
  %v304 = vpack.c.bf16 %v210, %v208
  %v305 = vpack.c.bf16 %v213, %v211
  %v306 = vpack.c.bf16 %v214, %v212
  %v307 = vpack.c.bf16 %v217, %v215
  %v308 = vpack.c.bf16 %v218, %v216
  %v309 = vpack.c.bf16 %v221, %v219
  %v310 = vpack.c.bf16 %v222, %v220
  %v311 = vpack.c.bf16 %v225, %v223
  %v312 = vpack.c.bf16 %v226, %v224
  %v313 = vpack.c.bf16 %v229, %v227
  %v314 = vpack.c.bf16 %v230, %v228
  %v315 = vpack.c.bf16 %v233, %v231
  %v316 = vpack.c.bf16 %v234, %v232
  %v317 = vpack.c.bf16 %v237, %v235
  %v318 = vpack.c.bf16 %v238, %v236
  %v319 = vpack.c.bf16 %v241, %v239
  %v320 = vpack.c.bf16 %v242, %v240
  %v321 = vpack.c.bf16 %v245, %v243
  %v322 = vpack.c.bf16 %v246, %v244
  %v323 = vpack.c.bf16 %v249, %v247
  %v324 = vpack.c.bf16 %v250, %v248
  %v325 = vpack.c.bf16 %v253, %v251
  %v326 = vpack.c.bf16 %v254, %v252
  %v327 = vpack.c.bf16 %v257, %v255
  %v328 = vpack.c.bf16 %v258, %v256
  %v329 = vpack.c.bf16 %v261, %v259
  %v330 = vpack.c.bf16 %v262, %v260
  %v331 = vpack.c.bf16 %v265, %v263
  %v332 = vpack.c.bf16 %v266, %v264
  %v333 = vpack.c.bf16 %v269, %v267
  %v334 = vpack.c.bf16 %v270, %v268
  %v335 = vld [vmem:[%s1] sm:$0xff]
  %v336 = vld [vmem:[%s1 + $0x8] sm:$0xff]
  %v337 = vld [vmem:[%s1 + $0x10] sm:$0xff]
  %v338 = vld [vmem:[%s1 + $0x18] sm:$0xff]
  %v339 = vld [vmem:[%s1 + $0x20] sm:$0xff]
  %v340 = vld [vmem:[%s1 + $0x28] sm:$0xff]
  %v341 = vld [vmem:[%s1 + $0x30] sm:$0xff]
  %v342 = vld [vmem:[%s1 + $0x38] sm:$0xff]
  %v343 = vld [vmem:[%s1 + $0x40] sm:$0xff]
  %v344 = vld [vmem:[%s1 + $0x48] sm:$0xff]
  %v345 = vld [vmem:[%s1 + $0x50] sm:$0xff]
  %v346 = vld [vmem:[%s1 + $0x58] sm:$0xff]
  %v347 = vld [vmem:[%s1 + $0x60] sm:$0xff]
  %v348 = vld [vmem:[%s1 + $0x68] sm:$0xff]
  %v349 = vld [vmem:[%s1 + $0x70] sm:$0xff]
  %v350 = vld [vmem:[%s1 + $0x78] sm:$0xff]
  %v351 = vld [vmem:[%s1 + $0x80] sm:$0xff]
  %v352 = vld [vmem:[%s1 + $0x88] sm:$0xff]
  %v353 = vld [vmem:[%s1 + $0x90] sm:$0xff]
  %v354 = vld [vmem:[%s1 + $0x98] sm:$0xff]
  %v355 = vpack.c.bf16 %v336, %v335
  %v356 = vpack.c.bf16 %v338, %v337
  %v357 = vpack.c.bf16 %v340, %v339
  %v358 = vpack.c.bf16 %v342, %v341
  %v359 = vpack.c.bf16 %v344, %v343
  %v360 = vpack.c.bf16 %v346, %v345
  %v361 = vpack.c.bf16 %v348, %v347
  %v362 = vpack.c.bf16 %v350, %v349
  %v363 = vpack.c.bf16 %v352, %v351
  %v364 = vpack.c.bf16 %v354, %v353
  %v365 = vld [vmem:[%s2] sm:$0x1]
  %v367 = vperm.slane %v365, 0
  %vm369 = vcmask 261120
  %v371 = vsel %vm369, %v272, 0
  %v374 = vsel %vm369, %v274, 0
  %v377 = vsel %vm369, %v276, 0
  %v380 = vsel %vm369, %v278, 0
  %v383 = vsel %vm369, %v280, 0
  %v386 = vsel %vm369, %v282, 0
  %v389 = vsel %vm369, %v284, 0
  %v392 = vsel %vm369, %v286, 0
  %v395 = vsel %vm369, %v288, 0
  %v398 = vsel %vm369, %v290, 0
  %v401 = vsel %vm369, %v292, 0
  %v404 = vsel %vm369, %v294, 0
  %v407 = vsel %vm369, %v296, 0
  %v410 = vsel %vm369, %v298, 0
  %v413 = vsel %vm369, %v300, 0
  %v416 = vsel %vm369, %v302, 0
  %v419 = vsel %vm369, %v304, 0
  %v422 = vsel %vm369, %v306, 0
  %v425 = vsel %vm369, %v308, 0
  %v428 = vsel %vm369, %v310, 0
  %v431 = vsel %vm369, %v312, 0
  %v434 = vsel %vm369, %v314, 0
  %v437 = vsel %vm369, %v316, 0
  %v440 = vsel %vm369, %v318, 0
  %v443 = vsel %vm369, %v320, 0
  %v446 = vsel %vm369, %v322, 0
  %v449 = vsel %vm369, %v324, 0
  %v452 = vsel %vm369, %v326, 0
  %v455 = vsel %vm369, %v328, 0
  %v458 = vsel %vm369, %v330, 0
  %v461 = vsel %vm369, %v332, 0
  %v464 = vsel %vm369, %v334, 0
  %466 = vmatpush.bf16.msra.mxu0 %v362
  %467 = vmatpush.bf16.msra.mxu0 %v361
  %468 = vmatpush.bf16.msra.mxu0 %v360
  %469 = vmatpush.bf16.msra.mxu0 %v359
  %470 = vmatpush.bf16.msra.mxu0 %v358
  %471 = vmatpush.bf16.msra.mxu0 %v357
  %472 = vmatpush.bf16.msra.mxu0 %v356
  %473 = vmatpush.bf16.msra.mxu0 %v355
  %474 = vmatmul.bf16.gmra.mxu0 %v271
  %v475 = vpop.f32.mrf.mxu0
  %v476 = vadd.f32 %v367, %v475
  %v477 = vpop.f32.mrf.mxu0
  %v478 = vadd.f32 %v367, %v477
  %479 = vmatmul.bf16.gmra.mxu0 %v273
  %v480 = vpop.f32.mrf.mxu0
  %v481 = vadd.f32 %v367, %v480
  %v482 = vpop.f32.mrf.mxu0
  %v483 = vadd.f32 %v367, %v482
  %484 = vmatmul.bf16.gmra.mxu0 %v275
  %v485 = vpop.f32.mrf.mxu0
  %v486 = vadd.f32 %v367, %v485
  %v487 = vpop.f32.mrf.mxu0
  %v488 = vadd.f32 %v367, %v487
  %489 = vmatmul.bf16.gmra.mxu0 %v277
  %v490 = vpop.f32.mrf.mxu0
  %v491 = vadd.f32 %v367, %v490
  %v492 = vpop.f32.mrf.mxu0
  %v493 = vadd.f32 %v367, %v492
  %494 = vmatmul.bf16.gmra.mxu0 %v279
  %v495 = vpop.f32.mrf.mxu0
  %v496 = vadd.f32 %v367, %v495
  %v497 = vpop.f32.mrf.mxu0
  %v498 = vadd.f32 %v367, %v497
  %499 = vmatmul.bf16.gmra.mxu0 %v281
  %v500 = vpop.f32.mrf.mxu0
  %v501 = vadd.f32 %v367, %v500
  %v502 = vpop.f32.mrf.mxu0
  %v503 = vadd.f32 %v367, %v502
  %504 = vmatmul.bf16.gmra.mxu0 %v283
  %v505 = vpop.f32.mrf.mxu0
  %v506 = vadd.f32 %v367, %v505
  %v507 = vpop.f32.mrf.mxu0
  %v508 = vadd.f32 %v367, %v507
  %509 = vmatmul.bf16.gmra.mxu0 %v285
  %v510 = vpop.f32.mrf.mxu0
  %v511 = vadd.f32 %v367, %v510
  %v512 = vpop.f32.mrf.mxu0
  %v513 = vadd.f32 %v367, %v512
  %514 = vmatmul.bf16.gmra.mxu0 %v287
  %v515 = vpop.f32.mrf.mxu0
  %v516 = vadd.f32 %v367, %v515
  %v517 = vpop.f32.mrf.mxu0
  %v518 = vadd.f32 %v367, %v517
  %519 = vmatmul.bf16.gmra.mxu0 %v289
  %v520 = vpop.f32.mrf.mxu0
  %v521 = vadd.f32 %v367, %v520
  %v522 = vpop.f32.mrf.mxu0
  %v523 = vadd.f32 %v367, %v522
  %524 = vmatmul.bf16.gmra.mxu0 %v291
  %v525 = vpop.f32.mrf.mxu0
  %v526 = vadd.f32 %v367, %v525
  %v527 = vpop.f32.mrf.mxu0
  %v528 = vadd.f32 %v367, %v527
  %529 = vmatmul.bf16.gmra.mxu0 %v293
  %v530 = vpop.f32.mrf.mxu0
  %v531 = vadd.f32 %v367, %v530
  %v532 = vpop.f32.mrf.mxu0
  %v533 = vadd.f32 %v367, %v532
  %534 = vmatmul.bf16.gmra.mxu0 %v295
  %v535 = vpop.f32.mrf.mxu0
  %v536 = vadd.f32 %v367, %v535
  %v537 = vpop.f32.mrf.mxu0
  %v538 = vadd.f32 %v367, %v537
  %539 = vmatmul.bf16.gmra.mxu0 %v297
  %v540 = vpop.f32.mrf.mxu0
  %v541 = vadd.f32 %v367, %v540
  %v542 = vpop.f32.mrf.mxu0
  %v543 = vadd.f32 %v367, %v542
  %544 = vmatmul.bf16.gmra.mxu0 %v299
  %v545 = vpop.f32.mrf.mxu0
  %v546 = vadd.f32 %v367, %v545
  %v547 = vpop.f32.mrf.mxu0
  %v548 = vadd.f32 %v367, %v547
  %549 = vmatmul.bf16.gmra.mxu0 %v301
  %v550 = vpop.f32.mrf.mxu0
  %v551 = vadd.f32 %v367, %v550
  %v552 = vpop.f32.mrf.mxu0
  %v553 = vadd.f32 %v367, %v552
  %554 = vmatmul.bf16.gmra.mxu0 %v303
  %v555 = vpop.f32.mrf.mxu0
  %v556 = vadd.f32 %v367, %v555
  %v557 = vpop.f32.mrf.mxu0
  %v558 = vadd.f32 %v367, %v557
  %559 = vmatmul.bf16.gmra.mxu0 %v305
  %v560 = vpop.f32.mrf.mxu0
  %v561 = vadd.f32 %v367, %v560
  %v562 = vpop.f32.mrf.mxu0
  %v563 = vadd.f32 %v367, %v562
  %564 = vmatmul.bf16.gmra.mxu0 %v307
  %v565 = vpop.f32.mrf.mxu0
  %v566 = vadd.f32 %v367, %v565
  %v567 = vpop.f32.mrf.mxu0
  %v568 = vadd.f32 %v367, %v567
  %569 = vmatmul.bf16.gmra.mxu0 %v309
  %v570 = vpop.f32.mrf.mxu0
  %v571 = vadd.f32 %v367, %v570
  %v572 = vpop.f32.mrf.mxu0
  %v573 = vadd.f32 %v367, %v572
  %574 = vmatmul.bf16.gmra.mxu0 %v311
  %v575 = vpop.f32.mrf.mxu0
  %v576 = vadd.f32 %v367, %v575
  %v577 = vpop.f32.mrf.mxu0
  %v578 = vadd.f32 %v367, %v577
  %579 = vmatmul.bf16.gmra.mxu0 %v313
  %v580 = vpop.f32.mrf.mxu0
  %v581 = vadd.f32 %v367, %v580
  %v582 = vpop.f32.mrf.mxu0
  %v583 = vadd.f32 %v367, %v582
  %584 = vmatmul.bf16.gmra.mxu0 %v315
  %v585 = vpop.f32.mrf.mxu0
  %v586 = vadd.f32 %v367, %v585
  %v587 = vpop.f32.mrf.mxu0
  %v588 = vadd.f32 %v367, %v587
  %589 = vmatmul.bf16.gmra.mxu0 %v317
  %v590 = vpop.f32.mrf.mxu0
  %v591 = vadd.f32 %v367, %v590
  %v592 = vpop.f32.mrf.mxu0
  %v593 = vadd.f32 %v367, %v592
  %594 = vmatmul.bf16.gmra.mxu0 %v319
  %v595 = vpop.f32.mrf.mxu0
  %v596 = vadd.f32 %v367, %v595
  %v597 = vpop.f32.mrf.mxu0
  %v598 = vadd.f32 %v367, %v597
  %599 = vmatmul.bf16.gmra.mxu0 %v321
  %v600 = vpop.f32.mrf.mxu0
  %v601 = vadd.f32 %v367, %v600
  %v602 = vpop.f32.mrf.mxu0
  %v603 = vadd.f32 %v367, %v602
  %604 = vmatmul.bf16.gmra.mxu0 %v323
  %v605 = vpop.f32.mrf.mxu0
  %v606 = vadd.f32 %v367, %v605
  %v607 = vpop.f32.mrf.mxu0
  %v608 = vadd.f32 %v367, %v607
  %609 = vmatmul.bf16.gmra.mxu0 %v325
  %v610 = vpop.f32.mrf.mxu0
  %v611 = vadd.f32 %v367, %v610
  %v612 = vpop.f32.mrf.mxu0
  %v613 = vadd.f32 %v367, %v612
  %614 = vmatmul.bf16.gmra.mxu0 %v327
  %v615 = vpop.f32.mrf.mxu0
  %v616 = vadd.f32 %v367, %v615
  %v617 = vpop.f32.mrf.mxu0
  %v618 = vadd.f32 %v367, %v617
  %619 = vmatmul.bf16.gmra.mxu0 %v329
  %v620 = vpop.f32.mrf.mxu0
  %v621 = vadd.f32 %v367, %v620
  %v622 = vpop.f32.mrf.mxu0
  %v623 = vadd.f32 %v367, %v622
  %624 = vmatmul.bf16.gmra.mxu0 %v331
  %v625 = vpop.f32.mrf.mxu0
  %v626 = vadd.f32 %v367, %v625
  %v627 = vpop.f32.mrf.mxu0
  %v628 = vadd.f32 %v367, %v627
  %629 = vmatmul.bf16.gmra.mxu0 %v333
  %v630 = vpop.f32.mrf.mxu0
  %v631 = vadd.f32 %v367, %v630
  %v632 = vpop.f32.mrf.mxu0
  %v633 = vadd.f32 %v367, %v632
  %634 = vdwg.mxu0
  %635 = vmatpush.bf16.msra.mxu0 0
  %636 = vmatpush.bf16.msra.mxu0 0
  %637 = vmatpush.bf16.msra.mxu0 0
  %638 = vmatpush.bf16.msra.mxu0 0
  %639 = vmatpush.bf16.msra.mxu0 0
  %640 = vmatpush.bf16.msra.mxu0 0
  %641 = vmatpush.bf16.msra.mxu0 %v364
  %642 = vmatpush.bf16.msra.mxu0 %v363
  %643 = vmatmul.bf16.gmra.mxu0 %v371
  %v644 = vpop.f32.mrf.mxu0
  %v645 = vadd.f32 %v476, %v644
  %v646 = vpop.f32.mrf.mxu0
  %v647 = vadd.f32 %v478, %v646
  %648 = vmatmul.bf16.gmra.mxu0 %v374
  %v649 = vpop.f32.mrf.mxu0
  %v650 = vadd.f32 %v481, %v649
  %v651 = vpop.f32.mrf.mxu0
  %v652 = vadd.f32 %v483, %v651
  %653 = vmatmul.bf16.gmra.mxu0 %v377
  %v654 = vpop.f32.mrf.mxu0
  %v655 = vadd.f32 %v486, %v654
  %v656 = vpop.f32.mrf.mxu0
  %v657 = vadd.f32 %v488, %v656
  %658 = vmatmul.bf16.gmra.mxu0 %v380
  %v659 = vpop.f32.mrf.mxu0
  %v660 = vadd.f32 %v491, %v659
  %v661 = vpop.f32.mrf.mxu0
  %v662 = vadd.f32 %v493, %v661
  %663 = vmatmul.bf16.gmra.mxu0 %v383
  %v664 = vpop.f32.mrf.mxu0
  %v665 = vadd.f32 %v496, %v664
  %v666 = vpop.f32.mrf.mxu0
  %v667 = vadd.f32 %v498, %v666
  %668 = vmatmul.bf16.gmra.mxu0 %v386
  %v669 = vpop.f32.mrf.mxu0
  %v670 = vadd.f32 %v501, %v669
  %v671 = vpop.f32.mrf.mxu0
  %v672 = vadd.f32 %v503, %v671
  %673 = vmatmul.bf16.gmra.mxu0 %v389
  %v674 = vpop.f32.mrf.mxu0
  %v675 = vadd.f32 %v506, %v674
  %v676 = vpop.f32.mrf.mxu0
  %v677 = vadd.f32 %v508, %v676
  %678 = vmatmul.bf16.gmra.mxu0 %v392
  %v679 = vpop.f32.mrf.mxu0
  %v680 = vadd.f32 %v511, %v679
  %v681 = vpop.f32.mrf.mxu0
  %v682 = vadd.f32 %v513, %v681
  %683 = vmatmul.bf16.gmra.mxu0 %v395
  %v684 = vpop.f32.mrf.mxu0
  %v685 = vadd.f32 %v516, %v684
  %v686 = vpop.f32.mrf.mxu0
  %v687 = vadd.f32 %v518, %v686
  %688 = vmatmul.bf16.gmra.mxu0 %v398
  %v689 = vpop.f32.mrf.mxu0
  %v690 = vadd.f32 %v521, %v689
  %v691 = vpop.f32.mrf.mxu0
  %v692 = vadd.f32 %v523, %v691
  %693 = vmatmul.bf16.gmra.mxu0 %v401
  %v694 = vpop.f32.mrf.mxu0
  %v695 = vadd.f32 %v526, %v694
  %v696 = vpop.f32.mrf.mxu0
  %v697 = vadd.f32 %v528, %v696
  %698 = vmatmul.bf16.gmra.mxu0 %v404
  %v699 = vpop.f32.mrf.mxu0
  %v700 = vadd.f32 %v531, %v699
  %v701 = vpop.f32.mrf.mxu0
  %v702 = vadd.f32 %v533, %v701
  %703 = vmatmul.bf16.gmra.mxu0 %v407
  %v704 = vpop.f32.mrf.mxu0
  %v705 = vadd.f32 %v536, %v704
  %v706 = vpop.f32.mrf.mxu0
  %v707 = vadd.f32 %v538, %v706
  %708 = vmatmul.bf16.gmra.mxu0 %v410
  %v709 = vpop.f32.mrf.mxu0
  %v710 = vadd.f32 %v541, %v709
  %v711 = vpop.f32.mrf.mxu0
  %v712 = vadd.f32 %v543, %v711
  %713 = vmatmul.bf16.gmra.mxu0 %v413
  %v714 = vpop.f32.mrf.mxu0
  %v715 = vadd.f32 %v546, %v714
  %v716 = vpop.f32.mrf.mxu0
  %v717 = vadd.f32 %v548, %v716
  %718 = vmatmul.bf16.gmra.mxu0 %v416
  %v719 = vpop.f32.mrf.mxu0
  %v720 = vadd.f32 %v551, %v719
  %v721 = vpop.f32.mrf.mxu0
  %v722 = vadd.f32 %v553, %v721
  %723 = vmatmul.bf16.gmra.mxu0 %v419
  %v724 = vpop.f32.mrf.mxu0
  %v725 = vadd.f32 %v556, %v724
  %v726 = vpop.f32.mrf.mxu0
  %v727 = vadd.f32 %v558, %v726
  %728 = vmatmul.bf16.gmra.mxu0 %v422
  %v729 = vpop.f32.mrf.mxu0
  %v730 = vadd.f32 %v561, %v729
  %v731 = vpop.f32.mrf.mxu0
  %v732 = vadd.f32 %v563, %v731
  %733 = vmatmul.bf16.gmra.mxu0 %v425
  %v734 = vpop.f32.mrf.mxu0
  %v735 = vadd.f32 %v566, %v734
  %v736 = vpop.f32.mrf.mxu0
  %v737 = vadd.f32 %v568, %v736
  %738 = vmatmul.bf16.gmra.mxu0 %v428
  %v739 = vpop.f32.mrf.mxu0
  %v740 = vadd.f32 %v571, %v739
  %v741 = vpop.f32.mrf.mxu0
  %v742 = vadd.f32 %v573, %v741
  %743 = vmatmul.bf16.gmra.mxu0 %v431
  %v744 = vpop.f32.mrf.mxu0
  %v745 = vadd.f32 %v576, %v744
  %v746 = vpop.f32.mrf.mxu0
  %v747 = vadd.f32 %v578, %v746
  %748 = vmatmul.bf16.gmra.mxu0 %v434
  %v749 = vpop.f32.mrf.mxu0
  %v750 = vadd.f32 %v581, %v749
  %v751 = vpop.f32.mrf.mxu0
  %v752 = vadd.f32 %v583, %v751
  %753 = vmatmul.bf16.gmra.mxu0 %v437
  %v754 = vpop.f32.mrf.mxu0
  %v755 = vadd.f32 %v586, %v754
  %v756 = vpop.f32.mrf.mxu0
  %v757 = vadd.f32 %v588, %v756
  %758 = vmatmul.bf16.gmra.mxu0 %v440
  %v759 = vpop.f32.mrf.mxu0
  %v760 = vadd.f32 %v591, %v759
  %v761 = vpop.f32.mrf.mxu0
  %v762 = vadd.f32 %v593, %v761
  %763 = vmatmul.bf16.gmra.mxu0 %v443
  %v764 = vpop.f32.mrf.mxu0
  %v765 = vadd.f32 %v596, %v764
  %v766 = vpop.f32.mrf.mxu0
  %v767 = vadd.f32 %v598, %v766
  %768 = vmatmul.bf16.gmra.mxu0 %v446
  %v769 = vpop.f32.mrf.mxu0
  %v770 = vadd.f32 %v601, %v769
  %v771 = vpop.f32.mrf.mxu0
  %v772 = vadd.f32 %v603, %v771
  %773 = vmatmul.bf16.gmra.mxu0 %v449
  %v774 = vpop.f32.mrf.mxu0
  %v775 = vadd.f32 %v606, %v774
  %v776 = vpop.f32.mrf.mxu0
  %v777 = vadd.f32 %v608, %v776
  %778 = vmatmul.bf16.gmra.mxu0 %v452
  %v779 = vpop.f32.mrf.mxu0
  %v780 = vadd.f32 %v611, %v779
  %v781 = vpop.f32.mrf.mxu0
  %v782 = vadd.f32 %v613, %v781
  %783 = vmatmul.bf16.gmra.mxu0 %v455
  %v784 = vpop.f32.mrf.mxu0
  %v785 = vadd.f32 %v616, %v784
  %v786 = vpop.f32.mrf.mxu0
  %v787 = vadd.f32 %v618, %v786
  %788 = vmatmul.bf16.gmra.mxu0 %v458
  %v789 = vpop.f32.mrf.mxu0
  %v790 = vadd.f32 %v621, %v789
  %v791 = vpop.f32.mrf.mxu0
  %v792 = vadd.f32 %v623, %v791
  %793 = vmatmul.bf16.gmra.mxu0 %v461
  %v794 = vpop.f32.mrf.mxu0
  %v795 = vadd.f32 %v626, %v794
  %v796 = vpop.f32.mrf.mxu0
  %v797 = vadd.f32 %v628, %v796
  %798 = vmatmul.bf16.gmra.mxu0 %v464
  %v799 = vpop.f32.mrf.mxu0
  %v800 = vadd.f32 %v631, %v799
  %v801 = vpop.f32.mrf.mxu0
  %v802 = vadd.f32 %v633, %v801
  %803 = vdwg.mxu0
  %v804 = vmax.f32 %v645, 0.0
  %v805 = vmax.f32 %v647, 0.0
  %v806 = vmax.f32 %v650, 0.0
  %v807 = vmax.f32 %v652, 0.0
  %v808 = vmax.f32 %v655, 0.0
  %v809 = vmax.f32 %v657, 0.0
  %v810 = vmax.f32 %v660, 0.0
  %v811 = vmax.f32 %v662, 0.0
  %v812 = vmax.f32 %v665, 0.0
  %v813 = vmax.f32 %v667, 0.0
  %v814 = vmax.f32 %v670, 0.0
  %v815 = vmax.f32 %v672, 0.0
  %v816 = vmax.f32 %v675, 0.0
  %v817 = vmax.f32 %v677, 0.0
  %v818 = vmax.f32 %v680, 0.0
  %v819 = vmax.f32 %v682, 0.0
  %v820 = vmax.f32 %v685, 0.0
  %v821 = vmax.f32 %v687, 0.0
  %v822 = vmax.f32 %v690, 0.0
  %v823 = vmax.f32 %v692, 0.0
  %v824 = vmax.f32 %v695, 0.0
  %v825 = vmax.f32 %v697, 0.0
  %v826 = vmax.f32 %v700, 0.0
  %v827 = vmax.f32 %v702, 0.0
  %v828 = vmax.f32 %v705, 0.0
  %v829 = vmax.f32 %v707, 0.0
  %v830 = vmax.f32 %v710, 0.0
  %v831 = vmax.f32 %v712, 0.0
  %v832 = vmax.f32 %v715, 0.0
  %v833 = vmax.f32 %v717, 0.0
  %v834 = vmax.f32 %v720, 0.0
  %v835 = vmax.f32 %v722, 0.0
  %v836 = vmax.f32 %v725, 0.0
  %v837 = vmax.f32 %v727, 0.0
  %v838 = vmax.f32 %v730, 0.0
  %v839 = vmax.f32 %v732, 0.0
  %v840 = vmax.f32 %v735, 0.0
  %v841 = vmax.f32 %v737, 0.0
  %v842 = vmax.f32 %v740, 0.0
  %v843 = vmax.f32 %v742, 0.0
  %v844 = vmax.f32 %v745, 0.0
  %v845 = vmax.f32 %v747, 0.0
  %v846 = vmax.f32 %v750, 0.0
  %v847 = vmax.f32 %v752, 0.0
  %v848 = vmax.f32 %v755, 0.0
  %v849 = vmax.f32 %v757, 0.0
  %v850 = vmax.f32 %v760, 0.0
  %v851 = vmax.f32 %v762, 0.0
  %v852 = vmax.f32 %v765, 0.0
  %v853 = vmax.f32 %v767, 0.0
  %v854 = vmax.f32 %v770, 0.0
  %v855 = vmax.f32 %v772, 0.0
  %v856 = vmax.f32 %v775, 0.0
  %v857 = vmax.f32 %v777, 0.0
  %v858 = vmax.f32 %v780, 0.0
  %v859 = vmax.f32 %v782, 0.0
  %v860 = vmax.f32 %v785, 0.0
  %v861 = vmax.f32 %v787, 0.0
  %v862 = vmax.f32 %v790, 0.0
  %v863 = vmax.f32 %v792, 0.0
  %v864 = vmax.f32 %v795, 0.0
  %v865 = vmax.f32 %v797, 0.0
  %v866 = vmax.f32 %v800, 0.0
  %v867 = vmax.f32 %v802, 0.0
  %868 = vst [vmem:[%s3] sm:$0xff] %v804
  %869 = vst [vmem:[%s3 + $0x8] sm:$0xff] %v805
  %870 = vst [vmem:[%s3 + $0x10] sm:$0xff] %v806
  %871 = vst [vmem:[%s3 + $0x18] sm:$0xff] %v807
  %872 = vst [vmem:[%s3 + $0x20] sm:$0xff] %v808
  %873 = vst [vmem:[%s3 + $0x28] sm:$0xff] %v809
  %874 = vst [vmem:[%s3 + $0x30] sm:$0xff] %v810
  %875 = vst [vmem:[%s3 + $0x38] sm:$0xff] %v811
  %876 = vst [vmem:[%s3 + $0x40] sm:$0xff] %v812
  %877 = vst [vmem:[%s3 + $0x48] sm:$0xff] %v813
  %878 = vst [vmem:[%s3 + $0x50] sm:$0xff] %v814
  %879 = vst [vmem:[%s3 + $0x58] sm:$0xff] %v815
  %880 = vst [vmem:[%s3 + $0x60] sm:$0xff] %v816
  %881 = vst [vmem:[%s3 + $0x68] sm:$0xff] %v817
  %882 = vst [vmem:[%s3 + $0x70] sm:$0xff] %v818
  %883 = vst [vmem:[%s3 + $0x78] sm:$0xff] %v819
  %884 = vst [vmem:[%s3 + $0x80] sm:$0xff] %v820
  %885 = vst [vmem:[%s3 + $0x88] sm:$0xff] %v821
  %886 = vst [vmem:[%s3 + $0x90] sm:$0xff] %v822
  %887 = vst [vmem:[%s3 + $0x98] sm:$0xff] %v823
  %888 = vst [vmem:[%s3 + $0xa0] sm:$0xff] %v824
  %889 = vst [vmem:[%s3 + $0xa8] sm:$0xff] %v825
  %890 = vst [vmem:[%s3 + $0xb0] sm:$0xff] %v826
  %891 = vst [vmem:[%s3 + $0xb8] sm:$0xff] %v827
  %892 = vst [vmem:[%s3 + $0xc0] sm:$0xff] %v828
  %893 = vst [vmem:[%s3 + $0xc8] sm:$0xff] %v829
  %894 = vst [vmem:[%s3 + $0xd0] sm:$0xff] %v830
  %895 = vst [vmem:[%s3 + $0xd8] sm:$0xff] %v831
  %896 = vst [vmem:[%s3 + $0xe0] sm:$0xff] %v832
  %897 = vst [vmem:[%s3 + $0xe8] sm:$0xff] %v833
  %898 = vst [vmem:[%s3 + $0xf0] sm:$0xff] %v834
  %899 = vst [vmem:[%s3 + $0xf8] sm:$0xff] %v835
  %900 = vst [vmem:[%s3 + $0x100] sm:$0xff] %v836
  %901 = vst [vmem:[%s3 + $0x108] sm:$0xff] %v837
  %902 = vst [vmem:[%s3 + $0x110] sm:$0xff] %v838
  %903 = vst [vmem:[%s3 + $0x118] sm:$0xff] %v839
  %904 = vst [vmem:[%s3 + $0x120] sm:$0xff] %v840
  %905 = vst [vmem:[%s3 + $0x128] sm:$0xff] %v841
  %906 = vst [vmem:[%s3 + $0x130] sm:$0xff] %v842
  %907 = vst [vmem:[%s3 + $0x138] sm:$0xff] %v843
  %908 = vst [vmem:[%s3 + $0x140] sm:$0xff] %v844
  %909 = vst [vmem:[%s3 + $0x148] sm:$0xff] %v845
  %910 = vst [vmem:[%s3 + $0x150] sm:$0xff] %v846
  %911 = vst [vmem:[%s3 + $0x158] sm:$0xff] %v847
  %912 = vst [vmem:[%s3 + $0x160] sm:$0xff] %v848
  %913 = vst [vmem:[%s3 + $0x168] sm:$0xff] %v849
  %914 = vst [vmem:[%s3 + $0x170] sm:$0xff] %v850
  %915 = vst [vmem:[%s3 + $0x178] sm:$0xff] %v851
  %916 = vst [vmem:[%s3 + $0x180] sm:$0xff] %v852
  %917 = vst [vmem:[%s3 + $0x188] sm:$0xff] %v853
  %918 = vst [vmem:[%s3 + $0x190] sm:$0xff] %v854
  %919 = vst [vmem:[%s3 + $0x198] sm:$0xff] %v855
  %920 = vst [vmem:[%s3 + $0x1a0] sm:$0xff] %v856
  %921 = vst [vmem:[%s3 + $0x1a8] sm:$0xff] %v857
  %922 = vst [vmem:[%s3 + $0x1b0] sm:$0xff] %v858
  %923 = vst [vmem:[%s3 + $0x1b8] sm:$0xff] %v859
  %924 = vst [vmem:[%s3 + $0x1c0] sm:$0xff] %v860
  %925 = vst [vmem:[%s3 + $0x1c8] sm:$0xff] %v861
  %926 = vst [vmem:[%s3 + $0x1d0] sm:$0xff] %v862
  %927 = vst [vmem:[%s3 + $0x1d8] sm:$0xff] %v863
  %928 = vst [vmem:[%s3 + $0x1e0] sm:$0xff] %v864
  %929 = vst [vmem:[%s3 + $0x1e8] sm:$0xff] %v865
  %930 = vst [vmem:[%s3 + $0x1f0] sm:$0xff] %v866
  %931 = vst [vmem:[%s3 + $0x1f8] sm:$0xff] %v867
  // Predicated region
  $region14: #{irednet_indrnn_forward.40} parent=0 // pred_check
    _
  $region15: #{irednet_indrnn_forward.40} parent=0 // pred_check_branch
    %933 = sbr.rel (0) target = $region17
  $region16: #{irednet_indrnn_forward.40} parent=0 // pred_region
    _
  $region17: #{irednet_indrnn_forward.40} parent=0 // pred_fallthru
    _
  // Predicated region
  $region18: #{irednet_indrnn_forward.40} parent=0 // pred_check
    _
  $region19: #{irednet_indrnn_forward.40} parent=0 // pred_check_branch
    %935 = sbr.rel (0) target = $region21
  $region20: #{irednet_indrnn_forward.40} parent=0 // pred_region
    _
  $region21: #{irednet_indrnn_forward.40} parent=0 // pred_fallthru
    _

// kernel: irednet_indrnn_forward.42
$region0: #{irednet_indrnn_forward.42}
  #allocation0 [shape = 'u32[]', space=smem, size = 0x4, offset = 0x4, fixed_abs, tag = 'smem constant byte address 0x4 - core index']
  #allocation1 [shape = 'u32[72,128]{1,0:T(1,128)}', space=vmem, size = 0x9000, scoped, tag = 'internal scratch']
  %s0 = inlined_call_operand.vmem [shape: f32[512,192], index: 0, kind: input, shape index: {}]
  %s1 = inlined_call_operand.vmem [shape: f32[192,128], index: 1, kind: input, shape index: {}]
  %s2 = inlined_call_operand.vmem [shape: f32[1,128], index: 2, kind: input, shape index: {}]
  %s3 = inlined_call_operand.vmem [shape: f32[512,128], index: 3, kind: output, shape index: {}]
  %s4 = sld [smem:[#allocation0]]
  $region22: #{irednet_indrnn_forward.42} parent=0
    _
  %s6 = ssub.s32 1, %s4
  %s7 = scalar_select 0, %s6, %s4
  // Predicated region
  $region2: #{irednet_indrnn_forward.42} parent=0 // pred_check
    _
  $region3: #{irednet_indrnn_forward.42} parent=0 // pred_check_branch
    %9 = sbr.rel (0) target = $region5
  $region4: #{irednet_indrnn_forward.42} parent=0 // pred_region
    _
  $region5: #{irednet_indrnn_forward.42} parent=0 // pred_fallthru
    _
  // Predicated region
  $region6: #{irednet_indrnn_forward.42} parent=0 // pred_check
    _
  $region7: #{irednet_indrnn_forward.42} parent=0 // pred_check_branch
    %11 = sbr.rel (0) target = $region9
  $region8: #{irednet_indrnn_forward.42} parent=0 // pred_region
    _
  $region9: #{irednet_indrnn_forward.42} parent=0 // pred_fallthru
    _
  // Predicated region
  $region10: #{irednet_indrnn_forward.42} parent=0 // pred_check
    _
  $region11: #{irednet_indrnn_forward.42} parent=0 // pred_check_branch
    %13 = sbr.rel (0) target = $region13
  $region12: #{irednet_indrnn_forward.42} parent=0 // pred_region
    _
  $region13: #{irednet_indrnn_forward.42} parent=0 // pred_fallthru
    _
  %v15 = vld [vmem:[%s0] sm:$0xff]
  %v16 = vld [vmem:[%s0 + $0x8] sm:$0xff]
  %v17 = vld [vmem:[%s0 + $0x10] sm:$0xff]
  %v18 = vld [vmem:[%s0 + $0x18] sm:$0xff]
  %v19 = vld [vmem:[%s0 + $0x20] sm:$0xff]
  %v20 = vld [vmem:[%s0 + $0x28] sm:$0xff]
  %v21 = vld [vmem:[%s0 + $0x30] sm:$0xff]
  %v22 = vld [vmem:[%s0 + $0x38] sm:$0xff]
  %v23 = vld [vmem:[%s0 + $0x40] sm:$0xff]
  %v24 = vld [vmem:[%s0 + $0x48] sm:$0xff]
  %v25 = vld [vmem:[%s0 + $0x50] sm:$0xff]
  %v26 = vld [vmem:[%s0 + $0x58] sm:$0xff]
  %v27 = vld [vmem:[%s0 + $0x60] sm:$0xff]
  %v28 = vld [vmem:[%s0 + $0x68] sm:$0xff]
  %v29 = vld [vmem:[%s0 + $0x70] sm:$0xff]
  %v30 = vld [vmem:[%s0 + $0x78] sm:$0xff]
  %v31 = vld [vmem:[%s0 + $0x80] sm:$0xff]
  %v32 = vld [vmem:[%s0 + $0x88] sm:$0xff]
  %v33 = vld [vmem:[%s0 + $0x90] sm:$0xff]
  %v34 = vld [vmem:[%s0 + $0x98] sm:$0xff]
  %v35 = vld [vmem:[%s0 + $0xa0] sm:$0xff]
  %v36 = vld [vmem:[%s0 + $0xa8] sm:$0xff]
  %v37 = vld [vmem:[%s0 + $0xb0] sm:$0xff]
  %v38 = vld [vmem:[%s0 + $0xb8] sm:$0xff]
  %v39 = vld [vmem:[%s0 + $0xc0] sm:$0xff]
  %v40 = vld [vmem:[%s0 + $0xc8] sm:$0xff]
  %v41 = vld [vmem:[%s0 + $0xd0] sm:$0xff]
  %v42 = vld [vmem:[%s0 + $0xd8] sm:$0xff]
  %v43 = vld [vmem:[%s0 + $0xe0] sm:$0xff]
  %v44 = vld [vmem:[%s0 + $0xe8] sm:$0xff]
  %v45 = vld [vmem:[%s0 + $0xf0] sm:$0xff]
  %v46 = vld [vmem:[%s0 + $0xf8] sm:$0xff]
  %v47 = vld [vmem:[%s0 + $0x100] sm:$0xff]
  %v48 = vld [vmem:[%s0 + $0x108] sm:$0xff]
  %v49 = vld [vmem:[%s0 + $0x110] sm:$0xff]
  %v50 = vld [vmem:[%s0 + $0x118] sm:$0xff]
  %v51 = vld [vmem:[%s0 + $0x120] sm:$0xff]
  %v52 = vld [vmem:[%s0 + $0x128] sm:$0xff]
  %v53 = vld [vmem:[%s0 + $0x130] sm:$0xff]
  %v54 = vld [vmem:[%s0 + $0x138] sm:$0xff]
  %v55 = vld [vmem:[%s0 + $0x140] sm:$0xff]
  %v56 = vld [vmem:[%s0 + $0x148] sm:$0xff]
  %v57 = vld [vmem:[%s0 + $0x150] sm:$0xff]
  %v58 = vld [vmem:[%s0 + $0x158] sm:$0xff]
  %v59 = vld [vmem:[%s0 + $0x160] sm:$0xff]
  %v60 = vld [vmem:[%s0 + $0x168] sm:$0xff]
  %v61 = vld [vmem:[%s0 + $0x170] sm:$0xff]
  %v62 = vld [vmem:[%s0 + $0x178] sm:$0xff]
  %v63 = vld [vmem:[%s0 + $0x180] sm:$0xff]
  %v64 = vld [vmem:[%s0 + $0x188] sm:$0xff]
  %v65 = vld [vmem:[%s0 + $0x190] sm:$0xff]
  %v66 = vld [vmem:[%s0 + $0x198] sm:$0xff]
  %v67 = vld [vmem:[%s0 + $0x1a0] sm:$0xff]
  %v68 = vld [vmem:[%s0 + $0x1a8] sm:$0xff]
  %v69 = vld [vmem:[%s0 + $0x1b0] sm:$0xff]
  %v70 = vld [vmem:[%s0 + $0x1b8] sm:$0xff]
  %v71 = vld [vmem:[%s0 + $0x1c0] sm:$0xff]
  %v72 = vld [vmem:[%s0 + $0x1c8] sm:$0xff]
  %v73 = vld [vmem:[%s0 + $0x1d0] sm:$0xff]
  %v74 = vld [vmem:[%s0 + $0x1d8] sm:$0xff]
  %v75 = vld [vmem:[%s0 + $0x1e0] sm:$0xff]
  %v76 = vld [vmem:[%s0 + $0x1e8] sm:$0xff]
  %v77 = vld [vmem:[%s0 + $0x1f0] sm:$0xff]
  %v78 = vld [vmem:[%s0 + $0x1f8] sm:$0xff]
  %v79 = vld [vmem:[%s0 + $0x200] sm:$0xff]
  %v80 = vld [vmem:[%s0 + $0x208] sm:$0xff]
  %v81 = vld [vmem:[%s0 + $0x210] sm:$0xff]
  %v82 = vld [vmem:[%s0 + $0x218] sm:$0xff]
  %v83 = vld [vmem:[%s0 + $0x220] sm:$0xff]
  %v84 = vld [vmem:[%s0 + $0x228] sm:$0xff]
  %v85 = vld [vmem:[%s0 + $0x230] sm:$0xff]
  %v86 = vld [vmem:[%s0 + $0x238] sm:$0xff]
  %v87 = vld [vmem:[%s0 + $0x240] sm:$0xff]
  %v88 = vld [vmem:[%s0 + $0x248] sm:$0xff]
  %v89 = vld [vmem:[%s0 + $0x250] sm:$0xff]
  %v90 = vld [vmem:[%s0 + $0x258] sm:$0xff]
  %v91 = vld [vmem:[%s0 + $0x260] sm:$0xff]
  %v92 = vld [vmem:[%s0 + $0x268] sm:$0xff]
  %v93 = vld [vmem:[%s0 + $0x270] sm:$0xff]
  %v94 = vld [vmem:[%s0 + $0x278] sm:$0xff]
  %v95 = vld [vmem:[%s0 + $0x280] sm:$0xff]
  %v96 = vld [vmem:[%s0 + $0x288] sm:$0xff]
  %v97 = vld [vmem:[%s0 + $0x290] sm:$0xff]
  %v98 = vld [vmem:[%s0 + $0x298] sm:$0xff]
  %v99 = vld [vmem:[%s0 + $0x2a0] sm:$0xff]
  %v100 = vld [vmem:[%s0 + $0x2a8] sm:$0xff]
  %v101 = vld [vmem:[%s0 + $0x2b0] sm:$0xff]
  %v102 = vld [vmem:[%s0 + $0x2b8] sm:$0xff]
  %v103 = vld [vmem:[%s0 + $0x2c0] sm:$0xff]
  %v104 = vld [vmem:[%s0 + $0x2c8] sm:$0xff]
  %v105 = vld [vmem:[%s0 + $0x2d0] sm:$0xff]
  %v106 = vld [vmem:[%s0 + $0x2d8] sm:$0xff]
  %v107 = vld [vmem:[%s0 + $0x2e0] sm:$0xff]
  %v108 = vld [vmem:[%s0 + $0x2e8] sm:$0xff]
  %v109 = vld [vmem:[%s0 + $0x2f0] sm:$0xff]
  %v110 = vld [vmem:[%s0 + $0x2f8] sm:$0xff]
  %v111 = vld [vmem:[%s0 + $0x300] sm:$0xff]
  %v112 = vld [vmem:[%s0 + $0x308] sm:$0xff]
  %v113 = vld [vmem:[%s0 + $0x310] sm:$0xff]
  %v114 = vld [vmem:[%s0 + $0x318] sm:$0xff]
  %v115 = vld [vmem:[%s0 + $0x320] sm:$0xff]
  %v116 = vld [vmem:[%s0 + $0x328] sm:$0xff]
  %v117 = vld [vmem:[%s0 + $0x330] sm:$0xff]
  %v118 = vld [vmem:[%s0 + $0x338] sm:$0xff]
  %v119 = vld [vmem:[%s0 + $0x340] sm:$0xff]
  %v120 = vld [vmem:[%s0 + $0x348] sm:$0xff]
  %v121 = vld [vmem:[%s0 + $0x350] sm:$0xff]
  %v122 = vld [vmem:[%s0 + $0x358] sm:$0xff]
  %v123 = vld [vmem:[%s0 + $0x360] sm:$0xff]
  %v124 = vld [vmem:[%s0 + $0x368] sm:$0xff]
  %v125 = vld [vmem:[%s0 + $0x370] sm:$0xff]
  %v126 = vld [vmem:[%s0 + $0x378] sm:$0xff]
  %v127 = vld [vmem:[%s0 + $0x380] sm:$0xff]
  %v128 = vld [vmem:[%s0 + $0x388] sm:$0xff]
  %v129 = vld [vmem:[%s0 + $0x390] sm:$0xff]
  %v130 = vld [vmem:[%s0 + $0x398] sm:$0xff]
  %v131 = vld [vmem:[%s0 + $0x3a0] sm:$0xff]
  %v132 = vld [vmem:[%s0 + $0x3a8] sm:$0xff]
  %v133 = vld [vmem:[%s0 + $0x3b0] sm:$0xff]
  %v134 = vld [vmem:[%s0 + $0x3b8] sm:$0xff]
  %v135 = vld [vmem:[%s0 + $0x3c0] sm:$0xff]
  %v136 = vld [vmem:[%s0 + $0x3c8] sm:$0xff]
  %v137 = vld [vmem:[%s0 + $0x3d0] sm:$0xff]
  %v138 = vld [vmem:[%s0 + $0x3d8] sm:$0xff]
  %v139 = vld [vmem:[%s0 + $0x3e0] sm:$0xff]
  %v140 = vld [vmem:[%s0 + $0x3e8] sm:$0xff]
  %v141 = vld [vmem:[%s0 + $0x3f0] sm:$0xff]
  %v142 = vld [vmem:[%s0 + $0x3f8] sm:$0xff]
  %v143 = vmax.f32 %v15, 0.0
  %v144 = vmax.f32 %v16, 0.0
  %v145 = vmax.f32 %v17, 0.0
  %v146 = vmax.f32 %v18, 0.0
  %v147 = vmax.f32 %v19, 0.0
  %v148 = vmax.f32 %v20, 0.0
  %v149 = vmax.f32 %v21, 0.0
  %v150 = vmax.f32 %v22, 0.0
  %v151 = vmax.f32 %v23, 0.0
  %v152 = vmax.f32 %v24, 0.0
  %v153 = vmax.f32 %v25, 0.0
  %v154 = vmax.f32 %v26, 0.0
  %v155 = vmax.f32 %v27, 0.0
  %v156 = vmax.f32 %v28, 0.0
  %v157 = vmax.f32 %v29, 0.0
  %v158 = vmax.f32 %v30, 0.0
  %v159 = vmax.f32 %v31, 0.0
  %v160 = vmax.f32 %v32, 0.0
  %v161 = vmax.f32 %v33, 0.0
  %v162 = vmax.f32 %v34, 0.0
  %v163 = vmax.f32 %v35, 0.0
  %v164 = vmax.f32 %v36, 0.0
  %v165 = vmax.f32 %v37, 0.0
  %v166 = vmax.f32 %v38, 0.0
  %v167 = vmax.f32 %v39, 0.0
  %v168 = vmax.f32 %v40, 0.0
  %v169 = vmax.f32 %v41, 0.0
  %v170 = vmax.f32 %v42, 0.0
  %v171 = vmax.f32 %v43, 0.0
  %v172 = vmax.f32 %v44, 0.0
  %v173 = vmax.f32 %v45, 0.0
  %v174 = vmax.f32 %v46, 0.0
  %v175 = vmax.f32 %v47, 0.0
  %v176 = vmax.f32 %v48, 0.0
  %v177 = vmax.f32 %v49, 0.0
  %v178 = vmax.f32 %v50, 0.0
  %v179 = vmax.f32 %v51, 0.0
  %v180 = vmax.f32 %v52, 0.0
  %v181 = vmax.f32 %v53, 0.0
  %v182 = vmax.f32 %v54, 0.0
  %v183 = vmax.f32 %v55, 0.0
  %v184 = vmax.f32 %v56, 0.0
  %v185 = vmax.f32 %v57, 0.0
  %v186 = vmax.f32 %v58, 0.0
  %v187 = vmax.f32 %v59, 0.0
  %v188 = vmax.f32 %v60, 0.0
  %v189 = vmax.f32 %v61, 0.0
  %v190 = vmax.f32 %v62, 0.0
  %v191 = vmax.f32 %v63, 0.0
  %v192 = vmax.f32 %v64, 0.0
  %v193 = vmax.f32 %v65, 0.0
  %v194 = vmax.f32 %v66, 0.0
  %v195 = vmax.f32 %v67, 0.0
  %v196 = vmax.f32 %v68, 0.0
  %v197 = vmax.f32 %v69, 0.0
  %v198 = vmax.f32 %v70, 0.0
  %v199 = vmax.f32 %v71, 0.0
  %v200 = vmax.f32 %v72, 0.0
  %v201 = vmax.f32 %v73, 0.0
  %v202 = vmax.f32 %v74, 0.0
  %v203 = vmax.f32 %v75, 0.0
  %v204 = vmax.f32 %v76, 0.0
  %v205 = vmax.f32 %v77, 0.0
  %v206 = vmax.f32 %v78, 0.0
  %v207 = vmax.f32 %v79, 0.0
  %v208 = vmax.f32 %v80, 0.0
  %v209 = vmax.f32 %v81, 0.0
  %v210 = vmax.f32 %v82, 0.0
  %v211 = vmax.f32 %v83, 0.0
  %v212 = vmax.f32 %v84, 0.0
  %v213 = vmax.f32 %v85, 0.0
  %v214 = vmax.f32 %v86, 0.0
  %v215 = vmax.f32 %v87, 0.0
  %v216 = vmax.f32 %v88, 0.0
  %v217 = vmax.f32 %v89, 0.0
  %v218 = vmax.f32 %v90, 0.0
  %v219 = vmax.f32 %v91, 0.0
  %v220 = vmax.f32 %v92, 0.0
  %v221 = vmax.f32 %v93, 0.0
  %v222 = vmax.f32 %v94, 0.0
  %v223 = vmax.f32 %v95, 0.0
  %v224 = vmax.f32 %v96, 0.0
  %v225 = vmax.f32 %v97, 0.0
  %v226 = vmax.f32 %v98, 0.0
  %v227 = vmax.f32 %v99, 0.0
  %v228 = vmax.f32 %v100, 0.0
  %v229 = vmax.f32 %v101, 0.0
  %v230 = vmax.f32 %v102, 0.0
  %v231 = vmax.f32 %v103, 0.0
  %v232 = vmax.f32 %v104, 0.0
  %v233 = vmax.f32 %v105, 0.0
  %v234 = vmax.f32 %v106, 0.0
  %v235 = vmax.f32 %v107, 0.0
  %v236 = vmax.f32 %v108, 0.0
  %v237 = vmax.f32 %v109, 0.0
  %v238 = vmax.f32 %v110, 0.0
  %v239 = vmax.f32 %v111, 0.0
  %v240 = vmax.f32 %v112, 0.0
  %v241 = vmax.f32 %v113, 0.0
  %v242 = vmax.f32 %v114, 0.0
  %v243 = vmax.f32 %v115, 0.0
  %v244 = vmax.f32 %v116, 0.0
  %v245 = vmax.f32 %v117, 0.0
  %v246 = vmax.f32 %v118, 0.0
  %v247 = vmax.f32 %v119, 0.0
  %v248 = vmax.f32 %v120, 0.0
  %v249 = vmax.f32 %v121, 0.0
  %v250 = vmax.f32 %v122, 0.0
  %v251 = vmax.f32 %v123, 0.0
  %v252 = vmax.f32 %v124, 0.0
  %v253 = vmax.f32 %v125, 0.0
  %v254 = vmax.f32 %v126, 0.0
  %v255 = vmax.f32 %v127, 0.0
  %v256 = vmax.f32 %v128, 0.0
  %v257 = vmax.f32 %v129, 0.0
  %v258 = vmax.f32 %v130, 0.0
  %v259 = vmax.f32 %v131, 0.0
  %v260 = vmax.f32 %v132, 0.0
  %v261 = vmax.f32 %v133, 0.0
  %v262 = vmax.f32 %v134, 0.0
  %v263 = vmax.f32 %v135, 0.0
  %v264 = vmax.f32 %v136, 0.0
  %v265 = vmax.f32 %v137, 0.0
  %v266 = vmax.f32 %v138, 0.0
  %v267 = vmax.f32 %v139, 0.0
  %v268 = vmax.f32 %v140, 0.0
  %v269 = vmax.f32 %v141, 0.0
  %v270 = vmax.f32 %v142, 0.0
  %v271 = vpack.c.bf16 %v145, %v143
  %v272 = vpack.c.bf16 %v146, %v144
  %v273 = vpack.c.bf16 %v149, %v147
  %v274 = vpack.c.bf16 %v150, %v148
  %v275 = vpack.c.bf16 %v153, %v151
  %v276 = vpack.c.bf16 %v154, %v152
  %v277 = vpack.c.bf16 %v157, %v155
  %v278 = vpack.c.bf16 %v158, %v156
  %v279 = vpack.c.bf16 %v161, %v159
  %v280 = vpack.c.bf16 %v162, %v160
  %v281 = vpack.c.bf16 %v165, %v163
  %v282 = vpack.c.bf16 %v166, %v164
  %v283 = vpack.c.bf16 %v169, %v167
  %v284 = vpack.c.bf16 %v170, %v168
  %v285 = vpack.c.bf16 %v173, %v171
  %v286 = vpack.c.bf16 %v174, %v172
  %v287 = vpack.c.bf16 %v177, %v175
  %v288 = vpack.c.bf16 %v178, %v176
  %v289 = vpack.c.bf16 %v181, %v179
  %v290 = vpack.c.bf16 %v182, %v180
  %v291 = vpack.c.bf16 %v185, %v183
  %v292 = vpack.c.bf16 %v186, %v184
  %v293 = vpack.c.bf16 %v189, %v187
  %v294 = vpack.c.bf16 %v190, %v188
  %v295 = vpack.c.bf16 %v193, %v191
  %v296 = vpack.c.bf16 %v194, %v192
  %v297 = vpack.c.bf16 %v197, %v195
  %v298 = vpack.c.bf16 %v198, %v196
  %v299 = vpack.c.bf16 %v201, %v199
  %v300 = vpack.c.bf16 %v202, %v200
  %v301 = vpack.c.bf16 %v205, %v203
  %v302 = vpack.c.bf16 %v206, %v204
  %v303 = vpack.c.bf16 %v209, %v207
  %v304 = vpack.c.bf16 %v210, %v208
  %v305 = vpack.c.bf16 %v213, %v211
  %v306 = vpack.c.bf16 %v214, %v212
  %v307 = vpack.c.bf16 %v217, %v215
  %v308 = vpack.c.bf16 %v218, %v216
  %v309 = vpack.c.bf16 %v221, %v219
  %v310 = vpack.c.bf16 %v222, %v220
  %v311 = vpack.c.bf16 %v225, %v223
  %v312 = vpack.c.bf16 %v226, %v224
  %v313 = vpack.c.bf16 %v229, %v227
  %v314 = vpack.c.bf16 %v230, %v228
  %v315 = vpack.c.bf16 %v233, %v231
  %v316 = vpack.c.bf16 %v234, %v232
  %v317 = vpack.c.bf16 %v237, %v235
  %v318 = vpack.c.bf16 %v238, %v236
  %v319 = vpack.c.bf16 %v241, %v239
  %v320 = vpack.c.bf16 %v242, %v240
  %v321 = vpack.c.bf16 %v245, %v243
  %v322 = vpack.c.bf16 %v246, %v244
  %v323 = vpack.c.bf16 %v249, %v247
  %v324 = vpack.c.bf16 %v250, %v248
  %v325 = vpack.c.bf16 %v253, %v251
  %v326 = vpack.c.bf16 %v254, %v252
  %v327 = vpack.c.bf16 %v257, %v255
  %v328 = vpack.c.bf16 %v258, %v256
  %v329 = vpack.c.bf16 %v261, %v259
  %v330 = vpack.c.bf16 %v262, %v260
  %v331 = vpack.c.bf16 %v265, %v263
  %v332 = vpack.c.bf16 %v266, %v264
  %v333 = vpack.c.bf16 %v269, %v267
  %v334 = vpack.c.bf16 %v270, %v268
  %v335 = vld [vmem:[%s1] sm:$0xff]
  %v336 = vld [vmem:[%s1 + $0x8] sm:$0xff]
  %v337 = vld [vmem:[%s1 + $0x10] sm:$0xff]
  %v338 = vld [vmem:[%s1 + $0x18] sm:$0xff]
  %v339 = vld [vmem:[%s1 + $0x20] sm:$0xff]
  %v340 = vld [vmem:[%s1 + $0x28] sm:$0xff]
  %v341 = vld [vmem:[%s1 + $0x30] sm:$0xff]
  %v342 = vld [vmem:[%s1 + $0x38] sm:$0xff]
  %v343 = vld [vmem:[%s1 + $0x40] sm:$0xff]
  %v344 = vld [vmem:[%s1 + $0x48] sm:$0xff]
  %v345 = vld [vmem:[%s1 + $0x50] sm:$0xff]
  %v346 = vld [vmem:[%s1 + $0x58] sm:$0xff]
  %v347 = vld [vmem:[%s1 + $0x60] sm:$0xff]
  %v348 = vld [vmem:[%s1 + $0x68] sm:$0xff]
  %v349 = vld [vmem:[%s1 + $0x70] sm:$0xff]
  %v350 = vld [vmem:[%s1 + $0x78] sm:$0xff]
  %v351 = vld [vmem:[%s1 + $0x80] sm:$0xff]
  %v352 = vld [vmem:[%s1 + $0x88] sm:$0xff]
  %v353 = vld [vmem:[%s1 + $0x90] sm:$0xff]
  %v354 = vld [vmem:[%s1 + $0x98] sm:$0xff]
  %v355 = vld [vmem:[%s1 + $0xa0] sm:$0xff]
  %v356 = vld [vmem:[%s1 + $0xa8] sm:$0xff]
  %v357 = vld [vmem:[%s1 + $0xb0] sm:$0xff]
  %v358 = vld [vmem:[%s1 + $0xb8] sm:$0xff]
  %v359 = vpack.c.bf16 %v336, %v335
  %v360 = vpack.c.bf16 %v338, %v337
  %v361 = vpack.c.bf16 %v340, %v339
  %v362 = vpack.c.bf16 %v342, %v341
  %v363 = vpack.c.bf16 %v344, %v343
  %v364 = vpack.c.bf16 %v346, %v345
  %v365 = vpack.c.bf16 %v348, %v347
  %v366 = vpack.c.bf16 %v350, %v349
  %v367 = vpack.c.bf16 %v352, %v351
  %v368 = vpack.c.bf16 %v354, %v353
  %v369 = vpack.c.bf16 %v356, %v355
  %v370 = vpack.c.bf16 %v358, %v357
  %v371 = vld [vmem:[%s2] sm:$0x1]
  %v373 = vperm.slane %v371, 0
  %vm375 = vcmask 523264
  %v377 = vsel %vm375, %v272, 0
  %v380 = vsel %vm375, %v274, 0
  %v383 = vsel %vm375, %v276, 0
  %v386 = vsel %vm375, %v278, 0
  %v389 = vsel %vm375, %v280, 0
  %v392 = vsel %vm375, %v282, 0
  %v395 = vsel %vm375, %v284, 0
  %v398 = vsel %vm375, %v286, 0
  %v401 = vsel %vm375, %v288, 0
  %v404 = vsel %vm375, %v290, 0
  %v407 = vsel %vm375, %v292, 0
  %v410 = vsel %vm375, %v294, 0
  %v413 = vsel %vm375, %v296, 0
  %v416 = vsel %vm375, %v298, 0
  %v419 = vsel %vm375, %v300, 0
  %v422 = vsel %vm375, %v302, 0
  %v425 = vsel %vm375, %v304, 0
  %v428 = vsel %vm375, %v306, 0
  %v431 = vsel %vm375, %v308, 0
  %v434 = vsel %vm375, %v310, 0
  %v437 = vsel %vm375, %v312, 0
  %v440 = vsel %vm375, %v314, 0
  %v443 = vsel %vm375, %v316, 0
  %v446 = vsel %vm375, %v318, 0
  %v449 = vsel %vm375, %v320, 0
  %v452 = vsel %vm375, %v322, 0
  %v455 = vsel %vm375, %v324, 0
  %v458 = vsel %vm375, %v326, 0
  %v461 = vsel %vm375, %v328, 0
  %v464 = vsel %vm375, %v330, 0
  %v467 = vsel %vm375, %v332, 0
  %v470 = vsel %vm375, %v334, 0
  %472 = vmatpush.bf16.msra.mxu0 %v366
  %473 = vmatpush.bf16.msra.mxu0 %v365
  %474 = vmatpush.bf16.msra.mxu0 %v364
  %475 = vmatpush.bf16.msra.mxu0 %v363
  %476 = vmatpush.bf16.msra.mxu0 %v362
  %477 = vmatpush.bf16.msra.mxu0 %v361
  %478 = vmatpush.bf16.msra.mxu0 %v360
  %479 = vmatpush.bf16.msra.mxu0 %v359
  %480 = vmatmul.bf16.gmra.mxu0 %v271
  %v481 = vpop.f32.mrf.mxu0
  %v482 = vadd.f32 %v373, %v481
  %v483 = vpop.f32.mrf.mxu0
  %v484 = vadd.f32 %v373, %v483
  %485 = vmatmul.bf16.gmra.mxu0 %v273
  %v486 = vpop.f32.mrf.mxu0
  %v487 = vadd.f32 %v373, %v486
  %v488 = vpop.f32.mrf.mxu0
  %v489 = vadd.f32 %v373, %v488
  %490 = vmatmul.bf16.gmra.mxu0 %v275
  %v491 = vpop.f32.mrf.mxu0
  %v492 = vadd.f32 %v373, %v491
  %v493 = vpop.f32.mrf.mxu0
  %v494 = vadd.f32 %v373, %v493
  %495 = vmatmul.bf16.gmra.mxu0 %v277
  %v496 = vpop.f32.mrf.mxu0
  %v497 = vadd.f32 %v373, %v496
  %v498 = vpop.f32.mrf.mxu0
  %v499 = vadd.f32 %v373, %v498
  %500 = vmatmul.bf16.gmra.mxu0 %v279
  %v501 = vpop.f32.mrf.mxu0
  %v502 = vadd.f32 %v373, %v501
  %v503 = vpop.f32.mrf.mxu0
  %v504 = vadd.f32 %v373, %v503
  %505 = vmatmul.bf16.gmra.mxu0 %v281
  %v506 = vpop.f32.mrf.mxu0
  %v507 = vadd.f32 %v373, %v506
  %v508 = vpop.f32.mrf.mxu0
  %v509 = vadd.f32 %v373, %v508
  %510 = vmatmul.bf16.gmra.mxu0 %v283
  %v511 = vpop.f32.mrf.mxu0
  %v512 = vadd.f32 %v373, %v511
  %v513 = vpop.f32.mrf.mxu0
  %v514 = vadd.f32 %v373, %v513
  %515 = vmatmul.bf16.gmra.mxu0 %v285
  %v516 = vpop.f32.mrf.mxu0
  %v517 = vadd.f32 %v373, %v516
  %v518 = vpop.f32.mrf.mxu0
  %v519 = vadd.f32 %v373, %v518
  %520 = vmatmul.bf16.gmra.mxu0 %v287
  %v521 = vpop.f32.mrf.mxu0
  %v522 = vadd.f32 %v373, %v521
  %v523 = vpop.f32.mrf.mxu0
  %v524 = vadd.f32 %v373, %v523
  %525 = vmatmul.bf16.gmra.mxu0 %v289
  %v526 = vpop.f32.mrf.mxu0
  %v527 = vadd.f32 %v373, %v526
  %v528 = vpop.f32.mrf.mxu0
  %v529 = vadd.f32 %v373, %v528
  %530 = vmatmul.bf16.gmra.mxu0 %v291
  %v531 = vpop.f32.mrf.mxu0
  %v532 = vadd.f32 %v373, %v531
  %v533 = vpop.f32.mrf.mxu0
  %v534 = vadd.f32 %v373, %v533
  %535 = vmatmul.bf16.gmra.mxu0 %v293
  %v536 = vpop.f32.mrf.mxu0
  %v537 = vadd.f32 %v373, %v536
  %v538 = vpop.f32.mrf.mxu0
  %v539 = vadd.f32 %v373, %v538
  %540 = vmatmul.bf16.gmra.mxu0 %v295
  %v541 = vpop.f32.mrf.mxu0
  %v542 = vadd.f32 %v373, %v541
  %v543 = vpop.f32.mrf.mxu0
  %v544 = vadd.f32 %v373, %v543
  %545 = vmatmul.bf16.gmra.mxu0 %v297
  %v546 = vpop.f32.mrf.mxu0
  %v547 = vadd.f32 %v373, %v546
  %v548 = vpop.f32.mrf.mxu0
  %v549 = vadd.f32 %v373, %v548
  %550 = vmatmul.bf16.gmra.mxu0 %v299
  %v551 = vpop.f32.mrf.mxu0
  %v552 = vadd.f32 %v373, %v551
  %v553 = vpop.f32.mrf.mxu0
  %v554 = vadd.f32 %v373, %v553
  %555 = vmatmul.bf16.gmra.mxu0 %v301
  %v556 = vpop.f32.mrf.mxu0
  %v557 = vadd.f32 %v373, %v556
  %v558 = vpop.f32.mrf.mxu0
  %v559 = vadd.f32 %v373, %v558
  %560 = vmatmul.bf16.gmra.mxu0 %v303
  %v561 = vpop.f32.mrf.mxu0
  %v562 = vadd.f32 %v373, %v561
  %v563 = vpop.f32.mrf.mxu0
  %v564 = vadd.f32 %v373, %v563
  %565 = vmatmul.bf16.gmra.mxu0 %v305
  %v566 = vpop.f32.mrf.mxu0
  %v567 = vadd.f32 %v373, %v566
  %v568 = vpop.f32.mrf.mxu0
  %v569 = vadd.f32 %v373, %v568
  %570 = vmatmul.bf16.gmra.mxu0 %v307
  %v571 = vpop.f32.mrf.mxu0
  %v572 = vadd.f32 %v373, %v571
  %v573 = vpop.f32.mrf.mxu0
  %v574 = vadd.f32 %v373, %v573
  %575 = vmatmul.bf16.gmra.mxu0 %v309
  %v576 = vpop.f32.mrf.mxu0
  %v577 = vadd.f32 %v373, %v576
  %v578 = vpop.f32.mrf.mxu0
  %v579 = vadd.f32 %v373, %v578
  %580 = vmatmul.bf16.gmra.mxu0 %v311
  %v581 = vpop.f32.mrf.mxu0
  %v582 = vadd.f32 %v373, %v581
  %v583 = vpop.f32.mrf.mxu0
  %v584 = vadd.f32 %v373, %v583
  %585 = vmatmul.bf16.gmra.mxu0 %v313
  %v586 = vpop.f32.mrf.mxu0
  %v587 = vadd.f32 %v373, %v586
  %v588 = vpop.f32.mrf.mxu0
  %v589 = vadd.f32 %v373, %v588
  %590 = vmatmul.bf16.gmra.mxu0 %v315
  %v591 = vpop.f32.mrf.mxu0
  %v592 = vadd.f32 %v373, %v591
  %v593 = vpop.f32.mrf.mxu0
  %v594 = vadd.f32 %v373, %v593
  %595 = vmatmul.bf16.gmra.mxu0 %v317
  %v596 = vpop.f32.mrf.mxu0
  %v597 = vadd.f32 %v373, %v596
  %v598 = vpop.f32.mrf.mxu0
  %v599 = vadd.f32 %v373, %v598
  %600 = vmatmul.bf16.gmra.mxu0 %v319
  %v601 = vpop.f32.mrf.mxu0
  %v602 = vadd.f32 %v373, %v601
  %v603 = vpop.f32.mrf.mxu0
  %v604 = vadd.f32 %v373, %v603
  %605 = vmatmul.bf16.gmra.mxu0 %v321
  %v606 = vpop.f32.mrf.mxu0
  %v607 = vadd.f32 %v373, %v606
  %v608 = vpop.f32.mrf.mxu0
  %v609 = vadd.f32 %v373, %v608
  %610 = vmatmul.bf16.gmra.mxu0 %v323
  %v611 = vpop.f32.mrf.mxu0
  %v612 = vadd.f32 %v373, %v611
  %v613 = vpop.f32.mrf.mxu0
  %v614 = vadd.f32 %v373, %v613
  %615 = vmatmul.bf16.gmra.mxu0 %v325
  %v616 = vpop.f32.mrf.mxu0
  %v617 = vadd.f32 %v373, %v616
  %v618 = vpop.f32.mrf.mxu0
  %v619 = vadd.f32 %v373, %v618
  %620 = vmatmul.bf16.gmra.mxu0 %v327
  %v621 = vpop.f32.mrf.mxu0
  %v622 = vadd.f32 %v373, %v621
  %v623 = vpop.f32.mrf.mxu0
  %v624 = vadd.f32 %v373, %v623
  %625 = vmatmul.bf16.gmra.mxu0 %v329
  %v626 = vpop.f32.mrf.mxu0
  %v627 = vadd.f32 %v373, %v626
  %v628 = vpop.f32.mrf.mxu0
  %v629 = vadd.f32 %v373, %v628
  %630 = vmatmul.bf16.gmra.mxu0 %v331
  %v631 = vpop.f32.mrf.mxu0
  %v632 = vadd.f32 %v373, %v631
  %v633 = vpop.f32.mrf.mxu0
  %v634 = vadd.f32 %v373, %v633
  %635 = vmatmul.bf16.gmra.mxu0 %v333
  %v636 = vpop.f32.mrf.mxu0
  %v637 = vadd.f32 %v373, %v636
  %v638 = vpop.f32.mrf.mxu0
  %v639 = vadd.f32 %v373, %v638
  %640 = vdwg.mxu0
  %641 = vmatpush.bf16.msra.mxu0 0
  %642 = vmatpush.bf16.msra.mxu0 0
  %643 = vmatpush.bf16.msra.mxu0 0
  %644 = vmatpush.bf16.msra.mxu0 0
  %645 = vmatpush.bf16.msra.mxu0 %v370
  %646 = vmatpush.bf16.msra.mxu0 %v369
  %647 = vmatpush.bf16.msra.mxu0 %v368
  %648 = vmatpush.bf16.msra.mxu0 %v367
  %649 = vmatmul.bf16.gmra.mxu0 %v377
  %v650 = vpop.f32.mrf.mxu0
  %v651 = vadd.f32 %v482, %v650
  %v652 = vpop.f32.mrf.mxu0
  %v653 = vadd.f32 %v484, %v652
  %654 = vmatmul.bf16.gmra.mxu0 %v380
  %v655 = vpop.f32.mrf.mxu0
  %v656 = vadd.f32 %v487, %v655
  %v657 = vpop.f32.mrf.mxu0
  %v658 = vadd.f32 %v489, %v657
  %659 = vmatmul.bf16.gmra.mxu0 %v383
  %v660 = vpop.f32.mrf.mxu0
  %v661 = vadd.f32 %v492, %v660
  %v662 = vpop.f32.mrf.mxu0
  %v663 = vadd.f32 %v494, %v662
  %664 = vmatmul.bf16.gmra.mxu0 %v386
  %v665 = vpop.f32.mrf.mxu0
  %v666 = vadd.f32 %v497, %v665
  %v667 = vpop.f32.mrf.mxu0
  %v668 = vadd.f32 %v499, %v667
  %669 = vmatmul.bf16.gmra.mxu0 %v389
  %v670 = vpop.f32.mrf.mxu0
  %v671 = vadd.f32 %v502, %v670
  %v672 = vpop.f32.mrf.mxu0
  %v673 = vadd.f32 %v504, %v672
  %674 = vmatmul.bf16.gmra.mxu0 %v392
  %v675 = vpop.f32.mrf.mxu0
  %v676 = vadd.f32 %v507, %v675
  %v677 = vpop.f32.mrf.mxu0
  %v678 = vadd.f32 %v509, %v677
  %679 = vmatmul.bf16.gmra.mxu0 %v395
  %v680 = vpop.f32.mrf.mxu0
  %v681 = vadd.f32 %v512, %v680
  %v682 = vpop.f32.mrf.mxu0
  %v683 = vadd.f32 %v514, %v682
  %684 = vmatmul.bf16.gmra.mxu0 %v398
  %v685 = vpop.f32.mrf.mxu0
  %v686 = vadd.f32 %v517, %v685
  %v687 = vpop.f32.mrf.mxu0
  %v688 = vadd.f32 %v519, %v687
  %689 = vmatmul.bf16.gmra.mxu0 %v401
  %v690 = vpop.f32.mrf.mxu0
  %v691 = vadd.f32 %v522, %v690
  %v692 = vpop.f32.mrf.mxu0
  %v693 = vadd.f32 %v524, %v692
  %694 = vmatmul.bf16.gmra.mxu0 %v404
  %v695 = vpop.f32.mrf.mxu0
  %v696 = vadd.f32 %v527, %v695
  %v697 = vpop.f32.mrf.mxu0
  %v698 = vadd.f32 %v529, %v697
  %699 = vmatmul.bf16.gmra.mxu0 %v407
  %v700 = vpop.f32.mrf.mxu0
  %v701 = vadd.f32 %v532, %v700
  %v702 = vpop.f32.mrf.mxu0
  %v703 = vadd.f32 %v534, %v702
  %704 = vmatmul.bf16.gmra.mxu0 %v410
  %v705 = vpop.f32.mrf.mxu0
  %v706 = vadd.f32 %v537, %v705
  %v707 = vpop.f32.mrf.mxu0
  %v708 = vadd.f32 %v539, %v707
  %709 = vmatmul.bf16.gmra.mxu0 %v413
  %v710 = vpop.f32.mrf.mxu0
  %v711 = vadd.f32 %v542, %v710
  %v712 = vpop.f32.mrf.mxu0
  %v713 = vadd.f32 %v544, %v712
  %714 = vmatmul.bf16.gmra.mxu0 %v416
  %v715 = vpop.f32.mrf.mxu0
  %v716 = vadd.f32 %v547, %v715
  %v717 = vpop.f32.mrf.mxu0
  %v718 = vadd.f32 %v549, %v717
  %719 = vmatmul.bf16.gmra.mxu0 %v419
  %v720 = vpop.f32.mrf.mxu0
  %v721 = vadd.f32 %v552, %v720
  %v722 = vpop.f32.mrf.mxu0
  %v723 = vadd.f32 %v554, %v722
  %724 = vmatmul.bf16.gmra.mxu0 %v422
  %v725 = vpop.f32.mrf.mxu0
  %v726 = vadd.f32 %v557, %v725
  %v727 = vpop.f32.mrf.mxu0
  %v728 = vadd.f32 %v559, %v727
  %729 = vmatmul.bf16.gmra.mxu0 %v425
  %v730 = vpop.f32.mrf.mxu0
  %v731 = vadd.f32 %v562, %v730
  %v732 = vpop.f32.mrf.mxu0
  %v733 = vadd.f32 %v564, %v732
  %734 = vmatmul.bf16.gmra.mxu0 %v428
  %v735 = vpop.f32.mrf.mxu0
  %v736 = vadd.f32 %v567, %v735
  %v737 = vpop.f32.mrf.mxu0
  %v738 = vadd.f32 %v569, %v737
  %739 = vmatmul.bf16.gmra.mxu0 %v431
  %v740 = vpop.f32.mrf.mxu0
  %v741 = vadd.f32 %v572, %v740
  %v742 = vpop.f32.mrf.mxu0
  %v743 = vadd.f32 %v574, %v742
  %744 = vmatmul.bf16.gmra.mxu0 %v434
  %v745 = vpop.f32.mrf.mxu0
  %v746 = vadd.f32 %v577, %v745
  %v747 = vpop.f32.mrf.mxu0
  %v748 = vadd.f32 %v579, %v747
  %749 = vmatmul.bf16.gmra.mxu0 %v437
  %v750 = vpop.f32.mrf.mxu0
  %v751 = vadd.f32 %v582, %v750
  %v752 = vpop.f32.mrf.mxu0
  %v753 = vadd.f32 %v584, %v752
  %754 = vmatmul.bf16.gmra.mxu0 %v440
  %v755 = vpop.f32.mrf.mxu0
  %v756 = vadd.f32 %v587, %v755
  %v757 = vpop.f32.mrf.mxu0
  %v758 = vadd.f32 %v589, %v757
  %759 = vmatmul.bf16.gmra.mxu0 %v443
  %v760 = vpop.f32.mrf.mxu0
  %v761 = vadd.f32 %v592, %v760
  %v762 = vpop.f32.mrf.mxu0
  %v763 = vadd.f32 %v594, %v762
  %764 = vmatmul.bf16.gmra.mxu0 %v446
  %v765 = vpop.f32.mrf.mxu0
  %v766 = vadd.f32 %v597, %v765
  %v767 = vpop.f32.mrf.mxu0
  %v768 = vadd.f32 %v599, %v767
  %769 = vmatmul.bf16.gmra.mxu0 %v449
  %v770 = vpop.f32.mrf.mxu0
  %v771 = vadd.f32 %v602, %v770
  %v772 = vpop.f32.mrf.mxu0
  %v773 = vadd.f32 %v604, %v772
  %774 = vmatmul.bf16.gmra.mxu0 %v452
  %v775 = vpop.f32.mrf.mxu0
  %v776 = vadd.f32 %v607, %v775
  %v777 = vpop.f32.mrf.mxu0
  %v778 = vadd.f32 %v609, %v777
  %779 = vmatmul.bf16.gmra.mxu0 %v455
  %v780 = vpop.f32.mrf.mxu0
  %v781 = vadd.f32 %v612, %v780
  %v782 = vpop.f32.mrf.mxu0
  %v783 = vadd.f32 %v614, %v782
  %784 = vmatmul.bf16.gmra.mxu0 %v458
  %v785 = vpop.f32.mrf.mxu0
  %v786 = vadd.f32 %v617, %v785
  %v787 = vpop.f32.mrf.mxu0
  %v788 = vadd.f32 %v619, %v787
  %789 = vmatmul.bf16.gmra.mxu0 %v461
  %v790 = vpop.f32.mrf.mxu0
  %v791 = vadd.f32 %v622, %v790
  %v792 = vpop.f32.mrf.mxu0
  %v793 = vadd.f32 %v624, %v792
  %794 = vmatmul.bf16.gmra.mxu0 %v464
  %v795 = vpop.f32.mrf.mxu0
  %v796 = vadd.f32 %v627, %v795
  %v797 = vpop.f32.mrf.mxu0
  %v798 = vadd.f32 %v629, %v797
  %799 = vmatmul.bf16.gmra.mxu0 %v467
  %v800 = vpop.f32.mrf.mxu0
  %v801 = vadd.f32 %v632, %v800
  %v802 = vpop.f32.mrf.mxu0
  %v803 = vadd.f32 %v634, %v802
  %804 = vmatmul.bf16.gmra.mxu0 %v470
  %v805 = vpop.f32.mrf.mxu0
  %v806 = vadd.f32 %v637, %v805
  %v807 = vpop.f32.mrf.mxu0
  %v808 = vadd.f32 %v639, %v807
  %809 = vdwg.mxu0
  %v810 = vmax.f32 %v651, 0.0
  %v811 = vmax.f32 %v653, 0.0
  %v812 = vmax.f32 %v656, 0.0
  %v813 = vmax.f32 %v658, 0.0
  %v814 = vmax.f32 %v661, 0.0
  %v815 = vmax.f32 %v663, 0.0
  %v816 = vmax.f32 %v666, 0.0
  %v817 = vmax.f32 %v668, 0.0
  %v818 = vmax.f32 %v671, 0.0
  %v819 = vmax.f32 %v673, 0.0
  %v820 = vmax.f32 %v676, 0.0
  %v821 = vmax.f32 %v678, 0.0
  %v822 = vmax.f32 %v681, 0.0
  %v823 = vmax.f32 %v683, 0.0
  %v824 = vmax.f32 %v686, 0.0
  %v825 = vmax.f32 %v688, 0.0
  %v826 = vmax.f32 %v691, 0.0
  %v827 = vmax.f32 %v693, 0.0
  %v828 = vmax.f32 %v696, 0.0
  %v829 = vmax.f32 %v698, 0.0
  %v830 = vmax.f32 %v701, 0.0
  %v831 = vmax.f32 %v703, 0.0
  %v832 = vmax.f32 %v706, 0.0
  %v833 = vmax.f32 %v708, 0.0
  %v834 = vmax.f32 %v711, 0.0
  %v835 = vmax.f32 %v713, 0.0
  %v836 = vmax.f32 %v716, 0.0
  %v837 = vmax.f32 %v718, 0.0
  %v838 = vmax.f32 %v721, 0.0
  %v839 = vmax.f32 %v723, 0.0
  %v840 = vmax.f32 %v726, 0.0
  %v841 = vmax.f32 %v728, 0.0
  %v842 = vmax.f32 %v731, 0.0
  %v843 = vmax.f32 %v733, 0.0
  %v844 = vmax.f32 %v736, 0.0
  %v845 = vmax.f32 %v738, 0.0
  %v846 = vmax.f32 %v741, 0.0
  %v847 = vmax.f32 %v743, 0.0
  %v848 = vmax.f32 %v746, 0.0
  %v849 = vmax.f32 %v748, 0.0
  %v850 = vmax.f32 %v751, 0.0
  %v851 = vmax.f32 %v753, 0.0
  %v852 = vmax.f32 %v756, 0.0
  %v853 = vmax.f32 %v758, 0.0
  %v854 = vmax.f32 %v761, 0.0
  %v855 = vmax.f32 %v763, 0.0
  %v856 = vmax.f32 %v766, 0.0
  %v857 = vmax.f32 %v768, 0.0
  %v858 = vmax.f32 %v771, 0.0
  %v859 = vmax.f32 %v773, 0.0
  %v860 = vmax.f32 %v776, 0.0
  %v861 = vmax.f32 %v778, 0.0
  %v862 = vmax.f32 %v781, 0.0
  %v863 = vmax.f32 %v783, 0.0
  %v864 = vmax.f32 %v786, 0.0
  %v865 = vmax.f32 %v788, 0.0
  %v866 = vmax.f32 %v791, 0.0
  %v867 = vmax.f32 %v793, 0.0
  %v868 = vmax.f32 %v796, 0.0
  %v869 = vmax.f32 %v798, 0.0
  %v870 = vmax.f32 %v801, 0.0
  %v871 = vmax.f32 %v803, 0.0
  %v872 = vmax.f32 %v806, 0.0
  %v873 = vmax.f32 %v808, 0.0
  %874 = vst [vmem:[%s3] sm:$0xff] %v810
  %875 = vst [vmem:[%s3 + $0x8] sm:$0xff] %v811
  %876 = vst [vmem:[%s3 + $0x10] sm:$0xff] %v812
  %877 = vst [vmem:[%s3 + $0x18] sm:$0xff] %v813
  %878 = vst [vmem:[%s3 + $0x20] sm:$0xff] %v814
  %879 = vst [vmem:[%s3 + $0x28] sm:$0xff] %v815
  %880 = vst [vmem:[%s3 + $0x30] sm:$0xff] %v816
  %881 = vst [vmem:[%s3 + $0x38] sm:$0xff] %v817
  %882 = vst [vmem:[%s3 + $0x40] sm:$0xff] %v818
  %883 = vst [vmem:[%s3 + $0x48] sm:$0xff] %v819
  %884 = vst [vmem:[%s3 + $0x50] sm:$0xff] %v820
  %885 = vst [vmem:[%s3 + $0x58] sm:$0xff] %v821
  %886 = vst [vmem:[%s3 + $0x60] sm:$0xff] %v822
  %887 = vst [vmem:[%s3 + $0x68] sm:$0xff] %v823
  %888 = vst [vmem:[%s3 + $0x70] sm:$0xff] %v824
  %889 = vst [vmem:[%s3 + $0x78] sm:$0xff] %v825
  %890 = vst [vmem:[%s3 + $0x80] sm:$0xff] %v826
  %891 = vst [vmem:[%s3 + $0x88] sm:$0xff] %v827
  %892 = vst [vmem:[%s3 + $0x90] sm:$0xff] %v828
  %893 = vst [vmem:[%s3 + $0x98] sm:$0xff] %v829
  %894 = vst [vmem:[%s3 + $0xa0] sm:$0xff] %v830
  %895 = vst [vmem:[%s3 + $0xa8] sm:$0xff] %v831
  %896 = vst [vmem:[%s3 + $0xb0] sm:$0xff] %v832
  %897 = vst [vmem:[%s3 + $0xb8] sm:$0xff] %v833
  %898 = vst [vmem:[%s3 + $0xc0] sm:$0xff] %v834
  %899 = vst [vmem:[%s3 + $0xc8] sm:$0xff] %v835
  %900 = vst [vmem:[%s3 + $0xd0] sm:$0xff] %v836
  %901 = vst [vmem:[%s3 + $0xd8] sm:$0xff] %v837
  %902 = vst [vmem:[%s3 + $0xe0] sm:$0xff] %v838
  %903 = vst [vmem:[%s3 + $0xe8] sm:$0xff] %v839
  %904 = vst [vmem:[%s3 + $0xf0] sm:$0xff] %v840
  %905 = vst [vmem:[%s3 + $0xf8] sm:$0xff] %v841
  %906 = vst [vmem:[%s3 + $0x100] sm:$0xff] %v842
  %907 = vst [vmem:[%s3 + $0x108] sm:$0xff] %v843
  %908 = vst [vmem:[%s3 + $0x110] sm:$0xff] %v844
  %909 = vst [vmem:[%s3 + $0x118] sm:$0xff] %v845
  %910 = vst [vmem:[%s3 + $0x120] sm:$0xff] %v846
  %911 = vst [vmem:[%s3 + $0x128] sm:$0xff] %v847
  %912 = vst [vmem:[%s3 + $0x130] sm:$0xff] %v848
  %913 = vst [vmem:[%s3 + $0x138] sm:$0xff] %v849
  %914 = vst [vmem:[%s3 + $0x140] sm:$0xff] %v850
  %915 = vst [vmem:[%s3 + $0x148] sm:$0xff] %v851
  %916 = vst [vmem:[%s3 + $0x150] sm:$0xff] %v852
  %917 = vst [vmem:[%s3 + $0x158] sm:$0xff] %v853
  %918 = vst [vmem:[%s3 + $0x160] sm:$0xff] %v854
  %919 = vst [vmem:[%s3 + $0x168] sm:$0xff] %v855
  %920 = vst [vmem:[%s3 + $0x170] sm:$0xff] %v856
  %921 = vst [vmem:[%s3 + $0x178] sm:$0xff] %v857
  %922 = vst [vmem:[%s3 + $0x180] sm:$0xff] %v858
  %923 = vst [vmem:[%s3 + $0x188] sm:$0xff] %v859
  %924 = vst [vmem:[%s3 + $0x190] sm:$0xff] %v860
  %925 = vst [vmem:[%s3 + $0x198] sm:$0xff] %v861
  %926 = vst [vmem:[%s3 + $0x1a0] sm:$0xff] %v862
  %927 = vst [vmem:[%s3 + $0x1a8] sm:$0xff] %v863
  %928 = vst [vmem:[%s3 + $0x1b0] sm:$0xff] %v864
  %929 = vst [vmem:[%s3 + $0x1b8] sm:$0xff] %v865
  %930 = vst [vmem:[%s3 + $0x1c0] sm:$0xff] %v866
  %931 = vst [vmem:[%s3 + $0x1c8] sm:$0xff] %v867
  %932 = vst [vmem:[%s3 + $0x1d0] sm:$0xff] %v868
  %933 = vst [vmem:[%s3 + $0x1d8] sm:$0xff] %v869
  %934 = vst [vmem:[%s3 + $0x1e0] sm:$0xff] %v870
  %935 = vst [vmem:[%s3 + $0x1e8] sm:$0xff] %v871
  %936 = vst [vmem:[%s3 + $0x1f0] sm:$0xff] %v872
  %937 = vst [vmem:[%s3 + $0x1f8] sm:$0xff] %v873
  // Predicated region
  $region14: #{irednet_indrnn_forward.42} parent=0 // pred_check
    _
  $region15: #{irednet_indrnn_forward.42} parent=0 // pred_check_branch
    %939 = sbr.rel (0) target = $region17
  $region16: #{irednet_indrnn_forward.42} parent=0 // pred_region
    _
  $region17: #{irednet_indrnn_forward.42} parent=0 // pred_fallthru
    _
  // Predicated region
  $region18: #{irednet_indrnn_forward.42} parent=0 // pred_check
    _
  $region19: #{irednet_indrnn_forward.42} parent=0 // pred_check_branch
    %941 = sbr.rel (0) target = $region21
  $region20: #{irednet_indrnn_forward.42} parent=0 // pred_region
    _
  $region21: #{irednet_indrnn_forward.42} parent=0 // pred_fallthru
    _

// kernel: irednet_indrnn_forward.44
$region0: #{irednet_indrnn_forward.44}
  #allocation0 [shape = 'u32[]', space=smem, size = 0x4, offset = 0x4, fixed_abs, tag = 'smem constant byte address 0x4 - core index']
  #allocation1 [shape = 'u32[72,128]{1,0:T(1,128)}', space=vmem, size = 0x9000, scoped, tag = 'internal scratch']
  %s0 = inlined_call_operand.vmem [shape: f32[2,18,18,224], index: 0, kind: input, shape index: {}, may-alias: {0,1,2}]
  %s1 = inlined_call_operand.vmem [shape: f32[2,18,18,224], index: 1, kind: input, shape index: {}, may-alias: {0,1,2}]
  %s2 = inlined_call_operand.vmem [shape: f32[2,18,18,224], index: 2, kind: input, shape index: {}, may-alias: {0,1,2}]
  %s3 = inlined_call_operand.vmem [shape: f32[9,224,3], index: 3, kind: input, shape index: {}]
  %s4 = inlined_call_operand.vmem [shape: f32[1,3], index: 4, kind: input, shape index: {}]
  %s5 = inlined_call_operand.vmem [shape: f32[2,16,16,3], index: 5, kind: output, shape index: {}]
  %s6 = sld [smem:[#allocation0]]
  $region156: #{irednet_indrnn_forward.44} parent=0
    _
  %s8 = ssub.s32 1, %s6
  %s9 = scalar_select 0, %s8, %s6
  $region1: #{irednet_indrnn_forward.44} parent=0
    #allocation2 [shape = 'u8[98304]{0}', space=vmem, size = 0x18000, scoped, tag = 'input window, operand 0']
    #allocation3 [shape = 'u8[98304]{0}', space=vmem, size = 0x18000, scoped, tag = 'input window, operand 1']
    #allocation4 [shape = 'u8[98304]{0}', space=vmem, size = 0x18000, scoped, tag = 'input window, operand 2']
    #allocation5 [shape = 'u8[32768]{0}', space=vmem, size = 0x8000, scoped, tag = 'output window, operand 0']
    loop: start=0, step=1, limit=18
    $region2: #{irednet_indrnn_forward.44} parent=1 // loop_pre_header
      _
    $region3: #{irednet_indrnn_forward.44} parent=1 // loop_header
      %s11 = sphi 0, %s15
      %p12 = scmp.ge.s32.totalorder %s11, 18
      %s21 = sphi 0, %s23
      %s24 = sphi 0, %s21
      %s25 = sphi 0, %s24
      %s41 = sphi 0, %s25
      %s49 = sphi 0, %s51
      %s52 = sphi 0, %s49
      %s53 = sphi 0, %s52
      %s69 = sphi 0, %s53
      %s77 = sphi 0, %s79
      %s80 = sphi 0, %s77
      %s81 = sphi 0, %s80
      %s97 = sphi 0, %s81
      %s101 = sphi 0, %s101
      %s103 = sphi 0, %s101
      %s104 = sphi 0, %s103
      %s118 = sphi 0, %s104
      %s122 = sphi 0, %s122
      %s124 = sphi 0, %s122
      %s125 = sphi 0, %s124
      %s139 = sphi 0, %s125
      %s145 = sphi 0, %s147
      %s148 = sphi 0, %s145
      %s149 = sphi 0, %s148
      %s165 = sphi 0, %s149
    $region4: #{irednet_indrnn_forward.44} parent=1 // loop_header_branch
      %14 = sbr.rel (%p12) target = $region8
    $region5: #{irednet_indrnn_forward.44} parent=1 // loop_body
      %s16 = ssub.s32 %s11, 1
      %s17 = ssub.s32 %s11, 2
      %s18 = sadd.s32 %s11, 1
      %s19 = ssub.s32 %s11, %s18
      %p20 = scmp.eq.s32.totalorder %s19, 0
      %s22 = sadd.s32 %s21, 1
      %s23 = scalar_select %p20, %s21, %s22
      %p26 = pneg %p20
      %p27 = scmp.eq.s32.totalorder %s11, 15
      %p28 = por %p26, %p27
      %p29 = scmp.ne.s32.totalorder %s21, %s24
      %p30 = scmp.eq.s32.totalorder %s11, 0
      %p31 = por %p29, %p30
      %p32 = scmp.ne.s32.totalorder %s21, %s24
      %p33 = scmp.eq.s32.totalorder %s16, 15
      %p34 = por %p32, %p33
      %p35 = scmp.ne.s32.totalorder %s24, %s25
      %p36 = scmp.eq.s32.totalorder %s16, 0
      %p37 = por %p35, %p36
      %p38 = scmp.ne.s32.totalorder %s24, %s25
      %p39 = scmp.eq.s32.totalorder %s17, 15
      %p40 = por %p38, %p39
      %p42 = scmp.ne.s32.totalorder %s25, %s41
      %p43 = scmp.eq.s32.totalorder %s17, 0
      %p44 = por %p42, %p43
      %s45 = sadd.s32 %s11, 1
      %s46 = sadd.s32 %s18, 1
      %s47 = ssub.s32 %s45, %s46
      %p48 = scmp.eq.s32.totalorder %s47, 0
      %s50 = sadd.s32 %s49, 1
      %s51 = scalar_select %p48, %s49, %s50
      %p54 = pneg %p48
      %p55 = scmp.eq.s32.totalorder %s11, 15
      %p56 = por %p54, %p55
      %p57 = scmp.ne.s32.totalorder %s49, %s52
      %p58 = scmp.eq.s32.totalorder %s11, 0
      %p59 = por %p57, %p58
      %p60 = scmp.ne.s32.totalorder %s49, %s52
      %p61 = scmp.eq.s32.totalorder %s16, 15
      %p62 = por %p60, %p61
      %p63 = scmp.ne.s32.totalorder %s52, %s53
      %p64 = scmp.eq.s32.totalorder %s16, 0
      %p65 = por %p63, %p64
      %p66 = scmp.ne.s32.totalorder %s52, %s53
      %p67 = scmp.eq.s32.totalorder %s17, 15
      %p68 = por %p66, %p67
      %p70 = scmp.ne.s32.totalorder %s53, %s69
      %p71 = scmp.eq.s32.totalorder %s17, 0
      %p72 = por %p70, %p71
      %s73 = sadd.s32 %s11, 2
      %s74 = sadd.s32 %s18, 2
      %s75 = ssub.s32 %s73, %s74
      %p76 = scmp.eq.s32.totalorder %s75, 0
      %s78 = sadd.s32 %s77, 1
      %s79 = scalar_select %p76, %s77, %s78
      %p82 = pneg %p76
      %p83 = scmp.eq.s32.totalorder %s11, 15
      %p84 = por %p82, %p83
      %p85 = scmp.ne.s32.totalorder %s77, %s80
      %p86 = scmp.eq.s32.totalorder %s11, 0
      %p87 = por %p85, %p86
      %p88 = scmp.ne.s32.totalorder %s77, %s80
      %p89 = scmp.eq.s32.totalorder %s16, 15
      %p90 = por %p88, %p89
      %p91 = scmp.ne.s32.totalorder %s80, %s81
      %p92 = scmp.eq.s32.totalorder %s16, 0
      %p93 = por %p91, %p92
      %p94 = scmp.ne.s32.totalorder %s80, %s81
      %p95 = scmp.eq.s32.totalorder %s17, 15
      %p96 = por %p94, %p95
      %p98 = scmp.ne.s32.totalorder %s81, %s97
      %p99 = scmp.eq.s32.totalorder %s17, 0
      %p100 = por %p98, %p99
      %s102 = sadd.s32 %s101, 1
      %p105 = scmp.eq.s32.totalorder %s11, 15
      %p106 = scmp.ne.s32.totalorder %s101, %s103
      %p107 = scmp.eq.s32.totalorder %s11, 0
      %p108 = por %p106, %p107
      %p109 = scmp.ne.s32.totalorder %s101, %s103
      %p110 = scmp.eq.s32.totalorder %s16, 15
      %p111 = por %p109, %p110
      %p112 = scmp.ne.s32.totalorder %s103, %s104
      %p113 = scmp.eq.s32.totalorder %s16, 0
      %p114 = por %p112, %p113
      %p115 = scmp.ne.s32.totalorder %s103, %s104
      %p116 = scmp.eq.s32.totalorder %s17, 15
      %p117 = por %p115, %p116
      %p119 = scmp.ne.s32.totalorder %s104, %s118
      %p120 = scmp.eq.s32.totalorder %s17, 0
      %p121 = por %p119, %p120
      %s123 = sadd.s32 %s122, 1
      %p126 = scmp.eq.s32.totalorder %s11, 15
      %p127 = scmp.ne.s32.totalorder %s122, %s124
      %p128 = scmp.eq.s32.totalorder %s11, 0
      %p129 = por %p127, %p128
      %p130 = scmp.ne.s32.totalorder %s122, %s124
      %p131 = scmp.eq.s32.totalorder %s16, 15
      %p132 = por %p130, %p131
      %p133 = scmp.ne.s32.totalorder %s124, %s125
      %p134 = scmp.eq.s32.totalorder %s16, 0
      %p135 = por %p133, %p134
      %p136 = scmp.ne.s32.totalorder %s124, %s125
      %p137 = scmp.eq.s32.totalorder %s17, 15
      %p138 = por %p136, %p137
      %p140 = scmp.ne.s32.totalorder %s125, %s139
      %p141 = scmp.eq.s32.totalorder %s17, 0
      %p142 = por %p140, %p141
      %s143 = ssub.s32 %s11, %s18
      %p144 = scmp.eq.s32.totalorder %s143, 0
      %s146 = sadd.s32 %s145, 1
      %s147 = scalar_select %p144, %s145, %s146
      %p150 = pneg %p144
      %p151 = scmp.eq.s32.totalorder %s11, 15
      %p152 = por %p150, %p151
      %p153 = scmp.ne.s32.totalorder %s145, %s148
      %p154 = scmp.eq.s32.totalorder %s11, 0
      %p155 = por %p153, %p154
      %p156 = scmp.ne.s32.totalorder %s145, %s148
      %p157 = scmp.eq.s32.totalorder %s16, 15
      %p158 = por %p156, %p157
      %p159 = scmp.ne.s32.totalorder %s148, %s149
      %p160 = scmp.eq.s32.totalorder %s16, 0
      %p161 = por %p159, %p160
      %p162 = scmp.ne.s32.totalorder %s148, %s149
      %p163 = scmp.eq.s32.totalorder %s17, 15
      %p164 = por %p162, %p163
      %p166 = scmp.ne.s32.totalorder %s149, %s165
      %p167 = scmp.eq.s32.totalorder %s17, 0
      %p168 = por %p166, %p167
      %p169 = scmp.le.s32.totalorder 1, %s11
      %p170 = scmp.lt.s32.totalorder %s11, 17
      %p171 = pnand %p169, %p170
      %p172 = pneg %p171
      // Predicated region
      $region9: #{irednet_indrnn_forward.44} parent=5 // pred_check
        _
      $region10: #{irednet_indrnn_forward.44} parent=5 // pred_check_branch
        %174 = sbr.rel (%p171) target = $region12
      $region11: #{irednet_indrnn_forward.44} parent=5 // pred_region
        %s175 = ssub.s32 %s11, 1
        // Predicated region
        $region13: #{irednet_indrnn_forward.44} parent=11 // pred_check
          %p176 = pneg %p114
        $region14: #{irednet_indrnn_forward.44} parent=11 // pred_check_branch
          %178 = sbr.rel (%p176) target = $region16
        $region15: #{irednet_indrnn_forward.44} parent=11 // pred_region
          _
        $region16: #{irednet_indrnn_forward.44} parent=11 // pred_fallthru
          _
        // Predicated region
        $region17: #{irednet_indrnn_forward.44} parent=11 // pred_check
          %p179 = pneg %p135
        $region18: #{irednet_indrnn_forward.44} parent=11 // pred_check_branch
          %181 = sbr.rel (%p179) target = $region20
        $region19: #{irednet_indrnn_forward.44} parent=11 // pred_region
          _
        $region20: #{irednet_indrnn_forward.44} parent=11 // pred_fallthru
          _
      $region12: #{irednet_indrnn_forward.44} parent=5 // pred_fallthru
        _
      %p182 = scmp.lt.s32.totalorder %s11, 16
      // Predicated region
      $region21: #{irednet_indrnn_forward.44} parent=5 // pred_check
        %p183 = pneg %p182
      $region22: #{irednet_indrnn_forward.44} parent=5 // pred_check_branch
        %185 = sbr.rel (%p183) target = $region24
      $region23: #{irednet_indrnn_forward.44} parent=5 // pred_region
        // Predicated region
        $region25: #{irednet_indrnn_forward.44} parent=23 // pred_check
          %p186 = pneg %p31
        $region26: #{irednet_indrnn_forward.44} parent=23 // pred_check_branch
          %188 = sbr.rel (%p186) target = $region28
        $region27: #{irednet_indrnn_forward.44} parent=23 // pred_region
          %s189 = sand.u32 %s21, 1
          %s190 = sand.u32 %s21, 1
          %s191 = smul.addr %s190, 96
          %s192 = scalar_lea.vmem [#allocation2], %s191
          %s193 = smul.addr %s11, 6
          %s194 = smul.addr %s193, 8
          %s195 = scalar_lea.vmem %s0, %s194
          // Predicated region
          $region29: #{irednet_indrnn_forward.44} parent=27 // pred_check
            _
          $region30: #{irednet_indrnn_forward.44} parent=27 // pred_check_branch
            %197 = sbr.rel (0) target = $region32
          $region31: #{irednet_indrnn_forward.44} parent=27 // pred_region
            // Predicated region
            $region33: #{irednet_indrnn_forward.44} parent=31 // pred_check
              _
            $region34: #{irednet_indrnn_forward.44} parent=31 // pred_check_branch
              %199 = sbr.rel (0) target = $region36
            $region35: #{irednet_indrnn_forward.44} parent=31 // pred_region
              loop: start=0, step=1, limit=1
              $region37: #{irednet_indrnn_forward.44} parent=35 // loop_pre_header
                _
              $region38: #{irednet_indrnn_forward.44} parent=35 // loop_header
                %s201 = sphi 0, %s205
                %p202 = scmp.ge.s32.totalorder %s201, 1
                %s206 = sphi %s195, %s195
                %s207 = sphi %s192, %s192
              $region39: #{irednet_indrnn_forward.44} parent=35 // loop_header_branch
                %204 = sbr.rel (%p202) target = $region43
              $region40: #{irednet_indrnn_forward.44} parent=35 // loop_body
                %v208 = vld [vmem:[%s206] sm:$0xff]
                %209 = vst [vmem:[%s207] sm:$0xff] %v208
                %v210 = vld [vmem:[%s206 + $0x8] sm:$0xff]
                %211 = vst [vmem:[%s207 + $0x8] sm:$0xff] %v210
                %v212 = vld [vmem:[%s206 + $0x10] sm:$0xff]
                %213 = vst [vmem:[%s207 + $0x10] sm:$0xff] %v212
                %v214 = vld [vmem:[%s206 + $0x18] sm:$0xff]
                %215 = vst [vmem:[%s207 + $0x18] sm:$0xff] %v214
                %v216 = vld [vmem:[%s206 + $0x20] sm:$0xff]
                %217 = vst [vmem:[%s207 + $0x20] sm:$0xff] %v216
                %v218 = vld [vmem:[%s206 + $0x28] sm:$0xff]
                %219 = vst [vmem:[%s207 + $0x28] sm:$0xff] %v218
                %v220 = vld [vmem:[%s206 + $0x360] sm:$0xff]
                %221 = vst [vmem:[%s207 + $0x30] sm:$0xff] %v220
                %v222 = vld [vmem:[%s206 + $0x368] sm:$0xff]
                %223 = vst [vmem:[%s207 + $0x38] sm:$0xff] %v222
                %v224 = vld [vmem:[%s206 + $0x370] sm:$0xff]
                %225 = vst [vmem:[%s207 + $0x40] sm:$0xff] %v224
                %v226 = vld [vmem:[%s206 + $0x378] sm:$0xff]
                %227 = vst [vmem:[%s207 + $0x48] sm:$0xff] %v226
                %v228 = vld [vmem:[%s206 + $0x380] sm:$0xff]
                %229 = vst [vmem:[%s207 + $0x50] sm:$0xff] %v228
                %v230 = vld [vmem:[%s206 + $0x388] sm:$0xff]
                %231 = vst [vmem:[%s207 + $0x58] sm:$0xff] %v230
              $region41: #{irednet_indrnn_forward.44} parent=35 // loop_footer
                %s205 = sadd.s32 1, %s201
              $region42: #{irednet_indrnn_forward.44} parent=35 // loop_footer_branch
                %200 = sbr.rel target = $region38
              $region43: #{irednet_indrnn_forward.44} parent=35 // loop_exit
                _
            $region36: #{irednet_indrnn_forward.44} parent=31 // pred_fallthru
              _
            // Predicated region
            $region44: #{irednet_indrnn_forward.44} parent=31 // pred_check
              _
            $region45: #{irednet_indrnn_forward.44} parent=31 // pred_check_branch
              %233 = sbr.rel target = $region47
            $region46: #{irednet_indrnn_forward.44} parent=31 // pred_region
              _
            $region47: #{irednet_indrnn_forward.44} parent=31 // pred_fallthru
              _
          $region32: #{irednet_indrnn_forward.44} parent=27 // pred_fallthru
            _
          %234 = vnop
        $region28: #{irednet_indrnn_forward.44} parent=23 // pred_fallthru
          _
        // Predicated region
        $region48: #{irednet_indrnn_forward.44} parent=23 // pred_check
          %p235 = pneg %p59
        $region49: #{irednet_indrnn_forward.44} parent=23 // pred_check_branch
          %237 = sbr.rel (%p235) target = $region51
        $region50: #{irednet_indrnn_forward.44} parent=23 // pred_region
          %s238 = sand.u32 %s49, 1
          %s239 = sand.u32 %s49, 1
          %s240 = smul.addr %s239, 96
          %s241 = scalar_lea.vmem [#allocation3], %s240
          %s242 = sadd.s32 %s11, 1
          %s243 = smul.addr %s242, 6
          %s244 = smul.addr %s243, 8
          %s245 = scalar_lea.vmem %s1, %s244
          // Predicated region
          $region52: #{irednet_indrnn_forward.44} parent=50 // pred_check
            _
          $region53: #{irednet_indrnn_forward.44} parent=50 // pred_check_branch
            %247 = sbr.rel (0) target = $region55
          $region54: #{irednet_indrnn_forward.44} parent=50 // pred_region
            // Predicated region
            $region56: #{irednet_indrnn_forward.44} parent=54 // pred_check
              _
            $region57: #{irednet_indrnn_forward.44} parent=54 // pred_check_branch
              %249 = sbr.rel (0) target = $region59
            $region58: #{irednet_indrnn_forward.44} parent=54 // pred_region
              loop: start=0, step=1, limit=1
              $region60: #{irednet_indrnn_forward.44} parent=58 // loop_pre_header
                _
              $region61: #{irednet_indrnn_forward.44} parent=58 // loop_header
                %s251 = sphi 0, %s255
                %p252 = scmp.ge.s32.totalorder %s251, 1
                %s256 = sphi %s245, %s245
                %s257 = sphi %s241, %s241
              $region62: #{irednet_indrnn_forward.44} parent=58 // loop_header_branch
                %254 = sbr.rel (%p252) target = $region66
              $region63: #{irednet_indrnn_forward.44} parent=58 // loop_body
                %v258 = vld [vmem:[%s256] sm:$0xff]
                %259 = vst [vmem:[%s257] sm:$0xff] %v258
                %v260 = vld [vmem:[%s256 + $0x8] sm:$0xff]
                %261 = vst [vmem:[%s257 + $0x8] sm:$0xff] %v260
                %v262 = vld [vmem:[%s256 + $0x10] sm:$0xff]
                %263 = vst [vmem:[%s257 + $0x10] sm:$0xff] %v262
                %v264 = vld [vmem:[%s256 + $0x18] sm:$0xff]
                %265 = vst [vmem:[%s257 + $0x18] sm:$0xff] %v264
                %v266 = vld [vmem:[%s256 + $0x20] sm:$0xff]
                %267 = vst [vmem:[%s257 + $0x20] sm:$0xff] %v266
                %v268 = vld [vmem:[%s256 + $0x28] sm:$0xff]
                %269 = vst [vmem:[%s257 + $0x28] sm:$0xff] %v268
                %v270 = vld [vmem:[%s256 + $0x360] sm:$0xff]
                %271 = vst [vmem:[%s257 + $0x30] sm:$0xff] %v270
                %v272 = vld [vmem:[%s256 + $0x368] sm:$0xff]
                %273 = vst [vmem:[%s257 + $0x38] sm:$0xff] %v272
                %v274 = vld [vmem:[%s256 + $0x370] sm:$0xff]
                %275 = vst [vmem:[%s257 + $0x40] sm:$0xff] %v274
                %v276 = vld [vmem:[%s256 + $0x378] sm:$0xff]
                %277 = vst [vmem:[%s257 + $0x48] sm:$0xff] %v276
                %v278 = vld [vmem:[%s256 + $0x380] sm:$0xff]
                %279 = vst [vmem:[%s257 + $0x50] sm:$0xff] %v278
                %v280 = vld [vmem:[%s256 + $0x388] sm:$0xff]
                %281 = vst [vmem:[%s257 + $0x58] sm:$0xff] %v280
              $region64: #{irednet_indrnn_forward.44} parent=58 // loop_footer
                %s255 = sadd.s32 1, %s251
              $region65: #{irednet_indrnn_forward.44} parent=58 // loop_footer_branch
                %250 = sbr.rel target = $region61
              $region66: #{irednet_indrnn_forward.44} parent=58 // loop_exit
                _
            $region59: #{irednet_indrnn_forward.44} parent=54 // pred_fallthru
              _
            // Predicated region
            $region67: #{irednet_indrnn_forward.44} parent=54 // pred_check
              _
            $region68: #{irednet_indrnn_forward.44} parent=54 // pred_check_branch
              %283 = sbr.rel target = $region70
            $region69: #{irednet_indrnn_forward.44} parent=54 // pred_region
              _
            $region70: #{irednet_indrnn_forward.44} parent=54 // pred_fallthru
              _
          $region55: #{irednet_indrnn_forward.44} parent=50 // pred_fallthru
            _
          %284 = vnop
        $region51: #{irednet_indrnn_forward.44} parent=23 // pred_fallthru
          _
        // Predicated region
        $region71: #{irednet_indrnn_forward.44} parent=23 // pred_check
          %p285 = pneg %p87
        $region72: #{irednet_indrnn_forward.44} parent=23 // pred_check_branch
          %287 = sbr.rel (%p285) target = $region74
        $region73: #{irednet_indrnn_forward.44} parent=23 // pred_region
          %s288 = sand.u32 %s77, 1
          %s289 = sand.u32 %s77, 1
          %s290 = smul.addr %s289, 96
          %s291 = scalar_lea.vmem [#allocation4], %s290
          %s292 = sadd.s32 %s11, 2
          %s293 = smul.addr %s292, 6
          %s294 = smul.addr %s293, 8
          %s295 = scalar_lea.vmem %s2, %s294
          // Predicated region
          $region75: #{irednet_indrnn_forward.44} parent=73 // pred_check
            _
          $region76: #{irednet_indrnn_forward.44} parent=73 // pred_check_branch
            %297 = sbr.rel (0) target = $region78
          $region77: #{irednet_indrnn_forward.44} parent=73 // pred_region
            // Predicated region
            $region79: #{irednet_indrnn_forward.44} parent=77 // pred_check
              _
            $region80: #{irednet_indrnn_forward.44} parent=77 // pred_check_branch
              %299 = sbr.rel (0) target = $region82
            $region81: #{irednet_indrnn_forward.44} parent=77 // pred_region
              loop: start=0, step=1, limit=1
              $region83: #{irednet_indrnn_forward.44} parent=81 // loop_pre_header
                _
              $region84: #{irednet_indrnn_forward.44} parent=81 // loop_header
                %s301 = sphi 0, %s305
                %p302 = scmp.ge.s32.totalorder %s301, 1
                %s306 = sphi %s295, %s295
                %s307 = sphi %s291, %s291
              $region85: #{irednet_indrnn_forward.44} parent=81 // loop_header_branch
                %304 = sbr.rel (%p302) target = $region89
              $region86: #{irednet_indrnn_forward.44} parent=81 // loop_body
                %v308 = vld [vmem:[%s306] sm:$0xff]
                %309 = vst [vmem:[%s307] sm:$0xff] %v308
                %v310 = vld [vmem:[%s306 + $0x8] sm:$0xff]
                %311 = vst [vmem:[%s307 + $0x8] sm:$0xff] %v310
                %v312 = vld [vmem:[%s306 + $0x10] sm:$0xff]
                %313 = vst [vmem:[%s307 + $0x10] sm:$0xff] %v312
                %v314 = vld [vmem:[%s306 + $0x18] sm:$0xff]
                %315 = vst [vmem:[%s307 + $0x18] sm:$0xff] %v314
                %v316 = vld [vmem:[%s306 + $0x20] sm:$0xff]
                %317 = vst [vmem:[%s307 + $0x20] sm:$0xff] %v316
                %v318 = vld [vmem:[%s306 + $0x28] sm:$0xff]
                %319 = vst [vmem:[%s307 + $0x28] sm:$0xff] %v318
                %v320 = vld [vmem:[%s306 + $0x360] sm:$0xff]
                %321 = vst [vmem:[%s307 + $0x30] sm:$0xff] %v320
                %v322 = vld [vmem:[%s306 + $0x368] sm:$0xff]
                %323 = vst [vmem:[%s307 + $0x38] sm:$0xff] %v322
                %v324 = vld [vmem:[%s306 + $0x370] sm:$0xff]
                %325 = vst [vmem:[%s307 + $0x40] sm:$0xff] %v324
                %v326 = vld [vmem:[%s306 + $0x378] sm:$0xff]
                %327 = vst [vmem:[%s307 + $0x48] sm:$0xff] %v326
                %v328 = vld [vmem:[%s306 + $0x380] sm:$0xff]
                %329 = vst [vmem:[%s307 + $0x50] sm:$0xff] %v328
                %v330 = vld [vmem:[%s306 + $0x388] sm:$0xff]
                %331 = vst [vmem:[%s307 + $0x58] sm:$0xff] %v330
              $region87: #{irednet_indrnn_forward.44} parent=81 // loop_footer
                %s305 = sadd.s32 1, %s301
              $region88: #{irednet_indrnn_forward.44} parent=81 // loop_footer_branch
                %300 = sbr.rel target = $region84
              $region89: #{irednet_indrnn_forward.44} parent=81 // loop_exit
                _
            $region82: #{irednet_indrnn_forward.44} parent=77 // pred_fallthru
              _
            // Predicated region
            $region90: #{irednet_indrnn_forward.44} parent=77 // pred_check
              _
            $region91: #{irednet_indrnn_forward.44} parent=77 // pred_check_branch
              %333 = sbr.rel target = $region93
            $region92: #{irednet_indrnn_forward.44} parent=77 // pred_region
              _
            $region93: #{irednet_indrnn_forward.44} parent=77 // pred_fallthru
              _
          $region78: #{irednet_indrnn_forward.44} parent=73 // pred_fallthru
            _
          %334 = vnop
        $region74: #{irednet_indrnn_forward.44} parent=23 // pred_fallthru
          _
      $region24: #{irednet_indrnn_forward.44} parent=5 // pred_fallthru
        _
      %p335 = scmp.le.s32.totalorder 1, %s11
      %p336 = scmp.lt.s32.totalorder %s11, 17
      %p337 = pnand %p335, %p336
      %p338 = pneg %p337
      // Predicated region
      $region94: #{irednet_indrnn_forward.44} parent=5 // pred_check
        _
      $region95: #{irednet_indrnn_forward.44} parent=5 // pred_check_branch
        %340 = sbr.rel (%p337) target = $region97
      $region96: #{irednet_indrnn_forward.44} parent=5 // pred_region
        %s341 = ssub.s32 %s11, 1
        %s342 = sand.u32 %s24, 1
        %s343 = sand.u32 %s24, 1
        %s344 = smul.addr %s343, 96
        %s345 = scalar_lea.vmem [#allocation2], %s344
        // Predicated region
        $region98: #{irednet_indrnn_forward.44} parent=96 // pred_check
          %p346 = pneg %p37
        $region99: #{irednet_indrnn_forward.44} parent=96 // pred_check_branch
          %348 = sbr.rel (%p346) target = $region101
        $region100: #{irednet_indrnn_forward.44} parent=96 // pred_region
          _
        $region101: #{irednet_indrnn_forward.44} parent=96 // pred_fallthru
          _
        %s349 = sand.u32 %s52, 1
        %s350 = sand.u32 %s52, 1
        %s351 = smul.addr %s350, 96
        %s352 = scalar_lea.vmem [#allocation3], %s351
        // Predicated region
        $region102: #{irednet_indrnn_forward.44} parent=96 // pred_check
          %p353 = pneg %p65
        $region103: #{irednet_indrnn_forward.44} parent=96 // pred_check_branch
          %355 = sbr.rel (%p353) target = $region105
        $region104: #{irednet_indrnn_forward.44} parent=96 // pred_region
          _
        $region105: #{irednet_indrnn_forward.44} parent=96 // pred_fallthru
          _
        %s356 = sand.u32 %s80, 1
        %s357 = sand.u32 %s80, 1
        %s358 = smul.addr %s357, 96
        %s359 = scalar_lea.vmem [#allocation4], %s358
        // Predicated region
        $region106: #{irednet_indrnn_forward.44} parent=96 // pred_check
          %p360 = pneg %p93
        $region107: #{irednet_indrnn_forward.44} parent=96 // pred_check_branch
          %362 = sbr.rel (%p360) target = $region109
        $region108: #{irednet_indrnn_forward.44} parent=96 // pred_region
          _
        $region109: #{irednet_indrnn_forward.44} parent=96 // pred_fallthru
          _
        %s363 = sand.u32 %s24, 1
        %s364 = sand.u32 %s24, 1
        %s365 = smul.addr %s364, 96
        %s366 = scalar_lea.vmem [#allocation2], %s365
        %p367 = pneg %p37
        %p368 = pneg %p34
        %s369 = sand.u32 %s52, 1
        %s370 = sand.u32 %s52, 1
        %s371 = smul.addr %s370, 96
        %s372 = scalar_lea.vmem [#allocation3], %s371
        %p373 = pneg %p65
        %p374 = pneg %p62
        %s375 = sand.u32 %s80, 1
        %s376 = sand.u32 %s80, 1
        %s377 = smul.addr %s376, 96
        %s378 = scalar_lea.vmem [#allocation4], %s377
        %p379 = pneg %p93
        %p380 = pneg %p90
        %p381 = pneg %p114
        %p382 = pneg %p111
        %p383 = pneg %p135
        %p384 = pneg %p132
        %p385 = pneg %p161
        %p386 = pneg %p158
        %s387 = sand.u32 %s148, 1
        %s388 = sand.u32 %s148, 1
        %s389 = smul.addr %s388, 32
        %s390 = scalar_lea.vmem [#allocation5], %s389
        %s391 = sadd.s32 %s16, 1
        %s392 = sadd.s32 %s16, 2
        %v394 = vld [vmem:[%s345] sm:$0xff]
        %v395 = vld [vmem:[%s345 + $0x8] sm:$0xff]
        %v396 = vld [vmem:[%s345 + $0x10] sm:$0xff]
        %v397 = vld [vmem:[%s345 + $0x18] sm:$0xff]
        %v398 = vld [vmem:[%s345 + $0x20] sm:$0x3]
        %v399 = vld [vmem:[%s345 + $0x28] sm:$0x3]
        %v400 = vld [vmem:[%s345 + $0x30] sm:$0xff]
        %v401 = vld [vmem:[%s345 + $0x38] sm:$0xff]
        %v402 = vld [vmem:[%s345 + $0x40] sm:$0xff]
        %v403 = vld [vmem:[%s345 + $0x48] sm:$0xff]
        %v404 = vld [vmem:[%s345 + $0x50] sm:$0x3]
        %v405 = vld [vmem:[%s345 + $0x58] sm:$0x3]
        %v406 = vld [vmem:[%s352] sm:$0xff]
        %v407 = vld [vmem:[%s352 + $0x8] sm:$0xff]
        %v408 = vld [vmem:[%s352 + $0x10] sm:$0xff]
        %v409 = vld [vmem:[%s352 + $0x18] sm:$0xff]
        %v410 = vld [vmem:[%s352 + $0x20] sm:$0x3]
        %v411 = vld [vmem:[%s352 + $0x28] sm:$0x3]
        %v412 = vld [vmem:[%s352 + $0x30] sm:$0xff]
        %v413 = vld [vmem:[%s352 + $0x38] sm:$0xff]
        %v414 = vld [vmem:[%s352 + $0x40] sm:$0xff]
        %v415 = vld [vmem:[%s352 + $0x48] sm:$0xff]
        %v416 = vld [vmem:[%s352 + $0x50] sm:$0x3]
        %v417 = vld [vmem:[%s352 + $0x58] sm:$0x3]
        %v418 = vld [vmem:[%s359] sm:$0xff]
        %v419 = vld [vmem:[%s359 + $0x8] sm:$0xff]
        %v420 = vld [vmem:[%s359 + $0x10] sm:$0xff]
        %v421 = vld [vmem:[%s359 + $0x18] sm:$0xff]
        %v422 = vld [vmem:[%s359 + $0x20] sm:$0x3]
        %v423 = vld [vmem:[%s359 + $0x28] sm:$0x3]
        %v424 = vld [vmem:[%s359 + $0x30] sm:$0xff]
        %v425 = vld [vmem:[%s359 + $0x38] sm:$0xff]
        %v426 = vld [vmem:[%s359 + $0x40] sm:$0xff]
        %v427 = vld [vmem:[%s359 + $0x48] sm:$0xff]
        %v428 = vld [vmem:[%s359 + $0x50] sm:$0x3]
        %v429 = vld [vmem:[%s359 + $0x58] sm:$0x3]
        %v430 = vld [vmem:[%s3] sm:$0xff]
        %v431 = vld [vmem:[%s3 + $0x8] sm:$0xff]
        %v432 = vld [vmem:[%s3 + $0x10] sm:$0xff]
        %v433 = vld [vmem:[%s3 + $0x18] sm:$0xff]
        %v434 = vld [vmem:[%s3 + $0x20] sm:$0xff]
        %v435 = vld [vmem:[%s3 + $0x28] sm:$0xff]
        %v436 = vld [vmem:[%s3 + $0x30] sm:$0xff]
        %v437 = vld [vmem:[%s3 + $0x38] sm:$0xff]
        %v438 = vld [vmem:[%s3 + $0x40] sm:$0xff]
        %v439 = vld [vmem:[%s3 + $0x48] sm:$0xff]
        %v440 = vld [vmem:[%s3 + $0x50] sm:$0xff]
        %v441 = vld [vmem:[%s3 + $0x58] sm:$0xff]
        %v442 = vld [vmem:[%s3 + $0x60] sm:$0xff]
        %v443 = vld [vmem:[%s3 + $0x68] sm:$0xff]
        %v444 = vld [vmem:[%s3 + $0x70] sm:$0xff]
        %v445 = vld [vmem:[%s3 + $0x78] sm:$0xff]
        %v446 = vld [vmem:[%s3 + $0x80] sm:$0xff]
        %v447 = vld [vmem:[%s3 + $0x88] sm:$0xff]
        %v448 = vld [vmem:[%s3 + $0x90] sm:$0xff]
        %v449 = vld [vmem:[%s3 + $0x98] sm:$0xff]
        %v450 = vld [vmem:[%s3 + $0xa0] sm:$0xff]
        %v451 = vld [vmem:[%s3 + $0xa8] sm:$0xff]
        %v452 = vld [vmem:[%s3 + $0xb0] sm:$0xff]
        %v453 = vld [vmem:[%s3 + $0xb8] sm:$0xff]
        %v454 = vld [vmem:[%s3 + $0xc0] sm:$0xff]
        %v455 = vld [vmem:[%s3 + $0xc8] sm:$0xff]
        %v456 = vld [vmem:[%s3 + $0xd0] sm:$0xff]
        %v457 = vld [vmem:[%s3 + $0xd8] sm:$0xff]
        %v458 = vpack.c.bf16 %v396, %v394
        %v459 = vpack.c.bf16 %v397, %v395
        %v460 = vpack.c.bf16 %v402, %v400
        %v461 = vpack.c.bf16 %v403, %v401
        %v462 = vpack.c.bf16 %v431, %v430
        %v463 = vpack.c.bf16 %v433, %v432
        %v464 = vpack.c.bf16 %v435, %v434
        %v465 = vpack.c.bf16 %v437, %v436
        %v466 = vpack.c.bf16 %v439, %v438
        %v467 = vpack.c.bf16 %v441, %v440
        %v468 = vpack.c.bf16 %v443, %v442
        %v469 = vpack.c.bf16 %v445, %v444
        %v470 = vpack.c.bf16 %v447, %v446
        %v471 = vpack.c.bf16 %v449, %v448
        %v472 = vpack.c.bf16 %v451, %v450
        %v473 = vpack.c.bf16 %v453, %v452
        %v474 = vpack.c.bf16 %v455, %v454
        %v475 = vpack.c.bf16 %v457, %v456
        %vm488 = vcmask 1046528
        %v489 = vrot.slane %v394, 1
        %v490 = vrot.slane %v396, 1
        %v491 = vsel %vm488, %v489, %v490
        %v492 = vrot.slane %v395, 1
        %v493 = vrot.slane %v397, 1
        %v494 = vsel %vm488, %v492, %v493
        %v495 = vrot.slane %v398, 1
        %v496 = vsel %vm488, %v490, %v495
        %v497 = vrot.slane %v399, 1
        %v498 = vsel %vm488, %v493, %v497
        %v499 = vrot.slane %v400, 1
        %v500 = vrot.slane %v402, 1
        %v501 = vsel %vm488, %v499, %v500
        %v502 = vrot.slane %v401, 1
        %v503 = vrot.slane %v403, 1
        %v504 = vsel %vm488, %v502, %v503
        %v505 = vrot.slane %v404, 1
        %v506 = vsel %vm488, %v500, %v505
        %v507 = vrot.slane %v405, 1
        %v508 = vsel %vm488, %v503, %v507
        %s517 = scalar_lea.vmem %s3, 224
        %v518 = vld [vmem:[%s517] sm:$0xff]
        %v519 = vld [vmem:[%s517 + $0x8] sm:$0xff]
        %v520 = vld [vmem:[%s517 + $0x10] sm:$0xff]
        %v521 = vld [vmem:[%s517 + $0x18] sm:$0xff]
        %v522 = vld [vmem:[%s517 + $0x20] sm:$0xff]
        %v523 = vld [vmem:[%s517 + $0x28] sm:$0xff]
        %v524 = vld [vmem:[%s517 + $0x30] sm:$0xff]
        %v525 = vld [vmem:[%s517 + $0x38] sm:$0xff]
        %v526 = vld [vmem:[%s517 + $0x40] sm:$0xff]
        %v527 = vld [vmem:[%s517 + $0x48] sm:$0xff]
        %v528 = vld [vmem:[%s517 + $0x50] sm:$0xff]
        %v529 = vld [vmem:[%s517 + $0x58] sm:$0xff]
        %v530 = vld [vmem:[%s517 + $0x60] sm:$0xff]
        %v531 = vld [vmem:[%s517 + $0x68] sm:$0xff]
        %v532 = vld [vmem:[%s517 + $0x70] sm:$0xff]
        %v533 = vld [vmem:[%s517 + $0x78] sm:$0xff]
        %v534 = vld [vmem:[%s517 + $0x80] sm:$0xff]
        %v535 = vld [vmem:[%s517 + $0x88] sm:$0xff]
        %v536 = vld [vmem:[%s517 + $0x90] sm:$0xff]
        %v537 = vld [vmem:[%s517 + $0x98] sm:$0xff]
        %v538 = vld [vmem:[%s517 + $0xa0] sm:$0xff]
        %v539 = vld [vmem:[%s517 + $0xa8] sm:$0xff]
        %v540 = vld [vmem:[%s517 + $0xb0] sm:$0xff]
        %v541 = vld [vmem:[%s517 + $0xb8] sm:$0xff]
        %v542 = vld [vmem:[%s517 + $0xc0] sm:$0xff]
        %v543 = vld [vmem:[%s517 + $0xc8] sm:$0xff]
        %v544 = vld [vmem:[%s517 + $0xd0] sm:$0xff]
        %v545 = vld [vmem:[%s517 + $0xd8] sm:$0xff]
        %v546 = vpack.c.bf16 %v496, %v491
        %v547 = vpack.c.bf16 %v498, %v494
        %v548 = vpack.c.bf16 %v506, %v501
        %v549 = vpack.c.bf16 %v508, %v504
        %v550 = vpack.c.bf16 %v519, %v518
        %v551 = vpack.c.bf16 %v521, %v520
        %v552 = vpack.c.bf16 %v523, %v522
        %v553 = vpack.c.bf16 %v525, %v524
        %v554 = vpack.c.bf16 %v527, %v526
        %v555 = vpack.c.bf16 %v529, %v528
        %v556 = vpack.c.bf16 %v531, %v530
        %v557 = vpack.c.bf16 %v533, %v532
        %v558 = vpack.c.bf16 %v535, %v534
        %v559 = vpack.c.bf16 %v537, %v536
        %v560 = vpack.c.bf16 %v539, %v538
        %v561 = vpack.c.bf16 %v541, %v540
        %v562 = vpack.c.bf16 %v543, %v542
        %v563 = vpack.c.bf16 %v545, %v544
        %vm564 = vcmask 785408
        %v566 = vsel %vm564, %v547, 0
        %v569 = vsel %vm564, %v549, 0
        %571 = vmatpush.bf16.msra.mxu0 %v557
        %572 = vmatpush.bf16.msra.mxu0 %v556
        %573 = vmatpush.bf16.msra.mxu0 %v555
        %574 = vmatpush.bf16.msra.mxu0 %v554
        %575 = vmatpush.bf16.msra.mxu0 %v553
        %576 = vmatpush.bf16.msra.mxu0 %v552
        %577 = vmatpush.bf16.msra.mxu0 %v551
        %578 = vmatpush.bf16.msra.mxu0 %v550
        %579 = vmatmul.bf16.gmra.mxu0 %v546
        %v580 = vpop.f32.mrf.mxu0
        %v581 = vadd.f32 0.0, %v580
        %v582 = vpop.f32.mrf.mxu0
        %v583 = vadd.f32 0.0, %v582
        %584 = vmatmul.bf16.gmra.mxu0 %v548
        %v585 = vpop.f32.mrf.mxu0
        %v586 = vadd.f32 0.0, %v585
        %v587 = vpop.f32.mrf.mxu0
        %v588 = vadd.f32 0.0, %v587
        %589 = vdwg.mxu0
        %590 = vmatpush.bf16.msra.mxu0 0
        %591 = vmatpush.bf16.msra.mxu0 0
        %592 = vmatpush.bf16.msra.mxu0 %v563
        %593 = vmatpush.bf16.msra.mxu0 %v562
        %594 = vmatpush.bf16.msra.mxu0 %v561
        %595 = vmatpush.bf16.msra.mxu0 %v560
        %596 = vmatpush.bf16.msra.mxu0 %v559
        %597 = vmatpush.bf16.msra.mxu0 %v558
        %598 = vmatmul.bf16.gmra.mxu0 %v566
        %v599 = vpop.f32.mrf.mxu0
        %v600 = vadd.f32 %v581, %v599
        %v601 = vpop.f32.mrf.mxu0
        %v602 = vadd.f32 %v583, %v601
        %603 = vmatmul.bf16.gmra.mxu0 %v569
        %v604 = vpop.f32.mrf.mxu0
        %v605 = vadd.f32 %v586, %v604
        %v606 = vpop.f32.mrf.mxu0
        %v607 = vadd.f32 %v588, %v606
        %608 = vdwg.mxu0
        %v610 = vsel %vm564, %v459, 0
        %v613 = vsel %vm564, %v461, 0
        %615 = vmatpush.bf16.msra.mxu0 %v469
        %616 = vmatpush.bf16.msra.mxu0 %v468
        %617 = vmatpush.bf16.msra.mxu0 %v467
        %618 = vmatpush.bf16.msra.mxu0 %v466
        %619 = vmatpush.bf16.msra.mxu0 %v465
        %620 = vmatpush.bf16.msra.mxu0 %v464
        %621 = vmatpush.bf16.msra.mxu0 %v463
        %622 = vmatpush.bf16.msra.mxu0 %v462
        %623 = vmatmul.bf16.gmra.mxu0 %v458
        %v624 = vpop.f32.mrf.mxu0
        %v625 = vadd.f32 %v600, %v624
        %v626 = vpop.f32.mrf.mxu0
        %v627 = vadd.f32 %v602, %v626
        %628 = vmatmul.bf16.gmra.mxu0 %v460
        %v629 = vpop.f32.mrf.mxu0
        %v630 = vadd.f32 %v605, %v629
        %v631 = vpop.f32.mrf.mxu0
        %v632 = vadd.f32 %v607, %v631
        %633 = vdwg.mxu0
        %634 = vmatpush.bf16.msra.mxu0 0
        %635 = vmatpush.bf16.msra.mxu0 0
        %636 = vmatpush.bf16.msra.mxu0 %v475
        %637 = vmatpush.bf16.msra.mxu0 %v474
        %638 = vmatpush.bf16.msra.mxu0 %v473
        %639 = vmatpush.bf16.msra.mxu0 %v472
        %640 = vmatpush.bf16.msra.mxu0 %v471
        %641 = vmatpush.bf16.msra.mxu0 %v470
        %642 = vmatmul.bf16.gmra.mxu0 %v610
        %v643 = vpop.f32.mrf.mxu0
        %v644 = vadd.f32 %v625, %v643
        %v645 = vpop.f32.mrf.mxu0
        %v646 = vadd.f32 %v627, %v645
        %647 = vmatmul.bf16.gmra.mxu0 %v613
        %v648 = vpop.f32.mrf.mxu0
        %v649 = vadd.f32 %v630, %v648
        %v650 = vpop.f32.mrf.mxu0
        %v651 = vadd.f32 %v632, %v650
        %652 = vdwg.mxu0
        %vm653 = vcmask 1045504
        %v654 = vrot.slane %v394, 2
        %v655 = vrot.slane %v396, 2
        %v656 = vsel %vm653, %v654, %v655
        %v657 = vrot.slane %v395, 2
        %v658 = vrot.slane %v397, 2
        %v659 = vsel %vm653, %v657, %v658
        %v660 = vrot.slane %v398, 2
        %v661 = vsel %vm653, %v655, %v660
        %v662 = vrot.slane %v399, 2
        %v663 = vsel %vm653, %v658, %v662
        %v664 = vrot.slane %v400, 2
        %v665 = vrot.slane %v402, 2
        %v666 = vsel %vm653, %v664, %v665
        %v667 = vrot.slane %v401, 2
        %v668 = vrot.slane %v403, 2
        %v669 = vsel %vm653, %v667, %v668
        %v670 = vrot.slane %v404, 2
        %v671 = vsel %vm653, %v665, %v670
        %v672 = vrot.slane %v405, 2
        %v673 = vsel %vm653, %v668, %v672
        %s682 = scalar_lea.vmem %s3, 448
        %v683 = vld [vmem:[%s682] sm:$0xff]
        %v684 = vld [vmem:[%s682 + $0x8] sm:$0xff]
        %v685 = vld [vmem:[%s682 + $0x10] sm:$0xff]
        %v686 = vld [vmem:[%s682 + $0x18] sm:$0xff]
        %v687 = vld [vmem:[%s682 + $0x20] sm:$0xff]
        %v688 = vld [vmem:[%s682 + $0x28] sm:$0xff]
        %v689 = vld [vmem:[%s682 + $0x30] sm:$0xff]
        %v690 = vld [vmem:[%s682 + $0x38] sm:$0xff]
        %v691 = vld [vmem:[%s682 + $0x40] sm:$0xff]
        %v692 = vld [vmem:[%s682 + $0x48] sm:$0xff]
        %v693 = vld [vmem:[%s682 + $0x50] sm:$0xff]
        %v694 = vld [vmem:[%s682 + $0x58] sm:$0xff]
        %v695 = vld [vmem:[%s682 + $0x60] sm:$0xff]
        %v696 = vld [vmem:[%s682 + $0x68] sm:$0xff]
        %v697 = vld [vmem:[%s682 + $0x70] sm:$0xff]
        %v698 = vld [vmem:[%s682 + $0x78] sm:$0xff]
        %v699 = vld [vmem:[%s682 + $0x80] sm:$0xff]
        %v700 = vld [vmem:[%s682 + $0x88] sm:$0xff]
        %v701 = vld [vmem:[%s682 + $0x90] sm:$0xff]
        %v702 = vld [vmem:[%s682 + $0x98] sm:$0xff]
        %v703 = vld [vmem:[%s682 + $0xa0] sm:$0xff]
        %v704 = vld [vmem:[%s682 + $0xa8] sm:$0xff]
        %v705 = vld [vmem:[%s682 + $0xb0] sm:$0xff]
        %v706 = vld [vmem:[%s682 + $0xb8] sm:$0xff]
        %v707 = vld [vmem:[%s682 + $0xc0] sm:$0xff]
        %v708 = vld [vmem:[%s682 + $0xc8] sm:$0xff]
        %v709 = vld [vmem:[%s682 + $0xd0] sm:$0xff]
        %v710 = vld [vmem:[%s682 + $0xd8] sm:$0xff]
        %v711 = vpack.c.bf16 %v661, %v656
        %v712 = vpack.c.bf16 %v663, %v659
        %v713 = vpack.c.bf16 %v671, %v666
        %v714 = vpack.c.bf16 %v673, %v669
        %v715 = vpack.c.bf16 %v684, %v683
        %v716 = vpack.c.bf16 %v686, %v685
        %v717 = vpack.c.bf16 %v688, %v687
        %v718 = vpack.c.bf16 %v690, %v689
        %v719 = vpack.c.bf16 %v692, %v691
        %v720 = vpack.c.bf16 %v694, %v693
        %v721 = vpack.c.bf16 %v696, %v695
        %v722 = vpack.c.bf16 %v698, %v697
        %v723 = vpack.c.bf16 %v700, %v699
        %v724 = vpack.c.bf16 %v702, %v701
        %v725 = vpack.c.bf16 %v704, %v703
        %v726 = vpack.c.bf16 %v706, %v705
        %v727 = vpack.c.bf16 %v708, %v707
        %v728 = vpack.c.bf16 %v710, %v709
        %v730 = vsel %vm564, %v712, 0
        %v733 = vsel %vm564, %v714, 0
        %735 = vmatpush.bf16.msra.mxu0 %v722
        %736 = vmatpush.bf16.msra.mxu0 %v721
        %737 = vmatpush.bf16.msra.mxu0 %v720
        %738 = vmatpush.bf16.msra.mxu0 %v719
        %739 = vmatpush.bf16.msra.mxu0 %v718
        %740 = vmatpush.bf16.msra.mxu0 %v717
        %741 = vmatpush.bf16.msra.mxu0 %v716
        %742 = vmatpush.bf16.msra.mxu0 %v715
        %743 = vmatmul.bf16.gmra.mxu0 %v711
        %v744 = vpop.f32.mrf.mxu0
        %v745 = vadd.f32 0.0, %v744
        %v746 = vpop.f32.mrf.mxu0
        %v747 = vadd.f32 0.0, %v746
        %748 = vmatmul.bf16.gmra.mxu0 %v713
        %v749 = vpop.f32.mrf.mxu0
        %v750 = vadd.f32 0.0, %v749
        %v751 = vpop.f32.mrf.mxu0
        %v752 = vadd.f32 0.0, %v751
        %753 = vdwg.mxu0
        %754 = vmatpush.bf16.msra.mxu0 0
        %755 = vmatpush.bf16.msra.mxu0 0
        %756 = vmatpush.bf16.msra.mxu0 %v728
        %757 = vmatpush.bf16.msra.mxu0 %v727
        %758 = vmatpush.bf16.msra.mxu0 %v726
        %759 = vmatpush.bf16.msra.mxu0 %v725
        %760 = vmatpush.bf16.msra.mxu0 %v724
        %761 = vmatpush.bf16.msra.mxu0 %v723
        %762 = vmatmul.bf16.gmra.mxu0 %v730
        %v763 = vpop.f32.mrf.mxu0
        %v764 = vadd.f32 %v745, %v763
        %v765 = vpop.f32.mrf.mxu0
        %v766 = vadd.f32 %v747, %v765
        %767 = vmatmul.bf16.gmra.mxu0 %v733
        %v768 = vpop.f32.mrf.mxu0
        %v769 = vadd.f32 %v750, %v768
        %v770 = vpop.f32.mrf.mxu0
        %v771 = vadd.f32 %v752, %v770
        %772 = vdwg.mxu0
        %v773 = vadd.f32 %v644, %v764
        %v774 = vadd.f32 %v646, %v766
        %v775 = vadd.f32 %v649, %v769
        %v776 = vadd.f32 %v651, %v771
        %s777 = scalar_lea.vmem %s3, 672
        %v778 = vld [vmem:[%s777] sm:$0xff]
        %v779 = vld [vmem:[%s777 + $0x8] sm:$0xff]
        %v780 = vld [vmem:[%s777 + $0x10] sm:$0xff]
        %v781 = vld [vmem:[%s777 + $0x18] sm:$0xff]
        %v782 = vld [vmem:[%s777 + $0x20] sm:$0xff]
        %v783 = vld [vmem:[%s777 + $0x28] sm:$0xff]
        %v784 = vld [vmem:[%s777 + $0x30] sm:$0xff]
        %v785 = vld [vmem:[%s777 + $0x38] sm:$0xff]
        %v786 = vld [vmem:[%s777 + $0x40] sm:$0xff]
        %v787 = vld [vmem:[%s777 + $0x48] sm:$0xff]
        %v788 = vld [vmem:[%s777 + $0x50] sm:$0xff]
        %v789 = vld [vmem:[%s777 + $0x58] sm:$0xff]
        %v790 = vld [vmem:[%s777 + $0x60] sm:$0xff]
        %v791 = vld [vmem:[%s777 + $0x68] sm:$0xff]
        %v792 = vld [vmem:[%s777 + $0x70] sm:$0xff]
        %v793 = vld [vmem:[%s777 + $0x78] sm:$0xff]
        %v794 = vld [vmem:[%s777 + $0x80] sm:$0xff]
        %v795 = vld [vmem:[%s777 + $0x88] sm:$0xff]
        %v796 = vld [vmem:[%s777 + $0x90] sm:$0xff]
        %v797 = vld [vmem:[%s777 + $0x98] sm:$0xff]
        %v798 = vld [vmem:[%s777 + $0xa0] sm:$0xff]
        %v799 = vld [vmem:[%s777 + $0xa8] sm:$0xff]
        %v800 = vld [vmem:[%s777 + $0xb0] sm:$0xff]
        %v801 = vld [vmem:[%s777 + $0xb8] sm:$0xff]
        %v802 = vld [vmem:[%s777 + $0xc0] sm:$0xff]
        %v803 = vld [vmem:[%s777 + $0xc8] sm:$0xff]
        %v804 = vld [vmem:[%s777 + $0xd0] sm:$0xff]
        %v805 = vld [vmem:[%s777 + $0xd8] sm:$0xff]
        %v806 = vpack.c.bf16 %v408, %v406
        %v807 = vpack.c.bf16 %v409, %v407
        %v808 = vpack.c.bf16 %v414, %v412
        %v809 = vpack.c.bf16 %v415, %v413
        %v810 = vpack.c.bf16 %v779, %v778
        %v811 = vpack.c.bf16 %v781, %v780
        %v812 = vpack.c.bf16 %v783, %v782
        %v813 = vpack.c.bf16 %v785, %v784
        %v814 = vpack.c.bf16 %v787, %v786
        %v815 = vpack.c.bf16 %v789, %v788
        %v816 = vpack.c.bf16 %v791, %v790
        %v817 = vpack.c.bf16 %v793, %v792
        %v818 = vpack.c.bf16 %v795, %v794
        %v819 = vpack.c.bf16 %v797, %v796
        %v820 = vpack.c.bf16 %v799, %v798
        %v821 = vpack.c.bf16 %v801, %v800
        %v822 = vpack.c.bf16 %v803, %v802
        %v823 = vpack.c.bf16 %v805, %v804
        %v825 = vsel %vm564, %v807, 0
        %v828 = vsel %vm564, %v809, 0
        %830 = vmatpush.bf16.msra.mxu0 %v817
        %831 = vmatpush.bf16.msra.mxu0 %v816
        %832 = vmatpush.bf16.msra.mxu0 %v815
        %833 = vmatpush.bf16.msra.mxu0 %v814
        %834 = vmatpush.bf16.msra.mxu0 %v813
        %835 = vmatpush.bf16.msra.mxu0 %v812
        %836 = vmatpush.bf16.msra.mxu0 %v811
        %837 = vmatpush.bf16.msra.mxu0 %v810
        %838 = vmatmul.bf16.gmra.mxu0 %v806
        %v839 = vpop.f32.mrf.mxu0
        %v840 = vadd.f32 0.0, %v839
        %v841 = vpop.f32.mrf.mxu0
        %v842 = vadd.f32 0.0, %v841
        %843 = vmatmul.bf16.gmra.mxu0 %v808
        %v844 = vpop.f32.mrf.mxu0
        %v845 = vadd.f32 0.0, %v844
        %v846 = vpop.f32.mrf.mxu0
        %v847 = vadd.f32 0.0, %v846
        %848 = vdwg.mxu0
        %849 = vmatpush.bf16.msra.mxu0 0
        %850 = vmatpush.bf16.msra.mxu0 0
        %851 = vmatpush.bf16.msra.mxu0 %v823
        %852 = vmatpush.bf16.msra.mxu0 %v822
        %853 = vmatpush.bf16.msra.mxu0 %v821
        %854 = vmatpush.bf16.msra.mxu0 %v820
        %855 = vmatpush.bf16.msra.mxu0 %v819
        %856 = vmatpush.bf16.msra.mxu0 %v818
        %857 = vmatmul.bf16.gmra.mxu0 %v825
        %v858 = vpop.f32.mrf.mxu0
        %v859 = vadd.f32 %v840, %v858
        %v860 = vpop.f32.mrf.mxu0
        %v861 = vadd.f32 %v842, %v860
        %862 = vmatmul.bf16.gmra.mxu0 %v828
        %v863 = vpop.f32.mrf.mxu0
        %v864 = vadd.f32 %v845, %v863
        %v865 = vpop.f32.mrf.mxu0
        %v866 = vadd.f32 %v847, %v865
        %867 = vdwg.mxu0
        %v868 = vadd.f32 %v773, %v859
        %v869 = vadd.f32 %v774, %v861
        %v870 = vadd.f32 %v775, %v864
        %v871 = vadd.f32 %v776, %v866
        %v884 = vrot.slane %v406, 1
        %v885 = vrot.slane %v408, 1
        %v886 = vsel %vm488, %v884, %v885
        %v887 = vrot.slane %v407, 1
        %v888 = vrot.slane %v409, 1
        %v889 = vsel %vm488, %v887, %v888
        %v890 = vrot.slane %v410, 1
        %v891 = vsel %vm488, %v885, %v890
        %v892 = vrot.slane %v411, 1
        %v893 = vsel %vm488, %v888, %v892
        %v894 = vrot.slane %v412, 1
        %v895 = vrot.slane %v414, 1
        %v896 = vsel %vm488, %v894, %v895
        %v897 = vrot.slane %v413, 1
        %v898 = vrot.slane %v415, 1
        %v899 = vsel %vm488, %v897, %v898
        %v900 = vrot.slane %v416, 1
        %v901 = vsel %vm488, %v895, %v900
        %v902 = vrot.slane %v417, 1
        %v903 = vsel %vm488, %v898, %v902
        %s912 = scalar_lea.vmem %s3, 896
        %v913 = vld [vmem:[%s912] sm:$0xff]
        %v914 = vld [vmem:[%s912 + $0x8] sm:$0xff]
        %v915 = vld [vmem:[%s912 + $0x10] sm:$0xff]
        %v916 = vld [vmem:[%s912 + $0x18] sm:$0xff]
        %v917 = vld [vmem:[%s912 + $0x20] sm:$0xff]
        %v918 = vld [vmem:[%s912 + $0x28] sm:$0xff]
        %v919 = vld [vmem:[%s912 + $0x30] sm:$0xff]
        %v920 = vld [vmem:[%s912 + $0x38] sm:$0xff]
        %v921 = vld [vmem:[%s912 + $0x40] sm:$0xff]
        %v922 = vld [vmem:[%s912 + $0x48] sm:$0xff]
        %v923 = vld [vmem:[%s912 + $0x50] sm:$0xff]
        %v924 = vld [vmem:[%s912 + $0x58] sm:$0xff]
        %v925 = vld [vmem:[%s912 + $0x60] sm:$0xff]
        %v926 = vld [vmem:[%s912 + $0x68] sm:$0xff]
        %v927 = vld [vmem:[%s912 + $0x70] sm:$0xff]
        %v928 = vld [vmem:[%s912 + $0x78] sm:$0xff]
        %v929 = vld [vmem:[%s912 + $0x80] sm:$0xff]
        %v930 = vld [vmem:[%s912 + $0x88] sm:$0xff]
        %v931 = vld [vmem:[%s912 + $0x90] sm:$0xff]
        %v932 = vld [vmem:[%s912 + $0x98] sm:$0xff]
        %v933 = vld [vmem:[%s912 + $0xa0] sm:$0xff]
        %v934 = vld [vmem:[%s912 + $0xa8] sm:$0xff]
        %v935 = vld [vmem:[%s912 + $0xb0] sm:$0xff]
        %v936 = vld [vmem:[%s912 + $0xb8] sm:$0xff]
        %v937 = vld [vmem:[%s912 + $0xc0] sm:$0xff]
        %v938 = vld [vmem:[%s912 + $0xc8] sm:$0xff]
        %v939 = vld [vmem:[%s912 + $0xd0] sm:$0xff]
        %v940 = vld [vmem:[%s912 + $0xd8] sm:$0xff]
        %v941 = vpack.c.bf16 %v891, %v886
        %v942 = vpack.c.bf16 %v893, %v889
        %v943 = vpack.c.bf16 %v901, %v896
        %v944 = vpack.c.bf16 %v903, %v899
        %v945 = vpack.c.bf16 %v914, %v913
        %v946 = vpack.c.bf16 %v916, %v915
        %v947 = vpack.c.bf16 %v918, %v917
        %v948 = vpack.c.bf16 %v920, %v919
        %v949 = vpack.c.bf16 %v922, %v921
        %v950 = vpack.c.bf16 %v924, %v923
        %v951 = vpack.c.bf16 %v926, %v925
        %v952 = vpack.c.bf16 %v928, %v927
        %v953 = vpack.c.bf16 %v930, %v929
        %v954 = vpack.c.bf16 %v932, %v931
        %v955 = vpack.c.bf16 %v934, %v933
        %v956 = vpack.c.bf16 %v936, %v935
        %v957 = vpack.c.bf16 %v938, %v937
        %v958 = vpack.c.bf16 %v940, %v939
        %v960 = vsel %vm564, %v942, 0
        %v963 = vsel %vm564, %v944, 0
        %965 = vmatpush.bf16.msra.mxu0 %v952
        %966 = vmatpush.bf16.msra.mxu0 %v951
        %967 = vmatpush.bf16.msra.mxu0 %v950
        %968 = vmatpush.bf16.msra.mxu0 %v949
        %969 = vmatpush.bf16.msra.mxu0 %v948
        %970 = vmatpush.bf16.msra.mxu0 %v947
        %971 = vmatpush.bf16.msra.mxu0 %v946
        %972 = vmatpush.bf16.msra.mxu0 %v945
        %973 = vmatmul.bf16.gmra.mxu0 %v941
        %v974 = vpop.f32.mrf.mxu0
        %v975 = vadd.f32 0.0, %v974
        %v976 = vpop.f32.mrf.mxu0
        %v977 = vadd.f32 0.0, %v976
        %978 = vmatmul.bf16.gmra.mxu0 %v943
        %v979 = vpop.f32.mrf.mxu0
        %v980 = vadd.f32 0.0, %v979
        %v981 = vpop.f32.mrf.mxu0
        %v982 = vadd.f32 0.0, %v981
        %983 = vdwg.mxu0
        %984 = vmatpush.bf16.msra.mxu0 0
        %985 = vmatpush.bf16.msra.mxu0 0
        %986 = vmatpush.bf16.msra.mxu0 %v958
        %987 = vmatpush.bf16.msra.mxu0 %v957
        %988 = vmatpush.bf16.msra.mxu0 %v956
        %989 = vmatpush.bf16.msra.mxu0 %v955
        %990 = vmatpush.bf16.msra.mxu0 %v954
        %991 = vmatpush.bf16.msra.mxu0 %v953
        %992 = vmatmul.bf16.gmra.mxu0 %v960
        %v993 = vpop.f32.mrf.mxu0
        %v994 = vadd.f32 %v975, %v993
        %v995 = vpop.f32.mrf.mxu0
        %v996 = vadd.f32 %v977, %v995
        %997 = vmatmul.bf16.gmra.mxu0 %v963
        %v998 = vpop.f32.mrf.mxu0
        %v999 = vadd.f32 %v980, %v998
        %v1000 = vpop.f32.mrf.mxu0
        %v1001 = vadd.f32 %v982, %v1000
        %1002 = vdwg.mxu0
        %v1003 = vadd.f32 %v868, %v994
        %v1004 = vadd.f32 %v869, %v996
        %v1005 = vadd.f32 %v870, %v999
        %v1006 = vadd.f32 %v871, %v1001
        %v1007 = vrot.slane %v406, 2
        %v1008 = vrot.slane %v408, 2
        %v1009 = vsel %vm653, %v1007, %v1008
        %v1010 = vrot.slane %v407, 2
        %v1011 = vrot.slane %v409, 2
        %v1012 = vsel %vm653, %v1010, %v1011
        %v1013 = vrot.slane %v410, 2
        %v1014 = vsel %vm653, %v1008, %v1013
        %v1015 = vrot.slane %v411, 2
        %v1016 = vsel %vm653, %v1011, %v1015
        %v1017 = vrot.slane %v412, 2
        %v1018 = vrot.slane %v414, 2
        %v1019 = vsel %vm653, %v1017, %v1018
        %v1020 = vrot.slane %v413, 2
        %v1021 = vrot.slane %v415, 2
        %v1022 = vsel %vm653, %v1020, %v1021
        %v1023 = vrot.slane %v416, 2
        %v1024 = vsel %vm653, %v1018, %v1023
        %v1025 = vrot.slane %v417, 2
        %v1026 = vsel %vm653, %v1021, %v1025
        %s1035 = scalar_lea.vmem %s3, 1120
        %v1036 = vld [vmem:[%s1035] sm:$0xff]
        %v1037 = vld [vmem:[%s1035 + $0x8] sm:$0xff]
        %v1038 = vld [vmem:[%s1035 + $0x10] sm:$0xff]
        %v1039 = vld [vmem:[%s1035 + $0x18] sm:$0xff]
        %v1040 = vld [vmem:[%s1035 + $0x20] sm:$0xff]
        %v1041 = vld [vmem:[%s1035 + $0x28] sm:$0xff]
        %v1042 = vld [vmem:[%s1035 + $0x30] sm:$0xff]
        %v1043 = vld [vmem:[%s1035 + $0x38] sm:$0xff]
        %v1044 = vld [vmem:[%s1035 + $0x40] sm:$0xff]
        %v1045 = vld [vmem:[%s1035 + $0x48] sm:$0xff]
        %v1046 = vld [vmem:[%s1035 + $0x50] sm:$0xff]
        %v1047 = vld [vmem:[%s1035 + $0x58] sm:$0xff]
        %v1048 = vld [vmem:[%s1035 + $0x60] sm:$0xff]
        %v1049 = vld [vmem:[%s1035 + $0x68] sm:$0xff]
        %v1050 = vld [vmem:[%s1035 + $0x70] sm:$0xff]
        %v1051 = vld [vmem:[%s1035 + $0x78] sm:$0xff]
        %v1052 = vld [vmem:[%s1035 + $0x80] sm:$0xff]
        %v1053 = vld [vmem:[%s1035 + $0x88] sm:$0xff]
        %v1054 = vld [vmem:[%s1035 + $0x90] sm:$0xff]
        %v1055 = vld [vmem:[%s1035 + $0x98] sm:$0xff]
        %v1056 = vld [vmem:[%s1035 + $0xa0] sm:$0xff]
        %v1057 = vld [vmem:[%s1035 + $0xa8] sm:$0xff]
        %v1058 = vld [vmem:[%s1035 + $0xb0] sm:$0xff]
        %v1059 = vld [vmem:[%s1035 + $0xb8] sm:$0xff]
        %v1060 = vld [vmem:[%s1035 + $0xc0] sm:$0xff]
        %v1061 = vld [vmem:[%s1035 + $0xc8] sm:$0xff]
        %v1062 = vld [vmem:[%s1035 + $0xd0] sm:$0xff]
        %v1063 = vld [vmem:[%s1035 + $0xd8] sm:$0xff]
        %v1064 = vpack.c.bf16 %v1014, %v1009
        %v1065 = vpack.c.bf16 %v1016, %v1012
        %v1066 = vpack.c.bf16 %v1024, %v1019
        %v1067 = vpack.c.bf16 %v1026, %v1022
        %v1068 = vpack.c.bf16 %v1037, %v1036
        %v1069 = vpack.c.bf16 %v1039, %v1038
        %v1070 = vpack.c.bf16 %v1041, %v1040
        %v1071 = vpack.c.bf16 %v1043, %v1042
        %v1072 = vpack.c.bf16 %v1045, %v1044
        %v1073 = vpack.c.bf16 %v1047, %v1046
        %v1074 = vpack.c.bf16 %v1049, %v1048
        %v1075 = vpack.c.bf16 %v1051, %v1050
        %v1076 = vpack.c.bf16 %v1053, %v1052
        %v1077 = vpack.c.bf16 %v1055, %v1054
        %v1078 = vpack.c.bf16 %v1057, %v1056
        %v1079 = vpack.c.bf16 %v1059, %v1058
        %v1080 = vpack.c.bf16 %v1061, %v1060
        %v1081 = vpack.c.bf16 %v1063, %v1062
        %v1083 = vsel %vm564, %v1065, 0
        %v1086 = vsel %vm564, %v1067, 0
        %1088 = vmatpush.bf16.msra.mxu0 %v1075
        %1089 = vmatpush.bf16.msra.mxu0 %v1074
        %1090 = vmatpush.bf16.msra.mxu0 %v1073
        %1091 = vmatpush.bf16.msra.mxu0 %v1072
        %1092 = vmatpush.bf16.msra.mxu0 %v1071
        %1093 = vmatpush.bf16.msra.mxu0 %v1070
        %1094 = vmatpush.bf16.msra.mxu0 %v1069
        %1095 = vmatpush.bf16.msra.mxu0 %v1068
        %1096 = vmatmul.bf16.gmra.mxu0 %v1064
        %v1097 = vpop.f32.mrf.mxu0
        %v1098 = vadd.f32 0.0, %v1097
        %v1099 = vpop.f32.mrf.mxu0
        %v1100 = vadd.f32 0.0, %v1099
        %1101 = vmatmul.bf16.gmra.mxu0 %v1066
        %v1102 = vpop.f32.mrf.mxu0
        %v1103 = vadd.f32 0.0, %v1102
        %v1104 = vpop.f32.mrf.mxu0
        %v1105 = vadd.f32 0.0, %v1104
        %1106 = vdwg.mxu0
        %1107 = vmatpush.bf16.msra.mxu0 0
        %1108 = vmatpush.bf16.msra.mxu0 0
        %1109 = vmatpush.bf16.msra.mxu0 %v1081
        %1110 = vmatpush.bf16.msra.mxu0 %v1080
        %1111 = vmatpush.bf16.msra.mxu0 %v1079
        %1112 = vmatpush.bf16.msra.mxu0 %v1078
        %1113 = vmatpush.bf16.msra.mxu0 %v1077
        %1114 = vmatpush.bf16.msra.mxu0 %v1076
        %1115 = vmatmul.bf16.gmra.mxu0 %v1083
        %v1116 = vpop.f32.mrf.mxu0
        %v1117 = vadd.f32 %v1098, %v1116
        %v1118 = vpop.f32.mrf.mxu0
        %v1119 = vadd.f32 %v1100, %v1118
        %1120 = vmatmul.bf16.gmra.mxu0 %v1086
        %v1121 = vpop.f32.mrf.mxu0
        %v1122 = vadd.f32 %v1103, %v1121
        %v1123 = vpop.f32.mrf.mxu0
        %v1124 = vadd.f32 %v1105, %v1123
        %1125 = vdwg.mxu0
        %v1126 = vadd.f32 %v1003, %v1117
        %v1127 = vadd.f32 %v1004, %v1119
        %v1128 = vadd.f32 %v1005, %v1122
        %v1129 = vadd.f32 %v1006, %v1124
        %s1130 = scalar_lea.vmem %s3, 1344
        %v1131 = vld [vmem:[%s1130] sm:$0xff]
        %v1132 = vld [vmem:[%s1130 + $0x8] sm:$0xff]
        %v1133 = vld [vmem:[%s1130 + $0x10] sm:$0xff]
        %v1134 = vld [vmem:[%s1130 + $0x18] sm:$0xff]
        %v1135 = vld [vmem:[%s1130 + $0x20] sm:$0xff]
        %v1136 = vld [vmem:[%s1130 + $0x28] sm:$0xff]
        %v1137 = vld [vmem:[%s1130 + $0x30] sm:$0xff]
        %v1138 = vld [vmem:[%s1130 + $0x38] sm:$0xff]
        %v1139 = vld [vmem:[%s1130 + $0x40] sm:$0xff]
        %v1140 = vld [vmem:[%s1130 + $0x48] sm:$0xff]
        %v1141 = vld [vmem:[%s1130 + $0x50] sm:$0xff]
        %v1142 = vld [vmem:[%s1130 + $0x58] sm:$0xff]
        %v1143 = vld [vmem:[%s1130 + $0x60] sm:$0xff]
        %v1144 = vld [vmem:[%s1130 + $0x68] sm:$0xff]
        %v1145 = vld [vmem:[%s1130 + $0x70] sm:$0xff]
        %v1146 = vld [vmem:[%s1130 + $0x78] sm:$0xff]
        %v1147 = vld [vmem:[%s1130 + $0x80] sm:$0xff]
        %v1148 = vld [vmem:[%s1130 + $0x88] sm:$0xff]
        %v1149 = vld [vmem:[%s1130 + $0x90] sm:$0xff]
        %v1150 = vld [vmem:[%s1130 + $0x98] sm:$0xff]
        %v1151 = vld [vmem:[%s1130 + $0xa0] sm:$0xff]
        %v1152 = vld [vmem:[%s1130 + $0xa8] sm:$0xff]
        %v1153 = vld [vmem:[%s1130 + $0xb0] sm:$0xff]
        %v1154 = vld [vmem:[%s1130 + $0xb8] sm:$0xff]
        %v1155 = vld [vmem:[%s1130 + $0xc0] sm:$0xff]
        %v1156 = vld [vmem:[%s1130 + $0xc8] sm:$0xff]
        %v1157 = vld [vmem:[%s1130 + $0xd0] sm:$0xff]
        %v1158 = vld [vmem:[%s1130 + $0xd8] sm:$0xff]
        %v1159 = vpack.c.bf16 %v420, %v418
        %v1160 = vpack.c.bf16 %v421, %v419
        %v1161 = vpack.c.bf16 %v426, %v424
        %v1162 = vpack.c.bf16 %v427, %v425
        %v1163 = vpack.c.bf16 %v1132, %v1131
        %v1164 = vpack.c.bf16 %v1134, %v1133
        %v1165 = vpack.c.bf16 %v1136, %v1135
        %v1166 = vpack.c.bf16 %v1138, %v1137
        %v1167 = vpack.c.bf16 %v1140, %v1139
        %v1168 = vpack.c.bf16 %v1142, %v1141
        %v1169 = vpack.c.bf16 %v1144, %v1143
        %v1170 = vpack.c.bf16 %v1146, %v1145
        %v1171 = vpack.c.bf16 %v1148, %v1147
        %v1172 = vpack.c.bf16 %v1150, %v1149
        %v1173 = vpack.c.bf16 %v1152, %v1151
        %v1174 = vpack.c.bf16 %v1154, %v1153
        %v1175 = vpack.c.bf16 %v1156, %v1155
        %v1176 = vpack.c.bf16 %v1158, %v1157
        %v1178 = vsel %vm564, %v1160, 0
        %v1181 = vsel %vm564, %v1162, 0
        %1183 = vmatpush.bf16.msra.mxu0 %v1170
        %1184 = vmatpush.bf16.msra.mxu0 %v1169
        %1185 = vmatpush.bf16.msra.mxu0 %v1168
        %1186 = vmatpush.bf16.msra.mxu0 %v1167
        %1187 = vmatpush.bf16.msra.mxu0 %v1166
        %1188 = vmatpush.bf16.msra.mxu0 %v1165
        %1189 = vmatpush.bf16.msra.mxu0 %v1164
        %1190 = vmatpush.bf16.msra.mxu0 %v1163
        %1191 = vmatmul.bf16.gmra.mxu0 %v1159
        %v1192 = vpop.f32.mrf.mxu0
        %v1193 = vadd.f32 0.0, %v1192
        %v1194 = vpop.f32.mrf.mxu0
        %v1195 = vadd.f32 0.0, %v1194
        %1196 = vmatmul.bf16.gmra.mxu0 %v1161
        %v1197 = vpop.f32.mrf.mxu0
        %v1198 = vadd.f32 0.0, %v1197
        %v1199 = vpop.f32.mrf.mxu0
        %v1200 = vadd.f32 0.0, %v1199
        %1201 = vdwg.mxu0
        %1202 = vmatpush.bf16.msra.mxu0 0
        %1203 = vmatpush.bf16.msra.mxu0 0
        %1204 = vmatpush.bf16.msra.mxu0 %v1176
        %1205 = vmatpush.bf16.msra.mxu0 %v1175
        %1206 = vmatpush.bf16.msra.mxu0 %v1174
        %1207 = vmatpush.bf16.msra.mxu0 %v1173
        %1208 = vmatpush.bf16.msra.mxu0 %v1172
        %1209 = vmatpush.bf16.msra.mxu0 %v1171
        %1210 = vmatmul.bf16.gmra.mxu0 %v1178
        %v1211 = vpop.f32.mrf.mxu0
        %v1212 = vadd.f32 %v1193, %v1211
        %v1213 = vpop.f32.mrf.mxu0
        %v1214 = vadd.f32 %v1195, %v1213
        %1215 = vmatmul.bf16.gmra.mxu0 %v1181
        %v1216 = vpop.f32.mrf.mxu0
        %v1217 = vadd.f32 %v1198, %v1216
        %v1218 = vpop.f32.mrf.mxu0
        %v1219 = vadd.f32 %v1200, %v1218
        %1220 = vdwg.mxu0
        %v1221 = vadd.f32 %v1126, %v1212
        %v1222 = vadd.f32 %v1127, %v1214
        %v1223 = vadd.f32 %v1128, %v1217
        %v1224 = vadd.f32 %v1129, %v1219
        %v1237 = vrot.slane %v418, 1
        %v1238 = vrot.slane %v420, 1
        %v1239 = vsel %vm488, %v1237, %v1238
        %v1240 = vrot.slane %v419, 1
        %v1241 = vrot.slane %v421, 1
        %v1242 = vsel %vm488, %v1240, %v1241
        %v1243 = vrot.slane %v422, 1
        %v1244 = vsel %vm488, %v1238, %v1243
        %v1245 = vrot.slane %v423, 1
        %v1246 = vsel %vm488, %v1241, %v1245
        %v1247 = vrot.slane %v424, 1
        %v1248 = vrot.slane %v426, 1
        %v1249 = vsel %vm488, %v1247, %v1248
        %v1250 = vrot.slane %v425, 1
        %v1251 = vrot.slane %v427, 1
        %v1252 = vsel %vm488, %v1250, %v1251
        %v1253 = vrot.slane %v428, 1
        %v1254 = vsel %vm488, %v1248, %v1253
        %v1255 = vrot.slane %v429, 1
        %v1256 = vsel %vm488, %v1251, %v1255
        %s1265 = scalar_lea.vmem %s3, 1568
        %v1266 = vld [vmem:[%s1265] sm:$0xff]
        %v1267 = vld [vmem:[%s1265 + $0x8] sm:$0xff]
        %v1268 = vld [vmem:[%s1265 + $0x10] sm:$0xff]
        %v1269 = vld [vmem:[%s1265 + $0x18] sm:$0xff]
        %v1270 = vld [vmem:[%s1265 + $0x20] sm:$0xff]
        %v1271 = vld [vmem:[%s1265 + $0x28] sm:$0xff]
        %v1272 = vld [vmem:[%s1265 + $0x30] sm:$0xff]
        %v1273 = vld [vmem:[%s1265 + $0x38] sm:$0xff]
        %v1274 = vld [vmem:[%s1265 + $0x40] sm:$0xff]
        %v1275 = vld [vmem:[%s1265 + $0x48] sm:$0xff]
        %v1276 = vld [vmem:[%s1265 + $0x50] sm:$0xff]
        %v1277 = vld [vmem:[%s1265 + $0x58] sm:$0xff]
        %v1278 = vld [vmem:[%s1265 + $0x60] sm:$0xff]
        %v1279 = vld [vmem:[%s1265 + $0x68] sm:$0xff]
        %v1280 = vld [vmem:[%s1265 + $0x70] sm:$0xff]
        %v1281 = vld [vmem:[%s1265 + $0x78] sm:$0xff]
        %v1282 = vld [vmem:[%s1265 + $0x80] sm:$0xff]
        %v1283 = vld [vmem:[%s1265 + $0x88] sm:$0xff]
        %v1284 = vld [vmem:[%s1265 + $0x90] sm:$0xff]
        %v1285 = vld [vmem:[%s1265 + $0x98] sm:$0xff]
        %v1286 = vld [vmem:[%s1265 + $0xa0] sm:$0xff]
        %v1287 = vld [vmem:[%s1265 + $0xa8] sm:$0xff]
        %v1288 = vld [vmem:[%s1265 + $0xb0] sm:$0xff]
        %v1289 = vld [vmem:[%s1265 + $0xb8] sm:$0xff]
        %v1290 = vld [vmem:[%s1265 + $0xc0] sm:$0xff]
        %v1291 = vld [vmem:[%s1265 + $0xc8] sm:$0xff]
        %v1292 = vld [vmem:[%s1265 + $0xd0] sm:$0xff]
        %v1293 = vld [vmem:[%s1265 + $0xd8] sm:$0xff]
        %v1294 = vpack.c.bf16 %v1244, %v1239
        %v1295 = vpack.c.bf16 %v1246, %v1242
        %v1296 = vpack.c.bf16 %v1254, %v1249
        %v1297 = vpack.c.bf16 %v1256, %v1252
        %v1298 = vpack.c.bf16 %v1267, %v1266
        %v1299 = vpack.c.bf16 %v1269, %v1268
        %v1300 = vpack.c.bf16 %v1271, %v1270
        %v1301 = vpack.c.bf16 %v1273, %v1272
        %v1302 = vpack.c.bf16 %v1275, %v1274
        %v1303 = vpack.c.bf16 %v1277, %v1276
        %v1304 = vpack.c.bf16 %v1279, %v1278
        %v1305 = vpack.c.bf16 %v1281, %v1280
        %v1306 = vpack.c.bf16 %v1283, %v1282
        %v1307 = vpack.c.bf16 %v1285, %v1284
        %v1308 = vpack.c.bf16 %v1287, %v1286
        %v1309 = vpack.c.bf16 %v1289, %v1288
        %v1310 = vpack.c.bf16 %v1291, %v1290
        %v1311 = vpack.c.bf16 %v1293, %v1292
        %v1313 = vsel %vm564, %v1295, 0
        %v1316 = vsel %vm564, %v1297, 0
        %1318 = vmatpush.bf16.msra.mxu0 %v1305
        %1319 = vmatpush.bf16.msra.mxu0 %v1304
        %1320 = vmatpush.bf16.msra.mxu0 %v1303
        %1321 = vmatpush.bf16.msra.mxu0 %v1302
        %1322 = vmatpush.bf16.msra.mxu0 %v1301
        %1323 = vmatpush.bf16.msra.mxu0 %v1300
        %1324 = vmatpush.bf16.msra.mxu0 %v1299
        %1325 = vmatpush.bf16.msra.mxu0 %v1298
        %1326 = vmatmul.bf16.gmra.mxu0 %v1294
        %v1327 = vpop.f32.mrf.mxu0
        %v1328 = vadd.f32 0.0, %v1327
        %v1329 = vpop.f32.mrf.mxu0
        %v1330 = vadd.f32 0.0, %v1329
        %1331 = vmatmul.bf16.gmra.mxu0 %v1296
        %v1332 = vpop.f32.mrf.mxu0
        %v1333 = vadd.f32 0.0, %v1332
        %v1334 = vpop.f32.mrf.mxu0
        %v1335 = vadd.f32 0.0, %v1334
        %1336 = vdwg.mxu0
        %1337 = vmatpush.bf16.msra.mxu0 0
        %1338 = vmatpush.bf16.msra.mxu0 0
        %1339 = vmatpush.bf16.msra.mxu0 %v1311
        %1340 = vmatpush.bf16.msra.mxu0 %v1310
        %1341 = vmatpush.bf16.msra.mxu0 %v1309
        %1342 = vmatpush.bf16.msra.mxu0 %v1308
        %1343 = vmatpush.bf16.msra.mxu0 %v1307
        %1344 = vmatpush.bf16.msra.mxu0 %v1306
        %1345 = vmatmul.bf16.gmra.mxu0 %v1313
        %v1346 = vpop.f32.mrf.mxu0
        %v1347 = vadd.f32 %v1328, %v1346
        %v1348 = vpop.f32.mrf.mxu0
        %v1349 = vadd.f32 %v1330, %v1348
        %1350 = vmatmul.bf16.gmra.mxu0 %v1316
        %v1351 = vpop.f32.mrf.mxu0
        %v1352 = vadd.f32 %v1333, %v1351
        %v1353 = vpop.f32.mrf.mxu0
        %v1354 = vadd.f32 %v1335, %v1353
        %1355 = vdwg.mxu0
        %v1356 = vadd.f32 %v1221, %v1347
        %v1357 = vadd.f32 %v1222, %v1349
        %v1358 = vadd.f32 %v1223, %v1352
        %v1359 = vadd.f32 %v1224, %v1354
        %v1360 = vrot.slane %v418, 2
        %v1361 = vrot.slane %v420, 2
        %v1362 = vsel %vm653, %v1360, %v1361
        %v1363 = vrot.slane %v419, 2
        %v1364 = vrot.slane %v421, 2
        %v1365 = vsel %vm653, %v1363, %v1364
        %v1366 = vrot.slane %v422, 2
        %v1367 = vsel %vm653, %v1361, %v1366
        %v1368 = vrot.slane %v423, 2
        %v1369 = vsel %vm653, %v1364, %v1368
        %v1370 = vrot.slane %v424, 2
        %v1371 = vrot.slane %v426, 2
        %v1372 = vsel %vm653, %v1370, %v1371
        %v1373 = vrot.slane %v425, 2
        %v1374 = vrot.slane %v427, 2
        %v1375 = vsel %vm653, %v1373, %v1374
        %v1376 = vrot.slane %v428, 2
        %v1377 = vsel %vm653, %v1371, %v1376
        %v1378 = vrot.slane %v429, 2
        %v1379 = vsel %vm653, %v1374, %v1378
        %s1388 = scalar_lea.vmem %s3, 1792
        %v1389 = vld [vmem:[%s1388] sm:$0xff]
        %v1390 = vld [vmem:[%s1388 + $0x8] sm:$0xff]
        %v1391 = vld [vmem:[%s1388 + $0x10] sm:$0xff]
        %v1392 = vld [vmem:[%s1388 + $0x18] sm:$0xff]
        %v1393 = vld [vmem:[%s1388 + $0x20] sm:$0xff]
        %v1394 = vld [vmem:[%s1388 + $0x28] sm:$0xff]
        %v1395 = vld [vmem:[%s1388 + $0x30] sm:$0xff]
        %v1396 = vld [vmem:[%s1388 + $0x38] sm:$0xff]
        %v1397 = vld [vmem:[%s1388 + $0x40] sm:$0xff]
        %v1398 = vld [vmem:[%s1388 + $0x48] sm:$0xff]
        %v1399 = vld [vmem:[%s1388 + $0x50] sm:$0xff]
        %v1400 = vld [vmem:[%s1388 + $0x58] sm:$0xff]
        %v1401 = vld [vmem:[%s1388 + $0x60] sm:$0xff]
        %v1402 = vld [vmem:[%s1388 + $0x68] sm:$0xff]
        %v1403 = vld [vmem:[%s1388 + $0x70] sm:$0xff]
        %v1404 = vld [vmem:[%s1388 + $0x78] sm:$0xff]
        %v1405 = vld [vmem:[%s1388 + $0x80] sm:$0xff]
        %v1406 = vld [vmem:[%s1388 + $0x88] sm:$0xff]
        %v1407 = vld [vmem:[%s1388 + $0x90] sm:$0xff]
        %v1408 = vld [vmem:[%s1388 + $0x98] sm:$0xff]
        %v1409 = vld [vmem:[%s1388 + $0xa0] sm:$0xff]
        %v1410 = vld [vmem:[%s1388 + $0xa8] sm:$0xff]
        %v1411 = vld [vmem:[%s1388 + $0xb0] sm:$0xff]
        %v1412 = vld [vmem:[%s1388 + $0xb8] sm:$0xff]
        %v1413 = vld [vmem:[%s1388 + $0xc0] sm:$0xff]
        %v1414 = vld [vmem:[%s1388 + $0xc8] sm:$0xff]
        %v1415 = vld [vmem:[%s1388 + $0xd0] sm:$0xff]
        %v1416 = vld [vmem:[%s1388 + $0xd8] sm:$0xff]
        %v1417 = vpack.c.bf16 %v1367, %v1362
        %v1418 = vpack.c.bf16 %v1369, %v1365
        %v1419 = vpack.c.bf16 %v1377, %v1372
        %v1420 = vpack.c.bf16 %v1379, %v1375
        %v1421 = vpack.c.bf16 %v1390, %v1389
        %v1422 = vpack.c.bf16 %v1392, %v1391
        %v1423 = vpack.c.bf16 %v1394, %v1393
        %v1424 = vpack.c.bf16 %v1396, %v1395
        %v1425 = vpack.c.bf16 %v1398, %v1397
        %v1426 = vpack.c.bf16 %v1400, %v1399
        %v1427 = vpack.c.bf16 %v1402, %v1401
        %v1428 = vpack.c.bf16 %v1404, %v1403
        %v1429 = vpack.c.bf16 %v1406, %v1405
        %v1430 = vpack.c.bf16 %v1408, %v1407
        %v1431 = vpack.c.bf16 %v1410, %v1409
        %v1432 = vpack.c.bf16 %v1412, %v1411
        %v1433 = vpack.c.bf16 %v1414, %v1413
        %v1434 = vpack.c.bf16 %v1416, %v1415
        %v1436 = vsel %vm564, %v1418, 0
        %v1439 = vsel %vm564, %v1420, 0
        %1441 = vmatpush.bf16.msra.mxu0 %v1428
        %1442 = vmatpush.bf16.msra.mxu0 %v1427
        %1443 = vmatpush.bf16.msra.mxu0 %v1426
        %1444 = vmatpush.bf16.msra.mxu0 %v1425
        %1445 = vmatpush.bf16.msra.mxu0 %v1424
        %1446 = vmatpush.bf16.msra.mxu0 %v1423
        %1447 = vmatpush.bf16.msra.mxu0 %v1422
        %1448 = vmatpush.bf16.msra.mxu0 %v1421
        %1449 = vmatmul.bf16.gmra.mxu0 %v1417
        %v1450 = vpop.f32.mrf.mxu0
        %v1451 = vadd.f32 0.0, %v1450
        %v1452 = vpop.f32.mrf.mxu0
        %v1453 = vadd.f32 0.0, %v1452
        %1454 = vmatmul.bf16.gmra.mxu0 %v1419
        %v1455 = vpop.f32.mrf.mxu0
        %v1456 = vadd.f32 0.0, %v1455
        %v1457 = vpop.f32.mrf.mxu0
        %v1458 = vadd.f32 0.0, %v1457
        %1459 = vdwg.mxu0
        %1460 = vmatpush.bf16.msra.mxu0 0
        %1461 = vmatpush.bf16.msra.mxu0 0
        %1462 = vmatpush.bf16.msra.mxu0 %v1434
        %1463 = vmatpush.bf16.msra.mxu0 %v1433
        %1464 = vmatpush.bf16.msra.mxu0 %v1432
        %1465 = vmatpush.bf16.msra.mxu0 %v1431
        %1466 = vmatpush.bf16.msra.mxu0 %v1430
        %1467 = vmatpush.bf16.msra.mxu0 %v1429
        %1468 = vmatmul.bf16.gmra.mxu0 %v1436
        %v1469 = vpop.f32.mrf.mxu0
        %v1470 = vadd.f32 %v1451, %v1469
        %v1471 = vpop.f32.mrf.mxu0
        %v1472 = vadd.f32 %v1453, %v1471
        %1473 = vmatmul.bf16.gmra.mxu0 %v1439
        %v1474 = vpop.f32.mrf.mxu0
        %v1475 = vadd.f32 %v1456, %v1474
        %v1476 = vpop.f32.mrf.mxu0
        %v1477 = vadd.f32 %v1458, %v1476
        %1478 = vdwg.mxu0
        %v1479 = vadd.f32 %v1356, %v1470
        %v1480 = vadd.f32 %v1357, %v1472
        %v1481 = vadd.f32 %v1358, %v1475
        %v1482 = vadd.f32 %v1359, %v1477
        %v1483 = vld [vmem:[%s4] sm:$0x1]
        %v1485 = vperm.slane %v1483, 0
        %v1487 = vadd.f32 %v1479, %v1485
        %v1488 = vadd.f32 %v1480, %v1485
        %v1489 = vadd.f32 %v1481, %v1485
        %v1490 = vadd.f32 %v1482, %v1485
        %vm1491 = vcmask 23552
        %1492 = vst.msk [vmem:[%s390] sm:$0xff] %vm1491, %v1487
        %1493 = vst.msk [vmem:[%s390 + $0x8] sm:$0xff] %vm1491, %v1488
        %1494 = vst.msk [vmem:[%s390 + $0x10] sm:$0xff] %vm1491, %v1489
        %1495 = vst.msk [vmem:[%s390 + $0x18] sm:$0xff] %vm1491, %v1490
        %s1496 = sand.u32 %s148, 1
        %s1497 = sand.u32 %s148, 1
        %s1498 = smul.addr %s1497, 32
        %s1499 = scalar_lea.vmem [#allocation5], %s1498
        // Predicated region
        $region110: #{irednet_indrnn_forward.44} parent=96 // pred_check
          %p1500 = pneg %p158
        $region111: #{irednet_indrnn_forward.44} parent=96 // pred_check_branch
          %1502 = sbr.rel (%p1500) target = $region113
        $region112: #{irednet_indrnn_forward.44} parent=96 // pred_region
          %s1503 = smul.addr %s16, 2
          %s1504 = smul.addr %s1503, 8
          %s1505 = scalar_lea.vmem %s5, %s1504
          // Predicated region
          $region114: #{irednet_indrnn_forward.44} parent=112 // pred_check
            _
          $region115: #{irednet_indrnn_forward.44} parent=112 // pred_check_branch
            %1507 = sbr.rel (0) target = $region117
          $region116: #{irednet_indrnn_forward.44} parent=112 // pred_region
            // Predicated region
            $region118: #{irednet_indrnn_forward.44} parent=116 // pred_check
              _
            $region119: #{irednet_indrnn_forward.44} parent=116 // pred_check_branch
              %1509 = sbr.rel (0) target = $region121
            $region120: #{irednet_indrnn_forward.44} parent=116 // pred_region
              // Predicated region
              $region133: #{irednet_indrnn_forward.44} parent=120 // pred_check
                _
              $region134: #{irednet_indrnn_forward.44} parent=120 // pred_check_branch
                %1531 = sbr.rel (0) target = $region136
              $region135: #{irednet_indrnn_forward.44} parent=120 // pred_region
                loop: start=0, step=1, limit=1
                $region137: #{irednet_indrnn_forward.44} parent=135 // loop_pre_header
                  _
                $region138: #{irednet_indrnn_forward.44} parent=135 // loop_header
                  %s1533 = sphi 0, %s1537
                  %p1534 = scmp.ge.s32.totalorder %s1533, 1
                  %s1538 = sphi %s1499, %s1499
                  %s1539 = sphi %s1505, %s1505
                $region139: #{irednet_indrnn_forward.44} parent=135 // loop_header_branch
                  %1536 = sbr.rel (%p1534) target = $region143
                $region140: #{irednet_indrnn_forward.44} parent=135 // loop_body
                  %v1540 = vld [vmem:[%s1538] sm:$0xff]
                  %1541 = vst [vmem:[%s1539] sm:$0xff] %v1540
                  %v1542 = vld [vmem:[%s1538 + $0x8] sm:$0xff]
                  %1543 = vst [vmem:[%s1539 + $0x8] sm:$0xff] %v1542
                  %v1544 = vld [vmem:[%s1538 + $0x10] sm:$0xff]
                  %1545 = vst [vmem:[%s1539 + $0x100] sm:$0xff] %v1544
                  %v1546 = vld [vmem:[%s1538 + $0x18] sm:$0xff]
                  %1547 = vst [vmem:[%s1539 + $0x108] sm:$0xff] %v1546
                $region141: #{irednet_indrnn_forward.44} parent=135 // loop_footer
                  %s1537 = sadd.s32 1, %s1533
                $region142: #{irednet_indrnn_forward.44} parent=135 // loop_footer_branch
                  %1532 = sbr.rel target = $region138
                $region143: #{irednet_indrnn_forward.44} parent=135 // loop_exit
                  _
              $region136: #{irednet_indrnn_forward.44} parent=120 // pred_fallthru
                _
              // Predicated region
              $region144: #{irednet_indrnn_forward.44} parent=120 // pred_check
                _
              $region145: #{irednet_indrnn_forward.44} parent=120 // pred_check_branch
                %1549 = sbr.rel target = $region147
              $region146: #{irednet_indrnn_forward.44} parent=120 // pred_region
                _
              $region147: #{irednet_indrnn_forward.44} parent=120 // pred_fallthru
                _
            $region121: #{irednet_indrnn_forward.44} parent=116 // pred_fallthru
              _
            // Predicated region
            $region122: #{irednet_indrnn_forward.44} parent=116 // pred_check
              _
            $region123: #{irednet_indrnn_forward.44} parent=116 // pred_check_branch
              %1511 = sbr.rel target = $region125
            $region124: #{irednet_indrnn_forward.44} parent=116 // pred_region
              %s1513 = ssub.s32 256, 1
              loop: start=0, step=1, limit=1
              $region126: #{irednet_indrnn_forward.44} parent=124 // loop_pre_header
                _
              $region127: #{irednet_indrnn_forward.44} parent=124 // loop_header
                %s1515 = sphi 0, %s1519
                %p1516 = scmp.ge.s32.totalorder %s1515, 1
                %s1520 = sphi %s1499, %s1499
                %s1521 = sphi %s1505, %s1505
              $region128: #{irednet_indrnn_forward.44} parent=124 // loop_header_branch
                %1518 = sbr.rel (%p1516) target = $region132
              $region129: #{irednet_indrnn_forward.44} parent=124 // loop_body
                %v1522 = vld [vmem:[%s1520] sm:%s1513]
                %1523 = vst [vmem:[%s1521] sm:%s1513] %v1522
                %v1524 = vld [vmem:[%s1520 + $0x8] sm:%s1513]
                %1525 = vst [vmem:[%s1521 + $0x8] sm:%s1513] %v1524
                %v1526 = vld [vmem:[%s1520 + $0x10] sm:%s1513]
                %1527 = vst [vmem:[%s1521 + $0x100] sm:%s1513] %v1526
                %v1528 = vld [vmem:[%s1520 + $0x18] sm:%s1513]
                %1529 = vst [vmem:[%s1521 + $0x108] sm:%s1513] %v1528
              $region130: #{irednet_indrnn_forward.44} parent=124 // loop_footer
                %s1519 = sadd.s32 1, %s1515
              $region131: #{irednet_indrnn_forward.44} parent=124 // loop_footer_branch
                %1514 = sbr.rel target = $region127
              $region132: #{irednet_indrnn_forward.44} parent=124 // loop_exit
                _
            $region125: #{irednet_indrnn_forward.44} parent=116 // pred_fallthru
              _
          $region117: #{irednet_indrnn_forward.44} parent=112 // pred_fallthru
            _
          %1550 = vnop
        $region113: #{irednet_indrnn_forward.44} parent=96 // pred_fallthru
          _
      $region97: #{irednet_indrnn_forward.44} parent=5 // pred_fallthru
        _
      %p1551 = scmp.le.s32.totalorder 2, %s11
      // Predicated region
      $region148: #{irednet_indrnn_forward.44} parent=5 // pred_check
        %p1552 = pneg %p1551
      $region149: #{irednet_indrnn_forward.44} parent=5 // pred_check_branch
        %1554 = sbr.rel (%p1552) target = $region151
      $region150: #{irednet_indrnn_forward.44} parent=5 // pred_region
        %s1555 = ssub.s32 %s11, 2
        // Predicated region
        $region152: #{irednet_indrnn_forward.44} parent=150 // pred_check
          %p1556 = pneg %p164
        $region153: #{irednet_indrnn_forward.44} parent=150 // pred_check_branch
          %1558 = sbr.rel (%p1556) target = $region155
        $region154: #{irednet_indrnn_forward.44} parent=150 // pred_region
          %s1559 = sand.u32 %s149, 1
          %s1560 = sand.u32 %s149, 1
          %s1561 = smul.addr %s1560, 32
          %s1562 = scalar_lea.vmem [#allocation5], %s1561
        $region155: #{irednet_indrnn_forward.44} parent=150 // pred_fallthru
          _
      $region151: #{irednet_indrnn_forward.44} parent=5 // pred_fallthru
        _
    $region6: #{irednet_indrnn_forward.44} parent=1 // loop_footer
      %s15 = sadd.s32 1, %s11
    $region7: #{irednet_indrnn_forward.44} parent=1 // loop_footer_branch
      %10 = sbr.rel target = $region3
    $region8: #{irednet_indrnn_forward.44} parent=1 // loop_exit
      _

</llo_original>
